<compile_context>
chip_gen: v5e
topology: v5e:2x2
jax: 0.10.0
libtpu: 0.0.40
codegen_flags: <defaults>
</compile_context>

<pallas_src>
import jax
import jax.numpy as jnp
from jax import lax
from jax.experimental import pallas as pl
from jax.experimental.pallas import tpu as pltpu

# MXU operand dtype (accumulation stays f32, elementwise math stays f32).
_MM_DTYPE = jnp.bfloat16


# ------------------------------ packing utils ------------------------------ #

def _round_up(x, m):
    return (x + m - 1) // m * m


def _pad2(a, rows, cols, dtype):
    """Zero-pad a 2-D array to (rows, cols) and cast."""
    out = jnp.zeros((rows, cols), dtype)
    return out.at[:a.shape[0], :a.shape[1]].set(a.astype(dtype))


def _pack_gru_weights(w3, rows_p, hp, dtype):
    # w3: (3, in_dim, H) stacked [reset, update, new], x @ W orientation.
    # Each gate zero-padded to hp lanes -> (rows_p, 3*hp), gate boundaries
    # land on 128-lane tile boundaries.
    return jnp.concatenate([_pad2(w3[g], rows_p, hp, dtype) for g in range(3)],
                           axis=1)


def _pack_gate_bias(b_ih, b_hh, hp):
    # b_*: (3, 1, H).  r/z gates: b_ih + b_hh pre-summed (both sit outside the
    # r-multiplication); n gate keeps b_ih on the input side, b_hh on the h side.
    segs = [b_ih[0] + b_hh[0], b_ih[1] + b_hh[1], b_ih[2]]
    b_g = jnp.concatenate([_pad2(s, 1, hp, jnp.float32) for s in segs], axis=1)
    b_hn = _pad2(b_hh[2], 1, hp, jnp.float32)
    return b_g, b_hn


# --------------------------------- wrapper ---------------------------------- #

def decoder_forward(encoded, h1, h2, h3, params, max_seq_length):
    B, D = encoded.shape
    H = h1.shape[-1]
    F_out = params["w_out"].shape[-1]
    T = int(max_seq_length)
    eps = 1e-5

    # Padded dims: sublane multiple for batch, lane multiples elsewhere.
    Bp = _round_up(max(B, 8), 8)
    Hp = _round_up(H, 128)
    Fp = _round_up(F_out, 128)
    Dp = _round_up(D, 128)

    # --- fold BatchNorm1d (eval mode) into per-feature scale/shift ---
    bn_scale = params["bn_gamma"] / jnp.sqrt(params["bn_var"] + eps)
    bn_shift = params["bn_beta"] - params["bn_mean"] * bn_scale

    # --- one lane-dense weight slab: 6 GRU matrices + fc_out, bf16 ---
    w_parts = []
    for l in (1, 2, 3):
        w_parts.append((f"w_ih{l}",
                        _pack_gru_weights(params[f"w_ih{l}"], Hp, Hp, _MM_DTYPE)))
        w_parts.append((f"w_hh{l}",
                        _pack_gru_weights(params[f"w_hh{l}"], Hp, Hp, _MM_DTYPE)))
    w_parts.append(("w_out", _pad2(params["w_out"], Hp, Fp, _MM_DTYPE)))
    woff, col = {}, 0
    for name, arr in w_parts:
        woff[name] = (col, arr.shape[1])
        col += arr.shape[1]
    w_slab = jnp.concatenate([a for _, a in w_parts], axis=1)      # (Hp, 18*Hp + Fp)

    # fc_input weight kept separate (contraction dim is Dp, not Hp).
    wfc_p = _pad2(params["w_fc_in"], Dp, Hp, _MM_DTYPE)

    # --- one bias / BN-vector slab, f32, all segment offsets 128-aligned ---
    bias_parts = [
        ("bn_scale", _pad2(bn_scale.reshape(1, D), 1, Dp, jnp.float32)),
        ("bn_shift", _pad2(bn_shift.reshape(1, D), 1, Dp, jnp.float32)),
        ("b_fc_in", _pad2(params["b_fc_in"].reshape(1, H), 1, Hp, jnp.float32)),
    ]
    for l in (1, 2, 3):
        b_g, b_hn = _pack_gate_bias(params[f"b_ih{l}"], params[f"b_hh{l}"], Hp)
        bias_parts.append((f"b_g{l}", b_g))
        bias_parts.append((f"b_hn{l}", b_hn))
    bias_parts.append(("b_out", _pad2(params["b_out"].reshape(1, F_out), 1, Fp,
                                      jnp.float32)))
    boff, col = {}, 0
    for name, arr in bias_parts:
        boff[name] = (col, arr.shape[1])
        col += arr.shape[1]
    bias_slab = jnp.concatenate([a for _, a in bias_parts], axis=1)  # (1, total)

    # --- padded activations / initial hidden states ---
    enc_p = _pad2(encoded, Bp, Dp, jnp.float32)
    h0_p = jnp.zeros((Bp, 3 * Hp), jnp.float32)
    h0_p = h0_p.at[:B, 0:H].set(h1.reshape(B, H).astype(jnp.float32))
    h0_p = h0_p.at[:B, Hp:Hp + H].set(h2.reshape(B, H).astype(jnp.float32))
    h0_p = h0_p.at[:B, 2 * Hp:2 * Hp + H].set(h3.reshape(B, H).astype(jnp.float32))

    # ------------------------------ kernel -------------------------------- #
    def kernel(enc_ref, h0_ref, wfc_ref, wslab_ref, bias_ref, out_ref, hout_ref):
        f32 = jnp.float32

        def mm(x, w):
            # MXU matmul: bf16 operands, f32 accumulation.
            return jnp.dot(x.astype(_MM_DTYPE), w, preferred_element_type=f32)

        def wview(name):                     # static ref view into the weight slab
            o, ww = woff[name]
            return wslab_ref.at[:, o:o + ww]

        def bval(name):                      # (1, width) f32 bias segment
            o, ww = boff[name]
            return bias_ref[:, o:o + ww]

        def gru_step(ig, h_prev, w_hh_v, b_hn_b):
            # ig: (Bp, 3Hp) input-side gates (r/z biases pre-summed, n keeps b_ih).
            hg = mm(h_prev, w_hh_v[...])                      # (Bp, 3Hp)
            rz = jax.nn.sigmoid(ig[:, :2 * Hp] + hg[:, :2 * Hp])
            r, z = rz[:, :Hp], rz[:, Hp:]
            n = jnp.tanh(ig[:, 2 * Hp:] + r * (hg[:, 2 * Hp:] + b_hn_b))
            return (1.0 - z) * n + z * h_prev

        # Static weight views (free).
        w_ih1_v, w_hh1_v = wview("w_ih1"), wview("w_hh1")
        w_ih2_v, w_hh2_v = wview("w_ih2"), wview("w_hh2")
        w_ih3_v, w_hh3_v = wview("w_ih3"), wview("w_hh3")
        w_out_v = wview("w_out")

        # Hoist broadcasts (JAX does not CSE broadcast_in_dim across the unroll).
        b_hn1 = jnp.broadcast_to(bval("b_hn1"), (Bp, Hp))
        b_hn2 = jnp.broadcast_to(bval("b_hn2"), (Bp, Hp))
        b_hn3 = jnp.broadcast_to(bval("b_hn3"), (Bp, Hp))
        b_g2 = jnp.broadcast_to(bval("b_g2"), (Bp, 3 * Hp))
        b_g3 = jnp.broadcast_to(bval("b_g3"), (Bp, 3 * Hp))
        b_out = jnp.broadcast_to(bval("b_out"), (Bp, Fp))

        # BatchNorm1d (folded) -> fc_input -> ReLU.
        x = enc_ref[...] * bval("bn_scale") + bval("bn_shift")        # (Bp, Dp)
        emb = jnp.maximum(mm(x, wfc_ref[...]) + bval("b_fc_in"), 0.0)  # (Bp, Hp)

        # GRU-1 input is the same embedding at every step -> input gates hoisted.
        ig1 = mm(emb, w_ih1_v[...]) + bval("b_g1")                     # (Bp, 3Hp)

        h1c = h0_ref[:, 0:Hp]
        h2c = h0_ref[:, Hp:2 * Hp]
        h3c = h0_ref[:, 2 * Hp:3 * Hp]

        # ---- wavefront over the three layers: iteration t runs
        #      layer-1 step t, layer-2 step t-1, layer-3 step t-2.
        # Static Python unroll (T+2 small) -> all slice offsets are static and
        # tile-aligned; every matmul in an iteration depends only on the
        # previous iteration's carry, so the six matmuls overlap on the MXU.
        for t in range(T + 2):
            l2_in = h1c   # layer-1 output at time t-1 (pre-update carry)
            l3_in = h2c   # layer-2 output at time t-2 (pre-update carry)
            if t < T:
                h1c = gru_step(ig1, h1c, w_hh1_v, b_hn1)
            if 1 <= t <= T:
                ig2 = mm(l2_in, w_ih2_v[...]) + b_g2
                h2c = gru_step(ig2, h2c, w_hh2_v, b_hn2)
            if t >= 2:
                ig3 = mm(l3_in, w_ih3_v[...]) + b_g3
                h3c = gru_step(ig3, h3c, w_hh3_v, b_hn3)
                s = t - 2
                # fc_out + sigmoid for step s; relu(sigmoid(x)) == sigmoid(x).
                o = jax.nn.sigmoid(mm(h3c, w_out_v[...]) + b_out)      # (Bp, Fp)
                out_ref[:, s * Fp:(s + 1) * Fp] = o

        hout_ref[:, 0:Hp] = h1c
        hout_ref[:, Hp:2 * Hp] = h2c
        hout_ref[:, 2 * Hp:3 * Hp] = h3c

    vmem = pl.BlockSpec(memory_space=pltpu.MemorySpace.VMEM)
    out_flat, hout = pl.pallas_call(
        kernel,
        out_shape=(
            jax.ShapeDtypeStruct((Bp, T * Fp), jnp.float32),
            jax.ShapeDtypeStruct((Bp, 3 * Hp), jnp.float32),
        ),
        in_specs=[vmem] * 5,
        out_specs=(vmem, vmem),
    )(enc_p, h0_p, wfc_p, w_slab, bias_slab)

    # Free reshape (no transpose) + tiny un-pad slices.
    out = out_flat.reshape(Bp, T, Fp)[:B, :, :F_out]
    h1o = hout[:B, 0:H][None]
    h2o = hout[:B, Hp:Hp + H][None]
    h3o = hout[:B, 2 * Hp:2 * Hp + H][None]
    return out, h1o, h2o, h3o


# ---------------------------- pure-JAX reference ---------------------------- #

def decoder_reference(encoded, h1, h2, h3, params, T, mm_dtype=jnp.float32):
    eps = 1e-5

    def mm(a, b):
        return jnp.dot(a.astype(mm_dtype), b.astype(mm_dtype),
                       preferred_element_type=jnp.float32)

    x = (encoded - params["bn_mean"]) / jnp.sqrt(params["bn_var"] + eps)
    x = x * params["bn_gamma"] + params["bn_beta"]
    emb = jax.nn.relu(mm(x, params["w_fc_in"]) + params["b_fc_in"])

    def gru(xseq, h0, wih, whh, bih, bhh):
        def step(h, x_t):
            r = jax.nn.sigmoid(mm(x_t, wih[0]) + bih[0, 0] + mm(h, whh[0]) + bhh[0, 0])
            z = jax.nn.sigmoid(mm(x_t, wih[1]) + bih[1, 0] + mm(h, whh[1]) + bhh[1, 0])
            n = jnp.tanh(mm(x_t, wih[2]) + bih[2, 0] + r * (mm(h, whh[2]) + bhh[2, 0]))
            hn = (1.0 - z) * n + z * h
            return hn, hn
        h_last, ys = lax.scan(step, h0, jnp.swapaxes(xseq, 0, 1))
        return jnp.swapaxes(ys, 0, 1), h_last

    emb_seq = jnp.repeat(emb[:, None, :], T, axis=1)
    o1, h1f = gru(emb_seq, h1[0], params["w_ih1"], params["w_hh1"],
                  params["b_ih1"], params["b_hh1"])
    o2, h2f = gru(o1, h2[0], params["w_ih2"], params["w_hh2"],
                  params["b_ih2"], params["b_hh2"])
    o3, h3f = gru(o2, h3[0], params["w_ih3"], params["w_hh3"],
                  params["b_ih3"], params["b_hh3"])
    out = jax.nn.relu(jax.nn.sigmoid(mm(o3, params["w_out"]) + params["b_out"]))
    return out, h1f[None], h2f[None], h3f[None]


# ----------------------------------- main ----------------------------------- #

if __name__ == "__main__":
    # Small shapes consistent with the module (the GRU-1 input is fc_input's
    # output, so input_size == hidden_n as in the default 100/100 config).
    B, D, H, F_out, T = 4, 32, 32, 12, 8

    key = jax.random.PRNGKey(0)
    ks = jax.random.split(key, 32)

    def nrm(k, shape, scale=0.2):
        return (scale * jax.random.normal(k, shape)).astype(jnp.float32)

    params = {
        "bn_gamma": 1.0 + nrm(ks[0], (D,), 0.1),
        "bn_beta":  nrm(ks[1], (D,), 0.1),
        "bn_mean":  nrm(ks[2], (D,), 0.1),
        "bn_var":   1.0 + 0.1 * jax.random.uniform(ks[3], (D,)).astype(jnp.float32),
        "w_fc_in":  nrm(ks[4], (D, H)),
        "b_fc_in":  nrm(ks[5], (H,)),
        "w_ih1": nrm(ks[6], (3, H, H)), "w_hh1": nrm(ks[7], (3, H, H)),
        "b_ih1": nrm(ks[8], (3, 1, H)), "b_hh1": nrm(ks[9], (3, 1, H)),
        "w_ih2": nrm(ks[10], (3, H, H)), "w_hh2": nrm(ks[11], (3, H, H)),
        "b_ih2": nrm(ks[12], (3, 1, H)), "b_hh2": nrm(ks[13], (3, 1, H)),
        "w_ih3": nrm(ks[14], (3, H, H)), "w_hh3": nrm(ks[15], (3, H, H)),
        "b_ih3": nrm(ks[16], (3, 1, H)), "b_hh3": nrm(ks[17], (3, 1, H)),
        "w_out": nrm(ks[18], (H, F_out)),
        "b_out": nrm(ks[19], (F_out,)),
    }

    encoded = jax.random.normal(ks[20], (B, D), dtype=jnp.float32)
    h1 = jnp.zeros((1, B, H), jnp.float32)
    h2 = jnp.zeros((1, B, H), jnp.float32)
    h3 = jnp.zeros((1, B, H), jnp.float32)

    out, h1o, h2o, h3o = jax.block_until_ready(
        decoder_forward(encoded, h1, h2, h3, params, T))

    # Compare against a reference that uses the same bf16 MXU-operand matmuls
    # (f32 accumulation / elementwise); after 3 layers x T steps of recurrence
    # the residual divergence is bf16-rounding-order noise, hence the 2e-2
    # tolerance instead of the f32-vs-f32 1e-4.
    r_out, r_h1, r_h2, r_h3 = decoder_reference(
        encoded, h1, h2, h3, params, T, mm_dtype=_MM_DTYPE)

    assert out.shape == (B, T, F_out)
    assert h1o.shape == (1, B, H) and h2o.shape == (1, B, H) and h3o.shape == (1, B, H)
    for a, b in ((out, r_out), (h1o, r_h1), (h2o, r_h2), (h3o, r_h3)):
        assert jnp.allclose(a, b, atol=2e-2, rtol=2e-2), float(jnp.max(jnp.abs(a - b)))

    print("KERNEL_OK")
</pallas_src>

<mosaic_0001>
module attributes {stable_mosaic.version = 11 : i64} {
  func.func @kernel(%arg0: memref<8x128xf32, #tpu.memory_space<vmem>>, %arg1: memref<8x384xf32, #tpu.memory_space<vmem>>, %arg2: memref<128x128xbf16, #tpu.memory_space<vmem>>, %arg3: memref<128x2432xbf16, #tpu.memory_space<vmem>>, %arg4: memref<1x2048xf32, #tpu.memory_space<vmem>>, %arg5: memref<8x1024xf32, #tpu.memory_space<vmem>>, %arg6: memref<8x384xf32, #tpu.memory_space<vmem>>) attributes {dimension_semantics = [], scalar_prefetch = 0 : i64, scratch_operands = 0 : i64, tpu.core_type = #tpu.core_type<tc>} {
    %c0 = arith.constant 0 : index
    %c768 = arith.constant 768 : index
    %0 = vector.load %arg4[%c0, %c768] : memref<1x2048xf32, #tpu.memory_space<vmem>>, vector<1x128xf32>
    %1 = vector.shape_cast %0 : vector<1x128xf32> to vector<1x128xf32>
    %2 = vector.broadcast %1 : vector<1x128xf32> to vector<8x128xf32>
    %c0_0 = arith.constant 0 : index
    %c1280 = arith.constant 1280 : index
    %3 = vector.load %arg4[%c0_0, %c1280] : memref<1x2048xf32, #tpu.memory_space<vmem>>, vector<1x128xf32>
    %4 = vector.shape_cast %3 : vector<1x128xf32> to vector<1x128xf32>
    %5 = vector.broadcast %4 : vector<1x128xf32> to vector<8x128xf32>
    %c0_1 = arith.constant 0 : index
    %c1792 = arith.constant 1792 : index
    %6 = vector.load %arg4[%c0_1, %c1792] : memref<1x2048xf32, #tpu.memory_space<vmem>>, vector<1x128xf32>
    %7 = vector.shape_cast %6 : vector<1x128xf32> to vector<1x128xf32>
    %8 = vector.broadcast %7 : vector<1x128xf32> to vector<8x128xf32>
    %c0_2 = arith.constant 0 : index
    %c896 = arith.constant 896 : index
    %9 = vector.load %arg4[%c0_2, %c896] : memref<1x2048xf32, #tpu.memory_space<vmem>>, vector<1x384xf32>
    %10 = vector.shape_cast %9 : vector<1x384xf32> to vector<1x384xf32>
    %11 = vector.broadcast %10 : vector<1x384xf32> to vector<8x384xf32>
    %c0_3 = arith.constant 0 : index
    %c1408 = arith.constant 1408 : index
    %12 = vector.load %arg4[%c0_3, %c1408] : memref<1x2048xf32, #tpu.memory_space<vmem>>, vector<1x384xf32>
    %13 = vector.shape_cast %12 : vector<1x384xf32> to vector<1x384xf32>
    %14 = vector.broadcast %13 : vector<1x384xf32> to vector<8x384xf32>
    %c0_4 = arith.constant 0 : index
    %c1920 = arith.constant 1920 : index
    %15 = vector.load %arg4[%c0_4, %c1920] : memref<1x2048xf32, #tpu.memory_space<vmem>>, vector<1x128xf32>
    %16 = vector.shape_cast %15 : vector<1x128xf32> to vector<1x128xf32>
    %17 = vector.broadcast %16 : vector<1x128xf32> to vector<8x128xf32>
    %c0_5 = arith.constant 0 : index
    %c0_6 = arith.constant 0 : index
    %18 = vector.load %arg0[%c0_5, %c0_6] : memref<8x128xf32, #tpu.memory_space<vmem>>, vector<8x128xf32>
    %c0_7 = arith.constant 0 : index
    %c0_8 = arith.constant 0 : index
    %19 = vector.load %arg4[%c0_7, %c0_8] : memref<1x2048xf32, #tpu.memory_space<vmem>>, vector<1x128xf32>
    %20 = vector.broadcast %19 : vector<1x128xf32> to vector<8x128xf32>
    %21 = arith.mulf %18, %20 : vector<8x128xf32>
    %c0_9 = arith.constant 0 : index
    %c128 = arith.constant 128 : index
    %22 = vector.load %arg4[%c0_9, %c128] : memref<1x2048xf32, #tpu.memory_space<vmem>>, vector<1x128xf32>
    %23 = vector.broadcast %22 : vector<1x128xf32> to vector<8x128xf32>
    %24 = arith.addf %21, %23 : vector<8x128xf32>
    %c0_10 = arith.constant 0 : index
    %c0_11 = arith.constant 0 : index
    %25 = vector.load %arg2[%c0_10, %c0_11] : memref<128x128xbf16, #tpu.memory_space<vmem>>, vector<128x128xbf16>
    %26 = arith.truncf %24 : vector<8x128xf32> to vector<8x128xbf16>
    %cst = arith.constant dense<0.000000e+00> : vector<8x128xf32>
    %27 = tpu.matmul %26, %25, %cst {dimension_numbers = #tpu.dot_dimension_numbers<[1], [0], [0], [1], [0, 0, 1, 1], [], []>} : vector<8x128xbf16>, vector<128x128xbf16>, vector<8x128xf32> -> vector<8x128xf32>
    %c0_12 = arith.constant 0 : index
    %c256 = arith.constant 256 : index
    %28 = vector.load %arg4[%c0_12, %c256] : memref<1x2048xf32, #tpu.memory_space<vmem>>, vector<1x128xf32>
    %29 = vector.broadcast %28 : vector<1x128xf32> to vector<8x128xf32>
    %30 = arith.addf %27, %29 : vector<8x128xf32>
    %cst_13 = arith.constant 0.000000e+00 : f32
    %31 = vector.broadcast %cst_13 : f32 to vector<8x128xf32>
    %32 = arith.maximumf %30, %31 : vector<8x128xf32>
    %c0_14 = arith.constant 0 : index
    %c0_15 = arith.constant 0 : index
    %33 = vector.load %arg3[%c0_14, %c0_15] : memref<128x2432xbf16, #tpu.memory_space<vmem>>, vector<128x384xbf16>
    %34 = arith.truncf %32 : vector<8x128xf32> to vector<8x128xbf16>
    %cst_16 = arith.constant dense<0.000000e+00> : vector<8x384xf32>
    %35 = tpu.matmul %34, %33, %cst_16 {dimension_numbers = #tpu.dot_dimension_numbers<[1], [0], [0], [1], [0, 0, 1, 1], [], []>} : vector<8x128xbf16>, vector<128x384xbf16>, vector<8x384xf32> -> vector<8x384xf32>
    %c0_17 = arith.constant 0 : index
    %c384 = arith.constant 384 : index
    %36 = vector.load %arg4[%c0_17, %c384] : memref<1x2048xf32, #tpu.memory_space<vmem>>, vector<1x384xf32>
    %37 = vector.broadcast %36 : vector<1x384xf32> to vector<8x384xf32>
    %38 = arith.addf %35, %37 : vector<8x384xf32>
    %c0_18 = arith.constant 0 : index
    %c0_19 = arith.constant 0 : index
    %39 = vector.load %arg1[%c0_18, %c0_19] : memref<8x384xf32, #tpu.memory_space<vmem>>, vector<8x128xf32>
    %c0_20 = arith.constant 0 : index
    %c128_21 = arith.constant 128 : index
    %40 = vector.load %arg1[%c0_20, %c128_21] : memref<8x384xf32, #tpu.memory_space<vmem>>, vector<8x128xf32>
    %c0_22 = arith.constant 0 : index
    %c256_23 = arith.constant 256 : index
    %41 = vector.load %arg1[%c0_22, %c256_23] : memref<8x384xf32, #tpu.memory_space<vmem>>, vector<8x128xf32>
    %c0_24 = arith.constant 0 : index
    %c384_25 = arith.constant 384 : index
    %42 = vector.load %arg3[%c0_24, %c384_25] : memref<128x2432xbf16, #tpu.memory_space<vmem>>, vector<128x384xbf16>
    %43 = arith.truncf %39 : vector<8x128xf32> to vector<8x128xbf16>
    %cst_26 = arith.constant dense<0.000000e+00> : vector<8x384xf32>
    %44 = tpu.matmul %43, %42, %cst_26 {dimension_numbers = #tpu.dot_dimension_numbers<[1], [0], [0], [1], [0, 0, 1, 1], [], []>} : vector<8x128xbf16>, vector<128x384xbf16>, vector<8x384xf32> -> vector<8x384xf32>
    %45 = vector.extract_strided_slice %38 {offsets = [0, 0], sizes = [8, 256], strides = [1, 1]} : vector<8x384xf32> to vector<8x256xf32>
    %46 = vector.extract_strided_slice %44 {offsets = [0, 0], sizes = [8, 256], strides = [1, 1]} : vector<8x384xf32> to vector<8x256xf32>
    %47 = arith.addf %45, %46 : vector<8x256xf32>
    %48 = arith.negf %47 : vector<8x256xf32>
    %49 = math.exp %48 : vector<8x256xf32>
    %cst_27 = arith.constant 1.000000e+00 : f32
    %50 = vector.broadcast %cst_27 : f32 to vector<8x256xf32>
    %51 = arith.addf %50, %49 : vector<8x256xf32>
    %52 = arith.divf %50, %51 : vector<8x256xf32>
    %53 = vector.extract_strided_slice %52 {offsets = [0, 0], sizes = [8, 128], strides = [1, 1]} : vector<8x256xf32> to vector<8x128xf32>
    %54 = vector.extract_strided_slice %52 {offsets = [0, 128], sizes = [8, 128], strides = [1, 1]} : vector<8x256xf32> to vector<8x128xf32>
    %55 = vector.extract_strided_slice %38 {offsets = [0, 256], sizes = [8, 128], strides = [1, 1]} : vector<8x384xf32> to vector<8x128xf32>
    %56 = vector.extract_strided_slice %44 {offsets = [0, 256], sizes = [8, 128], strides = [1, 1]} : vector<8x384xf32> to vector<8x128xf32>
    %57 = arith.addf %56, %2 : vector<8x128xf32>
    %58 = arith.mulf %53, %57 : vector<8x128xf32>
    %59 = arith.addf %55, %58 : vector<8x128xf32>
    %60 = math.tanh %59 : vector<8x128xf32>
    %cst_28 = arith.constant 1.000000e+00 : f32
    %61 = vector.broadcast %cst_28 : f32 to vector<8x128xf32>
    %62 = arith.subf %61, %54 : vector<8x128xf32>
    %63 = arith.mulf %62, %60 : vector<8x128xf32>
    %64 = arith.mulf %54, %39 : vector<8x128xf32>
    %65 = arith.addf %63, %64 : vector<8x128xf32>
    %c0_29 = arith.constant 0 : index
    %c384_30 = arith.constant 384 : index
    %66 = vector.load %arg3[%c0_29, %c384_30] : memref<128x2432xbf16, #tpu.memory_space<vmem>>, vector<128x384xbf16>
    %67 = arith.truncf %65 : vector<8x128xf32> to vector<8x128xbf16>
    %cst_31 = arith.constant dense<0.000000e+00> : vector<8x384xf32>
    %68 = tpu.matmul %67, %66, %cst_31 {dimension_numbers = #tpu.dot_dimension_numbers<[1], [0], [0], [1], [0, 0, 1, 1], [], []>} : vector<8x128xbf16>, vector<128x384xbf16>, vector<8x384xf32> -> vector<8x384xf32>
    %69 = vector.extract_strided_slice %38 {offsets = [0, 0], sizes = [8, 256], strides = [1, 1]} : vector<8x384xf32> to vector<8x256xf32>
    %70 = vector.extract_strided_slice %68 {offsets = [0, 0], sizes = [8, 256], strides = [1, 1]} : vector<8x384xf32> to vector<8x256xf32>
    %71 = arith.addf %69, %70 : vector<8x256xf32>
    %72 = arith.negf %71 : vector<8x256xf32>
    %73 = math.exp %72 : vector<8x256xf32>
    %cst_32 = arith.constant 1.000000e+00 : f32
    %74 = vector.broadcast %cst_32 : f32 to vector<8x256xf32>
    %75 = arith.addf %74, %73 : vector<8x256xf32>
    %76 = arith.divf %74, %75 : vector<8x256xf32>
    %77 = vector.extract_strided_slice %76 {offsets = [0, 0], sizes = [8, 128], strides = [1, 1]} : vector<8x256xf32> to vector<8x128xf32>
    %78 = vector.extract_strided_slice %76 {offsets = [0, 128], sizes = [8, 128], strides = [1, 1]} : vector<8x256xf32> to vector<8x128xf32>
    %79 = vector.extract_strided_slice %38 {offsets = [0, 256], sizes = [8, 128], strides = [1, 1]} : vector<8x384xf32> to vector<8x128xf32>
    %80 = vector.extract_strided_slice %68 {offsets = [0, 256], sizes = [8, 128], strides = [1, 1]} : vector<8x384xf32> to vector<8x128xf32>
    %81 = arith.addf %80, %2 : vector<8x128xf32>
    %82 = arith.mulf %77, %81 : vector<8x128xf32>
    %83 = arith.addf %79, %82 : vector<8x128xf32>
    %84 = math.tanh %83 : vector<8x128xf32>
    %cst_33 = arith.constant 1.000000e+00 : f32
    %85 = vector.broadcast %cst_33 : f32 to vector<8x128xf32>
    %86 = arith.subf %85, %78 : vector<8x128xf32>
    %87 = arith.mulf %86, %84 : vector<8x128xf32>
    %88 = arith.mulf %78, %65 : vector<8x128xf32>
    %89 = arith.addf %87, %88 : vector<8x128xf32>
    %c0_34 = arith.constant 0 : index
    %c768_35 = arith.constant 768 : index
    %90 = vector.load %arg3[%c0_34, %c768_35] : memref<128x2432xbf16, #tpu.memory_space<vmem>>, vector<128x384xbf16>
    %91 = arith.truncf %65 : vector<8x128xf32> to vector<8x128xbf16>
    %cst_36 = arith.constant dense<0.000000e+00> : vector<8x384xf32>
    %92 = tpu.matmul %91, %90, %cst_36 {dimension_numbers = #tpu.dot_dimension_numbers<[1], [0], [0], [1], [0, 0, 1, 1], [], []>} : vector<8x128xbf16>, vector<128x384xbf16>, vector<8x384xf32> -> vector<8x384xf32>
    %93 = arith.addf %92, %11 : vector<8x384xf32>
    %c0_37 = arith.constant 0 : index
    %c1152 = arith.constant 1152 : index
    %94 = vector.load %arg3[%c0_37, %c1152] : memref<128x2432xbf16, #tpu.memory_space<vmem>>, vector<128x384xbf16>
    %95 = arith.truncf %40 : vector<8x128xf32> to vector<8x128xbf16>
    %cst_38 = arith.constant dense<0.000000e+00> : vector<8x384xf32>
    %96 = tpu.matmul %95, %94, %cst_38 {dimension_numbers = #tpu.dot_dimension_numbers<[1], [0], [0], [1], [0, 0, 1, 1], [], []>} : vector<8x128xbf16>, vector<128x384xbf16>, vector<8x384xf32> -> vector<8x384xf32>
    %97 = vector.extract_strided_slice %93 {offsets = [0, 0], sizes = [8, 256], strides = [1, 1]} : vector<8x384xf32> to vector<8x256xf32>
    %98 = vector.extract_strided_slice %96 {offsets = [0, 0], sizes = [8, 256], strides = [1, 1]} : vector<8x384xf32> to vector<8x256xf32>
    %99 = arith.addf %97, %98 : vector<8x256xf32>
    %100 = arith.negf %99 : vector<8x256xf32>
    %101 = math.exp %100 : vector<8x256xf32>
    %cst_39 = arith.constant 1.000000e+00 : f32
    %102 = vector.broadcast %cst_39 : f32 to vector<8x256xf32>
    %103 = arith.addf %102, %101 : vector<8x256xf32>
    %104 = arith.divf %102, %103 : vector<8x256xf32>
    %105 = vector.extract_strided_slice %104 {offsets = [0, 0], sizes = [8, 128], strides = [1, 1]} : vector<8x256xf32> to vector<8x128xf32>
    %106 = vector.extract_strided_slice %104 {offsets = [0, 128], sizes = [8, 128], strides = [1, 1]} : vector<8x256xf32> to vector<8x128xf32>
    %107 = vector.extract_strided_slice %93 {offsets = [0, 256], sizes = [8, 128], strides = [1, 1]} : vector<8x384xf32> to vector<8x128xf32>
    %108 = vector.extract_strided_slice %96 {offsets = [0, 256], sizes = [8, 128], strides = [1, 1]} : vector<8x384xf32> to vector<8x128xf32>
    %109 = arith.addf %108, %5 : vector<8x128xf32>
    %110 = arith.mulf %105, %109 : vector<8x128xf32>
    %111 = arith.addf %107, %110 : vector<8x128xf32>
    %112 = math.tanh %111 : vector<8x128xf32>
    %cst_40 = arith.constant 1.000000e+00 : f32
    %113 = vector.broadcast %cst_40 : f32 to vector<8x128xf32>
    %114 = arith.subf %113, %106 : vector<8x128xf32>
    %115 = arith.mulf %114, %112 : vector<8x128xf32>
    %116 = arith.mulf %106, %40 : vector<8x128xf32>
    %117 = arith.addf %115, %116 : vector<8x128xf32>
    %c0_41 = arith.constant 0 : index
    %c384_42 = arith.constant 384 : index
    %118 = vector.load %arg3[%c0_41, %c384_42] : memref<128x2432xbf16, #tpu.memory_space<vmem>>, vector<128x384xbf16>
    %119 = arith.truncf %89 : vector<8x128xf32> to vector<8x128xbf16>
    %cst_43 = arith.constant dense<0.000000e+00> : vector<8x384xf32>
    %120 = tpu.matmul %119, %118, %cst_43 {dimension_numbers = #tpu.dot_dimension_numbers<[1], [0], [0], [1], [0, 0, 1, 1], [], []>} : vector<8x128xbf16>, vector<128x384xbf16>, vector<8x384xf32> -> vector<8x384xf32>
    %121 = vector.extract_strided_slice %38 {offsets = [0, 0], sizes = [8, 256], strides = [1, 1]} : vector<8x384xf32> to vector<8x256xf32>
    %122 = vector.extract_strided_slice %120 {offsets = [0, 0], sizes = [8, 256], strides = [1, 1]} : vector<8x384xf32> to vector<8x256xf32>
    %123 = arith.addf %121, %122 : vector<8x256xf32>
    %124 = arith.negf %123 : vector<8x256xf32>
    %125 = math.exp %124 : vector<8x256xf32>
    %cst_44 = arith.constant 1.000000e+00 : f32
    %126 = vector.broadcast %cst_44 : f32 to vector<8x256xf32>
    %127 = arith.addf %126, %125 : vector<8x256xf32>
    %128 = arith.divf %126, %127 : vector<8x256xf32>
    %129 = vector.extract_strided_slice %128 {offsets = [0, 0], sizes = [8, 128], strides = [1, 1]} : vector<8x256xf32> to vector<8x128xf32>
    %130 = vector.extract_strided_slice %128 {offsets = [0, 128], sizes = [8, 128], strides = [1, 1]} : vector<8x256xf32> to vector<8x128xf32>
    %131 = vector.extract_strided_slice %38 {offsets = [0, 256], sizes = [8, 128], strides = [1, 1]} : vector<8x384xf32> to vector<8x128xf32>
    %132 = vector.extract_strided_slice %120 {offsets = [0, 256], sizes = [8, 128], strides = [1, 1]} : vector<8x384xf32> to vector<8x128xf32>
    %133 = arith.addf %132, %2 : vector<8x128xf32>
    %134 = arith.mulf %129, %133 : vector<8x128xf32>
    %135 = arith.addf %131, %134 : vector<8x128xf32>
    %136 = math.tanh %135 : vector<8x128xf32>
    %cst_45 = arith.constant 1.000000e+00 : f32
    %137 = vector.broadcast %cst_45 : f32 to vector<8x128xf32>
    %138 = arith.subf %137, %130 : vector<8x128xf32>
    %139 = arith.mulf %138, %136 : vector<8x128xf32>
    %140 = arith.mulf %130, %89 : vector<8x128xf32>
    %141 = arith.addf %139, %140 : vector<8x128xf32>
    %c0_46 = arith.constant 0 : index
    %c768_47 = arith.constant 768 : index
    %142 = vector.load %arg3[%c0_46, %c768_47] : memref<128x2432xbf16, #tpu.memory_space<vmem>>, vector<128x384xbf16>
    %143 = arith.truncf %89 : vector<8x128xf32> to vector<8x128xbf16>
    %cst_48 = arith.constant dense<0.000000e+00> : vector<8x384xf32>
    %144 = tpu.matmul %143, %142, %cst_48 {dimension_numbers = #tpu.dot_dimension_numbers<[1], [0], [0], [1], [0, 0, 1, 1], [], []>} : vector<8x128xbf16>, vector<128x384xbf16>, vector<8x384xf32> -> vector<8x384xf32>
    %145 = arith.addf %144, %11 : vector<8x384xf32>
    %c0_49 = arith.constant 0 : index
    %c1152_50 = arith.constant 1152 : index
    %146 = vector.load %arg3[%c0_49, %c1152_50] : memref<128x2432xbf16, #tpu.memory_space<vmem>>, vector<128x384xbf16>
    %147 = arith.truncf %117 : vector<8x128xf32> to vector<8x128xbf16>
    %cst_51 = arith.constant dense<0.000000e+00> : vector<8x384xf32>
    %148 = tpu.matmul %147, %146, %cst_51 {dimension_numbers = #tpu.dot_dimension_numbers<[1], [0], [0], [1], [0, 0, 1, 1], [], []>} : vector<8x128xbf16>, vector<128x384xbf16>, vector<8x384xf32> -> vector<8x384xf32>
    %149 = vector.extract_strided_slice %145 {offsets = [0, 0], sizes = [8, 256], strides = [1, 1]} : vector<8x384xf32> to vector<8x256xf32>
    %150 = vector.extract_strided_slice %148 {offsets = [0, 0], sizes = [8, 256], strides = [1, 1]} : vector<8x384xf32> to vector<8x256xf32>
    %151 = arith.addf %149, %150 : vector<8x256xf32>
    %152 = arith.negf %151 : vector<8x256xf32>
    %153 = math.exp %152 : vector<8x256xf32>
    %cst_52 = arith.constant 1.000000e+00 : f32
    %154 = vector.broadcast %cst_52 : f32 to vector<8x256xf32>
    %155 = arith.addf %154, %153 : vector<8x256xf32>
    %156 = arith.divf %154, %155 : vector<8x256xf32>
    %157 = vector.extract_strided_slice %156 {offsets = [0, 0], sizes = [8, 128], strides = [1, 1]} : vector<8x256xf32> to vector<8x128xf32>
    %158 = vector.extract_strided_slice %156 {offsets = [0, 128], sizes = [8, 128], strides = [1, 1]} : vector<8x256xf32> to vector<8x128xf32>
    %159 = vector.extract_strided_slice %145 {offsets = [0, 256], sizes = [8, 128], strides = [1, 1]} : vector<8x384xf32> to vector<8x128xf32>
    %160 = vector.extract_strided_slice %148 {offsets = [0, 256], sizes = [8, 128], strides = [1, 1]} : vector<8x384xf32> to vector<8x128xf32>
    %161 = arith.addf %160, %5 : vector<8x128xf32>
    %162 = arith.mulf %157, %161 : vector<8x128xf32>
    %163 = arith.addf %159, %162 : vector<8x128xf32>
    %164 = math.tanh %163 : vector<8x128xf32>
    %cst_53 = arith.constant 1.000000e+00 : f32
    %165 = vector.broadcast %cst_53 : f32 to vector<8x128xf32>
    %166 = arith.subf %165, %158 : vector<8x128xf32>
    %167 = arith.mulf %166, %164 : vector<8x128xf32>
    %168 = arith.mulf %158, %117 : vector<8x128xf32>
    %169 = arith.addf %167, %168 : vector<8x128xf32>
    %c0_54 = arith.constant 0 : index
    %c1536 = arith.constant 1536 : index
    %170 = vector.load %arg3[%c0_54, %c1536] : memref<128x2432xbf16, #tpu.memory_space<vmem>>, vector<128x384xbf16>
    %171 = arith.truncf %117 : vector<8x128xf32> to vector<8x128xbf16>
    %cst_55 = arith.constant dense<0.000000e+00> : vector<8x384xf32>
    %172 = tpu.matmul %171, %170, %cst_55 {dimension_numbers = #tpu.dot_dimension_numbers<[1], [0], [0], [1], [0, 0, 1, 1], [], []>} : vector<8x128xbf16>, vector<128x384xbf16>, vector<8x384xf32> -> vector<8x384xf32>
    %173 = arith.addf %172, %14 : vector<8x384xf32>
    %c0_56 = arith.constant 0 : index
    %c1920_57 = arith.constant 1920 : index
    %174 = vector.load %arg3[%c0_56, %c1920_57] : memref<128x2432xbf16, #tpu.memory_space<vmem>>, vector<128x384xbf16>
    %175 = arith.truncf %41 : vector<8x128xf32> to vector<8x128xbf16>
    %cst_58 = arith.constant dense<0.000000e+00> : vector<8x384xf32>
    %176 = tpu.matmul %175, %174, %cst_58 {dimension_numbers = #tpu.dot_dimension_numbers<[1], [0], [0], [1], [0, 0, 1, 1], [], []>} : vector<8x128xbf16>, vector<128x384xbf16>, vector<8x384xf32> -> vector<8x384xf32>
    %177 = vector.extract_strided_slice %173 {offsets = [0, 0], sizes = [8, 256], strides = [1, 1]} : vector<8x384xf32> to vector<8x256xf32>
    %178 = vector.extract_strided_slice %176 {offsets = [0, 0], sizes = [8, 256], strides = [1, 1]} : vector<8x384xf32> to vector<8x256xf32>
    %179 = arith.addf %177, %178 : vector<8x256xf32>
    %180 = arith.negf %179 : vector<8x256xf32>
    %181 = math.exp %180 : vector<8x256xf32>
    %cst_59 = arith.constant 1.000000e+00 : f32
    %182 = vector.broadcast %cst_59 : f32 to vector<8x256xf32>
    %183 = arith.addf %182, %181 : vector<8x256xf32>
    %184 = arith.divf %182, %183 : vector<8x256xf32>
    %185 = vector.extract_strided_slice %184 {offsets = [0, 0], sizes = [8, 128], strides = [1, 1]} : vector<8x256xf32> to vector<8x128xf32>
    %186 = vector.extract_strided_slice %184 {offsets = [0, 128], sizes = [8, 128], strides = [1, 1]} : vector<8x256xf32> to vector<8x128xf32>
    %187 = vector.extract_strided_slice %173 {offsets = [0, 256], sizes = [8, 128], strides = [1, 1]} : vector<8x384xf32> to vector<8x128xf32>
    %188 = vector.extract_strided_slice %176 {offsets = [0, 256], sizes = [8, 128], strides = [1, 1]} : vector<8x384xf32> to vector<8x128xf32>
    %189 = arith.addf %188, %8 : vector<8x128xf32>
    %190 = arith.mulf %185, %189 : vector<8x128xf32>
    %191 = arith.addf %187, %190 : vector<8x128xf32>
    %192 = math.tanh %191 : vector<8x128xf32>
    %cst_60 = arith.constant 1.000000e+00 : f32
    %193 = vector.broadcast %cst_60 : f32 to vector<8x128xf32>
    %194 = arith.subf %193, %186 : vector<8x128xf32>
    %195 = arith.mulf %194, %192 : vector<8x128xf32>
    %196 = arith.mulf %186, %41 : vector<8x128xf32>
    %197 = arith.addf %195, %196 : vector<8x128xf32>
    %c0_61 = arith.constant 0 : index
    %c2304 = arith.constant 2304 : index
    %198 = vector.load %arg3[%c0_61, %c2304] : memref<128x2432xbf16, #tpu.memory_space<vmem>>, vector<128x128xbf16>
    %199 = arith.truncf %197 : vector<8x128xf32> to vector<8x128xbf16>
    %cst_62 = arith.constant dense<0.000000e+00> : vector<8x128xf32>
    %200 = tpu.matmul %199, %198, %cst_62 {dimension_numbers = #tpu.dot_dimension_numbers<[1], [0], [0], [1], [0, 0, 1, 1], [], []>} : vector<8x128xbf16>, vector<128x128xbf16>, vector<8x128xf32> -> vector<8x128xf32>
    %201 = arith.addf %200, %17 : vector<8x128xf32>
    %202 = arith.negf %201 : vector<8x128xf32>
    %203 = math.exp %202 : vector<8x128xf32>
    %cst_63 = arith.constant 1.000000e+00 : f32
    %204 = vector.broadcast %cst_63 : f32 to vector<8x128xf32>
    %205 = arith.addf %204, %203 : vector<8x128xf32>
    %206 = arith.divf %204, %205 : vector<8x128xf32>
    %c0_64 = arith.constant 0 : index
    %c0_65 = arith.constant 0 : index
    %207 = vector.load %arg5[%c0_64, %c0_65] : memref<8x1024xf32, #tpu.memory_space<vmem>>, vector<8x128xf32>
    tpu.vector_store %arg5[%c0_64, %c0_65], %206 {strides = array<i32>} : memref<8x1024xf32, #tpu.memory_space<vmem>>, vector<8x128xf32>,
    %c0_66 = arith.constant 0 : index
    %c384_67 = arith.constant 384 : index
    %208 = vector.load %arg3[%c0_66, %c384_67] : memref<128x2432xbf16, #tpu.memory_space<vmem>>, vector<128x384xbf16>
    %209 = arith.truncf %141 : vector<8x128xf32> to vector<8x128xbf16>
    %cst_68 = arith.constant dense<0.000000e+00> : vector<8x384xf32>
    %210 = tpu.matmul %209, %208, %cst_68 {dimension_numbers = #tpu.dot_dimension_numbers<[1], [0], [0], [1], [0, 0, 1, 1], [], []>} : vector<8x128xbf16>, vector<128x384xbf16>, vector<8x384xf32> -> vector<8x384xf32>
    %211 = vector.extract_strided_slice %38 {offsets = [0, 0], sizes = [8, 256], strides = [1, 1]} : vector<8x384xf32> to vector<8x256xf32>
    %212 = vector.extract_strided_slice %210 {offsets = [0, 0], sizes = [8, 256], strides = [1, 1]} : vector<8x384xf32> to vector<8x256xf32>
    %213 = arith.addf %211, %212 : vector<8x256xf32>
    %214 = arith.negf %213 : vector<8x256xf32>
    %215 = math.exp %214 : vector<8x256xf32>
    %cst_69 = arith.constant 1.000000e+00 : f32
    %216 = vector.broadcast %cst_69 : f32 to vector<8x256xf32>
    %217 = arith.addf %216, %215 : vector<8x256xf32>
    %218 = arith.divf %216, %217 : vector<8x256xf32>
    %219 = vector.extract_strided_slice %218 {offsets = [0, 0], sizes = [8, 128], strides = [1, 1]} : vector<8x256xf32> to vector<8x128xf32>
    %220 = vector.extract_strided_slice %218 {offsets = [0, 128], sizes = [8, 128], strides = [1, 1]} : vector<8x256xf32> to vector<8x128xf32>
    %221 = vector.extract_strided_slice %38 {offsets = [0, 256], sizes = [8, 128], strides = [1, 1]} : vector<8x384xf32> to vector<8x128xf32>
    %222 = vector.extract_strided_slice %210 {offsets = [0, 256], sizes = [8, 128], strides = [1, 1]} : vector<8x384xf32> to vector<8x128xf32>
    %223 = arith.addf %222, %2 : vector<8x128xf32>
    %224 = arith.mulf %219, %223 : vector<8x128xf32>
    %225 = arith.addf %221, %224 : vector<8x128xf32>
    %226 = math.tanh %225 : vector<8x128xf32>
    %cst_70 = arith.constant 1.000000e+00 : f32
    %227 = vector.broadcast %cst_70 : f32 to vector<8x128xf32>
    %228 = arith.subf %227, %220 : vector<8x128xf32>
    %229 = arith.mulf %228, %226 : vector<8x128xf32>
    %230 = arith.mulf %220, %141 : vector<8x128xf32>
    %231 = arith.addf %229, %230 : vector<8x128xf32>
    %c0_71 = arith.constant 0 : index
    %c768_72 = arith.constant 768 : index
    %232 = vector.load %arg3[%c0_71, %c768_72] : memref<128x2432xbf16, #tpu.memory_space<vmem>>, vector<128x384xbf16>
    %233 = arith.truncf %141 : vector<8x128xf32> to vector<8x128xbf16>
    %cst_73 = arith.constant dense<0.000000e+00> : vector<8x384xf32>
    %234 = tpu.matmul %233, %232, %cst_73 {dimension_numbers = #tpu.dot_dimension_numbers<[1], [0], [0], [1], [0, 0, 1, 1], [], []>} : vector<8x128xbf16>, vector<128x384xbf16>, vector<8x384xf32> -> vector<8x384xf32>
    %235 = arith.addf %234, %11 : vector<8x384xf32>
    %c0_74 = arith.constant 0 : index
    %c1152_75 = arith.constant 1152 : index
    %236 = vector.load %arg3[%c0_74, %c1152_75] : memref<128x2432xbf16, #tpu.memory_space<vmem>>, vector<128x384xbf16>
    %237 = arith.truncf %169 : vector<8x128xf32> to vector<8x128xbf16>
    %cst_76 = arith.constant dense<0.000000e+00> : vector<8x384xf32>
    %238 = tpu.matmul %237, %236, %cst_76 {dimension_numbers = #tpu.dot_dimension_numbers<[1], [0], [0], [1], [0, 0, 1, 1], [], []>} : vector<8x128xbf16>, vector<128x384xbf16>, vector<8x384xf32> -> vector<8x384xf32>
    %239 = vector.extract_strided_slice %235 {offsets = [0, 0], sizes = [8, 256], strides = [1, 1]} : vector<8x384xf32> to vector<8x256xf32>
    %240 = vector.extract_strided_slice %238 {offsets = [0, 0], sizes = [8, 256], strides = [1, 1]} : vector<8x384xf32> to vector<8x256xf32>
    %241 = arith.addf %239, %240 : vector<8x256xf32>
    %242 = arith.negf %241 : vector<8x256xf32>
    %243 = math.exp %242 : vector<8x256xf32>
    %cst_77 = arith.constant 1.000000e+00 : f32
    %244 = vector.broadcast %cst_77 : f32 to vector<8x256xf32>
    %245 = arith.addf %244, %243 : vector<8x256xf32>
    %246 = arith.divf %244, %245 : vector<8x256xf32>
    %247 = vector.extract_strided_slice %246 {offsets = [0, 0], sizes = [8, 128], strides = [1, 1]} : vector<8x256xf32> to vector<8x128xf32>
    %248 = vector.extract_strided_slice %246 {offsets = [0, 128], sizes = [8, 128], strides = [1, 1]} : vector<8x256xf32> to vector<8x128xf32>
    %249 = vector.extract_strided_slice %235 {offsets = [0, 256], sizes = [8, 128], strides = [1, 1]} : vector<8x384xf32> to vector<8x128xf32>
    %250 = vector.extract_strided_slice %238 {offsets = [0, 256], sizes = [8, 128], strides = [1, 1]} : vector<8x384xf32> to vector<8x128xf32>
    %251 = arith.addf %250, %5 : vector<8x128xf32>
    %252 = arith.mulf %247, %251 : vector<8x128xf32>
    %253 = arith.addf %249, %252 : vector<8x128xf32>
    %254 = math.tanh %253 : vector<8x128xf32>
    %cst_78 = arith.constant 1.000000e+00 : f32
    %255 = vector.broadcast %cst_78 : f32 to vector<8x128xf32>
    %256 = arith.subf %255, %248 : vector<8x128xf32>
    %257 = arith.mulf %256, %254 : vector<8x128xf32>
    %258 = arith.mulf %248, %169 : vector<8x128xf32>
    %259 = arith.addf %257, %258 : vector<8x128xf32>
    %c0_79 = arith.constant 0 : index
    %c1536_80 = arith.constant 1536 : index
    %260 = vector.load %arg3[%c0_79, %c1536_80] : memref<128x2432xbf16, #tpu.memory_space<vmem>>, vector<128x384xbf16>
    %261 = arith.truncf %169 : vector<8x128xf32> to vector<8x128xbf16>
    %cst_81 = arith.constant dense<0.000000e+00> : vector<8x384xf32>
    %262 = tpu.matmul %261, %260, %cst_81 {dimension_numbers = #tpu.dot_dimension_numbers<[1], [0], [0], [1], [0, 0, 1, 1], [], []>} : vector<8x128xbf16>, vector<128x384xbf16>, vector<8x384xf32> -> vector<8x384xf32>
    %263 = arith.addf %262, %14 : vector<8x384xf32>
    %c0_82 = arith.constant 0 : index
    %c1920_83 = arith.constant 1920 : index
    %264 = vector.load %arg3[%c0_82, %c1920_83] : memref<128x2432xbf16, #tpu.memory_space<vmem>>, vector<128x384xbf16>
    %265 = arith.truncf %197 : vector<8x128xf32> to vector<8x128xbf16>
    %cst_84 = arith.constant dense<0.000000e+00> : vector<8x384xf32>
    %266 = tpu.matmul %265, %264, %cst_84 {dimension_numbers = #tpu.dot_dimension_numbers<[1], [0], [0], [1], [0, 0, 1, 1], [], []>} : vector<8x128xbf16>, vector<128x384xbf16>, vector<8x384xf32> -> vector<8x384xf32>
    %267 = vector.extract_strided_slice %263 {offsets = [0, 0], sizes = [8, 256], strides = [1, 1]} : vector<8x384xf32> to vector<8x256xf32>
    %268 = vector.extract_strided_slice %266 {offsets = [0, 0], sizes = [8, 256], strides = [1, 1]} : vector<8x384xf32> to vector<8x256xf32>
    %269 = arith.addf %267, %268 : vector<8x256xf32>
    %270 = arith.negf %269 : vector<8x256xf32>
    %271 = math.exp %270 : vector<8x256xf32>
    %cst_85 = arith.constant 1.000000e+00 : f32
    %272 = vector.broadcast %cst_85 : f32 to vector<8x256xf32>
    %273 = arith.addf %272, %271 : vector<8x256xf32>
    %274 = arith.divf %272, %273 : vector<8x256xf32>
    %275 = vector.extract_strided_slice %274 {offsets = [0, 0], sizes = [8, 128], strides = [1, 1]} : vector<8x256xf32> to vector<8x128xf32>
    %276 = vector.extract_strided_slice %274 {offsets = [0, 128], sizes = [8, 128], strides = [1, 1]} : vector<8x256xf32> to vector<8x128xf32>
    %277 = vector.extract_strided_slice %263 {offsets = [0, 256], sizes = [8, 128], strides = [1, 1]} : vector<8x384xf32> to vector<8x128xf32>
    %278 = vector.extract_strided_slice %266 {offsets = [0, 256], sizes = [8, 128], strides = [1, 1]} : vector<8x384xf32> to vector<8x128xf32>
    %279 = arith.addf %278, %8 : vector<8x128xf32>
    %280 = arith.mulf %275, %279 : vector<8x128xf32>
    %281 = arith.addf %277, %280 : vector<8x128xf32>
    %282 = math.tanh %281 : vector<8x128xf32>
    %cst_86 = arith.constant 1.000000e+00 : f32
    %283 = vector.broadcast %cst_86 : f32 to vector<8x128xf32>
    %284 = arith.subf %283, %276 : vector<8x128xf32>
    %285 = arith.mulf %284, %282 : vector<8x128xf32>
    %286 = arith.mulf %276, %197 : vector<8x128xf32>
    %287 = arith.addf %285, %286 : vector<8x128xf32>
    %c0_87 = arith.constant 0 : index
    %c2304_88 = arith.constant 2304 : index
    %288 = vector.load %arg3[%c0_87, %c2304_88] : memref<128x2432xbf16, #tpu.memory_space<vmem>>, vector<128x128xbf16>
    %289 = arith.truncf %287 : vector<8x128xf32> to vector<8x128xbf16>
    %cst_89 = arith.constant dense<0.000000e+00> : vector<8x128xf32>
    %290 = tpu.matmul %289, %288, %cst_89 {dimension_numbers = #tpu.dot_dimension_numbers<[1], [0], [0], [1], [0, 0, 1, 1], [], []>} : vector<8x128xbf16>, vector<128x128xbf16>, vector<8x128xf32> -> vector<8x128xf32>
    %291 = arith.addf %290, %17 : vector<8x128xf32>
    %292 = arith.negf %291 : vector<8x128xf32>
    %293 = math.exp %292 : vector<8x128xf32>
    %cst_90 = arith.constant 1.000000e+00 : f32
    %294 = vector.broadcast %cst_90 : f32 to vector<8x128xf32>
    %295 = arith.addf %294, %293 : vector<8x128xf32>
    %296 = arith.divf %294, %295 : vector<8x128xf32>
    %c0_91 = arith.constant 0 : index
    %c128_92 = arith.constant 128 : index
    %297 = vector.load %arg5[%c0_91, %c128_92] : memref<8x1024xf32, #tpu.memory_space<vmem>>, vector<8x128xf32>
    tpu.vector_store %arg5[%c0_91, %c128_92], %296 {strides = array<i32>} : memref<8x1024xf32, #tpu.memory_space<vmem>>, vector<8x128xf32>,
    %c0_93 = arith.constant 0 : index
    %c384_94 = arith.constant 384 : index
    %298 = vector.load %arg3[%c0_93, %c384_94] : memref<128x2432xbf16, #tpu.memory_space<vmem>>, vector<128x384xbf16>
    %299 = arith.truncf %231 : vector<8x128xf32> to vector<8x128xbf16>
    %cst_95 = arith.constant dense<0.000000e+00> : vector<8x384xf32>
    %300 = tpu.matmul %299, %298, %cst_95 {dimension_numbers = #tpu.dot_dimension_numbers<[1], [0], [0], [1], [0, 0, 1, 1], [], []>} : vector<8x128xbf16>, vector<128x384xbf16>, vector<8x384xf32> -> vector<8x384xf32>
    %301 = vector.extract_strided_slice %38 {offsets = [0, 0], sizes = [8, 256], strides = [1, 1]} : vector<8x384xf32> to vector<8x256xf32>
    %302 = vector.extract_strided_slice %300 {offsets = [0, 0], sizes = [8, 256], strides = [1, 1]} : vector<8x384xf32> to vector<8x256xf32>
    %303 = arith.addf %301, %302 : vector<8x256xf32>
    %304 = arith.negf %303 : vector<8x256xf32>
    %305 = math.exp %304 : vector<8x256xf32>
    %cst_96 = arith.constant 1.000000e+00 : f32
    %306 = vector.broadcast %cst_96 : f32 to vector<8x256xf32>
    %307 = arith.addf %306, %305 : vector<8x256xf32>
    %308 = arith.divf %306, %307 : vector<8x256xf32>
    %309 = vector.extract_strided_slice %308 {offsets = [0, 0], sizes = [8, 128], strides = [1, 1]} : vector<8x256xf32> to vector<8x128xf32>
    %310 = vector.extract_strided_slice %308 {offsets = [0, 128], sizes = [8, 128], strides = [1, 1]} : vector<8x256xf32> to vector<8x128xf32>
    %311 = vector.extract_strided_slice %38 {offsets = [0, 256], sizes = [8, 128], strides = [1, 1]} : vector<8x384xf32> to vector<8x128xf32>
    %312 = vector.extract_strided_slice %300 {offsets = [0, 256], sizes = [8, 128], strides = [1, 1]} : vector<8x384xf32> to vector<8x128xf32>
    %313 = arith.addf %312, %2 : vector<8x128xf32>
    %314 = arith.mulf %309, %313 : vector<8x128xf32>
    %315 = arith.addf %311, %314 : vector<8x128xf32>
    %316 = math.tanh %315 : vector<8x128xf32>
    %cst_97 = arith.constant 1.000000e+00 : f32
    %317 = vector.broadcast %cst_97 : f32 to vector<8x128xf32>
    %318 = arith.subf %317, %310 : vector<8x128xf32>
    %319 = arith.mulf %318, %316 : vector<8x128xf32>
    %320 = arith.mulf %310, %231 : vector<8x128xf32>
    %321 = arith.addf %319, %320 : vector<8x128xf32>
    %c0_98 = arith.constant 0 : index
    %c768_99 = arith.constant 768 : index
    %322 = vector.load %arg3[%c0_98, %c768_99] : memref<128x2432xbf16, #tpu.memory_space<vmem>>, vector<128x384xbf16>
    %323 = arith.truncf %231 : vector<8x128xf32> to vector<8x128xbf16>
    %cst_100 = arith.constant dense<0.000000e+00> : vector<8x384xf32>
    %324 = tpu.matmul %323, %322, %cst_100 {dimension_numbers = #tpu.dot_dimension_numbers<[1], [0], [0], [1], [0, 0, 1, 1], [], []>} : vector<8x128xbf16>, vector<128x384xbf16>, vector<8x384xf32> -> vector<8x384xf32>
    %325 = arith.addf %324, %11 : vector<8x384xf32>
    %c0_101 = arith.constant 0 : index
    %c1152_102 = arith.constant 1152 : index
    %326 = vector.load %arg3[%c0_101, %c1152_102] : memref<128x2432xbf16, #tpu.memory_space<vmem>>, vector<128x384xbf16>
    %327 = arith.truncf %259 : vector<8x128xf32> to vector<8x128xbf16>
    %cst_103 = arith.constant dense<0.000000e+00> : vector<8x384xf32>
    %328 = tpu.matmul %327, %326, %cst_103 {dimension_numbers = #tpu.dot_dimension_numbers<[1], [0], [0], [1], [0, 0, 1, 1], [], []>} : vector<8x128xbf16>, vector<128x384xbf16>, vector<8x384xf32> -> vector<8x384xf32>
    %329 = vector.extract_strided_slice %325 {offsets = [0, 0], sizes = [8, 256], strides = [1, 1]} : vector<8x384xf32> to vector<8x256xf32>
    %330 = vector.extract_strided_slice %328 {offsets = [0, 0], sizes = [8, 256], strides = [1, 1]} : vector<8x384xf32> to vector<8x256xf32>
    %331 = arith.addf %329, %330 : vector<8x256xf32>
    %332 = arith.negf %331 : vector<8x256xf32>
    %333 = math.exp %332 : vector<8x256xf32>
    %cst_104 = arith.constant 1.000000e+00 : f32
    %334 = vector.broadcast %cst_104 : f32 to vector<8x256xf32>
    %335 = arith.addf %334, %333 : vector<8x256xf32>
    %336 = arith.divf %334, %335 : vector<8x256xf32>
    %337 = vector.extract_strided_slice %336 {offsets = [0, 0], sizes = [8, 128], strides = [1, 1]} : vector<8x256xf32> to vector<8x128xf32>
    %338 = vector.extract_strided_slice %336 {offsets = [0, 128], sizes = [8, 128], strides = [1, 1]} : vector<8x256xf32> to vector<8x128xf32>
    %339 = vector.extract_strided_slice %325 {offsets = [0, 256], sizes = [8, 128], strides = [1, 1]} : vector<8x384xf32> to vector<8x128xf32>
    %340 = vector.extract_strided_slice %328 {offsets = [0, 256], sizes = [8, 128], strides = [1, 1]} : vector<8x384xf32> to vector<8x128xf32>
    %341 = arith.addf %340, %5 : vector<8x128xf32>
    %342 = arith.mulf %337, %341 : vector<8x128xf32>
    %343 = arith.addf %339, %342 : vector<8x128xf32>
    %344 = math.tanh %343 : vector<8x128xf32>
    %cst_105 = arith.constant 1.000000e+00 : f32
    %345 = vector.broadcast %cst_105 : f32 to vector<8x128xf32>
    %346 = arith.subf %345, %338 : vector<8x128xf32>
    %347 = arith.mulf %346, %344 : vector<8x128xf32>
    %348 = arith.mulf %338, %259 : vector<8x128xf32>
    %349 = arith.addf %347, %348 : vector<8x128xf32>
    %c0_106 = arith.constant 0 : index
    %c1536_107 = arith.constant 1536 : index
    %350 = vector.load %arg3[%c0_106, %c1536_107] : memref<128x2432xbf16, #tpu.memory_space<vmem>>, vector<128x384xbf16>
    %351 = arith.truncf %259 : vector<8x128xf32> to vector<8x128xbf16>
    %cst_108 = arith.constant dense<0.000000e+00> : vector<8x384xf32>
    %352 = tpu.matmul %351, %350, %cst_108 {dimension_numbers = #tpu.dot_dimension_numbers<[1], [0], [0], [1], [0, 0, 1, 1], [], []>} : vector<8x128xbf16>, vector<128x384xbf16>, vector<8x384xf32> -> vector<8x384xf32>
    %353 = arith.addf %352, %14 : vector<8x384xf32>
    %c0_109 = arith.constant 0 : index
    %c1920_110 = arith.constant 1920 : index
    %354 = vector.load %arg3[%c0_109, %c1920_110] : memref<128x2432xbf16, #tpu.memory_space<vmem>>, vector<128x384xbf16>
    %355 = arith.truncf %287 : vector<8x128xf32> to vector<8x128xbf16>
    %cst_111 = arith.constant dense<0.000000e+00> : vector<8x384xf32>
    %356 = tpu.matmul %355, %354, %cst_111 {dimension_numbers = #tpu.dot_dimension_numbers<[1], [0], [0], [1], [0, 0, 1, 1], [], []>} : vector<8x128xbf16>, vector<128x384xbf16>, vector<8x384xf32> -> vector<8x384xf32>
    %357 = vector.extract_strided_slice %353 {offsets = [0, 0], sizes = [8, 256], strides = [1, 1]} : vector<8x384xf32> to vector<8x256xf32>
    %358 = vector.extract_strided_slice %356 {offsets = [0, 0], sizes = [8, 256], strides = [1, 1]} : vector<8x384xf32> to vector<8x256xf32>
    %359 = arith.addf %357, %358 : vector<8x256xf32>
    %360 = arith.negf %359 : vector<8x256xf32>
    %361 = math.exp %360 : vector<8x256xf32>
    %cst_112 = arith.constant 1.000000e+00 : f32
    %362 = vector.broadcast %cst_112 : f32 to vector<8x256xf32>
    %363 = arith.addf %362, %361 : vector<8x256xf32>
    %364 = arith.divf %362, %363 : vector<8x256xf32>
    %365 = vector.extract_strided_slice %364 {offsets = [0, 0], sizes = [8, 128], strides = [1, 1]} : vector<8x256xf32> to vector<8x128xf32>
    %366 = vector.extract_strided_slice %364 {offsets = [0, 128], sizes = [8, 128], strides = [1, 1]} : vector<8x256xf32> to vector<8x128xf32>
    %367 = vector.extract_strided_slice %353 {offsets = [0, 256], sizes = [8, 128], strides = [1, 1]} : vector<8x384xf32> to vector<8x128xf32>
    %368 = vector.extract_strided_slice %356 {offsets = [0, 256], sizes = [8, 128], strides = [1, 1]} : vector<8x384xf32> to vector<8x128xf32>
    %369 = arith.addf %368, %8 : vector<8x128xf32>
    %370 = arith.mulf %365, %369 : vector<8x128xf32>
    %371 = arith.addf %367, %370 : vector<8x128xf32>
    %372 = math.tanh %371 : vector<8x128xf32>
    %cst_113 = arith.constant 1.000000e+00 : f32
    %373 = vector.broadcast %cst_113 : f32 to vector<8x128xf32>
    %374 = arith.subf %373, %366 : vector<8x128xf32>
    %375 = arith.mulf %374, %372 : vector<8x128xf32>
    %376 = arith.mulf %366, %287 : vector<8x128xf32>
    %377 = arith.addf %375, %376 : vector<8x128xf32>
    %c0_114 = arith.constant 0 : index
    %c2304_115 = arith.constant 2304 : index
    %378 = vector.load %arg3[%c0_114, %c2304_115] : memref<128x2432xbf16, #tpu.memory_space<vmem>>, vector<128x128xbf16>
    %379 = arith.truncf %377 : vector<8x128xf32> to vector<8x128xbf16>
    %cst_116 = arith.constant dense<0.000000e+00> : vector<8x128xf32>
    %380 = tpu.matmul %379, %378, %cst_116 {dimension_numbers = #tpu.dot_dimension_numbers<[1], [0], [0], [1], [0, 0, 1, 1], [], []>} : vector<8x128xbf16>, vector<128x128xbf16>, vector<8x128xf32> -> vector<8x128xf32>
    %381 = arith.addf %380, %17 : vector<8x128xf32>
    %382 = arith.negf %381 : vector<8x128xf32>
    %383 = math.exp %382 : vector<8x128xf32>
    %cst_117 = arith.constant 1.000000e+00 : f32
    %384 = vector.broadcast %cst_117 : f32 to vector<8x128xf32>
    %385 = arith.addf %384, %383 : vector<8x128xf32>
    %386 = arith.divf %384, %385 : vector<8x128xf32>
    %c0_118 = arith.constant 0 : index
    %c256_119 = arith.constant 256 : index
    %387 = vector.load %arg5[%c0_118, %c256_119] : memref<8x1024xf32, #tpu.memory_space<vmem>>, vector<8x128xf32>
    tpu.vector_store %arg5[%c0_118, %c256_119], %386 {strides = array<i32>} : memref<8x1024xf32, #tpu.memory_space<vmem>>, vector<8x128xf32>,
    %c0_120 = arith.constant 0 : index
    %c384_121 = arith.constant 384 : index
    %388 = vector.load %arg3[%c0_120, %c384_121] : memref<128x2432xbf16, #tpu.memory_space<vmem>>, vector<128x384xbf16>
    %389 = arith.truncf %321 : vector<8x128xf32> to vector<8x128xbf16>
    %cst_122 = arith.constant dense<0.000000e+00> : vector<8x384xf32>
    %390 = tpu.matmul %389, %388, %cst_122 {dimension_numbers = #tpu.dot_dimension_numbers<[1], [0], [0], [1], [0, 0, 1, 1], [], []>} : vector<8x128xbf16>, vector<128x384xbf16>, vector<8x384xf32> -> vector<8x384xf32>
    %391 = vector.extract_strided_slice %38 {offsets = [0, 0], sizes = [8, 256], strides = [1, 1]} : vector<8x384xf32> to vector<8x256xf32>
    %392 = vector.extract_strided_slice %390 {offsets = [0, 0], sizes = [8, 256], strides = [1, 1]} : vector<8x384xf32> to vector<8x256xf32>
    %393 = arith.addf %391, %392 : vector<8x256xf32>
    %394 = arith.negf %393 : vector<8x256xf32>
    %395 = math.exp %394 : vector<8x256xf32>
    %cst_123 = arith.constant 1.000000e+00 : f32
    %396 = vector.broadcast %cst_123 : f32 to vector<8x256xf32>
    %397 = arith.addf %396, %395 : vector<8x256xf32>
    %398 = arith.divf %396, %397 : vector<8x256xf32>
    %399 = vector.extract_strided_slice %398 {offsets = [0, 0], sizes = [8, 128], strides = [1, 1]} : vector<8x256xf32> to vector<8x128xf32>
    %400 = vector.extract_strided_slice %398 {offsets = [0, 128], sizes = [8, 128], strides = [1, 1]} : vector<8x256xf32> to vector<8x128xf32>
    %401 = vector.extract_strided_slice %38 {offsets = [0, 256], sizes = [8, 128], strides = [1, 1]} : vector<8x384xf32> to vector<8x128xf32>
    %402 = vector.extract_strided_slice %390 {offsets = [0, 256], sizes = [8, 128], strides = [1, 1]} : vector<8x384xf32> to vector<8x128xf32>
    %403 = arith.addf %402, %2 : vector<8x128xf32>
    %404 = arith.mulf %399, %403 : vector<8x128xf32>
    %405 = arith.addf %401, %404 : vector<8x128xf32>
    %406 = math.tanh %405 : vector<8x128xf32>
    %cst_124 = arith.constant 1.000000e+00 : f32
    %407 = vector.broadcast %cst_124 : f32 to vector<8x128xf32>
    %408 = arith.subf %407, %400 : vector<8x128xf32>
    %409 = arith.mulf %408, %406 : vector<8x128xf32>
    %410 = arith.mulf %400, %321 : vector<8x128xf32>
    %411 = arith.addf %409, %410 : vector<8x128xf32>
    %c0_125 = arith.constant 0 : index
    %c768_126 = arith.constant 768 : index
    %412 = vector.load %arg3[%c0_125, %c768_126] : memref<128x2432xbf16, #tpu.memory_space<vmem>>, vector<128x384xbf16>
    %413 = arith.truncf %321 : vector<8x128xf32> to vector<8x128xbf16>
    %cst_127 = arith.constant dense<0.000000e+00> : vector<8x384xf32>
    %414 = tpu.matmul %413, %412, %cst_127 {dimension_numbers = #tpu.dot_dimension_numbers<[1], [0], [0], [1], [0, 0, 1, 1], [], []>} : vector<8x128xbf16>, vector<128x384xbf16>, vector<8x384xf32> -> vector<8x384xf32>
    %415 = arith.addf %414, %11 : vector<8x384xf32>
    %c0_128 = arith.constant 0 : index
    %c1152_129 = arith.constant 1152 : index
    %416 = vector.load %arg3[%c0_128, %c1152_129] : memref<128x2432xbf16, #tpu.memory_space<vmem>>, vector<128x384xbf16>
    %417 = arith.truncf %349 : vector<8x128xf32> to vector<8x128xbf16>
    %cst_130 = arith.constant dense<0.000000e+00> : vector<8x384xf32>
    %418 = tpu.matmul %417, %416, %cst_130 {dimension_numbers = #tpu.dot_dimension_numbers<[1], [0], [0], [1], [0, 0, 1, 1], [], []>} : vector<8x128xbf16>, vector<128x384xbf16>, vector<8x384xf32> -> vector<8x384xf32>
    %419 = vector.extract_strided_slice %415 {offsets = [0, 0], sizes = [8, 256], strides = [1, 1]} : vector<8x384xf32> to vector<8x256xf32>
    %420 = vector.extract_strided_slice %418 {offsets = [0, 0], sizes = [8, 256], strides = [1, 1]} : vector<8x384xf32> to vector<8x256xf32>
    %421 = arith.addf %419, %420 : vector<8x256xf32>
    %422 = arith.negf %421 : vector<8x256xf32>
    %423 = math.exp %422 : vector<8x256xf32>
    %cst_131 = arith.constant 1.000000e+00 : f32
    %424 = vector.broadcast %cst_131 : f32 to vector<8x256xf32>
    %425 = arith.addf %424, %423 : vector<8x256xf32>
    %426 = arith.divf %424, %425 : vector<8x256xf32>
    %427 = vector.extract_strided_slice %426 {offsets = [0, 0], sizes = [8, 128], strides = [1, 1]} : vector<8x256xf32> to vector<8x128xf32>
    %428 = vector.extract_strided_slice %426 {offsets = [0, 128], sizes = [8, 128], strides = [1, 1]} : vector<8x256xf32> to vector<8x128xf32>
    %429 = vector.extract_strided_slice %415 {offsets = [0, 256], sizes = [8, 128], strides = [1, 1]} : vector<8x384xf32> to vector<8x128xf32>
    %430 = vector.extract_strided_slice %418 {offsets = [0, 256], sizes = [8, 128], strides = [1, 1]} : vector<8x384xf32> to vector<8x128xf32>
    %431 = arith.addf %430, %5 : vector<8x128xf32>
    %432 = arith.mulf %427, %431 : vector<8x128xf32>
    %433 = arith.addf %429, %432 : vector<8x128xf32>
    %434 = math.tanh %433 : vector<8x128xf32>
    %cst_132 = arith.constant 1.000000e+00 : f32
    %435 = vector.broadcast %cst_132 : f32 to vector<8x128xf32>
    %436 = arith.subf %435, %428 : vector<8x128xf32>
    %437 = arith.mulf %436, %434 : vector<8x128xf32>
    %438 = arith.mulf %428, %349 : vector<8x128xf32>
    %439 = arith.addf %437, %438 : vector<8x128xf32>
    %c0_133 = arith.constant 0 : index
    %c1536_134 = arith.constant 1536 : index
    %440 = vector.load %arg3[%c0_133, %c1536_134] : memref<128x2432xbf16, #tpu.memory_space<vmem>>, vector<128x384xbf16>
    %441 = arith.truncf %349 : vector<8x128xf32> to vector<8x128xbf16>
    %cst_135 = arith.constant dense<0.000000e+00> : vector<8x384xf32>
    %442 = tpu.matmul %441, %440, %cst_135 {dimension_numbers = #tpu.dot_dimension_numbers<[1], [0], [0], [1], [0, 0, 1, 1], [], []>} : vector<8x128xbf16>, vector<128x384xbf16>, vector<8x384xf32> -> vector<8x384xf32>
    %443 = arith.addf %442, %14 : vector<8x384xf32>
    %c0_136 = arith.constant 0 : index
    %c1920_137 = arith.constant 1920 : index
    %444 = vector.load %arg3[%c0_136, %c1920_137] : memref<128x2432xbf16, #tpu.memory_space<vmem>>, vector<128x384xbf16>
    %445 = arith.truncf %377 : vector<8x128xf32> to vector<8x128xbf16>
    %cst_138 = arith.constant dense<0.000000e+00> : vector<8x384xf32>
    %446 = tpu.matmul %445, %444, %cst_138 {dimension_numbers = #tpu.dot_dimension_numbers<[1], [0], [0], [1], [0, 0, 1, 1], [], []>} : vector<8x128xbf16>, vector<128x384xbf16>, vector<8x384xf32> -> vector<8x384xf32>
    %447 = vector.extract_strided_slice %443 {offsets = [0, 0], sizes = [8, 256], strides = [1, 1]} : vector<8x384xf32> to vector<8x256xf32>
    %448 = vector.extract_strided_slice %446 {offsets = [0, 0], sizes = [8, 256], strides = [1, 1]} : vector<8x384xf32> to vector<8x256xf32>
    %449 = arith.addf %447, %448 : vector<8x256xf32>
    %450 = arith.negf %449 : vector<8x256xf32>
    %451 = math.exp %450 : vector<8x256xf32>
    %cst_139 = arith.constant 1.000000e+00 : f32
    %452 = vector.broadcast %cst_139 : f32 to vector<8x256xf32>
    %453 = arith.addf %452, %451 : vector<8x256xf32>
    %454 = arith.divf %452, %453 : vector<8x256xf32>
    %455 = vector.extract_strided_slice %454 {offsets = [0, 0], sizes = [8, 128], strides = [1, 1]} : vector<8x256xf32> to vector<8x128xf32>
    %456 = vector.extract_strided_slice %454 {offsets = [0, 128], sizes = [8, 128], strides = [1, 1]} : vector<8x256xf32> to vector<8x128xf32>
    %457 = vector.extract_strided_slice %443 {offsets = [0, 256], sizes = [8, 128], strides = [1, 1]} : vector<8x384xf32> to vector<8x128xf32>
    %458 = vector.extract_strided_slice %446 {offsets = [0, 256], sizes = [8, 128], strides = [1, 1]} : vector<8x384xf32> to vector<8x128xf32>
    %459 = arith.addf %458, %8 : vector<8x128xf32>
    %460 = arith.mulf %455, %459 : vector<8x128xf32>
    %461 = arith.addf %457, %460 : vector<8x128xf32>
    %462 = math.tanh %461 : vector<8x128xf32>
    %cst_140 = arith.constant 1.000000e+00 : f32
    %463 = vector.broadcast %cst_140 : f32 to vector<8x128xf32>
    %464 = arith.subf %463, %456 : vector<8x128xf32>
    %465 = arith.mulf %464, %462 : vector<8x128xf32>
    %466 = arith.mulf %456, %377 : vector<8x128xf32>
    %467 = arith.addf %465, %466 : vector<8x128xf32>
    %c0_141 = arith.constant 0 : index
    %c2304_142 = arith.constant 2304 : index
    %468 = vector.load %arg3[%c0_141, %c2304_142] : memref<128x2432xbf16, #tpu.memory_space<vmem>>, vector<128x128xbf16>
    %469 = arith.truncf %467 : vector<8x128xf32> to vector<8x128xbf16>
    %cst_143 = arith.constant dense<0.000000e+00> : vector<8x128xf32>
    %470 = tpu.matmul %469, %468, %cst_143 {dimension_numbers = #tpu.dot_dimension_numbers<[1], [0], [0], [1], [0, 0, 1, 1], [], []>} : vector<8x128xbf16>, vector<128x128xbf16>, vector<8x128xf32> -> vector<8x128xf32>
    %471 = arith.addf %470, %17 : vector<8x128xf32>
    %472 = arith.negf %471 : vector<8x128xf32>
    %473 = math.exp %472 : vector<8x128xf32>
    %cst_144 = arith.constant 1.000000e+00 : f32
    %474 = vector.broadcast %cst_144 : f32 to vector<8x128xf32>
    %475 = arith.addf %474, %473 : vector<8x128xf32>
    %476 = arith.divf %474, %475 : vector<8x128xf32>
    %c0_145 = arith.constant 0 : index
    %c384_146 = arith.constant 384 : index
    %477 = vector.load %arg5[%c0_145, %c384_146] : memref<8x1024xf32, #tpu.memory_space<vmem>>, vector<8x128xf32>
    tpu.vector_store %arg5[%c0_145, %c384_146], %476 {strides = array<i32>} : memref<8x1024xf32, #tpu.memory_space<vmem>>, vector<8x128xf32>,
    %c0_147 = arith.constant 0 : index
    %c384_148 = arith.constant 384 : index
    %478 = vector.load %arg3[%c0_147, %c384_148] : memref<128x2432xbf16, #tpu.memory_space<vmem>>, vector<128x384xbf16>
    %479 = arith.truncf %411 : vector<8x128xf32> to vector<8x128xbf16>
    %cst_149 = arith.constant dense<0.000000e+00> : vector<8x384xf32>
    %480 = tpu.matmul %479, %478, %cst_149 {dimension_numbers = #tpu.dot_dimension_numbers<[1], [0], [0], [1], [0, 0, 1, 1], [], []>} : vector<8x128xbf16>, vector<128x384xbf16>, vector<8x384xf32> -> vector<8x384xf32>
    %481 = vector.extract_strided_slice %38 {offsets = [0, 0], sizes = [8, 256], strides = [1, 1]} : vector<8x384xf32> to vector<8x256xf32>
    %482 = vector.extract_strided_slice %480 {offsets = [0, 0], sizes = [8, 256], strides = [1, 1]} : vector<8x384xf32> to vector<8x256xf32>
    %483 = arith.addf %481, %482 : vector<8x256xf32>
    %484 = arith.negf %483 : vector<8x256xf32>
    %485 = math.exp %484 : vector<8x256xf32>
    %cst_150 = arith.constant 1.000000e+00 : f32
    %486 = vector.broadcast %cst_150 : f32 to vector<8x256xf32>
    %487 = arith.addf %486, %485 : vector<8x256xf32>
    %488 = arith.divf %486, %487 : vector<8x256xf32>
    %489 = vector.extract_strided_slice %488 {offsets = [0, 0], sizes = [8, 128], strides = [1, 1]} : vector<8x256xf32> to vector<8x128xf32>
    %490 = vector.extract_strided_slice %488 {offsets = [0, 128], sizes = [8, 128], strides = [1, 1]} : vector<8x256xf32> to vector<8x128xf32>
    %491 = vector.extract_strided_slice %38 {offsets = [0, 256], sizes = [8, 128], strides = [1, 1]} : vector<8x384xf32> to vector<8x128xf32>
    %492 = vector.extract_strided_slice %480 {offsets = [0, 256], sizes = [8, 128], strides = [1, 1]} : vector<8x384xf32> to vector<8x128xf32>
    %493 = arith.addf %492, %2 : vector<8x128xf32>
    %494 = arith.mulf %489, %493 : vector<8x128xf32>
    %495 = arith.addf %491, %494 : vector<8x128xf32>
    %496 = math.tanh %495 : vector<8x128xf32>
    %cst_151 = arith.constant 1.000000e+00 : f32
    %497 = vector.broadcast %cst_151 : f32 to vector<8x128xf32>
    %498 = arith.subf %497, %490 : vector<8x128xf32>
    %499 = arith.mulf %498, %496 : vector<8x128xf32>
    %500 = arith.mulf %490, %411 : vector<8x128xf32>
    %501 = arith.addf %499, %500 : vector<8x128xf32>
    %c0_152 = arith.constant 0 : index
    %c768_153 = arith.constant 768 : index
    %502 = vector.load %arg3[%c0_152, %c768_153] : memref<128x2432xbf16, #tpu.memory_space<vmem>>, vector<128x384xbf16>
    %503 = arith.truncf %411 : vector<8x128xf32> to vector<8x128xbf16>
    %cst_154 = arith.constant dense<0.000000e+00> : vector<8x384xf32>
    %504 = tpu.matmul %503, %502, %cst_154 {dimension_numbers = #tpu.dot_dimension_numbers<[1], [0], [0], [1], [0, 0, 1, 1], [], []>} : vector<8x128xbf16>, vector<128x384xbf16>, vector<8x384xf32> -> vector<8x384xf32>
    %505 = arith.addf %504, %11 : vector<8x384xf32>
    %c0_155 = arith.constant 0 : index
    %c1152_156 = arith.constant 1152 : index
    %506 = vector.load %arg3[%c0_155, %c1152_156] : memref<128x2432xbf16, #tpu.memory_space<vmem>>, vector<128x384xbf16>
    %507 = arith.truncf %439 : vector<8x128xf32> to vector<8x128xbf16>
    %cst_157 = arith.constant dense<0.000000e+00> : vector<8x384xf32>
    %508 = tpu.matmul %507, %506, %cst_157 {dimension_numbers = #tpu.dot_dimension_numbers<[1], [0], [0], [1], [0, 0, 1, 1], [], []>} : vector<8x128xbf16>, vector<128x384xbf16>, vector<8x384xf32> -> vector<8x384xf32>
    %509 = vector.extract_strided_slice %505 {offsets = [0, 0], sizes = [8, 256], strides = [1, 1]} : vector<8x384xf32> to vector<8x256xf32>
    %510 = vector.extract_strided_slice %508 {offsets = [0, 0], sizes = [8, 256], strides = [1, 1]} : vector<8x384xf32> to vector<8x256xf32>
    %511 = arith.addf %509, %510 : vector<8x256xf32>
    %512 = arith.negf %511 : vector<8x256xf32>
    %513 = math.exp %512 : vector<8x256xf32>
    %cst_158 = arith.constant 1.000000e+00 : f32
    %514 = vector.broadcast %cst_158 : f32 to vector<8x256xf32>
    %515 = arith.addf %514, %513 : vector<8x256xf32>
    %516 = arith.divf %514, %515 : vector<8x256xf32>
    %517 = vector.extract_strided_slice %516 {offsets = [0, 0], sizes = [8, 128], strides = [1, 1]} : vector<8x256xf32> to vector<8x128xf32>
    %518 = vector.extract_strided_slice %516 {offsets = [0, 128], sizes = [8, 128], strides = [1, 1]} : vector<8x256xf32> to vector<8x128xf32>
    %519 = vector.extract_strided_slice %505 {offsets = [0, 256], sizes = [8, 128], strides = [1, 1]} : vector<8x384xf32> to vector<8x128xf32>
    %520 = vector.extract_strided_slice %508 {offsets = [0, 256], sizes = [8, 128], strides = [1, 1]} : vector<8x384xf32> to vector<8x128xf32>
    %521 = arith.addf %520, %5 : vector<8x128xf32>
    %522 = arith.mulf %517, %521 : vector<8x128xf32>
    %523 = arith.addf %519, %522 : vector<8x128xf32>
    %524 = math.tanh %523 : vector<8x128xf32>
    %cst_159 = arith.constant 1.000000e+00 : f32
    %525 = vector.broadcast %cst_159 : f32 to vector<8x128xf32>
    %526 = arith.subf %525, %518 : vector<8x128xf32>
    %527 = arith.mulf %526, %524 : vector<8x128xf32>
    %528 = arith.mulf %518, %439 : vector<8x128xf32>
    %529 = arith.addf %527, %528 : vector<8x128xf32>
    %c0_160 = arith.constant 0 : index
    %c1536_161 = arith.constant 1536 : index
    %530 = vector.load %arg3[%c0_160, %c1536_161] : memref<128x2432xbf16, #tpu.memory_space<vmem>>, vector<128x384xbf16>
    %531 = arith.truncf %439 : vector<8x128xf32> to vector<8x128xbf16>
    %cst_162 = arith.constant dense<0.000000e+00> : vector<8x384xf32>
    %532 = tpu.matmul %531, %530, %cst_162 {dimension_numbers = #tpu.dot_dimension_numbers<[1], [0], [0], [1], [0, 0, 1, 1], [], []>} : vector<8x128xbf16>, vector<128x384xbf16>, vector<8x384xf32> -> vector<8x384xf32>
    %533 = arith.addf %532, %14 : vector<8x384xf32>
    %c0_163 = arith.constant 0 : index
    %c1920_164 = arith.constant 1920 : index
    %534 = vector.load %arg3[%c0_163, %c1920_164] : memref<128x2432xbf16, #tpu.memory_space<vmem>>, vector<128x384xbf16>
    %535 = arith.truncf %467 : vector<8x128xf32> to vector<8x128xbf16>
    %cst_165 = arith.constant dense<0.000000e+00> : vector<8x384xf32>
    %536 = tpu.matmul %535, %534, %cst_165 {dimension_numbers = #tpu.dot_dimension_numbers<[1], [0], [0], [1], [0, 0, 1, 1], [], []>} : vector<8x128xbf16>, vector<128x384xbf16>, vector<8x384xf32> -> vector<8x384xf32>
    %537 = vector.extract_strided_slice %533 {offsets = [0, 0], sizes = [8, 256], strides = [1, 1]} : vector<8x384xf32> to vector<8x256xf32>
    %538 = vector.extract_strided_slice %536 {offsets = [0, 0], sizes = [8, 256], strides = [1, 1]} : vector<8x384xf32> to vector<8x256xf32>
    %539 = arith.addf %537, %538 : vector<8x256xf32>
    %540 = arith.negf %539 : vector<8x256xf32>
    %541 = math.exp %540 : vector<8x256xf32>
    %cst_166 = arith.constant 1.000000e+00 : f32
    %542 = vector.broadcast %cst_166 : f32 to vector<8x256xf32>
    %543 = arith.addf %542, %541 : vector<8x256xf32>
    %544 = arith.divf %542, %543 : vector<8x256xf32>
    %545 = vector.extract_strided_slice %544 {offsets = [0, 0], sizes = [8, 128], strides = [1, 1]} : vector<8x256xf32> to vector<8x128xf32>
    %546 = vector.extract_strided_slice %544 {offsets = [0, 128], sizes = [8, 128], strides = [1, 1]} : vector<8x256xf32> to vector<8x128xf32>
    %547 = vector.extract_strided_slice %533 {offsets = [0, 256], sizes = [8, 128], strides = [1, 1]} : vector<8x384xf32> to vector<8x128xf32>
    %548 = vector.extract_strided_slice %536 {offsets = [0, 256], sizes = [8, 128], strides = [1, 1]} : vector<8x384xf32> to vector<8x128xf32>
    %549 = arith.addf %548, %8 : vector<8x128xf32>
    %550 = arith.mulf %545, %549 : vector<8x128xf32>
    %551 = arith.addf %547, %550 : vector<8x128xf32>
    %552 = math.tanh %551 : vector<8x128xf32>
    %cst_167 = arith.constant 1.000000e+00 : f32
    %553 = vector.broadcast %cst_167 : f32 to vector<8x128xf32>
    %554 = arith.subf %553, %546 : vector<8x128xf32>
    %555 = arith.mulf %554, %552 : vector<8x128xf32>
    %556 = arith.mulf %546, %467 : vector<8x128xf32>
    %557 = arith.addf %555, %556 : vector<8x128xf32>
    %c0_168 = arith.constant 0 : index
    %c2304_169 = arith.constant 2304 : index
    %558 = vector.load %arg3[%c0_168, %c2304_169] : memref<128x2432xbf16, #tpu.memory_space<vmem>>, vector<128x128xbf16>
    %559 = arith.truncf %557 : vector<8x128xf32> to vector<8x128xbf16>
    %cst_170 = arith.constant dense<0.000000e+00> : vector<8x128xf32>
    %560 = tpu.matmul %559, %558, %cst_170 {dimension_numbers = #tpu.dot_dimension_numbers<[1], [0], [0], [1], [0, 0, 1, 1], [], []>} : vector<8x128xbf16>, vector<128x128xbf16>, vector<8x128xf32> -> vector<8x128xf32>
    %561 = arith.addf %560, %17 : vector<8x128xf32>
    %562 = arith.negf %561 : vector<8x128xf32>
    %563 = math.exp %562 : vector<8x128xf32>
    %cst_171 = arith.constant 1.000000e+00 : f32
    %564 = vector.broadcast %cst_171 : f32 to vector<8x128xf32>
    %565 = arith.addf %564, %563 : vector<8x128xf32>
    %566 = arith.divf %564, %565 : vector<8x128xf32>
    %c0_172 = arith.constant 0 : index
    %c512 = arith.constant 512 : index
    %567 = vector.load %arg5[%c0_172, %c512] : memref<8x1024xf32, #tpu.memory_space<vmem>>, vector<8x128xf32>
    tpu.vector_store %arg5[%c0_172, %c512], %566 {strides = array<i32>} : memref<8x1024xf32, #tpu.memory_space<vmem>>, vector<8x128xf32>,
    %c0_173 = arith.constant 0 : index
    %c384_174 = arith.constant 384 : index
    %568 = vector.load %arg3[%c0_173, %c384_174] : memref<128x2432xbf16, #tpu.memory_space<vmem>>, vector<128x384xbf16>
    %569 = arith.truncf %501 : vector<8x128xf32> to vector<8x128xbf16>
    %cst_175 = arith.constant dense<0.000000e+00> : vector<8x384xf32>
    %570 = tpu.matmul %569, %568, %cst_175 {dimension_numbers = #tpu.dot_dimension_numbers<[1], [0], [0], [1], [0, 0, 1, 1], [], []>} : vector<8x128xbf16>, vector<128x384xbf16>, vector<8x384xf32> -> vector<8x384xf32>
    %571 = vector.extract_strided_slice %38 {offsets = [0, 0], sizes = [8, 256], strides = [1, 1]} : vector<8x384xf32> to vector<8x256xf32>
    %572 = vector.extract_strided_slice %570 {offsets = [0, 0], sizes = [8, 256], strides = [1, 1]} : vector<8x384xf32> to vector<8x256xf32>
    %573 = arith.addf %571, %572 : vector<8x256xf32>
    %574 = arith.negf %573 : vector<8x256xf32>
    %575 = math.exp %574 : vector<8x256xf32>
    %cst_176 = arith.constant 1.000000e+00 : f32
    %576 = vector.broadcast %cst_176 : f32 to vector<8x256xf32>
    %577 = arith.addf %576, %575 : vector<8x256xf32>
    %578 = arith.divf %576, %577 : vector<8x256xf32>
    %579 = vector.extract_strided_slice %578 {offsets = [0, 0], sizes = [8, 128], strides = [1, 1]} : vector<8x256xf32> to vector<8x128xf32>
    %580 = vector.extract_strided_slice %578 {offsets = [0, 128], sizes = [8, 128], strides = [1, 1]} : vector<8x256xf32> to vector<8x128xf32>
    %581 = vector.extract_strided_slice %38 {offsets = [0, 256], sizes = [8, 128], strides = [1, 1]} : vector<8x384xf32> to vector<8x128xf32>
    %582 = vector.extract_strided_slice %570 {offsets = [0, 256], sizes = [8, 128], strides = [1, 1]} : vector<8x384xf32> to vector<8x128xf32>
    %583 = arith.addf %582, %2 : vector<8x128xf32>
    %584 = arith.mulf %579, %583 : vector<8x128xf32>
    %585 = arith.addf %581, %584 : vector<8x128xf32>
    %586 = math.tanh %585 : vector<8x128xf32>
    %cst_177 = arith.constant 1.000000e+00 : f32
    %587 = vector.broadcast %cst_177 : f32 to vector<8x128xf32>
    %588 = arith.subf %587, %580 : vector<8x128xf32>
    %589 = arith.mulf %588, %586 : vector<8x128xf32>
    %590 = arith.mulf %580, %501 : vector<8x128xf32>
    %591 = arith.addf %589, %590 : vector<8x128xf32>
    %c0_178 = arith.constant 0 : index
    %c768_179 = arith.constant 768 : index
    %592 = vector.load %arg3[%c0_178, %c768_179] : memref<128x2432xbf16, #tpu.memory_space<vmem>>, vector<128x384xbf16>
    %593 = arith.truncf %501 : vector<8x128xf32> to vector<8x128xbf16>
    %cst_180 = arith.constant dense<0.000000e+00> : vector<8x384xf32>
    %594 = tpu.matmul %593, %592, %cst_180 {dimension_numbers = #tpu.dot_dimension_numbers<[1], [0], [0], [1], [0, 0, 1, 1], [], []>} : vector<8x128xbf16>, vector<128x384xbf16>, vector<8x384xf32> -> vector<8x384xf32>
    %595 = arith.addf %594, %11 : vector<8x384xf32>
    %c0_181 = arith.constant 0 : index
    %c1152_182 = arith.constant 1152 : index
    %596 = vector.load %arg3[%c0_181, %c1152_182] : memref<128x2432xbf16, #tpu.memory_space<vmem>>, vector<128x384xbf16>
    %597 = arith.truncf %529 : vector<8x128xf32> to vector<8x128xbf16>
    %cst_183 = arith.constant dense<0.000000e+00> : vector<8x384xf32>
    %598 = tpu.matmul %597, %596, %cst_183 {dimension_numbers = #tpu.dot_dimension_numbers<[1], [0], [0], [1], [0, 0, 1, 1], [], []>} : vector<8x128xbf16>, vector<128x384xbf16>, vector<8x384xf32> -> vector<8x384xf32>
    %599 = vector.extract_strided_slice %595 {offsets = [0, 0], sizes = [8, 256], strides = [1, 1]} : vector<8x384xf32> to vector<8x256xf32>
    %600 = vector.extract_strided_slice %598 {offsets = [0, 0], sizes = [8, 256], strides = [1, 1]} : vector<8x384xf32> to vector<8x256xf32>
    %601 = arith.addf %599, %600 : vector<8x256xf32>
    %602 = arith.negf %601 : vector<8x256xf32>
    %603 = math.exp %602 : vector<8x256xf32>
    %cst_184 = arith.constant 1.000000e+00 : f32
    %604 = vector.broadcast %cst_184 : f32 to vector<8x256xf32>
    %605 = arith.addf %604, %603 : vector<8x256xf32>
    %606 = arith.divf %604, %605 : vector<8x256xf32>
    %607 = vector.extract_strided_slice %606 {offsets = [0, 0], sizes = [8, 128], strides = [1, 1]} : vector<8x256xf32> to vector<8x128xf32>
    %608 = vector.extract_strided_slice %606 {offsets = [0, 128], sizes = [8, 128], strides = [1, 1]} : vector<8x256xf32> to vector<8x128xf32>
    %609 = vector.extract_strided_slice %595 {offsets = [0, 256], sizes = [8, 128], strides = [1, 1]} : vector<8x384xf32> to vector<8x128xf32>
    %610 = vector.extract_strided_slice %598 {offsets = [0, 256], sizes = [8, 128], strides = [1, 1]} : vector<8x384xf32> to vector<8x128xf32>
    %611 = arith.addf %610, %5 : vector<8x128xf32>
    %612 = arith.mulf %607, %611 : vector<8x128xf32>
    %613 = arith.addf %609, %612 : vector<8x128xf32>
    %614 = math.tanh %613 : vector<8x128xf32>
    %cst_185 = arith.constant 1.000000e+00 : f32
    %615 = vector.broadcast %cst_185 : f32 to vector<8x128xf32>
    %616 = arith.subf %615, %608 : vector<8x128xf32>
    %617 = arith.mulf %616, %614 : vector<8x128xf32>
    %618 = arith.mulf %608, %529 : vector<8x128xf32>
    %619 = arith.addf %617, %618 : vector<8x128xf32>
    %c0_186 = arith.constant 0 : index
    %c1536_187 = arith.constant 1536 : index
    %620 = vector.load %arg3[%c0_186, %c1536_187] : memref<128x2432xbf16, #tpu.memory_space<vmem>>, vector<128x384xbf16>
    %621 = arith.truncf %529 : vector<8x128xf32> to vector<8x128xbf16>
    %cst_188 = arith.constant dense<0.000000e+00> : vector<8x384xf32>
    %622 = tpu.matmul %621, %620, %cst_188 {dimension_numbers = #tpu.dot_dimension_numbers<[1], [0], [0], [1], [0, 0, 1, 1], [], []>} : vector<8x128xbf16>, vector<128x384xbf16>, vector<8x384xf32> -> vector<8x384xf32>
    %623 = arith.addf %622, %14 : vector<8x384xf32>
    %c0_189 = arith.constant 0 : index
    %c1920_190 = arith.constant 1920 : index
    %624 = vector.load %arg3[%c0_189, %c1920_190] : memref<128x2432xbf16, #tpu.memory_space<vmem>>, vector<128x384xbf16>
    %625 = arith.truncf %557 : vector<8x128xf32> to vector<8x128xbf16>
    %cst_191 = arith.constant dense<0.000000e+00> : vector<8x384xf32>
    %626 = tpu.matmul %625, %624, %cst_191 {dimension_numbers = #tpu.dot_dimension_numbers<[1], [0], [0], [1], [0, 0, 1, 1], [], []>} : vector<8x128xbf16>, vector<128x384xbf16>, vector<8x384xf32> -> vector<8x384xf32>
    %627 = vector.extract_strided_slice %623 {offsets = [0, 0], sizes = [8, 256], strides = [1, 1]} : vector<8x384xf32> to vector<8x256xf32>
    %628 = vector.extract_strided_slice %626 {offsets = [0, 0], sizes = [8, 256], strides = [1, 1]} : vector<8x384xf32> to vector<8x256xf32>
    %629 = arith.addf %627, %628 : vector<8x256xf32>
    %630 = arith.negf %629 : vector<8x256xf32>
    %631 = math.exp %630 : vector<8x256xf32>
    %cst_192 = arith.constant 1.000000e+00 : f32
    %632 = vector.broadcast %cst_192 : f32 to vector<8x256xf32>
    %633 = arith.addf %632, %631 : vector<8x256xf32>
    %634 = arith.divf %632, %633 : vector<8x256xf32>
    %635 = vector.extract_strided_slice %634 {offsets = [0, 0], sizes = [8, 128], strides = [1, 1]} : vector<8x256xf32> to vector<8x128xf32>
    %636 = vector.extract_strided_slice %634 {offsets = [0, 128], sizes = [8, 128], strides = [1, 1]} : vector<8x256xf32> to vector<8x128xf32>
    %637 = vector.extract_strided_slice %623 {offsets = [0, 256], sizes = [8, 128], strides = [1, 1]} : vector<8x384xf32> to vector<8x128xf32>
    %638 = vector.extract_strided_slice %626 {offsets = [0, 256], sizes = [8, 128], strides = [1, 1]} : vector<8x384xf32> to vector<8x128xf32>
    %639 = arith.addf %638, %8 : vector<8x128xf32>
    %640 = arith.mulf %635, %639 : vector<8x128xf32>
    %641 = arith.addf %637, %640 : vector<8x128xf32>
    %642 = math.tanh %641 : vector<8x128xf32>
    %cst_193 = arith.constant 1.000000e+00 : f32
    %643 = vector.broadcast %cst_193 : f32 to vector<8x128xf32>
    %644 = arith.subf %643, %636 : vector<8x128xf32>
    %645 = arith.mulf %644, %642 : vector<8x128xf32>
    %646 = arith.mulf %636, %557 : vector<8x128xf32>
    %647 = arith.addf %645, %646 : vector<8x128xf32>
    %c0_194 = arith.constant 0 : index
    %c2304_195 = arith.constant 2304 : index
    %648 = vector.load %arg3[%c0_194, %c2304_195] : memref<128x2432xbf16, #tpu.memory_space<vmem>>, vector<128x128xbf16>
    %649 = arith.truncf %647 : vector<8x128xf32> to vector<8x128xbf16>
    %cst_196 = arith.constant dense<0.000000e+00> : vector<8x128xf32>
    %650 = tpu.matmul %649, %648, %cst_196 {dimension_numbers = #tpu.dot_dimension_numbers<[1], [0], [0], [1], [0, 0, 1, 1], [], []>} : vector<8x128xbf16>, vector<128x128xbf16>, vector<8x128xf32> -> vector<8x128xf32>
    %651 = arith.addf %650, %17 : vector<8x128xf32>
    %652 = arith.negf %651 : vector<8x128xf32>
    %653 = math.exp %652 : vector<8x128xf32>
    %cst_197 = arith.constant 1.000000e+00 : f32
    %654 = vector.broadcast %cst_197 : f32 to vector<8x128xf32>
    %655 = arith.addf %654, %653 : vector<8x128xf32>
    %656 = arith.divf %654, %655 : vector<8x128xf32>
    %c0_198 = arith.constant 0 : index
    %c640 = arith.constant 640 : index
    %657 = vector.load %arg5[%c0_198, %c640] : memref<8x1024xf32, #tpu.memory_space<vmem>>, vector<8x128xf32>
    tpu.vector_store %arg5[%c0_198, %c640], %656 {strides = array<i32>} : memref<8x1024xf32, #tpu.memory_space<vmem>>, vector<8x128xf32>,
    %c0_199 = arith.constant 0 : index
    %c768_200 = arith.constant 768 : index
    %658 = vector.load %arg3[%c0_199, %c768_200] : memref<128x2432xbf16, #tpu.memory_space<vmem>>, vector<128x384xbf16>
    %659 = arith.truncf %591 : vector<8x128xf32> to vector<8x128xbf16>
    %cst_201 = arith.constant dense<0.000000e+00> : vector<8x384xf32>
    %660 = tpu.matmul %659, %658, %cst_201 {dimension_numbers = #tpu.dot_dimension_numbers<[1], [0], [0], [1], [0, 0, 1, 1], [], []>} : vector<8x128xbf16>, vector<128x384xbf16>, vector<8x384xf32> -> vector<8x384xf32>
    %661 = arith.addf %660, %11 : vector<8x384xf32>
    %c0_202 = arith.constant 0 : index
    %c1152_203 = arith.constant 1152 : index
    %662 = vector.load %arg3[%c0_202, %c1152_203] : memref<128x2432xbf16, #tpu.memory_space<vmem>>, vector<128x384xbf16>
    %663 = arith.truncf %619 : vector<8x128xf32> to vector<8x128xbf16>
    %cst_204 = arith.constant dense<0.000000e+00> : vector<8x384xf32>
    %664 = tpu.matmul %663, %662, %cst_204 {dimension_numbers = #tpu.dot_dimension_numbers<[1], [0], [0], [1], [0, 0, 1, 1], [], []>} : vector<8x128xbf16>, vector<128x384xbf16>, vector<8x384xf32> -> vector<8x384xf32>
    %665 = vector.extract_strided_slice %661 {offsets = [0, 0], sizes = [8, 256], strides = [1, 1]} : vector<8x384xf32> to vector<8x256xf32>
    %666 = vector.extract_strided_slice %664 {offsets = [0, 0], sizes = [8, 256], strides = [1, 1]} : vector<8x384xf32> to vector<8x256xf32>
    %667 = arith.addf %665, %666 : vector<8x256xf32>
    %668 = arith.negf %667 : vector<8x256xf32>
    %669 = math.exp %668 : vector<8x256xf32>
    %cst_205 = arith.constant 1.000000e+00 : f32
    %670 = vector.broadcast %cst_205 : f32 to vector<8x256xf32>
    %671 = arith.addf %670, %669 : vector<8x256xf32>
    %672 = arith.divf %670, %671 : vector<8x256xf32>
    %673 = vector.extract_strided_slice %672 {offsets = [0, 0], sizes = [8, 128], strides = [1, 1]} : vector<8x256xf32> to vector<8x128xf32>
    %674 = vector.extract_strided_slice %672 {offsets = [0, 128], sizes = [8, 128], strides = [1, 1]} : vector<8x256xf32> to vector<8x128xf32>
    %675 = vector.extract_strided_slice %661 {offsets = [0, 256], sizes = [8, 128], strides = [1, 1]} : vector<8x384xf32> to vector<8x128xf32>
    %676 = vector.extract_strided_slice %664 {offsets = [0, 256], sizes = [8, 128], strides = [1, 1]} : vector<8x384xf32> to vector<8x128xf32>
    %677 = arith.addf %676, %5 : vector<8x128xf32>
    %678 = arith.mulf %673, %677 : vector<8x128xf32>
    %679 = arith.addf %675, %678 : vector<8x128xf32>
    %680 = math.tanh %679 : vector<8x128xf32>
    %cst_206 = arith.constant 1.000000e+00 : f32
    %681 = vector.broadcast %cst_206 : f32 to vector<8x128xf32>
    %682 = arith.subf %681, %674 : vector<8x128xf32>
    %683 = arith.mulf %682, %680 : vector<8x128xf32>
    %684 = arith.mulf %674, %619 : vector<8x128xf32>
    %685 = arith.addf %683, %684 : vector<8x128xf32>
    %c0_207 = arith.constant 0 : index
    %c1536_208 = arith.constant 1536 : index
    %686 = vector.load %arg3[%c0_207, %c1536_208] : memref<128x2432xbf16, #tpu.memory_space<vmem>>, vector<128x384xbf16>
    %687 = arith.truncf %619 : vector<8x128xf32> to vector<8x128xbf16>
    %cst_209 = arith.constant dense<0.000000e+00> : vector<8x384xf32>
    %688 = tpu.matmul %687, %686, %cst_209 {dimension_numbers = #tpu.dot_dimension_numbers<[1], [0], [0], [1], [0, 0, 1, 1], [], []>} : vector<8x128xbf16>, vector<128x384xbf16>, vector<8x384xf32> -> vector<8x384xf32>
    %689 = arith.addf %688, %14 : vector<8x384xf32>
    %c0_210 = arith.constant 0 : index
    %c1920_211 = arith.constant 1920 : index
    %690 = vector.load %arg3[%c0_210, %c1920_211] : memref<128x2432xbf16, #tpu.memory_space<vmem>>, vector<128x384xbf16>
    %691 = arith.truncf %647 : vector<8x128xf32> to vector<8x128xbf16>
    %cst_212 = arith.constant dense<0.000000e+00> : vector<8x384xf32>
    %692 = tpu.matmul %691, %690, %cst_212 {dimension_numbers = #tpu.dot_dimension_numbers<[1], [0], [0], [1], [0, 0, 1, 1], [], []>} : vector<8x128xbf16>, vector<128x384xbf16>, vector<8x384xf32> -> vector<8x384xf32>
    %693 = vector.extract_strided_slice %689 {offsets = [0, 0], sizes = [8, 256], strides = [1, 1]} : vector<8x384xf32> to vector<8x256xf32>
    %694 = vector.extract_strided_slice %692 {offsets = [0, 0], sizes = [8, 256], strides = [1, 1]} : vector<8x384xf32> to vector<8x256xf32>
    %695 = arith.addf %693, %694 : vector<8x256xf32>
    %696 = arith.negf %695 : vector<8x256xf32>
    %697 = math.exp %696 : vector<8x256xf32>
    %cst_213 = arith.constant 1.000000e+00 : f32
    %698 = vector.broadcast %cst_213 : f32 to vector<8x256xf32>
    %699 = arith.addf %698, %697 : vector<8x256xf32>
    %700 = arith.divf %698, %699 : vector<8x256xf32>
    %701 = vector.extract_strided_slice %700 {offsets = [0, 0], sizes = [8, 128], strides = [1, 1]} : vector<8x256xf32> to vector<8x128xf32>
    %702 = vector.extract_strided_slice %700 {offsets = [0, 128], sizes = [8, 128], strides = [1, 1]} : vector<8x256xf32> to vector<8x128xf32>
    %703 = vector.extract_strided_slice %689 {offsets = [0, 256], sizes = [8, 128], strides = [1, 1]} : vector<8x384xf32> to vector<8x128xf32>
    %704 = vector.extract_strided_slice %692 {offsets = [0, 256], sizes = [8, 128], strides = [1, 1]} : vector<8x384xf32> to vector<8x128xf32>
    %705 = arith.addf %704, %8 : vector<8x128xf32>
    %706 = arith.mulf %701, %705 : vector<8x128xf32>
    %707 = arith.addf %703, %706 : vector<8x128xf32>
    %708 = math.tanh %707 : vector<8x128xf32>
    %cst_214 = arith.constant 1.000000e+00 : f32
    %709 = vector.broadcast %cst_214 : f32 to vector<8x128xf32>
    %710 = arith.subf %709, %702 : vector<8x128xf32>
    %711 = arith.mulf %710, %708 : vector<8x128xf32>
    %712 = arith.mulf %702, %647 : vector<8x128xf32>
    %713 = arith.addf %711, %712 : vector<8x128xf32>
    %c0_215 = arith.constant 0 : index
    %c2304_216 = arith.constant 2304 : index
    %714 = vector.load %arg3[%c0_215, %c2304_216] : memref<128x2432xbf16, #tpu.memory_space<vmem>>, vector<128x128xbf16>
    %715 = arith.truncf %713 : vector<8x128xf32> to vector<8x128xbf16>
    %cst_217 = arith.constant dense<0.000000e+00> : vector<8x128xf32>
    %716 = tpu.matmul %715, %714, %cst_217 {dimension_numbers = #tpu.dot_dimension_numbers<[1], [0], [0], [1], [0, 0, 1, 1], [], []>} : vector<8x128xbf16>, vector<128x128xbf16>, vector<8x128xf32> -> vector<8x128xf32>
    %717 = arith.addf %716, %17 : vector<8x128xf32>
    %718 = arith.negf %717 : vector<8x128xf32>
    %719 = math.exp %718 : vector<8x128xf32>
    %cst_218 = arith.constant 1.000000e+00 : f32
    %720 = vector.broadcast %cst_218 : f32 to vector<8x128xf32>
    %721 = arith.addf %720, %719 : vector<8x128xf32>
    %722 = arith.divf %720, %721 : vector<8x128xf32>
    %c0_219 = arith.constant 0 : index
    %c768_220 = arith.constant 768 : index
    %723 = vector.load %arg5[%c0_219, %c768_220] : memref<8x1024xf32, #tpu.memory_space<vmem>>, vector<8x128xf32>
    tpu.vector_store %arg5[%c0_219, %c768_220], %722 {strides = array<i32>} : memref<8x1024xf32, #tpu.memory_space<vmem>>, vector<8x128xf32>,
    %c0_221 = arith.constant 0 : index
    %c1536_222 = arith.constant 1536 : index
    %724 = vector.load %arg3[%c0_221, %c1536_222] : memref<128x2432xbf16, #tpu.memory_space<vmem>>, vector<128x384xbf16>
    %725 = arith.truncf %685 : vector<8x128xf32> to vector<8x128xbf16>
    %cst_223 = arith.constant dense<0.000000e+00> : vector<8x384xf32>
    %726 = tpu.matmul %725, %724, %cst_223 {dimension_numbers = #tpu.dot_dimension_numbers<[1], [0], [0], [1], [0, 0, 1, 1], [], []>} : vector<8x128xbf16>, vector<128x384xbf16>, vector<8x384xf32> -> vector<8x384xf32>
    %727 = arith.addf %726, %14 : vector<8x384xf32>
    %c0_224 = arith.constant 0 : index
    %c1920_225 = arith.constant 1920 : index
    %728 = vector.load %arg3[%c0_224, %c1920_225] : memref<128x2432xbf16, #tpu.memory_space<vmem>>, vector<128x384xbf16>
    %729 = arith.truncf %713 : vector<8x128xf32> to vector<8x128xbf16>
    %cst_226 = arith.constant dense<0.000000e+00> : vector<8x384xf32>
    %730 = tpu.matmul %729, %728, %cst_226 {dimension_numbers = #tpu.dot_dimension_numbers<[1], [0], [0], [1], [0, 0, 1, 1], [], []>} : vector<8x128xbf16>, vector<128x384xbf16>, vector<8x384xf32> -> vector<8x384xf32>
    %731 = vector.extract_strided_slice %727 {offsets = [0, 0], sizes = [8, 256], strides = [1, 1]} : vector<8x384xf32> to vector<8x256xf32>
    %732 = vector.extract_strided_slice %730 {offsets = [0, 0], sizes = [8, 256], strides = [1, 1]} : vector<8x384xf32> to vector<8x256xf32>
    %733 = arith.addf %731, %732 : vector<8x256xf32>
    %734 = arith.negf %733 : vector<8x256xf32>
    %735 = math.exp %734 : vector<8x256xf32>
    %cst_227 = arith.constant 1.000000e+00 : f32
    %736 = vector.broadcast %cst_227 : f32 to vector<8x256xf32>
    %737 = arith.addf %736, %735 : vector<8x256xf32>
    %738 = arith.divf %736, %737 : vector<8x256xf32>
    %739 = vector.extract_strided_slice %738 {offsets = [0, 0], sizes = [8, 128], strides = [1, 1]} : vector<8x256xf32> to vector<8x128xf32>
    %740 = vector.extract_strided_slice %738 {offsets = [0, 128], sizes = [8, 128], strides = [1, 1]} : vector<8x256xf32> to vector<8x128xf32>
    %741 = vector.extract_strided_slice %727 {offsets = [0, 256], sizes = [8, 128], strides = [1, 1]} : vector<8x384xf32> to vector<8x128xf32>
    %742 = vector.extract_strided_slice %730 {offsets = [0, 256], sizes = [8, 128], strides = [1, 1]} : vector<8x384xf32> to vector<8x128xf32>
    %743 = arith.addf %742, %8 : vector<8x128xf32>
    %744 = arith.mulf %739, %743 : vector<8x128xf32>
    %745 = arith.addf %741, %744 : vector<8x128xf32>
    %746 = math.tanh %745 : vector<8x128xf32>
    %cst_228 = arith.constant 1.000000e+00 : f32
    %747 = vector.broadcast %cst_228 : f32 to vector<8x128xf32>
    %748 = arith.subf %747, %740 : vector<8x128xf32>
    %749 = arith.mulf %748, %746 : vector<8x128xf32>
    %750 = arith.mulf %740, %713 : vector<8x128xf32>
    %751 = arith.addf %749, %750 : vector<8x128xf32>
    %c0_229 = arith.constant 0 : index
    %c2304_230 = arith.constant 2304 : index
    %752 = vector.load %arg3[%c0_229, %c2304_230] : memref<128x2432xbf16, #tpu.memory_space<vmem>>, vector<128x128xbf16>
    %753 = arith.truncf %751 : vector<8x128xf32> to vector<8x128xbf16>
    %cst_231 = arith.constant dense<0.000000e+00> : vector<8x128xf32>
    %754 = tpu.matmul %753, %752, %cst_231 {dimension_numbers = #tpu.dot_dimension_numbers<[1], [0], [0], [1], [0, 0, 1, 1], [], []>} : vector<8x128xbf16>, vector<128x128xbf16>, vector<8x128xf32> -> vector<8x128xf32>
    %755 = arith.addf %754, %17 : vector<8x128xf32>
    %756 = arith.negf %755 : vector<8x128xf32>
    %757 = math.exp %756 : vector<8x128xf32>
    %cst_232 = arith.constant 1.000000e+00 : f32
    %758 = vector.broadcast %cst_232 : f32 to vector<8x128xf32>
    %759 = arith.addf %758, %757 : vector<8x128xf32>
    %760 = arith.divf %758, %759 : vector<8x128xf32>
    %c0_233 = arith.constant 0 : index
    %c896_234 = arith.constant 896 : index
    %761 = vector.load %arg5[%c0_233, %c896_234] : memref<8x1024xf32, #tpu.memory_space<vmem>>, vector<8x128xf32>
    tpu.vector_store %arg5[%c0_233, %c896_234], %760 {strides = array<i32>} : memref<8x1024xf32, #tpu.memory_space<vmem>>, vector<8x128xf32>,
    %c0_235 = arith.constant 0 : index
    %c0_236 = arith.constant 0 : index
    %762 = vector.load %arg6[%c0_235, %c0_236] : memref<8x384xf32, #tpu.memory_space<vmem>>, vector<8x128xf32>
    tpu.vector_store %arg6[%c0_235, %c0_236], %591 {strides = array<i32>} : memref<8x384xf32, #tpu.memory_space<vmem>>, vector<8x128xf32>,
    %c0_237 = arith.constant 0 : index
    %c128_238 = arith.constant 128 : index
    %763 = vector.load %arg6[%c0_237, %c128_238] : memref<8x384xf32, #tpu.memory_space<vmem>>, vector<8x128xf32>
    tpu.vector_store %arg6[%c0_237, %c128_238], %685 {strides = array<i32>} : memref<8x384xf32, #tpu.memory_space<vmem>>, vector<8x128xf32>,
    %c0_239 = arith.constant 0 : index
    %c256_240 = arith.constant 256 : index
    %764 = vector.load %arg6[%c0_239, %c256_240] : memref<8x384xf32, #tpu.memory_space<vmem>>, vector<8x128xf32>
    tpu.vector_store %arg6[%c0_239, %c256_240], %751 {strides = array<i32>} : memref<8x384xf32, #tpu.memory_space<vmem>>, vector<8x128xf32>,
    return
  }
}

</mosaic_0001>

<llo_original>
// kernel: tpu_custom_call.1
$region0: #{tpu_custom_call.1}
  #allocation0 [shape = 'u32[]', space=smem, size = 0x4, offset = 0x4, fixed_abs, tag = 'smem constant byte address 0x4 - core index']
  #allocation1 [shape = 'u32[72,128]{1,0:T(1,128)}', space=vmem, size = 0x9000, scoped, tag = 'internal scratch']
  %s0 = inlined_call_operand.hbm [shape: f32[8,128], index: 0, kind: input, shape index: {}]
  %s1 = inlined_call_operand.hbm [shape: f32[8,384], index: 1, kind: input, shape index: {}]
  %s2 = inlined_call_operand.hbm [shape: bf16[128,128], index: 2, kind: input, shape index: {}]
  %s3 = inlined_call_operand.hbm [shape: bf16[128,2432], index: 3, kind: input, shape index: {}]
  %s4 = inlined_call_operand.hbm [shape: f32[1,2048], index: 4, kind: input, shape index: {}]
  %s5 = inlined_call_operand.hbm [shape: f32[8,1024], index: 5, kind: output, shape index: {0}]
  %s6 = inlined_call_operand.hbm [shape: f32[8,384], index: 6, kind: output, shape index: {1}]
  %7 = xla_tuple %s5, %s6
  %s8 = sld [smem:[#allocation0]]
  $region58: #{tpu_custom_call.1} parent=0
    _
  %s10 = ssub.s32 1, %s8
  %s11 = scalar_select 0, %s10, %s8
  $region1: #{tpu_custom_call.1} parent=0
    #allocation2 [shape = 'u8[4096]{0}', space=vmem, size = 0x1000, scoped, tag = 'input window, operand 0, single buffered']
    #allocation3 [shape = 's32[1]{0}', space=sflag, size = 0x4, scoped, tag = 'scoped memory for tpu_custom_call.1']
    #allocation4 [shape = 's32[1]{0}', space=sflag, size = 0x4, scoped, tag = 'scoped memory for tpu_custom_call.1']
    #allocation5 [shape = 'u8[12288]{0}', space=vmem, size = 0x3000, scoped, tag = 'input window, operand 1, single buffered']
    #allocation6 [shape = 's32[1]{0}', space=sflag, size = 0x4, scoped, tag = 'scoped memory for tpu_custom_call.1']
    #allocation7 [shape = 'u8[32768]{0}', space=vmem, size = 0x8000, scoped, tag = 'input window, operand 2, single buffered']
    #allocation8 [shape = 'u8[622592]{0}', space=vmem, size = 0x98000, scoped, tag = 'input window, operand 3, single buffered']
    #allocation9 [shape = 's32[1]{0}', space=sflag, size = 0x4, scoped, tag = 'scoped memory for tpu_custom_call.1']
    #allocation10 [shape = 'u8[8192]{0}', space=vmem, size = 0x2000, scoped, tag = 'input window, operand 4, single buffered']
    #allocation11 [shape = 'u8[32768]{0}', space=vmem, size = 0x8000, scoped, tag = 'output window, operand 0, single buffered']
    #allocation12 [shape = 'u8[12288]{0}', space=vmem, size = 0x3000, scoped, tag = 'output window, operand 1, single buffered']
    #allocation13 [shape = 's32[1]{0}', space=sflag, size = 0x4, scoped, tag = 'scoped memory for tpu_custom_call.1']
    %12 = vsyncpa [#allocation3], 0
    %13 = vsyncpa [#allocation6], 0
    %14 = vsyncpa [#allocation9], 0
    %15 = vsyncpa [#allocation4], 0
    %16 = vsyncpa [#allocation13], 0
    // Predicated region
    $region2: #{tpu_custom_call.1} parent=1 // pred_check
      _
    $region3: #{tpu_custom_call.1} parent=1 // pred_check_branch
      %18 = sbr.rel (0) target = $region5
    $region4: #{tpu_custom_call.1} parent=1 // pred_region
      %20 = vsyncadd [#allocation3], 0
      %s22 = sshll.u32 %s0, 4
      %s23 = int_to_ptr.hbm [resolvable:$true] %s22
      %s24 = sshll.u32 [#allocation2], 4
      %s25 = int_to_ptr.vmem [resolvable:$true] %s24
      %27 = dma.hbm_to_vmem [thread:$0]  %s23, 128, %s25, [#allocation3]
    $region5: #{tpu_custom_call.1} parent=1 // pred_fallthru
      _
    // Predicated region
    $region6: #{tpu_custom_call.1} parent=1 // pred_check
      _
    $region7: #{tpu_custom_call.1} parent=1 // pred_check_branch
      %29 = sbr.rel (0) target = $region9
    $region8: #{tpu_custom_call.1} parent=1 // pred_region
      %31 = vsyncadd [#allocation6], 0
      %s33 = sshll.u32 %s1, 4
      %s34 = int_to_ptr.hbm [resolvable:$true] %s33
      %s35 = sshll.u32 [#allocation5], 4
      %s36 = int_to_ptr.vmem [resolvable:$true] %s35
      %38 = dma.hbm_to_vmem [thread:$0]  %s34, 384, %s36, [#allocation6]
    $region9: #{tpu_custom_call.1} parent=1 // pred_fallthru
      _
    // Predicated region
    $region10: #{tpu_custom_call.1} parent=1 // pred_check
      _
    $region11: #{tpu_custom_call.1} parent=1 // pred_check_branch
      %40 = sbr.rel (0) target = $region13
    $region12: #{tpu_custom_call.1} parent=1 // pred_region
      %42 = vsyncadd [#allocation6], 0
      %s43 = sshll.u32 %s2, 4
      %s44 = int_to_ptr.hbm [resolvable:$true] %s43
      %s45 = sshll.u32 [#allocation7], 4
      %s46 = int_to_ptr.vmem [resolvable:$true] %s45
      %51 = dma.hbm_to_vmem [thread:$0]  %s44, 1024, %s46, [#allocation6], 64, 64, 4
    $region13: #{tpu_custom_call.1} parent=1 // pred_fallthru
      _
    // Predicated region
    $region14: #{tpu_custom_call.1} parent=1 // pred_check
      _
    $region15: #{tpu_custom_call.1} parent=1 // pred_check_branch
      %53 = sbr.rel (0) target = $region17
    $region16: #{tpu_custom_call.1} parent=1 // pred_region
      %55 = vsyncadd [#allocation9], 0
      %s56 = sshll.u32 %s3, 4
      %s57 = int_to_ptr.hbm [resolvable:$true] %s56
      %s58 = sshll.u32 [#allocation8], 4
      %s59 = int_to_ptr.vmem [resolvable:$true] %s58
      %64 = dma.hbm_to_vmem [thread:$0]  %s57, 19456, %s59, [#allocation9], 1216, 1216, 76
    $region17: #{tpu_custom_call.1} parent=1 // pred_fallthru
      _
    // Predicated region
    $region18: #{tpu_custom_call.1} parent=1 // pred_check
      _
    $region19: #{tpu_custom_call.1} parent=1 // pred_check_branch
      %66 = sbr.rel (0) target = $region21
    $region20: #{tpu_custom_call.1} parent=1 // pred_region
      %68 = vsyncadd [#allocation9], 0
      %s70 = sshll.u32 %s4, 4
      %s71 = int_to_ptr.hbm [resolvable:$true] %s70
      %s72 = sshll.u32 [#allocation10], 4
      %s73 = int_to_ptr.vmem [resolvable:$true] %s72
      %75 = dma.hbm_to_vmem [thread:$0]  %s71, 256, %s73, [#allocation9]
    $region21: #{tpu_custom_call.1} parent=1 // pred_fallthru
      _
    // Predicated region
    $region22: #{tpu_custom_call.1} parent=1 // pred_check
      _
    $region23: #{tpu_custom_call.1} parent=1 // pred_check_branch
      %77 = sbr.rel (0) target = $region25
    $region24: #{tpu_custom_call.1} parent=1 // pred_region
      %79 = dma.done [#allocation3], 128
    $region25: #{tpu_custom_call.1} parent=1 // pred_fallthru
      _
    // Predicated region
    $region26: #{tpu_custom_call.1} parent=1 // pred_check
      _
    $region27: #{tpu_custom_call.1} parent=1 // pred_check_branch
      %81 = sbr.rel (0) target = $region29
    $region28: #{tpu_custom_call.1} parent=1 // pred_region
      %83 = dma.done [#allocation6], 384
    $region29: #{tpu_custom_call.1} parent=1 // pred_fallthru
      _
    // Predicated region
    $region30: #{tpu_custom_call.1} parent=1 // pred_check
      _
    $region31: #{tpu_custom_call.1} parent=1 // pred_check_branch
      %85 = sbr.rel (0) target = $region33
    $region32: #{tpu_custom_call.1} parent=1 // pred_region
      %87 = dma.done [#allocation6], 1024
    $region33: #{tpu_custom_call.1} parent=1 // pred_fallthru
      _
    // Predicated region
    $region34: #{tpu_custom_call.1} parent=1 // pred_check
      _
    $region35: #{tpu_custom_call.1} parent=1 // pred_check_branch
      %89 = sbr.rel (0) target = $region37
    $region36: #{tpu_custom_call.1} parent=1 // pred_region
      %91 = dma.done [#allocation9], 19456
    $region37: #{tpu_custom_call.1} parent=1 // pred_fallthru
      _
    // Predicated region
    $region38: #{tpu_custom_call.1} parent=1 // pred_check
      _
    $region39: #{tpu_custom_call.1} parent=1 // pred_check_branch
      %93 = sbr.rel (0) target = $region41
    $region40: #{tpu_custom_call.1} parent=1 // pred_region
      %95 = dma.done [#allocation9], 256
    $region41: #{tpu_custom_call.1} parent=1 // pred_fallthru
      _
    %v96 = vld [vmem:[#allocation10 + $0x6] sm:$0x1]
    %v98 = vperm.slane %v96, 0
    %v100 = vld [vmem:[#allocation10 + $0xa] sm:$0x1]
    %v102 = vperm.slane %v100, 0
    %v104 = vld [vmem:[#allocation10 + $0xe] sm:$0x1]
    %v106 = vperm.slane %v104, 0
    %v108 = vld [vmem:[#allocation10 + $0x7] sm:$0x7]
    %v110 = vperm.slane %v108, 0
    %v111 = vperm.slane %v108, 1
    %v112 = vperm.slane %v108, 2
    %v116 = vld [vmem:[#allocation10 + $0xb] sm:$0x7]
    %v118 = vperm.slane %v116, 0
    %v119 = vperm.slane %v116, 1
    %v120 = vperm.slane %v116, 2
    %v124 = vld [vmem:[#allocation10 + $0xf] sm:$0x1]
    %v126 = vperm.slane %v124, 0
    %v128 = vld [vmem:[#allocation2] sm:$0xff]
    %v129 = vld [vmem:[#allocation10] sm:$0x1]
    %v131 = vperm.slane %v129, 0
    %v133 = vmul.f32 %v128, %v131
    %v134 = vld [vmem:[#allocation10 + $0x1] sm:$0x1]
    %v136 = vperm.slane %v134, 0
    %v138 = vadd.f32 %v133, %v136
    %v139 = vld [vmem:[#allocation7] sm:$0xf]
    %v140 = vld [vmem:[#allocation7 + $0x4] sm:$0xf]
    %v141 = vld [vmem:[#allocation7 + $0x8] sm:$0xf]
    %v142 = vld [vmem:[#allocation7 + $0xc] sm:$0xf]
    %v143 = vld [vmem:[#allocation7 + $0x10] sm:$0xf]
    %v144 = vld [vmem:[#allocation7 + $0x14] sm:$0xf]
    %v145 = vld [vmem:[#allocation7 + $0x18] sm:$0xf]
    %v146 = vld [vmem:[#allocation7 + $0x1c] sm:$0xf]
    %v147 = vld [vmem:[#allocation7 + $0x20] sm:$0xf]
    %v148 = vld [vmem:[#allocation7 + $0x24] sm:$0xf]
    %v149 = vld [vmem:[#allocation7 + $0x28] sm:$0xf]
    %v150 = vld [vmem:[#allocation7 + $0x2c] sm:$0xf]
    %v151 = vld [vmem:[#allocation7 + $0x30] sm:$0xf]
    %v152 = vld [vmem:[#allocation7 + $0x34] sm:$0xf]
    %v153 = vld [vmem:[#allocation7 + $0x38] sm:$0xf]
    %v154 = vld [vmem:[#allocation7 + $0x3c] sm:$0xf]
    %v155 = vpack.c.bf16 %v138, %v138
    %v156 = vld [vmem:[#allocation10 + $0x2] sm:$0x1]
    %v158 = vperm.slane %v156, 0
    %v176 = vunpack.c.l.b16 %v139
    %v177 = vunpack.c.l.b16 %v140
    %v178 = vunpack.c.l.b16 %v141
    %v179 = vunpack.c.l.b16 %v142
    %v180 = vunpack.c.l.b16 %v143
    %v181 = vunpack.c.l.b16 %v144
    %v182 = vunpack.c.l.b16 %v145
    %v183 = vunpack.c.l.b16 %v146
    %v184 = vunpack.c.l.b16 %v147
    %v185 = vunpack.c.l.b16 %v148
    %v186 = vunpack.c.l.b16 %v149
    %v187 = vunpack.c.l.b16 %v150
    %v188 = vunpack.c.l.b16 %v151
    %v189 = vunpack.c.l.b16 %v152
    %v190 = vunpack.c.l.b16 %v153
    %v191 = vunpack.c.l.b16 %v154
    %v192 = vpack.c.b16 %v177, %v176
    %v193 = vpack.c.b16 %v179, %v178
    %v194 = vpack.c.b16 %v181, %v180
    %v195 = vpack.c.b16 %v183, %v182
    %v196 = vpack.c.b16 %v185, %v184
    %v197 = vpack.c.b16 %v187, %v186
    %v198 = vpack.c.b16 %v189, %v188
    %v199 = vpack.c.b16 %v191, %v190
    %208 = vmatpush.bf16.msra.mxu0 %v199
    %209 = vmatpush.bf16.msra.mxu0 %v198
    %210 = vmatpush.bf16.msra.mxu0 %v197
    %211 = vmatpush.bf16.msra.mxu0 %v196
    %212 = vmatpush.bf16.msra.mxu0 %v195
    %213 = vmatpush.bf16.msra.mxu0 %v194
    %214 = vmatpush.bf16.msra.mxu0 %v193
    %215 = vmatpush.bf16.msra.mxu0 %v192
    %216 = vmatmul.bf16.gmra.mxu0 %v155
    %v217 = vpop.f32.mrf.mxu0
    %v218 = vadd.f32 %v158, %v217
    %v219 = vpop.f32.mrf.mxu0
    %220 = vdwg.mxu0
    %v221 = vmax.f32 %v218, 0.0
    %v222 = vld [vmem:[#allocation8] sm:$0xff]
    %v223 = vld [vmem:[#allocation8 + $0x8] sm:$0xf]
    %v224 = vld [vmem:[#allocation8 + $0x4c] sm:$0xff]
    %v225 = vld [vmem:[#allocation8 + $0x54] sm:$0xf]
    %v226 = vld [vmem:[#allocation8 + $0x98] sm:$0xff]
    %v227 = vld [vmem:[#allocation8 + $0xa0] sm:$0xf]
    %v228 = vld [vmem:[#allocation8 + $0xe4] sm:$0xff]
    %v229 = vld [vmem:[#allocation8 + $0xec] sm:$0xf]
    %v230 = vld [vmem:[#allocation8 + $0x130] sm:$0xff]
    %v231 = vld [vmem:[#allocation8 + $0x138] sm:$0xf]
    %v232 = vld [vmem:[#allocation8 + $0x17c] sm:$0xff]
    %v233 = vld [vmem:[#allocation8 + $0x184] sm:$0xf]
    %v234 = vld [vmem:[#allocation8 + $0x1c8] sm:$0xff]
    %v235 = vld [vmem:[#allocation8 + $0x1d0] sm:$0xf]
    %v236 = vld [vmem:[#allocation8 + $0x214] sm:$0xff]
    %v237 = vld [vmem:[#allocation8 + $0x21c] sm:$0xf]
    %v238 = vld [vmem:[#allocation8 + $0x260] sm:$0xff]
    %v239 = vld [vmem:[#allocation8 + $0x268] sm:$0xf]
    %v240 = vld [vmem:[#allocation8 + $0x2ac] sm:$0xff]
    %v241 = vld [vmem:[#allocation8 + $0x2b4] sm:$0xf]
    %v242 = vld [vmem:[#allocation8 + $0x2f8] sm:$0xff]
    %v243 = vld [vmem:[#allocation8 + $0x300] sm:$0xf]
    %v244 = vld [vmem:[#allocation8 + $0x344] sm:$0xff]
    %v245 = vld [vmem:[#allocation8 + $0x34c] sm:$0xf]
    %v246 = vld [vmem:[#allocation8 + $0x390] sm:$0xff]
    %v247 = vld [vmem:[#allocation8 + $0x398] sm:$0xf]
    %v248 = vld [vmem:[#allocation8 + $0x3dc] sm:$0xff]
    %v249 = vld [vmem:[#allocation8 + $0x3e4] sm:$0xf]
    %v250 = vld [vmem:[#allocation8 + $0x428] sm:$0xff]
    %v251 = vld [vmem:[#allocation8 + $0x430] sm:$0xf]
    %v252 = vld [vmem:[#allocation8 + $0x474] sm:$0xff]
    %v253 = vld [vmem:[#allocation8 + $0x47c] sm:$0xf]
    %v254 = vpack.c.bf16 %v221, %v221
    %v255 = vld [vmem:[#allocation10 + $0x3] sm:$0x7]
    %v257 = vperm.slane %v255, 0
    %v258 = vperm.slane %v255, 1
    %v259 = vperm.slane %v255, 2
    %v295 = vunpack.c.l.b16 %v222
    %v296 = vunpack.c.h.b16 %v222
    %v297 = vunpack.c.l.b16 %v223
    %v298 = vunpack.c.l.b16 %v224
    %v299 = vunpack.c.h.b16 %v224
    %v300 = vunpack.c.l.b16 %v225
    %v301 = vunpack.c.l.b16 %v226
    %v302 = vunpack.c.h.b16 %v226
    %v303 = vunpack.c.l.b16 %v227
    %v304 = vunpack.c.l.b16 %v228
    %v305 = vunpack.c.h.b16 %v228
    %v306 = vunpack.c.l.b16 %v229
    %v307 = vunpack.c.l.b16 %v230
    %v308 = vunpack.c.h.b16 %v230
    %v309 = vunpack.c.l.b16 %v231
    %v310 = vunpack.c.l.b16 %v232
    %v311 = vunpack.c.h.b16 %v232
    %v312 = vunpack.c.l.b16 %v233
    %v313 = vunpack.c.l.b16 %v234
    %v314 = vunpack.c.h.b16 %v234
    %v315 = vunpack.c.l.b16 %v235
    %v316 = vunpack.c.l.b16 %v236
    %v317 = vunpack.c.h.b16 %v236
    %v318 = vunpack.c.l.b16 %v237
    %v319 = vunpack.c.l.b16 %v238
    %v320 = vunpack.c.h.b16 %v238
    %v321 = vunpack.c.l.b16 %v239
    %v322 = vunpack.c.l.b16 %v240
    %v323 = vunpack.c.h.b16 %v240
    %v324 = vunpack.c.l.b16 %v241
    %v325 = vunpack.c.l.b16 %v242
    %v326 = vunpack.c.h.b16 %v242
    %v327 = vunpack.c.l.b16 %v243
    %v328 = vunpack.c.l.b16 %v244
    %v329 = vunpack.c.h.b16 %v244
    %v330 = vunpack.c.l.b16 %v245
    %v331 = vunpack.c.l.b16 %v246
    %v332 = vunpack.c.h.b16 %v246
    %v333 = vunpack.c.l.b16 %v247
    %v334 = vunpack.c.l.b16 %v248
    %v335 = vunpack.c.h.b16 %v248
    %v336 = vunpack.c.l.b16 %v249
    %v337 = vunpack.c.l.b16 %v250
    %v338 = vunpack.c.h.b16 %v250
    %v339 = vunpack.c.l.b16 %v251
    %v340 = vunpack.c.l.b16 %v252
    %v341 = vunpack.c.h.b16 %v252
    %v342 = vunpack.c.l.b16 %v253
    %v343 = vpack.c.b16 %v298, %v295
    %v344 = vpack.c.b16 %v299, %v296
    %v345 = vpack.c.b16 %v300, %v297
    %v346 = vpack.c.b16 %v304, %v301
    %v347 = vpack.c.b16 %v305, %v302
    %v348 = vpack.c.b16 %v306, %v303
    %v349 = vpack.c.b16 %v310, %v307
    %v350 = vpack.c.b16 %v311, %v308
    %v351 = vpack.c.b16 %v312, %v309
    %v352 = vpack.c.b16 %v316, %v313
    %v353 = vpack.c.b16 %v317, %v314
    %v354 = vpack.c.b16 %v318, %v315
    %v355 = vpack.c.b16 %v322, %v319
    %v356 = vpack.c.b16 %v323, %v320
    %v357 = vpack.c.b16 %v324, %v321
    %v358 = vpack.c.b16 %v328, %v325
    %v359 = vpack.c.b16 %v329, %v326
    %v360 = vpack.c.b16 %v330, %v327
    %v361 = vpack.c.b16 %v334, %v331
    %v362 = vpack.c.b16 %v335, %v332
    %v363 = vpack.c.b16 %v336, %v333
    %v364 = vpack.c.b16 %v340, %v337
    %v365 = vpack.c.b16 %v341, %v338
    %v366 = vpack.c.b16 %v342, %v339
    %391 = vmatpush.bf16.msra.mxu0 %v364
    %392 = vmatpush.bf16.msra.mxu0 %v361
    %393 = vmatpush.bf16.msra.mxu0 %v358
    %394 = vmatpush.bf16.msra.mxu0 %v355
    %395 = vmatpush.bf16.msra.mxu0 %v352
    %396 = vmatpush.bf16.msra.mxu0 %v349
    %397 = vmatpush.bf16.msra.mxu0 %v346
    %398 = vmatpush.bf16.msra.mxu0 %v343
    %399 = vmatmul.bf16.gmra.mxu0 %v254
    %v400 = vpop.f32.mrf.mxu0
    %v401 = vadd.f32 %v257, %v400
    %v402 = vpop.f32.mrf.mxu0
    %403 = vdwg.mxu0
    %404 = vmatpush.bf16.msra.mxu0 %v365
    %405 = vmatpush.bf16.msra.mxu0 %v362
    %406 = vmatpush.bf16.msra.mxu0 %v359
    %407 = vmatpush.bf16.msra.mxu0 %v356
    %408 = vmatpush.bf16.msra.mxu0 %v353
    %409 = vmatpush.bf16.msra.mxu0 %v350
    %410 = vmatpush.bf16.msra.mxu0 %v347
    %411 = vmatpush.bf16.msra.mxu0 %v344
    %412 = vmatmul.bf16.gmra.mxu0 %v254
    %v413 = vpop.f32.mrf.mxu0
    %v414 = vadd.f32 %v258, %v413
    %v415 = vpop.f32.mrf.mxu0
    %416 = vdwg.mxu0
    %417 = vmatpush.bf16.msra.mxu0 %v366
    %418 = vmatpush.bf16.msra.mxu0 %v363
    %419 = vmatpush.bf16.msra.mxu0 %v360
    %420 = vmatpush.bf16.msra.mxu0 %v357
    %421 = vmatpush.bf16.msra.mxu0 %v354
    %422 = vmatpush.bf16.msra.mxu0 %v351
    %423 = vmatpush.bf16.msra.mxu0 %v348
    %424 = vmatpush.bf16.msra.mxu0 %v345
    %425 = vmatmul.bf16.gmra.mxu0 %v254
    %v426 = vpop.f32.mrf.mxu0
    %v427 = vadd.f32 %v259, %v426
    %v428 = vpop.f32.mrf.mxu0
    %429 = vdwg.mxu0
    %v430 = vld [vmem:[#allocation5] sm:$0xff]
    %v431 = vld [vmem:[#allocation5 + $0x8] sm:$0xff]
    %v432 = vld [vmem:[#allocation5 + $0x10] sm:$0xff]
    %v433 = vld [vmem:[#allocation8 + $0xc] sm:$0xff]
    %v434 = vld [vmem:[#allocation8 + $0x14] sm:$0xf]
    %v435 = vld [vmem:[#allocation8 + $0x58] sm:$0xff]
    %v436 = vld [vmem:[#allocation8 + $0x60] sm:$0xf]
    %v437 = vld [vmem:[#allocation8 + $0xa4] sm:$0xff]
    %v438 = vld [vmem:[#allocation8 + $0xac] sm:$0xf]
    %v439 = vld [vmem:[#allocation8 + $0xf0] sm:$0xff]
    %v440 = vld [vmem:[#allocation8 + $0xf8] sm:$0xf]
    %v441 = vld [vmem:[#allocation8 + $0x13c] sm:$0xff]
    %v442 = vld [vmem:[#allocation8 + $0x144] sm:$0xf]
    %v443 = vld [vmem:[#allocation8 + $0x188] sm:$0xff]
    %v444 = vld [vmem:[#allocation8 + $0x190] sm:$0xf]
    %v445 = vld [vmem:[#allocation8 + $0x1d4] sm:$0xff]
    %v446 = vld [vmem:[#allocation8 + $0x1dc] sm:$0xf]
    %v447 = vld [vmem:[#allocation8 + $0x220] sm:$0xff]
    %v448 = vld [vmem:[#allocation8 + $0x228] sm:$0xf]
    %v449 = vld [vmem:[#allocation8 + $0x26c] sm:$0xff]
    %v450 = vld [vmem:[#allocation8 + $0x274] sm:$0xf]
    %v451 = vld [vmem:[#allocation8 + $0x2b8] sm:$0xff]
    %v452 = vld [vmem:[#allocation8 + $0x2c0] sm:$0xf]
    %v453 = vld [vmem:[#allocation8 + $0x304] sm:$0xff]
    %v454 = vld [vmem:[#allocation8 + $0x30c] sm:$0xf]
    %v455 = vld [vmem:[#allocation8 + $0x350] sm:$0xff]
    %v456 = vld [vmem:[#allocation8 + $0x358] sm:$0xf]
    %v457 = vld [vmem:[#allocation8 + $0x39c] sm:$0xff]
    %v458 = vld [vmem:[#allocation8 + $0x3a4] sm:$0xf]
    %v459 = vld [vmem:[#allocation8 + $0x3e8] sm:$0xff]
    %v460 = vld [vmem:[#allocation8 + $0x3f0] sm:$0xf]
    %v461 = vld [vmem:[#allocation8 + $0x434] sm:$0xff]
    %v462 = vld [vmem:[#allocation8 + $0x43c] sm:$0xf]
    %v463 = vld [vmem:[#allocation8 + $0x480] sm:$0xff]
    %v464 = vld [vmem:[#allocation8 + $0x488] sm:$0xf]
    %v465 = vpack.c.bf16 %v430, %v430
    %v498 = vunpack.c.l.b16 %v433
    %v499 = vunpack.c.h.b16 %v433
    %v500 = vunpack.c.l.b16 %v434
    %v501 = vunpack.c.l.b16 %v435
    %v502 = vunpack.c.h.b16 %v435
    %v503 = vunpack.c.l.b16 %v436
    %v504 = vunpack.c.l.b16 %v437
    %v505 = vunpack.c.h.b16 %v437
    %v506 = vunpack.c.l.b16 %v438
    %v507 = vunpack.c.l.b16 %v439
    %v508 = vunpack.c.h.b16 %v439
    %v509 = vunpack.c.l.b16 %v440
    %v510 = vunpack.c.l.b16 %v441
    %v511 = vunpack.c.h.b16 %v441
    %v512 = vunpack.c.l.b16 %v442
    %v513 = vunpack.c.l.b16 %v443
    %v514 = vunpack.c.h.b16 %v443
    %v515 = vunpack.c.l.b16 %v444
    %v516 = vunpack.c.l.b16 %v445
    %v517 = vunpack.c.h.b16 %v445
    %v518 = vunpack.c.l.b16 %v446
    %v519 = vunpack.c.l.b16 %v447
    %v520 = vunpack.c.h.b16 %v447
    %v521 = vunpack.c.l.b16 %v448
    %v522 = vunpack.c.l.b16 %v449
    %v523 = vunpack.c.h.b16 %v449
    %v524 = vunpack.c.l.b16 %v450
    %v525 = vunpack.c.l.b16 %v451
    %v526 = vunpack.c.h.b16 %v451
    %v527 = vunpack.c.l.b16 %v452
    %v528 = vunpack.c.l.b16 %v453
    %v529 = vunpack.c.h.b16 %v453
    %v530 = vunpack.c.l.b16 %v454
    %v531 = vunpack.c.l.b16 %v455
    %v532 = vunpack.c.h.b16 %v455
    %v533 = vunpack.c.l.b16 %v456
    %v534 = vunpack.c.l.b16 %v457
    %v535 = vunpack.c.h.b16 %v457
    %v536 = vunpack.c.l.b16 %v458
    %v537 = vunpack.c.l.b16 %v459
    %v538 = vunpack.c.h.b16 %v459
    %v539 = vunpack.c.l.b16 %v460
    %v540 = vunpack.c.l.b16 %v461
    %v541 = vunpack.c.h.b16 %v461
    %v542 = vunpack.c.l.b16 %v462
    %v543 = vunpack.c.l.b16 %v463
    %v544 = vunpack.c.h.b16 %v463
    %v545 = vunpack.c.l.b16 %v464
    %v546 = vpack.c.b16 %v501, %v498
    %v547 = vpack.c.b16 %v502, %v499
    %v548 = vpack.c.b16 %v503, %v500
    %v549 = vpack.c.b16 %v507, %v504
    %v550 = vpack.c.b16 %v508, %v505
    %v551 = vpack.c.b16 %v509, %v506
    %v552 = vpack.c.b16 %v513, %v510
    %v553 = vpack.c.b16 %v514, %v511
    %v554 = vpack.c.b16 %v515, %v512
    %v555 = vpack.c.b16 %v519, %v516
    %v556 = vpack.c.b16 %v520, %v517
    %v557 = vpack.c.b16 %v521, %v518
    %v558 = vpack.c.b16 %v525, %v522
    %v559 = vpack.c.b16 %v526, %v523
    %v560 = vpack.c.b16 %v527, %v524
    %v561 = vpack.c.b16 %v531, %v528
    %v562 = vpack.c.b16 %v532, %v529
    %v563 = vpack.c.b16 %v533, %v530
    %v564 = vpack.c.b16 %v537, %v534
    %v565 = vpack.c.b16 %v538, %v535
    %v566 = vpack.c.b16 %v539, %v536
    %v567 = vpack.c.b16 %v543, %v540
    %v568 = vpack.c.b16 %v544, %v541
    %v569 = vpack.c.b16 %v545, %v542
    %594 = vmatpush.bf16.msra.mxu0 %v567
    %595 = vmatpush.bf16.msra.mxu0 %v564
    %596 = vmatpush.bf16.msra.mxu0 %v561
    %597 = vmatpush.bf16.msra.mxu0 %v558
    %598 = vmatpush.bf16.msra.mxu0 %v555
    %599 = vmatpush.bf16.msra.mxu0 %v552
    %600 = vmatpush.bf16.msra.mxu0 %v549
    %601 = vmatpush.bf16.msra.mxu0 %v546
    %602 = vmatmul.bf16.gmra.mxu0 %v465
    %v603 = vpop.f32.mrf.mxu0
    %v604 = vadd.f32 0.0, %v603
    %v605 = vpop.f32.mrf.mxu0
    %606 = vdwg.mxu0
    %607 = vmatpush.bf16.msra.mxu0 %v568
    %608 = vmatpush.bf16.msra.mxu0 %v565
    %609 = vmatpush.bf16.msra.mxu0 %v562
    %610 = vmatpush.bf16.msra.mxu0 %v559
    %611 = vmatpush.bf16.msra.mxu0 %v556
    %612 = vmatpush.bf16.msra.mxu0 %v553
    %613 = vmatpush.bf16.msra.mxu0 %v550
    %614 = vmatpush.bf16.msra.mxu0 %v547
    %615 = vmatmul.bf16.gmra.mxu0 %v465
    %v616 = vpop.f32.mrf.mxu0
    %v617 = vadd.f32 0.0, %v616
    %v618 = vpop.f32.mrf.mxu0
    %619 = vdwg.mxu0
    %620 = vmatpush.bf16.msra.mxu0 %v569
    %621 = vmatpush.bf16.msra.mxu0 %v566
    %622 = vmatpush.bf16.msra.mxu0 %v563
    %623 = vmatpush.bf16.msra.mxu0 %v560
    %624 = vmatpush.bf16.msra.mxu0 %v557
    %625 = vmatpush.bf16.msra.mxu0 %v554
    %626 = vmatpush.bf16.msra.mxu0 %v551
    %627 = vmatpush.bf16.msra.mxu0 %v548
    %628 = vmatmul.bf16.gmra.mxu0 %v465
    %v629 = vpop.f32.mrf.mxu0
    %v630 = vadd.f32 0.0, %v629
    %v631 = vpop.f32.mrf.mxu0
    %632 = vdwg.mxu0
    %v633 = vadd.f32 %v401, %v604
    %v634 = vadd.f32 %v414, %v617
    %v635 = vxor.u32 %v633, 2147483648
    %v636 = vxor.u32 %v634, 2147483648
    %v637 = vmul.f32 %v635, 1.442695
    %v638 = vpow.pop %v637
    %v639 = vmul.f32 %v636, 1.442695
    %v640 = vpow.pop %v639
    %v641 = vadd.f32 %v638, 1.0
    %v642 = vadd.f32 %v640, 1.0
    %v643 = vrcp.pop %v641
    %v644 = vmul.f32 %v641, %v643
    %v645 = vsub.f32 1.0, %v644
    %v646 = vmul.f32 %v643, %v645
    %v647 = vadd.f32 %v643, %v646
    %vm648 = vweird.f32 %v641
    %vm649 = vweird.f32 %v643
    %vm650 = vmor %vm648, %vm649
    %v651 = vsel %vm650, %v643, %v647
    %v652 = vand.u32 2147483647, %v641
    %vm653 = vcmp.eq.f32.partialorder %v652, 8.507059e+37
    %v654 = vand.u32 %v641, 2147483648
    %v655 = vor.u32 1.1754944e-38, %v654
    %v656 = vsel %vm653, %v655, %v651
    %v657 = vmul.f32 1.0, %v656
    %v658 = vrcp.pop %v642
    %v659 = vmul.f32 %v642, %v658
    %v660 = vsub.f32 1.0, %v659
    %v661 = vmul.f32 %v658, %v660
    %v662 = vadd.f32 %v658, %v661
    %vm663 = vweird.f32 %v642
    %vm664 = vweird.f32 %v658
    %vm665 = vmor %vm663, %vm664
    %v666 = vsel %vm665, %v658, %v662
    %v667 = vand.u32 2147483647, %v642
    %vm668 = vcmp.eq.f32.partialorder %v667, 8.507059e+37
    %v669 = vand.u32 %v642, 2147483648
    %v670 = vor.u32 1.1754944e-38, %v669
    %v671 = vsel %vm668, %v670, %v666
    %v672 = vmul.f32 1.0, %v671
    %v673 = vadd.f32 %v630, %v98
    %v674 = vmul.f32 %v657, %v673
    %v675 = vadd.f32 %v427, %v674
    %v676 = vtanh.pop %v675
    %v677 = vsub.f32 1.0, %v672
    %v678 = vmul.f32 %v677, %v676
    %v679 = vmul.f32 %v672, %v430
    %v680 = vadd.f32 %v678, %v679
    %v681 = vpack.c.bf16 %v680, %v680
    %682 = vmatpush.bf16.msra.mxu0 %v567
    %683 = vmatpush.bf16.msra.mxu0 %v564
    %684 = vmatpush.bf16.msra.mxu0 %v561
    %685 = vmatpush.bf16.msra.mxu0 %v558
    %686 = vmatpush.bf16.msra.mxu0 %v555
    %687 = vmatpush.bf16.msra.mxu0 %v552
    %688 = vmatpush.bf16.msra.mxu0 %v549
    %689 = vmatpush.bf16.msra.mxu0 %v546
    %690 = vmatmul.bf16.gmra.mxu0 %v681
    %v691 = vpop.f32.mrf.mxu0
    %v692 = vadd.f32 0.0, %v691
    %v693 = vpop.f32.mrf.mxu0
    %694 = vdwg.mxu0
    %695 = vmatpush.bf16.msra.mxu0 %v568
    %696 = vmatpush.bf16.msra.mxu0 %v565
    %697 = vmatpush.bf16.msra.mxu0 %v562
    %698 = vmatpush.bf16.msra.mxu0 %v559
    %699 = vmatpush.bf16.msra.mxu0 %v556
    %700 = vmatpush.bf16.msra.mxu0 %v553
    %701 = vmatpush.bf16.msra.mxu0 %v550
    %702 = vmatpush.bf16.msra.mxu0 %v547
    %703 = vmatmul.bf16.gmra.mxu0 %v681
    %v704 = vpop.f32.mrf.mxu0
    %v705 = vadd.f32 0.0, %v704
    %v706 = vpop.f32.mrf.mxu0
    %707 = vdwg.mxu0
    %708 = vmatpush.bf16.msra.mxu0 %v569
    %709 = vmatpush.bf16.msra.mxu0 %v566
    %710 = vmatpush.bf16.msra.mxu0 %v563
    %711 = vmatpush.bf16.msra.mxu0 %v560
    %712 = vmatpush.bf16.msra.mxu0 %v557
    %713 = vmatpush.bf16.msra.mxu0 %v554
    %714 = vmatpush.bf16.msra.mxu0 %v551
    %715 = vmatpush.bf16.msra.mxu0 %v548
    %716 = vmatmul.bf16.gmra.mxu0 %v681
    %v717 = vpop.f32.mrf.mxu0
    %v718 = vadd.f32 0.0, %v717
    %v719 = vpop.f32.mrf.mxu0
    %720 = vdwg.mxu0
    %v721 = vadd.f32 %v401, %v692
    %v722 = vadd.f32 %v414, %v705
    %v723 = vxor.u32 %v721, 2147483648
    %v724 = vxor.u32 %v722, 2147483648
    %v725 = vmul.f32 %v723, 1.442695
    %v726 = vpow.pop %v725
    %v727 = vmul.f32 %v724, 1.442695
    %v728 = vpow.pop %v727
    %v729 = vadd.f32 %v726, 1.0
    %v730 = vadd.f32 %v728, 1.0
    %v731 = vrcp.pop %v729
    %v732 = vmul.f32 %v729, %v731
    %v733 = vsub.f32 1.0, %v732
    %v734 = vmul.f32 %v731, %v733
    %v735 = vadd.f32 %v731, %v734
    %vm736 = vweird.f32 %v729
    %vm737 = vweird.f32 %v731
    %vm738 = vmor %vm736, %vm737
    %v739 = vsel %vm738, %v731, %v735
    %v740 = vand.u32 2147483647, %v729
    %vm741 = vcmp.eq.f32.partialorder %v740, 8.507059e+37
    %v742 = vand.u32 %v729, 2147483648
    %v743 = vor.u32 1.1754944e-38, %v742
    %v744 = vsel %vm741, %v743, %v739
    %v745 = vmul.f32 1.0, %v744
    %v746 = vrcp.pop %v730
    %v747 = vmul.f32 %v730, %v746
    %v748 = vsub.f32 1.0, %v747
    %v749 = vmul.f32 %v746, %v748
    %v750 = vadd.f32 %v746, %v749
    %vm751 = vweird.f32 %v730
    %vm752 = vweird.f32 %v746
    %vm753 = vmor %vm751, %vm752
    %v754 = vsel %vm753, %v746, %v750
    %v755 = vand.u32 2147483647, %v730
    %vm756 = vcmp.eq.f32.partialorder %v755, 8.507059e+37
    %v757 = vand.u32 %v730, 2147483648
    %v758 = vor.u32 1.1754944e-38, %v757
    %v759 = vsel %vm756, %v758, %v754
    %v760 = vmul.f32 1.0, %v759
    %v761 = vadd.f32 %v718, %v98
    %v762 = vmul.f32 %v745, %v761
    %v763 = vadd.f32 %v427, %v762
    %v764 = vtanh.pop %v763
    %v765 = vsub.f32 1.0, %v760
    %v766 = vmul.f32 %v765, %v764
    %v767 = vmul.f32 %v760, %v680
    %v768 = vadd.f32 %v766, %v767
    %v769 = vld [vmem:[#allocation8 + $0x18] sm:$0xff]
    %v770 = vld [vmem:[#allocation8 + $0x20] sm:$0xf]
    %v771 = vld [vmem:[#allocation8 + $0x64] sm:$0xff]
    %v772 = vld [vmem:[#allocation8 + $0x6c] sm:$0xf]
    %v773 = vld [vmem:[#allocation8 + $0xb0] sm:$0xff]
    %v774 = vld [vmem:[#allocation8 + $0xb8] sm:$0xf]
    %v775 = vld [vmem:[#allocation8 + $0xfc] sm:$0xff]
    %v776 = vld [vmem:[#allocation8 + $0x104] sm:$0xf]
    %v777 = vld [vmem:[#allocation8 + $0x148] sm:$0xff]
    %v778 = vld [vmem:[#allocation8 + $0x150] sm:$0xf]
    %v779 = vld [vmem:[#allocation8 + $0x194] sm:$0xff]
    %v780 = vld [vmem:[#allocation8 + $0x19c] sm:$0xf]
    %v781 = vld [vmem:[#allocation8 + $0x1e0] sm:$0xff]
    %v782 = vld [vmem:[#allocation8 + $0x1e8] sm:$0xf]
    %v783 = vld [vmem:[#allocation8 + $0x22c] sm:$0xff]
    %v784 = vld [vmem:[#allocation8 + $0x234] sm:$0xf]
    %v785 = vld [vmem:[#allocation8 + $0x278] sm:$0xff]
    %v786 = vld [vmem:[#allocation8 + $0x280] sm:$0xf]
    %v787 = vld [vmem:[#allocation8 + $0x2c4] sm:$0xff]
    %v788 = vld [vmem:[#allocation8 + $0x2cc] sm:$0xf]
    %v789 = vld [vmem:[#allocation8 + $0x310] sm:$0xff]
    %v790 = vld [vmem:[#allocation8 + $0x318] sm:$0xf]
    %v791 = vld [vmem:[#allocation8 + $0x35c] sm:$0xff]
    %v792 = vld [vmem:[#allocation8 + $0x364] sm:$0xf]
    %v793 = vld [vmem:[#allocation8 + $0x3a8] sm:$0xff]
    %v794 = vld [vmem:[#allocation8 + $0x3b0] sm:$0xf]
    %v795 = vld [vmem:[#allocation8 + $0x3f4] sm:$0xff]
    %v796 = vld [vmem:[#allocation8 + $0x3fc] sm:$0xf]
    %v797 = vld [vmem:[#allocation8 + $0x440] sm:$0xff]
    %v798 = vld [vmem:[#allocation8 + $0x448] sm:$0xf]
    %v799 = vld [vmem:[#allocation8 + $0x48c] sm:$0xff]
    %v800 = vld [vmem:[#allocation8 + $0x494] sm:$0xf]
    %v833 = vunpack.c.l.b16 %v769
    %v834 = vunpack.c.h.b16 %v769
    %v835 = vunpack.c.l.b16 %v770
    %v836 = vunpack.c.l.b16 %v771
    %v837 = vunpack.c.h.b16 %v771
    %v838 = vunpack.c.l.b16 %v772
    %v839 = vunpack.c.l.b16 %v773
    %v840 = vunpack.c.h.b16 %v773
    %v841 = vunpack.c.l.b16 %v774
    %v842 = vunpack.c.l.b16 %v775
    %v843 = vunpack.c.h.b16 %v775
    %v844 = vunpack.c.l.b16 %v776
    %v845 = vunpack.c.l.b16 %v777
    %v846 = vunpack.c.h.b16 %v777
    %v847 = vunpack.c.l.b16 %v778
    %v848 = vunpack.c.l.b16 %v779
    %v849 = vunpack.c.h.b16 %v779
    %v850 = vunpack.c.l.b16 %v780
    %v851 = vunpack.c.l.b16 %v781
    %v852 = vunpack.c.h.b16 %v781
    %v853 = vunpack.c.l.b16 %v782
    %v854 = vunpack.c.l.b16 %v783
    %v855 = vunpack.c.h.b16 %v783
    %v856 = vunpack.c.l.b16 %v784
    %v857 = vunpack.c.l.b16 %v785
    %v858 = vunpack.c.h.b16 %v785
    %v859 = vunpack.c.l.b16 %v786
    %v860 = vunpack.c.l.b16 %v787
    %v861 = vunpack.c.h.b16 %v787
    %v862 = vunpack.c.l.b16 %v788
    %v863 = vunpack.c.l.b16 %v789
    %v864 = vunpack.c.h.b16 %v789
    %v865 = vunpack.c.l.b16 %v790
    %v866 = vunpack.c.l.b16 %v791
    %v867 = vunpack.c.h.b16 %v791
    %v868 = vunpack.c.l.b16 %v792
    %v869 = vunpack.c.l.b16 %v793
    %v870 = vunpack.c.h.b16 %v793
    %v871 = vunpack.c.l.b16 %v794
    %v872 = vunpack.c.l.b16 %v795
    %v873 = vunpack.c.h.b16 %v795
    %v874 = vunpack.c.l.b16 %v796
    %v875 = vunpack.c.l.b16 %v797
    %v876 = vunpack.c.h.b16 %v797
    %v877 = vunpack.c.l.b16 %v798
    %v878 = vunpack.c.l.b16 %v799
    %v879 = vunpack.c.h.b16 %v799
    %v880 = vunpack.c.l.b16 %v800
    %v881 = vpack.c.b16 %v836, %v833
    %v882 = vpack.c.b16 %v837, %v834
    %v883 = vpack.c.b16 %v838, %v835
    %v884 = vpack.c.b16 %v842, %v839
    %v885 = vpack.c.b16 %v843, %v840
    %v886 = vpack.c.b16 %v844, %v841
    %v887 = vpack.c.b16 %v848, %v845
    %v888 = vpack.c.b16 %v849, %v846
    %v889 = vpack.c.b16 %v850, %v847
    %v890 = vpack.c.b16 %v854, %v851
    %v891 = vpack.c.b16 %v855, %v852
    %v892 = vpack.c.b16 %v856, %v853
    %v893 = vpack.c.b16 %v860, %v857
    %v894 = vpack.c.b16 %v861, %v858
    %v895 = vpack.c.b16 %v862, %v859
    %v896 = vpack.c.b16 %v866, %v863
    %v897 = vpack.c.b16 %v867, %v864
    %v898 = vpack.c.b16 %v868, %v865
    %v899 = vpack.c.b16 %v872, %v869
    %v900 = vpack.c.b16 %v873, %v870
    %v901 = vpack.c.b16 %v874, %v871
    %v902 = vpack.c.b16 %v878, %v875
    %v903 = vpack.c.b16 %v879, %v876
    %v904 = vpack.c.b16 %v880, %v877
    %929 = vmatpush.bf16.msra.mxu0 %v902
    %930 = vmatpush.bf16.msra.mxu0 %v899
    %931 = vmatpush.bf16.msra.mxu0 %v896
    %932 = vmatpush.bf16.msra.mxu0 %v893
    %933 = vmatpush.bf16.msra.mxu0 %v890
    %934 = vmatpush.bf16.msra.mxu0 %v887
    %935 = vmatpush.bf16.msra.mxu0 %v884
    %936 = vmatpush.bf16.msra.mxu0 %v881
    %937 = vmatmul.bf16.gmra.mxu0 %v681
    %v938 = vpop.f32.mrf.mxu0
    %v939 = vadd.f32 %v110, %v938
    %v940 = vpop.f32.mrf.mxu0
    %941 = vdwg.mxu0
    %942 = vmatpush.bf16.msra.mxu0 %v903
    %943 = vmatpush.bf16.msra.mxu0 %v900
    %944 = vmatpush.bf16.msra.mxu0 %v897
    %945 = vmatpush.bf16.msra.mxu0 %v894
    %946 = vmatpush.bf16.msra.mxu0 %v891
    %947 = vmatpush.bf16.msra.mxu0 %v888
    %948 = vmatpush.bf16.msra.mxu0 %v885
    %949 = vmatpush.bf16.msra.mxu0 %v882
    %950 = vmatmul.bf16.gmra.mxu0 %v681
    %v951 = vpop.f32.mrf.mxu0
    %v952 = vadd.f32 %v111, %v951
    %v953 = vpop.f32.mrf.mxu0
    %954 = vdwg.mxu0
    %955 = vmatpush.bf16.msra.mxu0 %v904
    %956 = vmatpush.bf16.msra.mxu0 %v901
    %957 = vmatpush.bf16.msra.mxu0 %v898
    %958 = vmatpush.bf16.msra.mxu0 %v895
    %959 = vmatpush.bf16.msra.mxu0 %v892
    %960 = vmatpush.bf16.msra.mxu0 %v889
    %961 = vmatpush.bf16.msra.mxu0 %v886
    %962 = vmatpush.bf16.msra.mxu0 %v883
    %963 = vmatmul.bf16.gmra.mxu0 %v681
    %v964 = vpop.f32.mrf.mxu0
    %v965 = vadd.f32 %v112, %v964
    %v966 = vpop.f32.mrf.mxu0
    %967 = vdwg.mxu0
    %v968 = vld [vmem:[#allocation8 + $0x24] sm:$0xff]
    %v969 = vld [vmem:[#allocation8 + $0x2c] sm:$0xf]
    %v970 = vld [vmem:[#allocation8 + $0x70] sm:$0xff]
    %v971 = vld [vmem:[#allocation8 + $0x78] sm:$0xf]
    %v972 = vld [vmem:[#allocation8 + $0xbc] sm:$0xff]
    %v973 = vld [vmem:[#allocation8 + $0xc4] sm:$0xf]
    %v974 = vld [vmem:[#allocation8 + $0x108] sm:$0xff]
    %v975 = vld [vmem:[#allocation8 + $0x110] sm:$0xf]
    %v976 = vld [vmem:[#allocation8 + $0x154] sm:$0xff]
    %v977 = vld [vmem:[#allocation8 + $0x15c] sm:$0xf]
    %v978 = vld [vmem:[#allocation8 + $0x1a0] sm:$0xff]
    %v979 = vld [vmem:[#allocation8 + $0x1a8] sm:$0xf]
    %v980 = vld [vmem:[#allocation8 + $0x1ec] sm:$0xff]
    %v981 = vld [vmem:[#allocation8 + $0x1f4] sm:$0xf]
    %v982 = vld [vmem:[#allocation8 + $0x238] sm:$0xff]
    %v983 = vld [vmem:[#allocation8 + $0x240] sm:$0xf]
    %v984 = vld [vmem:[#allocation8 + $0x284] sm:$0xff]
    %v985 = vld [vmem:[#allocation8 + $0x28c] sm:$0xf]
    %v986 = vld [vmem:[#allocation8 + $0x2d0] sm:$0xff]
    %v987 = vld [vmem:[#allocation8 + $0x2d8] sm:$0xf]
    %v988 = vld [vmem:[#allocation8 + $0x31c] sm:$0xff]
    %v989 = vld [vmem:[#allocation8 + $0x324] sm:$0xf]
    %v990 = vld [vmem:[#allocation8 + $0x368] sm:$0xff]
    %v991 = vld [vmem:[#allocation8 + $0x370] sm:$0xf]
    %v992 = vld [vmem:[#allocation8 + $0x3b4] sm:$0xff]
    %v993 = vld [vmem:[#allocation8 + $0x3bc] sm:$0xf]
    %v994 = vld [vmem:[#allocation8 + $0x400] sm:$0xff]
    %v995 = vld [vmem:[#allocation8 + $0x408] sm:$0xf]
    %v996 = vld [vmem:[#allocation8 + $0x44c] sm:$0xff]
    %v997 = vld [vmem:[#allocation8 + $0x454] sm:$0xf]
    %v998 = vld [vmem:[#allocation8 + $0x498] sm:$0xff]
    %v999 = vld [vmem:[#allocation8 + $0x4a0] sm:$0xf]
    %v1000 = vpack.c.bf16 %v431, %v431
    %v1033 = vunpack.c.l.b16 %v968
    %v1034 = vunpack.c.h.b16 %v968
    %v1035 = vunpack.c.l.b16 %v969
    %v1036 = vunpack.c.l.b16 %v970
    %v1037 = vunpack.c.h.b16 %v970
    %v1038 = vunpack.c.l.b16 %v971
    %v1039 = vunpack.c.l.b16 %v972
    %v1040 = vunpack.c.h.b16 %v972
    %v1041 = vunpack.c.l.b16 %v973
    %v1042 = vunpack.c.l.b16 %v974
    %v1043 = vunpack.c.h.b16 %v974
    %v1044 = vunpack.c.l.b16 %v975
    %v1045 = vunpack.c.l.b16 %v976
    %v1046 = vunpack.c.h.b16 %v976
    %v1047 = vunpack.c.l.b16 %v977
    %v1048 = vunpack.c.l.b16 %v978
    %v1049 = vunpack.c.h.b16 %v978
    %v1050 = vunpack.c.l.b16 %v979
    %v1051 = vunpack.c.l.b16 %v980
    %v1052 = vunpack.c.h.b16 %v980
    %v1053 = vunpack.c.l.b16 %v981
    %v1054 = vunpack.c.l.b16 %v982
    %v1055 = vunpack.c.h.b16 %v982
    %v1056 = vunpack.c.l.b16 %v983
    %v1057 = vunpack.c.l.b16 %v984
    %v1058 = vunpack.c.h.b16 %v984
    %v1059 = vunpack.c.l.b16 %v985
    %v1060 = vunpack.c.l.b16 %v986
    %v1061 = vunpack.c.h.b16 %v986
    %v1062 = vunpack.c.l.b16 %v987
    %v1063 = vunpack.c.l.b16 %v988
    %v1064 = vunpack.c.h.b16 %v988
    %v1065 = vunpack.c.l.b16 %v989
    %v1066 = vunpack.c.l.b16 %v990
    %v1067 = vunpack.c.h.b16 %v990
    %v1068 = vunpack.c.l.b16 %v991
    %v1069 = vunpack.c.l.b16 %v992
    %v1070 = vunpack.c.h.b16 %v992
    %v1071 = vunpack.c.l.b16 %v993
    %v1072 = vunpack.c.l.b16 %v994
    %v1073 = vunpack.c.h.b16 %v994
    %v1074 = vunpack.c.l.b16 %v995
    %v1075 = vunpack.c.l.b16 %v996
    %v1076 = vunpack.c.h.b16 %v996
    %v1077 = vunpack.c.l.b16 %v997
    %v1078 = vunpack.c.l.b16 %v998
    %v1079 = vunpack.c.h.b16 %v998
    %v1080 = vunpack.c.l.b16 %v999
    %v1081 = vpack.c.b16 %v1036, %v1033
    %v1082 = vpack.c.b16 %v1037, %v1034
    %v1083 = vpack.c.b16 %v1038, %v1035
    %v1084 = vpack.c.b16 %v1042, %v1039
    %v1085 = vpack.c.b16 %v1043, %v1040
    %v1086 = vpack.c.b16 %v1044, %v1041
    %v1087 = vpack.c.b16 %v1048, %v1045
    %v1088 = vpack.c.b16 %v1049, %v1046
    %v1089 = vpack.c.b16 %v1050, %v1047
    %v1090 = vpack.c.b16 %v1054, %v1051
    %v1091 = vpack.c.b16 %v1055, %v1052
    %v1092 = vpack.c.b16 %v1056, %v1053
    %v1093 = vpack.c.b16 %v1060, %v1057
    %v1094 = vpack.c.b16 %v1061, %v1058
    %v1095 = vpack.c.b16 %v1062, %v1059
    %v1096 = vpack.c.b16 %v1066, %v1063
    %v1097 = vpack.c.b16 %v1067, %v1064
    %v1098 = vpack.c.b16 %v1068, %v1065
    %v1099 = vpack.c.b16 %v1072, %v1069
    %v1100 = vpack.c.b16 %v1073, %v1070
    %v1101 = vpack.c.b16 %v1074, %v1071
    %v1102 = vpack.c.b16 %v1078, %v1075
    %v1103 = vpack.c.b16 %v1079, %v1076
    %v1104 = vpack.c.b16 %v1080, %v1077
    %1129 = vmatpush.bf16.msra.mxu0 %v1102
    %1130 = vmatpush.bf16.msra.mxu0 %v1099
    %1131 = vmatpush.bf16.msra.mxu0 %v1096
    %1132 = vmatpush.bf16.msra.mxu0 %v1093
    %1133 = vmatpush.bf16.msra.mxu0 %v1090
    %1134 = vmatpush.bf16.msra.mxu0 %v1087
    %1135 = vmatpush.bf16.msra.mxu0 %v1084
    %1136 = vmatpush.bf16.msra.mxu0 %v1081
    %1137 = vmatmul.bf16.gmra.mxu0 %v1000
    %v1138 = vpop.f32.mrf.mxu0
    %v1139 = vadd.f32 0.0, %v1138
    %v1140 = vpop.f32.mrf.mxu0
    %1141 = vdwg.mxu0
    %1142 = vmatpush.bf16.msra.mxu0 %v1103
    %1143 = vmatpush.bf16.msra.mxu0 %v1100
    %1144 = vmatpush.bf16.msra.mxu0 %v1097
    %1145 = vmatpush.bf16.msra.mxu0 %v1094
    %1146 = vmatpush.bf16.msra.mxu0 %v1091
    %1147 = vmatpush.bf16.msra.mxu0 %v1088
    %1148 = vmatpush.bf16.msra.mxu0 %v1085
    %1149 = vmatpush.bf16.msra.mxu0 %v1082
    %1150 = vmatmul.bf16.gmra.mxu0 %v1000
    %v1151 = vpop.f32.mrf.mxu0
    %v1152 = vadd.f32 0.0, %v1151
    %v1153 = vpop.f32.mrf.mxu0
    %1154 = vdwg.mxu0
    %1155 = vmatpush.bf16.msra.mxu0 %v1104
    %1156 = vmatpush.bf16.msra.mxu0 %v1101
    %1157 = vmatpush.bf16.msra.mxu0 %v1098
    %1158 = vmatpush.bf16.msra.mxu0 %v1095
    %1159 = vmatpush.bf16.msra.mxu0 %v1092
    %1160 = vmatpush.bf16.msra.mxu0 %v1089
    %1161 = vmatpush.bf16.msra.mxu0 %v1086
    %1162 = vmatpush.bf16.msra.mxu0 %v1083
    %1163 = vmatmul.bf16.gmra.mxu0 %v1000
    %v1164 = vpop.f32.mrf.mxu0
    %v1165 = vadd.f32 0.0, %v1164
    %v1166 = vpop.f32.mrf.mxu0
    %1167 = vdwg.mxu0
    %v1168 = vadd.f32 %v939, %v1139
    %v1169 = vadd.f32 %v952, %v1152
    %v1170 = vxor.u32 %v1168, 2147483648
    %v1171 = vxor.u32 %v1169, 2147483648
    %v1172 = vmul.f32 %v1170, 1.442695
    %v1173 = vpow.pop %v1172
    %v1174 = vmul.f32 %v1171, 1.442695
    %v1175 = vpow.pop %v1174
    %v1176 = vadd.f32 %v1173, 1.0
    %v1177 = vadd.f32 %v1175, 1.0
    %v1178 = vrcp.pop %v1176
    %v1179 = vmul.f32 %v1176, %v1178
    %v1180 = vsub.f32 1.0, %v1179
    %v1181 = vmul.f32 %v1178, %v1180
    %v1182 = vadd.f32 %v1178, %v1181
    %vm1183 = vweird.f32 %v1176
    %vm1184 = vweird.f32 %v1178
    %vm1185 = vmor %vm1183, %vm1184
    %v1186 = vsel %vm1185, %v1178, %v1182
    %v1187 = vand.u32 2147483647, %v1176
    %vm1188 = vcmp.eq.f32.partialorder %v1187, 8.507059e+37
    %v1189 = vand.u32 %v1176, 2147483648
    %v1190 = vor.u32 1.1754944e-38, %v1189
    %v1191 = vsel %vm1188, %v1190, %v1186
    %v1192 = vmul.f32 1.0, %v1191
    %v1193 = vrcp.pop %v1177
    %v1194 = vmul.f32 %v1177, %v1193
    %v1195 = vsub.f32 1.0, %v1194
    %v1196 = vmul.f32 %v1193, %v1195
    %v1197 = vadd.f32 %v1193, %v1196
    %vm1198 = vweird.f32 %v1177
    %vm1199 = vweird.f32 %v1193
    %vm1200 = vmor %vm1198, %vm1199
    %v1201 = vsel %vm1200, %v1193, %v1197
    %v1202 = vand.u32 2147483647, %v1177
    %vm1203 = vcmp.eq.f32.partialorder %v1202, 8.507059e+37
    %v1204 = vand.u32 %v1177, 2147483648
    %v1205 = vor.u32 1.1754944e-38, %v1204
    %v1206 = vsel %vm1203, %v1205, %v1201
    %v1207 = vmul.f32 1.0, %v1206
    %v1208 = vadd.f32 %v1165, %v102
    %v1209 = vmul.f32 %v1192, %v1208
    %v1210 = vadd.f32 %v965, %v1209
    %v1211 = vtanh.pop %v1210
    %v1212 = vsub.f32 1.0, %v1207
    %v1213 = vmul.f32 %v1212, %v1211
    %v1214 = vmul.f32 %v1207, %v431
    %v1215 = vadd.f32 %v1213, %v1214
    %v1216 = vpack.c.bf16 %v768, %v768
    %1217 = vmatpush.bf16.msra.mxu0 %v567
    %1218 = vmatpush.bf16.msra.mxu0 %v564
    %1219 = vmatpush.bf16.msra.mxu0 %v561
    %1220 = vmatpush.bf16.msra.mxu0 %v558
    %1221 = vmatpush.bf16.msra.mxu0 %v555
    %1222 = vmatpush.bf16.msra.mxu0 %v552
    %1223 = vmatpush.bf16.msra.mxu0 %v549
    %1224 = vmatpush.bf16.msra.mxu0 %v546
    %1225 = vmatmul.bf16.gmra.mxu0 %v1216
    %v1226 = vpop.f32.mrf.mxu0
    %v1227 = vadd.f32 0.0, %v1226
    %v1228 = vpop.f32.mrf.mxu0
    %1229 = vdwg.mxu0
    %1230 = vmatpush.bf16.msra.mxu0 %v568
    %1231 = vmatpush.bf16.msra.mxu0 %v565
    %1232 = vmatpush.bf16.msra.mxu0 %v562
    %1233 = vmatpush.bf16.msra.mxu0 %v559
    %1234 = vmatpush.bf16.msra.mxu0 %v556
    %1235 = vmatpush.bf16.msra.mxu0 %v553
    %1236 = vmatpush.bf16.msra.mxu0 %v550
    %1237 = vmatpush.bf16.msra.mxu0 %v547
    %1238 = vmatmul.bf16.gmra.mxu0 %v1216
    %v1239 = vpop.f32.mrf.mxu0
    %v1240 = vadd.f32 0.0, %v1239
    %v1241 = vpop.f32.mrf.mxu0
    %1242 = vdwg.mxu0
    %1243 = vmatpush.bf16.msra.mxu0 %v569
    %1244 = vmatpush.bf16.msra.mxu0 %v566
    %1245 = vmatpush.bf16.msra.mxu0 %v563
    %1246 = vmatpush.bf16.msra.mxu0 %v560
    %1247 = vmatpush.bf16.msra.mxu0 %v557
    %1248 = vmatpush.bf16.msra.mxu0 %v554
    %1249 = vmatpush.bf16.msra.mxu0 %v551
    %1250 = vmatpush.bf16.msra.mxu0 %v548
    %1251 = vmatmul.bf16.gmra.mxu0 %v1216
    %v1252 = vpop.f32.mrf.mxu0
    %v1253 = vadd.f32 0.0, %v1252
    %v1254 = vpop.f32.mrf.mxu0
    %1255 = vdwg.mxu0
    %v1256 = vadd.f32 %v401, %v1227
    %v1257 = vadd.f32 %v414, %v1240
    %v1258 = vxor.u32 %v1256, 2147483648
    %v1259 = vxor.u32 %v1257, 2147483648
    %v1260 = vmul.f32 %v1258, 1.442695
    %v1261 = vpow.pop %v1260
    %v1262 = vmul.f32 %v1259, 1.442695
    %v1263 = vpow.pop %v1262
    %v1264 = vadd.f32 %v1261, 1.0
    %v1265 = vadd.f32 %v1263, 1.0
    %v1266 = vrcp.pop %v1264
    %v1267 = vmul.f32 %v1264, %v1266
    %v1268 = vsub.f32 1.0, %v1267
    %v1269 = vmul.f32 %v1266, %v1268
    %v1270 = vadd.f32 %v1266, %v1269
    %vm1271 = vweird.f32 %v1264
    %vm1272 = vweird.f32 %v1266
    %vm1273 = vmor %vm1271, %vm1272
    %v1274 = vsel %vm1273, %v1266, %v1270
    %v1275 = vand.u32 2147483647, %v1264
    %vm1276 = vcmp.eq.f32.partialorder %v1275, 8.507059e+37
    %v1277 = vand.u32 %v1264, 2147483648
    %v1278 = vor.u32 1.1754944e-38, %v1277
    %v1279 = vsel %vm1276, %v1278, %v1274
    %v1280 = vmul.f32 1.0, %v1279
    %v1281 = vrcp.pop %v1265
    %v1282 = vmul.f32 %v1265, %v1281
    %v1283 = vsub.f32 1.0, %v1282
    %v1284 = vmul.f32 %v1281, %v1283
    %v1285 = vadd.f32 %v1281, %v1284
    %vm1286 = vweird.f32 %v1265
    %vm1287 = vweird.f32 %v1281
    %vm1288 = vmor %vm1286, %vm1287
    %v1289 = vsel %vm1288, %v1281, %v1285
    %v1290 = vand.u32 2147483647, %v1265
    %vm1291 = vcmp.eq.f32.partialorder %v1290, 8.507059e+37
    %v1292 = vand.u32 %v1265, 2147483648
    %v1293 = vor.u32 1.1754944e-38, %v1292
    %v1294 = vsel %vm1291, %v1293, %v1289
    %v1295 = vmul.f32 1.0, %v1294
    %v1296 = vadd.f32 %v1253, %v98
    %v1297 = vmul.f32 %v1280, %v1296
    %v1298 = vadd.f32 %v427, %v1297
    %v1299 = vtanh.pop %v1298
    %v1300 = vsub.f32 1.0, %v1295
    %v1301 = vmul.f32 %v1300, %v1299
    %v1302 = vmul.f32 %v1295, %v768
    %v1303 = vadd.f32 %v1301, %v1302
    %1304 = vmatpush.bf16.msra.mxu0 %v902
    %1305 = vmatpush.bf16.msra.mxu0 %v899
    %1306 = vmatpush.bf16.msra.mxu0 %v896
    %1307 = vmatpush.bf16.msra.mxu0 %v893
    %1308 = vmatpush.bf16.msra.mxu0 %v890
    %1309 = vmatpush.bf16.msra.mxu0 %v887
    %1310 = vmatpush.bf16.msra.mxu0 %v884
    %1311 = vmatpush.bf16.msra.mxu0 %v881
    %1312 = vmatmul.bf16.gmra.mxu0 %v1216
    %v1313 = vpop.f32.mrf.mxu0
    %v1314 = vadd.f32 %v110, %v1313
    %v1315 = vpop.f32.mrf.mxu0
    %1316 = vdwg.mxu0
    %1317 = vmatpush.bf16.msra.mxu0 %v903
    %1318 = vmatpush.bf16.msra.mxu0 %v900
    %1319 = vmatpush.bf16.msra.mxu0 %v897
    %1320 = vmatpush.bf16.msra.mxu0 %v894
    %1321 = vmatpush.bf16.msra.mxu0 %v891
    %1322 = vmatpush.bf16.msra.mxu0 %v888
    %1323 = vmatpush.bf16.msra.mxu0 %v885
    %1324 = vmatpush.bf16.msra.mxu0 %v882
    %1325 = vmatmul.bf16.gmra.mxu0 %v1216
    %v1326 = vpop.f32.mrf.mxu0
    %v1327 = vadd.f32 %v111, %v1326
    %v1328 = vpop.f32.mrf.mxu0
    %1329 = vdwg.mxu0
    %1330 = vmatpush.bf16.msra.mxu0 %v904
    %1331 = vmatpush.bf16.msra.mxu0 %v901
    %1332 = vmatpush.bf16.msra.mxu0 %v898
    %1333 = vmatpush.bf16.msra.mxu0 %v895
    %1334 = vmatpush.bf16.msra.mxu0 %v892
    %1335 = vmatpush.bf16.msra.mxu0 %v889
    %1336 = vmatpush.bf16.msra.mxu0 %v886
    %1337 = vmatpush.bf16.msra.mxu0 %v883
    %1338 = vmatmul.bf16.gmra.mxu0 %v1216
    %v1339 = vpop.f32.mrf.mxu0
    %v1340 = vadd.f32 %v112, %v1339
    %v1341 = vpop.f32.mrf.mxu0
    %1342 = vdwg.mxu0
    %v1343 = vpack.c.bf16 %v1215, %v1215
    %1344 = vmatpush.bf16.msra.mxu0 %v1102
    %1345 = vmatpush.bf16.msra.mxu0 %v1099
    %1346 = vmatpush.bf16.msra.mxu0 %v1096
    %1347 = vmatpush.bf16.msra.mxu0 %v1093
    %1348 = vmatpush.bf16.msra.mxu0 %v1090
    %1349 = vmatpush.bf16.msra.mxu0 %v1087
    %1350 = vmatpush.bf16.msra.mxu0 %v1084
    %1351 = vmatpush.bf16.msra.mxu0 %v1081
    %1352 = vmatmul.bf16.gmra.mxu0 %v1343
    %v1353 = vpop.f32.mrf.mxu0
    %v1354 = vadd.f32 0.0, %v1353
    %v1355 = vpop.f32.mrf.mxu0
    %1356 = vdwg.mxu0
    %1357 = vmatpush.bf16.msra.mxu0 %v1103
    %1358 = vmatpush.bf16.msra.mxu0 %v1100
    %1359 = vmatpush.bf16.msra.mxu0 %v1097
    %1360 = vmatpush.bf16.msra.mxu0 %v1094
    %1361 = vmatpush.bf16.msra.mxu0 %v1091
    %1362 = vmatpush.bf16.msra.mxu0 %v1088
    %1363 = vmatpush.bf16.msra.mxu0 %v1085
    %1364 = vmatpush.bf16.msra.mxu0 %v1082
    %1365 = vmatmul.bf16.gmra.mxu0 %v1343
    %v1366 = vpop.f32.mrf.mxu0
    %v1367 = vadd.f32 0.0, %v1366
    %v1368 = vpop.f32.mrf.mxu0
    %1369 = vdwg.mxu0
    %1370 = vmatpush.bf16.msra.mxu0 %v1104
    %1371 = vmatpush.bf16.msra.mxu0 %v1101
    %1372 = vmatpush.bf16.msra.mxu0 %v1098
    %1373 = vmatpush.bf16.msra.mxu0 %v1095
    %1374 = vmatpush.bf16.msra.mxu0 %v1092
    %1375 = vmatpush.bf16.msra.mxu0 %v1089
    %1376 = vmatpush.bf16.msra.mxu0 %v1086
    %1377 = vmatpush.bf16.msra.mxu0 %v1083
    %1378 = vmatmul.bf16.gmra.mxu0 %v1343
    %v1379 = vpop.f32.mrf.mxu0
    %v1380 = vadd.f32 0.0, %v1379
    %v1381 = vpop.f32.mrf.mxu0
    %1382 = vdwg.mxu0
    %v1383 = vadd.f32 %v1314, %v1354
    %v1384 = vadd.f32 %v1327, %v1367
    %v1385 = vxor.u32 %v1383, 2147483648
    %v1386 = vxor.u32 %v1384, 2147483648
    %v1387 = vmul.f32 %v1385, 1.442695
    %v1388 = vpow.pop %v1387
    %v1389 = vmul.f32 %v1386, 1.442695
    %v1390 = vpow.pop %v1389
    %v1391 = vadd.f32 %v1388, 1.0
    %v1392 = vadd.f32 %v1390, 1.0
    %v1393 = vrcp.pop %v1391
    %v1394 = vmul.f32 %v1391, %v1393
    %v1395 = vsub.f32 1.0, %v1394
    %v1396 = vmul.f32 %v1393, %v1395
    %v1397 = vadd.f32 %v1393, %v1396
    %vm1398 = vweird.f32 %v1391
    %vm1399 = vweird.f32 %v1393
    %vm1400 = vmor %vm1398, %vm1399
    %v1401 = vsel %vm1400, %v1393, %v1397
    %v1402 = vand.u32 2147483647, %v1391
    %vm1403 = vcmp.eq.f32.partialorder %v1402, 8.507059e+37
    %v1404 = vand.u32 %v1391, 2147483648
    %v1405 = vor.u32 1.1754944e-38, %v1404
    %v1406 = vsel %vm1403, %v1405, %v1401
    %v1407 = vmul.f32 1.0, %v1406
    %v1408 = vrcp.pop %v1392
    %v1409 = vmul.f32 %v1392, %v1408
    %v1410 = vsub.f32 1.0, %v1409
    %v1411 = vmul.f32 %v1408, %v1410
    %v1412 = vadd.f32 %v1408, %v1411
    %vm1413 = vweird.f32 %v1392
    %vm1414 = vweird.f32 %v1408
    %vm1415 = vmor %vm1413, %vm1414
    %v1416 = vsel %vm1415, %v1408, %v1412
    %v1417 = vand.u32 2147483647, %v1392
    %vm1418 = vcmp.eq.f32.partialorder %v1417, 8.507059e+37
    %v1419 = vand.u32 %v1392, 2147483648
    %v1420 = vor.u32 1.1754944e-38, %v1419
    %v1421 = vsel %vm1418, %v1420, %v1416
    %v1422 = vmul.f32 1.0, %v1421
    %v1423 = vadd.f32 %v1380, %v102
    %v1424 = vmul.f32 %v1407, %v1423
    %v1425 = vadd.f32 %v1340, %v1424
    %v1426 = vtanh.pop %v1425
    %v1427 = vsub.f32 1.0, %v1422
    %v1428 = vmul.f32 %v1427, %v1426
    %v1429 = vmul.f32 %v1422, %v1215
    %v1430 = vadd.f32 %v1428, %v1429
    %v1431 = vld [vmem:[#allocation8 + $0x30] sm:$0xff]
    %v1432 = vld [vmem:[#allocation8 + $0x38] sm:$0xf]
    %v1433 = vld [vmem:[#allocation8 + $0x7c] sm:$0xff]
    %v1434 = vld [vmem:[#allocation8 + $0x84] sm:$0xf]
    %v1435 = vld [vmem:[#allocation8 + $0xc8] sm:$0xff]
    %v1436 = vld [vmem:[#allocation8 + $0xd0] sm:$0xf]
    %v1437 = vld [vmem:[#allocation8 + $0x114] sm:$0xff]
    %v1438 = vld [vmem:[#allocation8 + $0x11c] sm:$0xf]
    %v1439 = vld [vmem:[#allocation8 + $0x160] sm:$0xff]
    %v1440 = vld [vmem:[#allocation8 + $0x168] sm:$0xf]
    %v1441 = vld [vmem:[#allocation8 + $0x1ac] sm:$0xff]
    %v1442 = vld [vmem:[#allocation8 + $0x1b4] sm:$0xf]
    %v1443 = vld [vmem:[#allocation8 + $0x1f8] sm:$0xff]
    %v1444 = vld [vmem:[#allocation8 + $0x200] sm:$0xf]
    %v1445 = vld [vmem:[#allocation8 + $0x244] sm:$0xff]
    %v1446 = vld [vmem:[#allocation8 + $0x24c] sm:$0xf]
    %v1447 = vld [vmem:[#allocation8 + $0x290] sm:$0xff]
    %v1448 = vld [vmem:[#allocation8 + $0x298] sm:$0xf]
    %v1449 = vld [vmem:[#allocation8 + $0x2dc] sm:$0xff]
    %v1450 = vld [vmem:[#allocation8 + $0x2e4] sm:$0xf]
    %v1451 = vld [vmem:[#allocation8 + $0x328] sm:$0xff]
    %v1452 = vld [vmem:[#allocation8 + $0x330] sm:$0xf]
    %v1453 = vld [vmem:[#allocation8 + $0x374] sm:$0xff]
    %v1454 = vld [vmem:[#allocation8 + $0x37c] sm:$0xf]
    %v1455 = vld [vmem:[#allocation8 + $0x3c0] sm:$0xff]
    %v1456 = vld [vmem:[#allocation8 + $0x3c8] sm:$0xf]
    %v1457 = vld [vmem:[#allocation8 + $0x40c] sm:$0xff]
    %v1458 = vld [vmem:[#allocation8 + $0x414] sm:$0xf]
    %v1459 = vld [vmem:[#allocation8 + $0x458] sm:$0xff]
    %v1460 = vld [vmem:[#allocation8 + $0x460] sm:$0xf]
    %v1461 = vld [vmem:[#allocation8 + $0x4a4] sm:$0xff]
    %v1462 = vld [vmem:[#allocation8 + $0x4ac] sm:$0xf]
    %v1495 = vunpack.c.l.b16 %v1431
    %v1496 = vunpack.c.h.b16 %v1431
    %v1497 = vunpack.c.l.b16 %v1432
    %v1498 = vunpack.c.l.b16 %v1433
    %v1499 = vunpack.c.h.b16 %v1433
    %v1500 = vunpack.c.l.b16 %v1434
    %v1501 = vunpack.c.l.b16 %v1435
    %v1502 = vunpack.c.h.b16 %v1435
    %v1503 = vunpack.c.l.b16 %v1436
    %v1504 = vunpack.c.l.b16 %v1437
    %v1505 = vunpack.c.h.b16 %v1437
    %v1506 = vunpack.c.l.b16 %v1438
    %v1507 = vunpack.c.l.b16 %v1439
    %v1508 = vunpack.c.h.b16 %v1439
    %v1509 = vunpack.c.l.b16 %v1440
    %v1510 = vunpack.c.l.b16 %v1441
    %v1511 = vunpack.c.h.b16 %v1441
    %v1512 = vunpack.c.l.b16 %v1442
    %v1513 = vunpack.c.l.b16 %v1443
    %v1514 = vunpack.c.h.b16 %v1443
    %v1515 = vunpack.c.l.b16 %v1444
    %v1516 = vunpack.c.l.b16 %v1445
    %v1517 = vunpack.c.h.b16 %v1445
    %v1518 = vunpack.c.l.b16 %v1446
    %v1519 = vunpack.c.l.b16 %v1447
    %v1520 = vunpack.c.h.b16 %v1447
    %v1521 = vunpack.c.l.b16 %v1448
    %v1522 = vunpack.c.l.b16 %v1449
    %v1523 = vunpack.c.h.b16 %v1449
    %v1524 = vunpack.c.l.b16 %v1450
    %v1525 = vunpack.c.l.b16 %v1451
    %v1526 = vunpack.c.h.b16 %v1451
    %v1527 = vunpack.c.l.b16 %v1452
    %v1528 = vunpack.c.l.b16 %v1453
    %v1529 = vunpack.c.h.b16 %v1453
    %v1530 = vunpack.c.l.b16 %v1454
    %v1531 = vunpack.c.l.b16 %v1455
    %v1532 = vunpack.c.h.b16 %v1455
    %v1533 = vunpack.c.l.b16 %v1456
    %v1534 = vunpack.c.l.b16 %v1457
    %v1535 = vunpack.c.h.b16 %v1457
    %v1536 = vunpack.c.l.b16 %v1458
    %v1537 = vunpack.c.l.b16 %v1459
    %v1538 = vunpack.c.h.b16 %v1459
    %v1539 = vunpack.c.l.b16 %v1460
    %v1540 = vunpack.c.l.b16 %v1461
    %v1541 = vunpack.c.h.b16 %v1461
    %v1542 = vunpack.c.l.b16 %v1462
    %v1543 = vpack.c.b16 %v1498, %v1495
    %v1544 = vpack.c.b16 %v1499, %v1496
    %v1545 = vpack.c.b16 %v1500, %v1497
    %v1546 = vpack.c.b16 %v1504, %v1501
    %v1547 = vpack.c.b16 %v1505, %v1502
    %v1548 = vpack.c.b16 %v1506, %v1503
    %v1549 = vpack.c.b16 %v1510, %v1507
    %v1550 = vpack.c.b16 %v1511, %v1508
    %v1551 = vpack.c.b16 %v1512, %v1509
    %v1552 = vpack.c.b16 %v1516, %v1513
    %v1553 = vpack.c.b16 %v1517, %v1514
    %v1554 = vpack.c.b16 %v1518, %v1515
    %v1555 = vpack.c.b16 %v1522, %v1519
    %v1556 = vpack.c.b16 %v1523, %v1520
    %v1557 = vpack.c.b16 %v1524, %v1521
    %v1558 = vpack.c.b16 %v1528, %v1525
    %v1559 = vpack.c.b16 %v1529, %v1526
    %v1560 = vpack.c.b16 %v1530, %v1527
    %v1561 = vpack.c.b16 %v1534, %v1531
    %v1562 = vpack.c.b16 %v1535, %v1532
    %v1563 = vpack.c.b16 %v1536, %v1533
    %v1564 = vpack.c.b16 %v1540, %v1537
    %v1565 = vpack.c.b16 %v1541, %v1538
    %v1566 = vpack.c.b16 %v1542, %v1539
    %1591 = vmatpush.bf16.msra.mxu0 %v1564
    %1592 = vmatpush.bf16.msra.mxu0 %v1561
    %1593 = vmatpush.bf16.msra.mxu0 %v1558
    %1594 = vmatpush.bf16.msra.mxu0 %v1555
    %1595 = vmatpush.bf16.msra.mxu0 %v1552
    %1596 = vmatpush.bf16.msra.mxu0 %v1549
    %1597 = vmatpush.bf16.msra.mxu0 %v1546
    %1598 = vmatpush.bf16.msra.mxu0 %v1543
    %1599 = vmatmul.bf16.gmra.mxu0 %v1343
    %v1600 = vpop.f32.mrf.mxu0
    %v1601 = vadd.f32 %v118, %v1600
    %v1602 = vpop.f32.mrf.mxu0
    %1603 = vdwg.mxu0
    %1604 = vmatpush.bf16.msra.mxu0 %v1565
    %1605 = vmatpush.bf16.msra.mxu0 %v1562
    %1606 = vmatpush.bf16.msra.mxu0 %v1559
    %1607 = vmatpush.bf16.msra.mxu0 %v1556
    %1608 = vmatpush.bf16.msra.mxu0 %v1553
    %1609 = vmatpush.bf16.msra.mxu0 %v1550
    %1610 = vmatpush.bf16.msra.mxu0 %v1547
    %1611 = vmatpush.bf16.msra.mxu0 %v1544
    %1612 = vmatmul.bf16.gmra.mxu0 %v1343
    %v1613 = vpop.f32.mrf.mxu0
    %v1614 = vadd.f32 %v119, %v1613
    %v1615 = vpop.f32.mrf.mxu0
    %1616 = vdwg.mxu0
    %1617 = vmatpush.bf16.msra.mxu0 %v1566
    %1618 = vmatpush.bf16.msra.mxu0 %v1563
    %1619 = vmatpush.bf16.msra.mxu0 %v1560
    %1620 = vmatpush.bf16.msra.mxu0 %v1557
    %1621 = vmatpush.bf16.msra.mxu0 %v1554
    %1622 = vmatpush.bf16.msra.mxu0 %v1551
    %1623 = vmatpush.bf16.msra.mxu0 %v1548
    %1624 = vmatpush.bf16.msra.mxu0 %v1545
    %1625 = vmatmul.bf16.gmra.mxu0 %v1343
    %v1626 = vpop.f32.mrf.mxu0
    %v1627 = vadd.f32 %v120, %v1626
    %v1628 = vpop.f32.mrf.mxu0
    %1629 = vdwg.mxu0
    %v1630 = vld [vmem:[#allocation8 + $0x3c] sm:$0xff]
    %v1631 = vld [vmem:[#allocation8 + $0x44] sm:$0xf]
    %v1632 = vld [vmem:[#allocation8 + $0x88] sm:$0xff]
    %v1633 = vld [vmem:[#allocation8 + $0x90] sm:$0xf]
    %v1634 = vld [vmem:[#allocation8 + $0xd4] sm:$0xff]
    %v1635 = vld [vmem:[#allocation8 + $0xdc] sm:$0xf]
    %v1636 = vld [vmem:[#allocation8 + $0x120] sm:$0xff]
    %v1637 = vld [vmem:[#allocation8 + $0x128] sm:$0xf]
    %v1638 = vld [vmem:[#allocation8 + $0x16c] sm:$0xff]
    %v1639 = vld [vmem:[#allocation8 + $0x174] sm:$0xf]
    %v1640 = vld [vmem:[#allocation8 + $0x1b8] sm:$0xff]
    %v1641 = vld [vmem:[#allocation8 + $0x1c0] sm:$0xf]
    %v1642 = vld [vmem:[#allocation8 + $0x204] sm:$0xff]
    %v1643 = vld [vmem:[#allocation8 + $0x20c] sm:$0xf]
    %v1644 = vld [vmem:[#allocation8 + $0x250] sm:$0xff]
    %v1645 = vld [vmem:[#allocation8 + $0x258] sm:$0xf]
    %v1646 = vld [vmem:[#allocation8 + $0x29c] sm:$0xff]
    %v1647 = vld [vmem:[#allocation8 + $0x2a4] sm:$0xf]
    %v1648 = vld [vmem:[#allocation8 + $0x2e8] sm:$0xff]
    %v1649 = vld [vmem:[#allocation8 + $0x2f0] sm:$0xf]
    %v1650 = vld [vmem:[#allocation8 + $0x334] sm:$0xff]
    %v1651 = vld [vmem:[#allocation8 + $0x33c] sm:$0xf]
    %v1652 = vld [vmem:[#allocation8 + $0x380] sm:$0xff]
    %v1653 = vld [vmem:[#allocation8 + $0x388] sm:$0xf]
    %v1654 = vld [vmem:[#allocation8 + $0x3cc] sm:$0xff]
    %v1655 = vld [vmem:[#allocation8 + $0x3d4] sm:$0xf]
    %v1656 = vld [vmem:[#allocation8 + $0x418] sm:$0xff]
    %v1657 = vld [vmem:[#allocation8 + $0x420] sm:$0xf]
    %v1658 = vld [vmem:[#allocation8 + $0x464] sm:$0xff]
    %v1659 = vld [vmem:[#allocation8 + $0x46c] sm:$0xf]
    %v1660 = vld [vmem:[#allocation8 + $0x4b0] sm:$0xff]
    %v1661 = vld [vmem:[#allocation8 + $0x4b8] sm:$0xf]
    %v1662 = vpack.c.bf16 %v432, %v432
    %v1695 = vunpack.c.l.b16 %v1630
    %v1696 = vunpack.c.h.b16 %v1630
    %v1697 = vunpack.c.l.b16 %v1631
    %v1698 = vunpack.c.l.b16 %v1632
    %v1699 = vunpack.c.h.b16 %v1632
    %v1700 = vunpack.c.l.b16 %v1633
    %v1701 = vunpack.c.l.b16 %v1634
    %v1702 = vunpack.c.h.b16 %v1634
    %v1703 = vunpack.c.l.b16 %v1635
    %v1704 = vunpack.c.l.b16 %v1636
    %v1705 = vunpack.c.h.b16 %v1636
    %v1706 = vunpack.c.l.b16 %v1637
    %v1707 = vunpack.c.l.b16 %v1638
    %v1708 = vunpack.c.h.b16 %v1638
    %v1709 = vunpack.c.l.b16 %v1639
    %v1710 = vunpack.c.l.b16 %v1640
    %v1711 = vunpack.c.h.b16 %v1640
    %v1712 = vunpack.c.l.b16 %v1641
    %v1713 = vunpack.c.l.b16 %v1642
    %v1714 = vunpack.c.h.b16 %v1642
    %v1715 = vunpack.c.l.b16 %v1643
    %v1716 = vunpack.c.l.b16 %v1644
    %v1717 = vunpack.c.h.b16 %v1644
    %v1718 = vunpack.c.l.b16 %v1645
    %v1719 = vunpack.c.l.b16 %v1646
    %v1720 = vunpack.c.h.b16 %v1646
    %v1721 = vunpack.c.l.b16 %v1647
    %v1722 = vunpack.c.l.b16 %v1648
    %v1723 = vunpack.c.h.b16 %v1648
    %v1724 = vunpack.c.l.b16 %v1649
    %v1725 = vunpack.c.l.b16 %v1650
    %v1726 = vunpack.c.h.b16 %v1650
    %v1727 = vunpack.c.l.b16 %v1651
    %v1728 = vunpack.c.l.b16 %v1652
    %v1729 = vunpack.c.h.b16 %v1652
    %v1730 = vunpack.c.l.b16 %v1653
    %v1731 = vunpack.c.l.b16 %v1654
    %v1732 = vunpack.c.h.b16 %v1654
    %v1733 = vunpack.c.l.b16 %v1655
    %v1734 = vunpack.c.l.b16 %v1656
    %v1735 = vunpack.c.h.b16 %v1656
    %v1736 = vunpack.c.l.b16 %v1657
    %v1737 = vunpack.c.l.b16 %v1658
    %v1738 = vunpack.c.h.b16 %v1658
    %v1739 = vunpack.c.l.b16 %v1659
    %v1740 = vunpack.c.l.b16 %v1660
    %v1741 = vunpack.c.h.b16 %v1660
    %v1742 = vunpack.c.l.b16 %v1661
    %v1743 = vpack.c.b16 %v1698, %v1695
    %v1744 = vpack.c.b16 %v1699, %v1696
    %v1745 = vpack.c.b16 %v1700, %v1697
    %v1746 = vpack.c.b16 %v1704, %v1701
    %v1747 = vpack.c.b16 %v1705, %v1702
    %v1748 = vpack.c.b16 %v1706, %v1703
    %v1749 = vpack.c.b16 %v1710, %v1707
    %v1750 = vpack.c.b16 %v1711, %v1708
    %v1751 = vpack.c.b16 %v1712, %v1709
    %v1752 = vpack.c.b16 %v1716, %v1713
    %v1753 = vpack.c.b16 %v1717, %v1714
    %v1754 = vpack.c.b16 %v1718, %v1715
    %v1755 = vpack.c.b16 %v1722, %v1719
    %v1756 = vpack.c.b16 %v1723, %v1720
    %v1757 = vpack.c.b16 %v1724, %v1721
    %v1758 = vpack.c.b16 %v1728, %v1725
    %v1759 = vpack.c.b16 %v1729, %v1726
    %v1760 = vpack.c.b16 %v1730, %v1727
    %v1761 = vpack.c.b16 %v1734, %v1731
    %v1762 = vpack.c.b16 %v1735, %v1732
    %v1763 = vpack.c.b16 %v1736, %v1733
    %v1764 = vpack.c.b16 %v1740, %v1737
    %v1765 = vpack.c.b16 %v1741, %v1738
    %v1766 = vpack.c.b16 %v1742, %v1739
    %1791 = vmatpush.bf16.msra.mxu0 %v1764
    %1792 = vmatpush.bf16.msra.mxu0 %v1761
    %1793 = vmatpush.bf16.msra.mxu0 %v1758
    %1794 = vmatpush.bf16.msra.mxu0 %v1755
    %1795 = vmatpush.bf16.msra.mxu0 %v1752
    %1796 = vmatpush.bf16.msra.mxu0 %v1749
    %1797 = vmatpush.bf16.msra.mxu0 %v1746
    %1798 = vmatpush.bf16.msra.mxu0 %v1743
    %1799 = vmatmul.bf16.gmra.mxu0 %v1662
    %v1800 = vpop.f32.mrf.mxu0
    %v1801 = vadd.f32 0.0, %v1800
    %v1802 = vpop.f32.mrf.mxu0
    %1803 = vdwg.mxu0
    %1804 = vmatpush.bf16.msra.mxu0 %v1765
    %1805 = vmatpush.bf16.msra.mxu0 %v1762
    %1806 = vmatpush.bf16.msra.mxu0 %v1759
    %1807 = vmatpush.bf16.msra.mxu0 %v1756
    %1808 = vmatpush.bf16.msra.mxu0 %v1753
    %1809 = vmatpush.bf16.msra.mxu0 %v1750
    %1810 = vmatpush.bf16.msra.mxu0 %v1747
    %1811 = vmatpush.bf16.msra.mxu0 %v1744
    %1812 = vmatmul.bf16.gmra.mxu0 %v1662
    %v1813 = vpop.f32.mrf.mxu0
    %v1814 = vadd.f32 0.0, %v1813
    %v1815 = vpop.f32.mrf.mxu0
    %1816 = vdwg.mxu0
    %1817 = vmatpush.bf16.msra.mxu0 %v1766
    %1818 = vmatpush.bf16.msra.mxu0 %v1763
    %1819 = vmatpush.bf16.msra.mxu0 %v1760
    %1820 = vmatpush.bf16.msra.mxu0 %v1757
    %1821 = vmatpush.bf16.msra.mxu0 %v1754
    %1822 = vmatpush.bf16.msra.mxu0 %v1751
    %1823 = vmatpush.bf16.msra.mxu0 %v1748
    %1824 = vmatpush.bf16.msra.mxu0 %v1745
    %1825 = vmatmul.bf16.gmra.mxu0 %v1662
    %v1826 = vpop.f32.mrf.mxu0
    %v1827 = vadd.f32 0.0, %v1826
    %v1828 = vpop.f32.mrf.mxu0
    %1829 = vdwg.mxu0
    %v1830 = vadd.f32 %v1601, %v1801
    %v1831 = vadd.f32 %v1614, %v1814
    %v1832 = vxor.u32 %v1830, 2147483648
    %v1833 = vxor.u32 %v1831, 2147483648
    %v1834 = vmul.f32 %v1832, 1.442695
    %v1835 = vpow.pop %v1834
    %v1836 = vmul.f32 %v1833, 1.442695
    %v1837 = vpow.pop %v1836
    %v1838 = vadd.f32 %v1835, 1.0
    %v1839 = vadd.f32 %v1837, 1.0
    %v1840 = vrcp.pop %v1838
    %v1841 = vmul.f32 %v1838, %v1840
    %v1842 = vsub.f32 1.0, %v1841
    %v1843 = vmul.f32 %v1840, %v1842
    %v1844 = vadd.f32 %v1840, %v1843
    %vm1845 = vweird.f32 %v1838
    %vm1846 = vweird.f32 %v1840
    %vm1847 = vmor %vm1845, %vm1846
    %v1848 = vsel %vm1847, %v1840, %v1844
    %v1849 = vand.u32 2147483647, %v1838
    %vm1850 = vcmp.eq.f32.partialorder %v1849, 8.507059e+37
    %v1851 = vand.u32 %v1838, 2147483648
    %v1852 = vor.u32 1.1754944e-38, %v1851
    %v1853 = vsel %vm1850, %v1852, %v1848
    %v1854 = vmul.f32 1.0, %v1853
    %v1855 = vrcp.pop %v1839
    %v1856 = vmul.f32 %v1839, %v1855
    %v1857 = vsub.f32 1.0, %v1856
    %v1858 = vmul.f32 %v1855, %v1857
    %v1859 = vadd.f32 %v1855, %v1858
    %vm1860 = vweird.f32 %v1839
    %vm1861 = vweird.f32 %v1855
    %vm1862 = vmor %vm1860, %vm1861
    %v1863 = vsel %vm1862, %v1855, %v1859
    %v1864 = vand.u32 2147483647, %v1839
    %vm1865 = vcmp.eq.f32.partialorder %v1864, 8.507059e+37
    %v1866 = vand.u32 %v1839, 2147483648
    %v1867 = vor.u32 1.1754944e-38, %v1866
    %v1868 = vsel %vm1865, %v1867, %v1863
    %v1869 = vmul.f32 1.0, %v1868
    %v1870 = vadd.f32 %v1827, %v106
    %v1871 = vmul.f32 %v1854, %v1870
    %v1872 = vadd.f32 %v1627, %v1871
    %v1873 = vtanh.pop %v1872
    %v1874 = vsub.f32 1.0, %v1869
    %v1875 = vmul.f32 %v1874, %v1873
    %v1876 = vmul.f32 %v1869, %v432
    %v1877 = vadd.f32 %v1875, %v1876
    %v1878 = vld [vmem:[#allocation8 + $0x48] sm:$0xf]
    %v1879 = vld [vmem:[#allocation8 + $0x94] sm:$0xf]
    %v1880 = vld [vmem:[#allocation8 + $0xe0] sm:$0xf]
    %v1881 = vld [vmem:[#allocation8 + $0x12c] sm:$0xf]
    %v1882 = vld [vmem:[#allocation8 + $0x178] sm:$0xf]
    %v1883 = vld [vmem:[#allocation8 + $0x1c4] sm:$0xf]
    %v1884 = vld [vmem:[#allocation8 + $0x210] sm:$0xf]
    %v1885 = vld [vmem:[#allocation8 + $0x25c] sm:$0xf]
    %v1886 = vld [vmem:[#allocation8 + $0x2a8] sm:$0xf]
    %v1887 = vld [vmem:[#allocation8 + $0x2f4] sm:$0xf]
    %v1888 = vld [vmem:[#allocation8 + $0x340] sm:$0xf]
    %v1889 = vld [vmem:[#allocation8 + $0x38c] sm:$0xf]
    %v1890 = vld [vmem:[#allocation8 + $0x3d8] sm:$0xf]
    %v1891 = vld [vmem:[#allocation8 + $0x424] sm:$0xf]
    %v1892 = vld [vmem:[#allocation8 + $0x470] sm:$0xf]
    %v1893 = vld [vmem:[#allocation8 + $0x4bc] sm:$0xf]
    %v1894 = vpack.c.bf16 %v1877, %v1877
    %v1911 = vunpack.c.l.b16 %v1878
    %v1912 = vunpack.c.l.b16 %v1879
    %v1913 = vunpack.c.l.b16 %v1880
    %v1914 = vunpack.c.l.b16 %v1881
    %v1915 = vunpack.c.l.b16 %v1882
    %v1916 = vunpack.c.l.b16 %v1883
    %v1917 = vunpack.c.l.b16 %v1884
    %v1918 = vunpack.c.l.b16 %v1885
    %v1919 = vunpack.c.l.b16 %v1886
    %v1920 = vunpack.c.l.b16 %v1887
    %v1921 = vunpack.c.l.b16 %v1888
    %v1922 = vunpack.c.l.b16 %v1889
    %v1923 = vunpack.c.l.b16 %v1890
    %v1924 = vunpack.c.l.b16 %v1891
    %v1925 = vunpack.c.l.b16 %v1892
    %v1926 = vunpack.c.l.b16 %v1893
    %v1927 = vpack.c.b16 %v1912, %v1911
    %v1928 = vpack.c.b16 %v1914, %v1913
    %v1929 = vpack.c.b16 %v1916, %v1915
    %v1930 = vpack.c.b16 %v1918, %v1917
    %v1931 = vpack.c.b16 %v1920, %v1919
    %v1932 = vpack.c.b16 %v1922, %v1921
    %v1933 = vpack.c.b16 %v1924, %v1923
    %v1934 = vpack.c.b16 %v1926, %v1925
    %1943 = vmatpush.bf16.msra.mxu0 %v1934
    %1944 = vmatpush.bf16.msra.mxu0 %v1933
    %1945 = vmatpush.bf16.msra.mxu0 %v1932
    %1946 = vmatpush.bf16.msra.mxu0 %v1931
    %1947 = vmatpush.bf16.msra.mxu0 %v1930
    %1948 = vmatpush.bf16.msra.mxu0 %v1929
    %1949 = vmatpush.bf16.msra.mxu0 %v1928
    %1950 = vmatpush.bf16.msra.mxu0 %v1927
    %1951 = vmatmul.bf16.gmra.mxu0 %v1894
    %v1952 = vpop.f32.mrf.mxu0
    %v1953 = vadd.f32 %v126, %v1952
    %v1954 = vpop.f32.mrf.mxu0
    %1955 = vdwg.mxu0
    %v1956 = vxor.u32 %v1953, 2147483648
    %v1957 = vmul.f32 %v1956, 1.442695
    %v1958 = vpow.pop %v1957
    %v1959 = vadd.f32 %v1958, 1.0
    %v1960 = vrcp.pop %v1959
    %v1961 = vmul.f32 %v1959, %v1960
    %v1962 = vsub.f32 1.0, %v1961
    %v1963 = vmul.f32 %v1960, %v1962
    %v1964 = vadd.f32 %v1960, %v1963
    %vm1965 = vweird.f32 %v1959
    %vm1966 = vweird.f32 %v1960
    %vm1967 = vmor %vm1965, %vm1966
    %v1968 = vsel %vm1967, %v1960, %v1964
    %v1969 = vand.u32 2147483647, %v1959
    %vm1970 = vcmp.eq.f32.partialorder %v1969, 8.507059e+37
    %v1971 = vand.u32 %v1959, 2147483648
    %v1972 = vor.u32 1.1754944e-38, %v1971
    %v1973 = vsel %vm1970, %v1972, %v1968
    %v1974 = vmul.f32 1.0, %v1973
    %1975 = vst [vmem:[#allocation11] sm:$0xff] %v1974
    %v1976 = vld [vmem:[#allocation8 + $0xc] sm:$0xff]
    %v1977 = vld [vmem:[#allocation8 + $0x14] sm:$0xf]
    %v1978 = vld [vmem:[#allocation8 + $0x58] sm:$0xff]
    %v1979 = vld [vmem:[#allocation8 + $0x60] sm:$0xf]
    %v1980 = vld [vmem:[#allocation8 + $0xa4] sm:$0xff]
    %v1981 = vld [vmem:[#allocation8 + $0xac] sm:$0xf]
    %v1982 = vld [vmem:[#allocation8 + $0xf0] sm:$0xff]
    %v1983 = vld [vmem:[#allocation8 + $0xf8] sm:$0xf]
    %v1984 = vld [vmem:[#allocation8 + $0x13c] sm:$0xff]
    %v1985 = vld [vmem:[#allocation8 + $0x144] sm:$0xf]
    %v1986 = vld [vmem:[#allocation8 + $0x188] sm:$0xff]
    %v1987 = vld [vmem:[#allocation8 + $0x190] sm:$0xf]
    %v1988 = vld [vmem:[#allocation8 + $0x1d4] sm:$0xff]
    %v1989 = vld [vmem:[#allocation8 + $0x1dc] sm:$0xf]
    %v1990 = vld [vmem:[#allocation8 + $0x220] sm:$0xff]
    %v1991 = vld [vmem:[#allocation8 + $0x228] sm:$0xf]
    %v1992 = vld [vmem:[#allocation8 + $0x26c] sm:$0xff]
    %v1993 = vld [vmem:[#allocation8 + $0x274] sm:$0xf]
    %v1994 = vld [vmem:[#allocation8 + $0x2b8] sm:$0xff]
    %v1995 = vld [vmem:[#allocation8 + $0x2c0] sm:$0xf]
    %v1996 = vld [vmem:[#allocation8 + $0x304] sm:$0xff]
    %v1997 = vld [vmem:[#allocation8 + $0x30c] sm:$0xf]
    %v1998 = vld [vmem:[#allocation8 + $0x350] sm:$0xff]
    %v1999 = vld [vmem:[#allocation8 + $0x358] sm:$0xf]
    %v2000 = vld [vmem:[#allocation8 + $0x39c] sm:$0xff]
    %v2001 = vld [vmem:[#allocation8 + $0x3a4] sm:$0xf]
    %v2002 = vld [vmem:[#allocation8 + $0x3e8] sm:$0xff]
    %v2003 = vld [vmem:[#allocation8 + $0x3f0] sm:$0xf]
    %v2004 = vld [vmem:[#allocation8 + $0x434] sm:$0xff]
    %v2005 = vld [vmem:[#allocation8 + $0x43c] sm:$0xf]
    %v2006 = vld [vmem:[#allocation8 + $0x480] sm:$0xff]
    %v2007 = vld [vmem:[#allocation8 + $0x488] sm:$0xf]
    %v2008 = vpack.c.bf16 %v1303, %v1303
    %v2041 = vunpack.c.l.b16 %v1976
    %v2042 = vunpack.c.h.b16 %v1976
    %v2043 = vunpack.c.l.b16 %v1977
    %v2044 = vunpack.c.l.b16 %v1978
    %v2045 = vunpack.c.h.b16 %v1978
    %v2046 = vunpack.c.l.b16 %v1979
    %v2047 = vunpack.c.l.b16 %v1980
    %v2048 = vunpack.c.h.b16 %v1980
    %v2049 = vunpack.c.l.b16 %v1981
    %v2050 = vunpack.c.l.b16 %v1982
    %v2051 = vunpack.c.h.b16 %v1982
    %v2052 = vunpack.c.l.b16 %v1983
    %v2053 = vunpack.c.l.b16 %v1984
    %v2054 = vunpack.c.h.b16 %v1984
    %v2055 = vunpack.c.l.b16 %v1985
    %v2056 = vunpack.c.l.b16 %v1986
    %v2057 = vunpack.c.h.b16 %v1986
    %v2058 = vunpack.c.l.b16 %v1987
    %v2059 = vunpack.c.l.b16 %v1988
    %v2060 = vunpack.c.h.b16 %v1988
    %v2061 = vunpack.c.l.b16 %v1989
    %v2062 = vunpack.c.l.b16 %v1990
    %v2063 = vunpack.c.h.b16 %v1990
    %v2064 = vunpack.c.l.b16 %v1991
    %v2065 = vunpack.c.l.b16 %v1992
    %v2066 = vunpack.c.h.b16 %v1992
    %v2067 = vunpack.c.l.b16 %v1993
    %v2068 = vunpack.c.l.b16 %v1994
    %v2069 = vunpack.c.h.b16 %v1994
    %v2070 = vunpack.c.l.b16 %v1995
    %v2071 = vunpack.c.l.b16 %v1996
    %v2072 = vunpack.c.h.b16 %v1996
    %v2073 = vunpack.c.l.b16 %v1997
    %v2074 = vunpack.c.l.b16 %v1998
    %v2075 = vunpack.c.h.b16 %v1998
    %v2076 = vunpack.c.l.b16 %v1999
    %v2077 = vunpack.c.l.b16 %v2000
    %v2078 = vunpack.c.h.b16 %v2000
    %v2079 = vunpack.c.l.b16 %v2001
    %v2080 = vunpack.c.l.b16 %v2002
    %v2081 = vunpack.c.h.b16 %v2002
    %v2082 = vunpack.c.l.b16 %v2003
    %v2083 = vunpack.c.l.b16 %v2004
    %v2084 = vunpack.c.h.b16 %v2004
    %v2085 = vunpack.c.l.b16 %v2005
    %v2086 = vunpack.c.l.b16 %v2006
    %v2087 = vunpack.c.h.b16 %v2006
    %v2088 = vunpack.c.l.b16 %v2007
    %v2089 = vpack.c.b16 %v2044, %v2041
    %v2090 = vpack.c.b16 %v2045, %v2042
    %v2091 = vpack.c.b16 %v2046, %v2043
    %v2092 = vpack.c.b16 %v2050, %v2047
    %v2093 = vpack.c.b16 %v2051, %v2048
    %v2094 = vpack.c.b16 %v2052, %v2049
    %v2095 = vpack.c.b16 %v2056, %v2053
    %v2096 = vpack.c.b16 %v2057, %v2054
    %v2097 = vpack.c.b16 %v2058, %v2055
    %v2098 = vpack.c.b16 %v2062, %v2059
    %v2099 = vpack.c.b16 %v2063, %v2060
    %v2100 = vpack.c.b16 %v2064, %v2061
    %v2101 = vpack.c.b16 %v2068, %v2065
    %v2102 = vpack.c.b16 %v2069, %v2066
    %v2103 = vpack.c.b16 %v2070, %v2067
    %v2104 = vpack.c.b16 %v2074, %v2071
    %v2105 = vpack.c.b16 %v2075, %v2072
    %v2106 = vpack.c.b16 %v2076, %v2073
    %v2107 = vpack.c.b16 %v2080, %v2077
    %v2108 = vpack.c.b16 %v2081, %v2078
    %v2109 = vpack.c.b16 %v2082, %v2079
    %v2110 = vpack.c.b16 %v2086, %v2083
    %v2111 = vpack.c.b16 %v2087, %v2084
    %v2112 = vpack.c.b16 %v2088, %v2085
    %2137 = vmatpush.bf16.msra.mxu0 %v2110
    %2138 = vmatpush.bf16.msra.mxu0 %v2107
    %2139 = vmatpush.bf16.msra.mxu0 %v2104
    %2140 = vmatpush.bf16.msra.mxu0 %v2101
    %2141 = vmatpush.bf16.msra.mxu0 %v2098
    %2142 = vmatpush.bf16.msra.mxu0 %v2095
    %2143 = vmatpush.bf16.msra.mxu0 %v2092
    %2144 = vmatpush.bf16.msra.mxu0 %v2089
    %2145 = vmatmul.bf16.gmra.mxu0 %v2008
    %v2146 = vpop.f32.mrf.mxu0
    %v2147 = vadd.f32 0.0, %v2146
    %v2148 = vpop.f32.mrf.mxu0
    %2149 = vdwg.mxu0
    %2150 = vmatpush.bf16.msra.mxu0 %v2111
    %2151 = vmatpush.bf16.msra.mxu0 %v2108
    %2152 = vmatpush.bf16.msra.mxu0 %v2105
    %2153 = vmatpush.bf16.msra.mxu0 %v2102
    %2154 = vmatpush.bf16.msra.mxu0 %v2099
    %2155 = vmatpush.bf16.msra.mxu0 %v2096
    %2156 = vmatpush.bf16.msra.mxu0 %v2093
    %2157 = vmatpush.bf16.msra.mxu0 %v2090
    %2158 = vmatmul.bf16.gmra.mxu0 %v2008
    %v2159 = vpop.f32.mrf.mxu0
    %v2160 = vadd.f32 0.0, %v2159
    %v2161 = vpop.f32.mrf.mxu0
    %2162 = vdwg.mxu0
    %2163 = vmatpush.bf16.msra.mxu0 %v2112
    %2164 = vmatpush.bf16.msra.mxu0 %v2109
    %2165 = vmatpush.bf16.msra.mxu0 %v2106
    %2166 = vmatpush.bf16.msra.mxu0 %v2103
    %2167 = vmatpush.bf16.msra.mxu0 %v2100
    %2168 = vmatpush.bf16.msra.mxu0 %v2097
    %2169 = vmatpush.bf16.msra.mxu0 %v2094
    %2170 = vmatpush.bf16.msra.mxu0 %v2091
    %2171 = vmatmul.bf16.gmra.mxu0 %v2008
    %v2172 = vpop.f32.mrf.mxu0
    %v2173 = vadd.f32 0.0, %v2172
    %v2174 = vpop.f32.mrf.mxu0
    %2175 = vdwg.mxu0
    %v2176 = vadd.f32 %v401, %v2147
    %v2177 = vadd.f32 %v414, %v2160
    %v2178 = vxor.u32 %v2176, 2147483648
    %v2179 = vxor.u32 %v2177, 2147483648
    %v2180 = vmul.f32 %v2178, 1.442695
    %v2181 = vpow.pop %v2180
    %v2182 = vmul.f32 %v2179, 1.442695
    %v2183 = vpow.pop %v2182
    %v2184 = vadd.f32 %v2181, 1.0
    %v2185 = vadd.f32 %v2183, 1.0
    %v2186 = vrcp.pop %v2184
    %v2187 = vmul.f32 %v2184, %v2186
    %v2188 = vsub.f32 1.0, %v2187
    %v2189 = vmul.f32 %v2186, %v2188
    %v2190 = vadd.f32 %v2186, %v2189
    %vm2191 = vweird.f32 %v2184
    %vm2192 = vweird.f32 %v2186
    %vm2193 = vmor %vm2191, %vm2192
    %v2194 = vsel %vm2193, %v2186, %v2190
    %v2195 = vand.u32 2147483647, %v2184
    %vm2196 = vcmp.eq.f32.partialorder %v2195, 8.507059e+37
    %v2197 = vand.u32 %v2184, 2147483648
    %v2198 = vor.u32 1.1754944e-38, %v2197
    %v2199 = vsel %vm2196, %v2198, %v2194
    %v2200 = vmul.f32 1.0, %v2199
    %v2201 = vrcp.pop %v2185
    %v2202 = vmul.f32 %v2185, %v2201
    %v2203 = vsub.f32 1.0, %v2202
    %v2204 = vmul.f32 %v2201, %v2203
    %v2205 = vadd.f32 %v2201, %v2204
    %vm2206 = vweird.f32 %v2185
    %vm2207 = vweird.f32 %v2201
    %vm2208 = vmor %vm2206, %vm2207
    %v2209 = vsel %vm2208, %v2201, %v2205
    %v2210 = vand.u32 2147483647, %v2185
    %vm2211 = vcmp.eq.f32.partialorder %v2210, 8.507059e+37
    %v2212 = vand.u32 %v2185, 2147483648
    %v2213 = vor.u32 1.1754944e-38, %v2212
    %v2214 = vsel %vm2211, %v2213, %v2209
    %v2215 = vmul.f32 1.0, %v2214
    %v2216 = vadd.f32 %v2173, %v98
    %v2217 = vmul.f32 %v2200, %v2216
    %v2218 = vadd.f32 %v427, %v2217
    %v2219 = vtanh.pop %v2218
    %v2220 = vsub.f32 1.0, %v2215
    %v2221 = vmul.f32 %v2220, %v2219
    %v2222 = vmul.f32 %v2215, %v1303
    %v2223 = vadd.f32 %v2221, %v2222
    %v2224 = vld [vmem:[#allocation8 + $0x18] sm:$0xff]
    %v2225 = vld [vmem:[#allocation8 + $0x20] sm:$0xf]
    %v2226 = vld [vmem:[#allocation8 + $0x64] sm:$0xff]
    %v2227 = vld [vmem:[#allocation8 + $0x6c] sm:$0xf]
    %v2228 = vld [vmem:[#allocation8 + $0xb0] sm:$0xff]
    %v2229 = vld [vmem:[#allocation8 + $0xb8] sm:$0xf]
    %v2230 = vld [vmem:[#allocation8 + $0xfc] sm:$0xff]
    %v2231 = vld [vmem:[#allocation8 + $0x104] sm:$0xf]
    %v2232 = vld [vmem:[#allocation8 + $0x148] sm:$0xff]
    %v2233 = vld [vmem:[#allocation8 + $0x150] sm:$0xf]
    %v2234 = vld [vmem:[#allocation8 + $0x194] sm:$0xff]
    %v2235 = vld [vmem:[#allocation8 + $0x19c] sm:$0xf]
    %v2236 = vld [vmem:[#allocation8 + $0x1e0] sm:$0xff]
    %v2237 = vld [vmem:[#allocation8 + $0x1e8] sm:$0xf]
    %v2238 = vld [vmem:[#allocation8 + $0x22c] sm:$0xff]
    %v2239 = vld [vmem:[#allocation8 + $0x234] sm:$0xf]
    %v2240 = vld [vmem:[#allocation8 + $0x278] sm:$0xff]
    %v2241 = vld [vmem:[#allocation8 + $0x280] sm:$0xf]
    %v2242 = vld [vmem:[#allocation8 + $0x2c4] sm:$0xff]
    %v2243 = vld [vmem:[#allocation8 + $0x2cc] sm:$0xf]
    %v2244 = vld [vmem:[#allocation8 + $0x310] sm:$0xff]
    %v2245 = vld [vmem:[#allocation8 + $0x318] sm:$0xf]
    %v2246 = vld [vmem:[#allocation8 + $0x35c] sm:$0xff]
    %v2247 = vld [vmem:[#allocation8 + $0x364] sm:$0xf]
    %v2248 = vld [vmem:[#allocation8 + $0x3a8] sm:$0xff]
    %v2249 = vld [vmem:[#allocation8 + $0x3b0] sm:$0xf]
    %v2250 = vld [vmem:[#allocation8 + $0x3f4] sm:$0xff]
    %v2251 = vld [vmem:[#allocation8 + $0x3fc] sm:$0xf]
    %v2252 = vld [vmem:[#allocation8 + $0x440] sm:$0xff]
    %v2253 = vld [vmem:[#allocation8 + $0x448] sm:$0xf]
    %v2254 = vld [vmem:[#allocation8 + $0x48c] sm:$0xff]
    %v2255 = vld [vmem:[#allocation8 + $0x494] sm:$0xf]
    %v2288 = vunpack.c.l.b16 %v2224
    %v2289 = vunpack.c.h.b16 %v2224
    %v2290 = vunpack.c.l.b16 %v2225
    %v2291 = vunpack.c.l.b16 %v2226
    %v2292 = vunpack.c.h.b16 %v2226
    %v2293 = vunpack.c.l.b16 %v2227
    %v2294 = vunpack.c.l.b16 %v2228
    %v2295 = vunpack.c.h.b16 %v2228
    %v2296 = vunpack.c.l.b16 %v2229
    %v2297 = vunpack.c.l.b16 %v2230
    %v2298 = vunpack.c.h.b16 %v2230
    %v2299 = vunpack.c.l.b16 %v2231
    %v2300 = vunpack.c.l.b16 %v2232
    %v2301 = vunpack.c.h.b16 %v2232
    %v2302 = vunpack.c.l.b16 %v2233
    %v2303 = vunpack.c.l.b16 %v2234
    %v2304 = vunpack.c.h.b16 %v2234
    %v2305 = vunpack.c.l.b16 %v2235
    %v2306 = vunpack.c.l.b16 %v2236
    %v2307 = vunpack.c.h.b16 %v2236
    %v2308 = vunpack.c.l.b16 %v2237
    %v2309 = vunpack.c.l.b16 %v2238
    %v2310 = vunpack.c.h.b16 %v2238
    %v2311 = vunpack.c.l.b16 %v2239
    %v2312 = vunpack.c.l.b16 %v2240
    %v2313 = vunpack.c.h.b16 %v2240
    %v2314 = vunpack.c.l.b16 %v2241
    %v2315 = vunpack.c.l.b16 %v2242
    %v2316 = vunpack.c.h.b16 %v2242
    %v2317 = vunpack.c.l.b16 %v2243
    %v2318 = vunpack.c.l.b16 %v2244
    %v2319 = vunpack.c.h.b16 %v2244
    %v2320 = vunpack.c.l.b16 %v2245
    %v2321 = vunpack.c.l.b16 %v2246
    %v2322 = vunpack.c.h.b16 %v2246
    %v2323 = vunpack.c.l.b16 %v2247
    %v2324 = vunpack.c.l.b16 %v2248
    %v2325 = vunpack.c.h.b16 %v2248
    %v2326 = vunpack.c.l.b16 %v2249
    %v2327 = vunpack.c.l.b16 %v2250
    %v2328 = vunpack.c.h.b16 %v2250
    %v2329 = vunpack.c.l.b16 %v2251
    %v2330 = vunpack.c.l.b16 %v2252
    %v2331 = vunpack.c.h.b16 %v2252
    %v2332 = vunpack.c.l.b16 %v2253
    %v2333 = vunpack.c.l.b16 %v2254
    %v2334 = vunpack.c.h.b16 %v2254
    %v2335 = vunpack.c.l.b16 %v2255
    %v2336 = vpack.c.b16 %v2291, %v2288
    %v2337 = vpack.c.b16 %v2292, %v2289
    %v2338 = vpack.c.b16 %v2293, %v2290
    %v2339 = vpack.c.b16 %v2297, %v2294
    %v2340 = vpack.c.b16 %v2298, %v2295
    %v2341 = vpack.c.b16 %v2299, %v2296
    %v2342 = vpack.c.b16 %v2303, %v2300
    %v2343 = vpack.c.b16 %v2304, %v2301
    %v2344 = vpack.c.b16 %v2305, %v2302
    %v2345 = vpack.c.b16 %v2309, %v2306
    %v2346 = vpack.c.b16 %v2310, %v2307
    %v2347 = vpack.c.b16 %v2311, %v2308
    %v2348 = vpack.c.b16 %v2315, %v2312
    %v2349 = vpack.c.b16 %v2316, %v2313
    %v2350 = vpack.c.b16 %v2317, %v2314
    %v2351 = vpack.c.b16 %v2321, %v2318
    %v2352 = vpack.c.b16 %v2322, %v2319
    %v2353 = vpack.c.b16 %v2323, %v2320
    %v2354 = vpack.c.b16 %v2327, %v2324
    %v2355 = vpack.c.b16 %v2328, %v2325
    %v2356 = vpack.c.b16 %v2329, %v2326
    %v2357 = vpack.c.b16 %v2333, %v2330
    %v2358 = vpack.c.b16 %v2334, %v2331
    %v2359 = vpack.c.b16 %v2335, %v2332
    %2384 = vmatpush.bf16.msra.mxu0 %v2357
    %2385 = vmatpush.bf16.msra.mxu0 %v2354
    %2386 = vmatpush.bf16.msra.mxu0 %v2351
    %2387 = vmatpush.bf16.msra.mxu0 %v2348
    %2388 = vmatpush.bf16.msra.mxu0 %v2345
    %2389 = vmatpush.bf16.msra.mxu0 %v2342
    %2390 = vmatpush.bf16.msra.mxu0 %v2339
    %2391 = vmatpush.bf16.msra.mxu0 %v2336
    %2392 = vmatmul.bf16.gmra.mxu0 %v2008
    %v2393 = vpop.f32.mrf.mxu0
    %v2394 = vadd.f32 %v110, %v2393
    %v2395 = vpop.f32.mrf.mxu0
    %2396 = vdwg.mxu0
    %2397 = vmatpush.bf16.msra.mxu0 %v2358
    %2398 = vmatpush.bf16.msra.mxu0 %v2355
    %2399 = vmatpush.bf16.msra.mxu0 %v2352
    %2400 = vmatpush.bf16.msra.mxu0 %v2349
    %2401 = vmatpush.bf16.msra.mxu0 %v2346
    %2402 = vmatpush.bf16.msra.mxu0 %v2343
    %2403 = vmatpush.bf16.msra.mxu0 %v2340
    %2404 = vmatpush.bf16.msra.mxu0 %v2337
    %2405 = vmatmul.bf16.gmra.mxu0 %v2008
    %v2406 = vpop.f32.mrf.mxu0
    %v2407 = vadd.f32 %v111, %v2406
    %v2408 = vpop.f32.mrf.mxu0
    %2409 = vdwg.mxu0
    %2410 = vmatpush.bf16.msra.mxu0 %v2359
    %2411 = vmatpush.bf16.msra.mxu0 %v2356
    %2412 = vmatpush.bf16.msra.mxu0 %v2353
    %2413 = vmatpush.bf16.msra.mxu0 %v2350
    %2414 = vmatpush.bf16.msra.mxu0 %v2347
    %2415 = vmatpush.bf16.msra.mxu0 %v2344
    %2416 = vmatpush.bf16.msra.mxu0 %v2341
    %2417 = vmatpush.bf16.msra.mxu0 %v2338
    %2418 = vmatmul.bf16.gmra.mxu0 %v2008
    %v2419 = vpop.f32.mrf.mxu0
    %v2420 = vadd.f32 %v112, %v2419
    %v2421 = vpop.f32.mrf.mxu0
    %2422 = vdwg.mxu0
    %v2423 = vld [vmem:[#allocation8 + $0x24] sm:$0xff]
    %v2424 = vld [vmem:[#allocation8 + $0x2c] sm:$0xf]
    %v2425 = vld [vmem:[#allocation8 + $0x70] sm:$0xff]
    %v2426 = vld [vmem:[#allocation8 + $0x78] sm:$0xf]
    %v2427 = vld [vmem:[#allocation8 + $0xbc] sm:$0xff]
    %v2428 = vld [vmem:[#allocation8 + $0xc4] sm:$0xf]
    %v2429 = vld [vmem:[#allocation8 + $0x108] sm:$0xff]
    %v2430 = vld [vmem:[#allocation8 + $0x110] sm:$0xf]
    %v2431 = vld [vmem:[#allocation8 + $0x154] sm:$0xff]
    %v2432 = vld [vmem:[#allocation8 + $0x15c] sm:$0xf]
    %v2433 = vld [vmem:[#allocation8 + $0x1a0] sm:$0xff]
    %v2434 = vld [vmem:[#allocation8 + $0x1a8] sm:$0xf]
    %v2435 = vld [vmem:[#allocation8 + $0x1ec] sm:$0xff]
    %v2436 = vld [vmem:[#allocation8 + $0x1f4] sm:$0xf]
    %v2437 = vld [vmem:[#allocation8 + $0x238] sm:$0xff]
    %v2438 = vld [vmem:[#allocation8 + $0x240] sm:$0xf]
    %v2439 = vld [vmem:[#allocation8 + $0x284] sm:$0xff]
    %v2440 = vld [vmem:[#allocation8 + $0x28c] sm:$0xf]
    %v2441 = vld [vmem:[#allocation8 + $0x2d0] sm:$0xff]
    %v2442 = vld [vmem:[#allocation8 + $0x2d8] sm:$0xf]
    %v2443 = vld [vmem:[#allocation8 + $0x31c] sm:$0xff]
    %v2444 = vld [vmem:[#allocation8 + $0x324] sm:$0xf]
    %v2445 = vld [vmem:[#allocation8 + $0x368] sm:$0xff]
    %v2446 = vld [vmem:[#allocation8 + $0x370] sm:$0xf]
    %v2447 = vld [vmem:[#allocation8 + $0x3b4] sm:$0xff]
    %v2448 = vld [vmem:[#allocation8 + $0x3bc] sm:$0xf]
    %v2449 = vld [vmem:[#allocation8 + $0x400] sm:$0xff]
    %v2450 = vld [vmem:[#allocation8 + $0x408] sm:$0xf]
    %v2451 = vld [vmem:[#allocation8 + $0x44c] sm:$0xff]
    %v2452 = vld [vmem:[#allocation8 + $0x454] sm:$0xf]
    %v2453 = vld [vmem:[#allocation8 + $0x498] sm:$0xff]
    %v2454 = vld [vmem:[#allocation8 + $0x4a0] sm:$0xf]
    %v2455 = vpack.c.bf16 %v1430, %v1430
    %v2488 = vunpack.c.l.b16 %v2423
    %v2489 = vunpack.c.h.b16 %v2423
    %v2490 = vunpack.c.l.b16 %v2424
    %v2491 = vunpack.c.l.b16 %v2425
    %v2492 = vunpack.c.h.b16 %v2425
    %v2493 = vunpack.c.l.b16 %v2426
    %v2494 = vunpack.c.l.b16 %v2427
    %v2495 = vunpack.c.h.b16 %v2427
    %v2496 = vunpack.c.l.b16 %v2428
    %v2497 = vunpack.c.l.b16 %v2429
    %v2498 = vunpack.c.h.b16 %v2429
    %v2499 = vunpack.c.l.b16 %v2430
    %v2500 = vunpack.c.l.b16 %v2431
    %v2501 = vunpack.c.h.b16 %v2431
    %v2502 = vunpack.c.l.b16 %v2432
    %v2503 = vunpack.c.l.b16 %v2433
    %v2504 = vunpack.c.h.b16 %v2433
    %v2505 = vunpack.c.l.b16 %v2434
    %v2506 = vunpack.c.l.b16 %v2435
    %v2507 = vunpack.c.h.b16 %v2435
    %v2508 = vunpack.c.l.b16 %v2436
    %v2509 = vunpack.c.l.b16 %v2437
    %v2510 = vunpack.c.h.b16 %v2437
    %v2511 = vunpack.c.l.b16 %v2438
    %v2512 = vunpack.c.l.b16 %v2439
    %v2513 = vunpack.c.h.b16 %v2439
    %v2514 = vunpack.c.l.b16 %v2440
    %v2515 = vunpack.c.l.b16 %v2441
    %v2516 = vunpack.c.h.b16 %v2441
    %v2517 = vunpack.c.l.b16 %v2442
    %v2518 = vunpack.c.l.b16 %v2443
    %v2519 = vunpack.c.h.b16 %v2443
    %v2520 = vunpack.c.l.b16 %v2444
    %v2521 = vunpack.c.l.b16 %v2445
    %v2522 = vunpack.c.h.b16 %v2445
    %v2523 = vunpack.c.l.b16 %v2446
    %v2524 = vunpack.c.l.b16 %v2447
    %v2525 = vunpack.c.h.b16 %v2447
    %v2526 = vunpack.c.l.b16 %v2448
    %v2527 = vunpack.c.l.b16 %v2449
    %v2528 = vunpack.c.h.b16 %v2449
    %v2529 = vunpack.c.l.b16 %v2450
    %v2530 = vunpack.c.l.b16 %v2451
    %v2531 = vunpack.c.h.b16 %v2451
    %v2532 = vunpack.c.l.b16 %v2452
    %v2533 = vunpack.c.l.b16 %v2453
    %v2534 = vunpack.c.h.b16 %v2453
    %v2535 = vunpack.c.l.b16 %v2454
    %v2536 = vpack.c.b16 %v2491, %v2488
    %v2537 = vpack.c.b16 %v2492, %v2489
    %v2538 = vpack.c.b16 %v2493, %v2490
    %v2539 = vpack.c.b16 %v2497, %v2494
    %v2540 = vpack.c.b16 %v2498, %v2495
    %v2541 = vpack.c.b16 %v2499, %v2496
    %v2542 = vpack.c.b16 %v2503, %v2500
    %v2543 = vpack.c.b16 %v2504, %v2501
    %v2544 = vpack.c.b16 %v2505, %v2502
    %v2545 = vpack.c.b16 %v2509, %v2506
    %v2546 = vpack.c.b16 %v2510, %v2507
    %v2547 = vpack.c.b16 %v2511, %v2508
    %v2548 = vpack.c.b16 %v2515, %v2512
    %v2549 = vpack.c.b16 %v2516, %v2513
    %v2550 = vpack.c.b16 %v2517, %v2514
    %v2551 = vpack.c.b16 %v2521, %v2518
    %v2552 = vpack.c.b16 %v2522, %v2519
    %v2553 = vpack.c.b16 %v2523, %v2520
    %v2554 = vpack.c.b16 %v2527, %v2524
    %v2555 = vpack.c.b16 %v2528, %v2525
    %v2556 = vpack.c.b16 %v2529, %v2526
    %v2557 = vpack.c.b16 %v2533, %v2530
    %v2558 = vpack.c.b16 %v2534, %v2531
    %v2559 = vpack.c.b16 %v2535, %v2532
    %2584 = vmatpush.bf16.msra.mxu0 %v2557
    %2585 = vmatpush.bf16.msra.mxu0 %v2554
    %2586 = vmatpush.bf16.msra.mxu0 %v2551
    %2587 = vmatpush.bf16.msra.mxu0 %v2548
    %2588 = vmatpush.bf16.msra.mxu0 %v2545
    %2589 = vmatpush.bf16.msra.mxu0 %v2542
    %2590 = vmatpush.bf16.msra.mxu0 %v2539
    %2591 = vmatpush.bf16.msra.mxu0 %v2536
    %2592 = vmatmul.bf16.gmra.mxu0 %v2455
    %v2593 = vpop.f32.mrf.mxu0
    %v2594 = vadd.f32 0.0, %v2593
    %v2595 = vpop.f32.mrf.mxu0
    %2596 = vdwg.mxu0
    %2597 = vmatpush.bf16.msra.mxu0 %v2558
    %2598 = vmatpush.bf16.msra.mxu0 %v2555
    %2599 = vmatpush.bf16.msra.mxu0 %v2552
    %2600 = vmatpush.bf16.msra.mxu0 %v2549
    %2601 = vmatpush.bf16.msra.mxu0 %v2546
    %2602 = vmatpush.bf16.msra.mxu0 %v2543
    %2603 = vmatpush.bf16.msra.mxu0 %v2540
    %2604 = vmatpush.bf16.msra.mxu0 %v2537
    %2605 = vmatmul.bf16.gmra.mxu0 %v2455
    %v2606 = vpop.f32.mrf.mxu0
    %v2607 = vadd.f32 0.0, %v2606
    %v2608 = vpop.f32.mrf.mxu0
    %2609 = vdwg.mxu0
    %2610 = vmatpush.bf16.msra.mxu0 %v2559
    %2611 = vmatpush.bf16.msra.mxu0 %v2556
    %2612 = vmatpush.bf16.msra.mxu0 %v2553
    %2613 = vmatpush.bf16.msra.mxu0 %v2550
    %2614 = vmatpush.bf16.msra.mxu0 %v2547
    %2615 = vmatpush.bf16.msra.mxu0 %v2544
    %2616 = vmatpush.bf16.msra.mxu0 %v2541
    %2617 = vmatpush.bf16.msra.mxu0 %v2538
    %2618 = vmatmul.bf16.gmra.mxu0 %v2455
    %v2619 = vpop.f32.mrf.mxu0
    %v2620 = vadd.f32 0.0, %v2619
    %v2621 = vpop.f32.mrf.mxu0
    %2622 = vdwg.mxu0
    %v2623 = vadd.f32 %v2394, %v2594
    %v2624 = vadd.f32 %v2407, %v2607
    %v2625 = vxor.u32 %v2623, 2147483648
    %v2626 = vxor.u32 %v2624, 2147483648
    %v2627 = vmul.f32 %v2625, 1.442695
    %v2628 = vpow.pop %v2627
    %v2629 = vmul.f32 %v2626, 1.442695
    %v2630 = vpow.pop %v2629
    %v2631 = vadd.f32 %v2628, 1.0
    %v2632 = vadd.f32 %v2630, 1.0
    %v2633 = vrcp.pop %v2631
    %v2634 = vmul.f32 %v2631, %v2633
    %v2635 = vsub.f32 1.0, %v2634
    %v2636 = vmul.f32 %v2633, %v2635
    %v2637 = vadd.f32 %v2633, %v2636
    %vm2638 = vweird.f32 %v2631
    %vm2639 = vweird.f32 %v2633
    %vm2640 = vmor %vm2638, %vm2639
    %v2641 = vsel %vm2640, %v2633, %v2637
    %v2642 = vand.u32 2147483647, %v2631
    %vm2643 = vcmp.eq.f32.partialorder %v2642, 8.507059e+37
    %v2644 = vand.u32 %v2631, 2147483648
    %v2645 = vor.u32 1.1754944e-38, %v2644
    %v2646 = vsel %vm2643, %v2645, %v2641
    %v2647 = vmul.f32 1.0, %v2646
    %v2648 = vrcp.pop %v2632
    %v2649 = vmul.f32 %v2632, %v2648
    %v2650 = vsub.f32 1.0, %v2649
    %v2651 = vmul.f32 %v2648, %v2650
    %v2652 = vadd.f32 %v2648, %v2651
    %vm2653 = vweird.f32 %v2632
    %vm2654 = vweird.f32 %v2648
    %vm2655 = vmor %vm2653, %vm2654
    %v2656 = vsel %vm2655, %v2648, %v2652
    %v2657 = vand.u32 2147483647, %v2632
    %vm2658 = vcmp.eq.f32.partialorder %v2657, 8.507059e+37
    %v2659 = vand.u32 %v2632, 2147483648
    %v2660 = vor.u32 1.1754944e-38, %v2659
    %v2661 = vsel %vm2658, %v2660, %v2656
    %v2662 = vmul.f32 1.0, %v2661
    %v2663 = vadd.f32 %v2620, %v102
    %v2664 = vmul.f32 %v2647, %v2663
    %v2665 = vadd.f32 %v2420, %v2664
    %v2666 = vtanh.pop %v2665
    %v2667 = vsub.f32 1.0, %v2662
    %v2668 = vmul.f32 %v2667, %v2666
    %v2669 = vmul.f32 %v2662, %v1430
    %v2670 = vadd.f32 %v2668, %v2669
    %v2671 = vld [vmem:[#allocation8 + $0x30] sm:$0xff]
    %v2672 = vld [vmem:[#allocation8 + $0x38] sm:$0xf]
    %v2673 = vld [vmem:[#allocation8 + $0x7c] sm:$0xff]
    %v2674 = vld [vmem:[#allocation8 + $0x84] sm:$0xf]
    %v2675 = vld [vmem:[#allocation8 + $0xc8] sm:$0xff]
    %v2676 = vld [vmem:[#allocation8 + $0xd0] sm:$0xf]
    %v2677 = vld [vmem:[#allocation8 + $0x114] sm:$0xff]
    %v2678 = vld [vmem:[#allocation8 + $0x11c] sm:$0xf]
    %v2679 = vld [vmem:[#allocation8 + $0x160] sm:$0xff]
    %v2680 = vld [vmem:[#allocation8 + $0x168] sm:$0xf]
    %v2681 = vld [vmem:[#allocation8 + $0x1ac] sm:$0xff]
    %v2682 = vld [vmem:[#allocation8 + $0x1b4] sm:$0xf]
    %v2683 = vld [vmem:[#allocation8 + $0x1f8] sm:$0xff]
    %v2684 = vld [vmem:[#allocation8 + $0x200] sm:$0xf]
    %v2685 = vld [vmem:[#allocation8 + $0x244] sm:$0xff]
    %v2686 = vld [vmem:[#allocation8 + $0x24c] sm:$0xf]
    %v2687 = vld [vmem:[#allocation8 + $0x290] sm:$0xff]
    %v2688 = vld [vmem:[#allocation8 + $0x298] sm:$0xf]
    %v2689 = vld [vmem:[#allocation8 + $0x2dc] sm:$0xff]
    %v2690 = vld [vmem:[#allocation8 + $0x2e4] sm:$0xf]
    %v2691 = vld [vmem:[#allocation8 + $0x328] sm:$0xff]
    %v2692 = vld [vmem:[#allocation8 + $0x330] sm:$0xf]
    %v2693 = vld [vmem:[#allocation8 + $0x374] sm:$0xff]
    %v2694 = vld [vmem:[#allocation8 + $0x37c] sm:$0xf]
    %v2695 = vld [vmem:[#allocation8 + $0x3c0] sm:$0xff]
    %v2696 = vld [vmem:[#allocation8 + $0x3c8] sm:$0xf]
    %v2697 = vld [vmem:[#allocation8 + $0x40c] sm:$0xff]
    %v2698 = vld [vmem:[#allocation8 + $0x414] sm:$0xf]
    %v2699 = vld [vmem:[#allocation8 + $0x458] sm:$0xff]
    %v2700 = vld [vmem:[#allocation8 + $0x460] sm:$0xf]
    %v2701 = vld [vmem:[#allocation8 + $0x4a4] sm:$0xff]
    %v2702 = vld [vmem:[#allocation8 + $0x4ac] sm:$0xf]
    %v2735 = vunpack.c.l.b16 %v2671
    %v2736 = vunpack.c.h.b16 %v2671
    %v2737 = vunpack.c.l.b16 %v2672
    %v2738 = vunpack.c.l.b16 %v2673
    %v2739 = vunpack.c.h.b16 %v2673
    %v2740 = vunpack.c.l.b16 %v2674
    %v2741 = vunpack.c.l.b16 %v2675
    %v2742 = vunpack.c.h.b16 %v2675
    %v2743 = vunpack.c.l.b16 %v2676
    %v2744 = vunpack.c.l.b16 %v2677
    %v2745 = vunpack.c.h.b16 %v2677
    %v2746 = vunpack.c.l.b16 %v2678
    %v2747 = vunpack.c.l.b16 %v2679
    %v2748 = vunpack.c.h.b16 %v2679
    %v2749 = vunpack.c.l.b16 %v2680
    %v2750 = vunpack.c.l.b16 %v2681
    %v2751 = vunpack.c.h.b16 %v2681
    %v2752 = vunpack.c.l.b16 %v2682
    %v2753 = vunpack.c.l.b16 %v2683
    %v2754 = vunpack.c.h.b16 %v2683
    %v2755 = vunpack.c.l.b16 %v2684
    %v2756 = vunpack.c.l.b16 %v2685
    %v2757 = vunpack.c.h.b16 %v2685
    %v2758 = vunpack.c.l.b16 %v2686
    %v2759 = vunpack.c.l.b16 %v2687
    %v2760 = vunpack.c.h.b16 %v2687
    %v2761 = vunpack.c.l.b16 %v2688
    %v2762 = vunpack.c.l.b16 %v2689
    %v2763 = vunpack.c.h.b16 %v2689
    %v2764 = vunpack.c.l.b16 %v2690
    %v2765 = vunpack.c.l.b16 %v2691
    %v2766 = vunpack.c.h.b16 %v2691
    %v2767 = vunpack.c.l.b16 %v2692
    %v2768 = vunpack.c.l.b16 %v2693
    %v2769 = vunpack.c.h.b16 %v2693
    %v2770 = vunpack.c.l.b16 %v2694
    %v2771 = vunpack.c.l.b16 %v2695
    %v2772 = vunpack.c.h.b16 %v2695
    %v2773 = vunpack.c.l.b16 %v2696
    %v2774 = vunpack.c.l.b16 %v2697
    %v2775 = vunpack.c.h.b16 %v2697
    %v2776 = vunpack.c.l.b16 %v2698
    %v2777 = vunpack.c.l.b16 %v2699
    %v2778 = vunpack.c.h.b16 %v2699
    %v2779 = vunpack.c.l.b16 %v2700
    %v2780 = vunpack.c.l.b16 %v2701
    %v2781 = vunpack.c.h.b16 %v2701
    %v2782 = vunpack.c.l.b16 %v2702
    %v2783 = vpack.c.b16 %v2738, %v2735
    %v2784 = vpack.c.b16 %v2739, %v2736
    %v2785 = vpack.c.b16 %v2740, %v2737
    %v2786 = vpack.c.b16 %v2744, %v2741
    %v2787 = vpack.c.b16 %v2745, %v2742
    %v2788 = vpack.c.b16 %v2746, %v2743
    %v2789 = vpack.c.b16 %v2750, %v2747
    %v2790 = vpack.c.b16 %v2751, %v2748
    %v2791 = vpack.c.b16 %v2752, %v2749
    %v2792 = vpack.c.b16 %v2756, %v2753
    %v2793 = vpack.c.b16 %v2757, %v2754
    %v2794 = vpack.c.b16 %v2758, %v2755
    %v2795 = vpack.c.b16 %v2762, %v2759
    %v2796 = vpack.c.b16 %v2763, %v2760
    %v2797 = vpack.c.b16 %v2764, %v2761
    %v2798 = vpack.c.b16 %v2768, %v2765
    %v2799 = vpack.c.b16 %v2769, %v2766
    %v2800 = vpack.c.b16 %v2770, %v2767
    %v2801 = vpack.c.b16 %v2774, %v2771
    %v2802 = vpack.c.b16 %v2775, %v2772
    %v2803 = vpack.c.b16 %v2776, %v2773
    %v2804 = vpack.c.b16 %v2780, %v2777
    %v2805 = vpack.c.b16 %v2781, %v2778
    %v2806 = vpack.c.b16 %v2782, %v2779
    %2831 = vmatpush.bf16.msra.mxu0 %v2804
    %2832 = vmatpush.bf16.msra.mxu0 %v2801
    %2833 = vmatpush.bf16.msra.mxu0 %v2798
    %2834 = vmatpush.bf16.msra.mxu0 %v2795
    %2835 = vmatpush.bf16.msra.mxu0 %v2792
    %2836 = vmatpush.bf16.msra.mxu0 %v2789
    %2837 = vmatpush.bf16.msra.mxu0 %v2786
    %2838 = vmatpush.bf16.msra.mxu0 %v2783
    %2839 = vmatmul.bf16.gmra.mxu0 %v2455
    %v2840 = vpop.f32.mrf.mxu0
    %v2841 = vadd.f32 %v118, %v2840
    %v2842 = vpop.f32.mrf.mxu0
    %2843 = vdwg.mxu0
    %2844 = vmatpush.bf16.msra.mxu0 %v2805
    %2845 = vmatpush.bf16.msra.mxu0 %v2802
    %2846 = vmatpush.bf16.msra.mxu0 %v2799
    %2847 = vmatpush.bf16.msra.mxu0 %v2796
    %2848 = vmatpush.bf16.msra.mxu0 %v2793
    %2849 = vmatpush.bf16.msra.mxu0 %v2790
    %2850 = vmatpush.bf16.msra.mxu0 %v2787
    %2851 = vmatpush.bf16.msra.mxu0 %v2784
    %2852 = vmatmul.bf16.gmra.mxu0 %v2455
    %v2853 = vpop.f32.mrf.mxu0
    %v2854 = vadd.f32 %v119, %v2853
    %v2855 = vpop.f32.mrf.mxu0
    %2856 = vdwg.mxu0
    %2857 = vmatpush.bf16.msra.mxu0 %v2806
    %2858 = vmatpush.bf16.msra.mxu0 %v2803
    %2859 = vmatpush.bf16.msra.mxu0 %v2800
    %2860 = vmatpush.bf16.msra.mxu0 %v2797
    %2861 = vmatpush.bf16.msra.mxu0 %v2794
    %2862 = vmatpush.bf16.msra.mxu0 %v2791
    %2863 = vmatpush.bf16.msra.mxu0 %v2788
    %2864 = vmatpush.bf16.msra.mxu0 %v2785
    %2865 = vmatmul.bf16.gmra.mxu0 %v2455
    %v2866 = vpop.f32.mrf.mxu0
    %v2867 = vadd.f32 %v120, %v2866
    %v2868 = vpop.f32.mrf.mxu0
    %2869 = vdwg.mxu0
    %v2870 = vld [vmem:[#allocation8 + $0x3c] sm:$0xff]
    %v2871 = vld [vmem:[#allocation8 + $0x44] sm:$0xf]
    %v2872 = vld [vmem:[#allocation8 + $0x88] sm:$0xff]
    %v2873 = vld [vmem:[#allocation8 + $0x90] sm:$0xf]
    %v2874 = vld [vmem:[#allocation8 + $0xd4] sm:$0xff]
    %v2875 = vld [vmem:[#allocation8 + $0xdc] sm:$0xf]
    %v2876 = vld [vmem:[#allocation8 + $0x120] sm:$0xff]
    %v2877 = vld [vmem:[#allocation8 + $0x128] sm:$0xf]
    %v2878 = vld [vmem:[#allocation8 + $0x16c] sm:$0xff]
    %v2879 = vld [vmem:[#allocation8 + $0x174] sm:$0xf]
    %v2880 = vld [vmem:[#allocation8 + $0x1b8] sm:$0xff]
    %v2881 = vld [vmem:[#allocation8 + $0x1c0] sm:$0xf]
    %v2882 = vld [vmem:[#allocation8 + $0x204] sm:$0xff]
    %v2883 = vld [vmem:[#allocation8 + $0x20c] sm:$0xf]
    %v2884 = vld [vmem:[#allocation8 + $0x250] sm:$0xff]
    %v2885 = vld [vmem:[#allocation8 + $0x258] sm:$0xf]
    %v2886 = vld [vmem:[#allocation8 + $0x29c] sm:$0xff]
    %v2887 = vld [vmem:[#allocation8 + $0x2a4] sm:$0xf]
    %v2888 = vld [vmem:[#allocation8 + $0x2e8] sm:$0xff]
    %v2889 = vld [vmem:[#allocation8 + $0x2f0] sm:$0xf]
    %v2890 = vld [vmem:[#allocation8 + $0x334] sm:$0xff]
    %v2891 = vld [vmem:[#allocation8 + $0x33c] sm:$0xf]
    %v2892 = vld [vmem:[#allocation8 + $0x380] sm:$0xff]
    %v2893 = vld [vmem:[#allocation8 + $0x388] sm:$0xf]
    %v2894 = vld [vmem:[#allocation8 + $0x3cc] sm:$0xff]
    %v2895 = vld [vmem:[#allocation8 + $0x3d4] sm:$0xf]
    %v2896 = vld [vmem:[#allocation8 + $0x418] sm:$0xff]
    %v2897 = vld [vmem:[#allocation8 + $0x420] sm:$0xf]
    %v2898 = vld [vmem:[#allocation8 + $0x464] sm:$0xff]
    %v2899 = vld [vmem:[#allocation8 + $0x46c] sm:$0xf]
    %v2900 = vld [vmem:[#allocation8 + $0x4b0] sm:$0xff]
    %v2901 = vld [vmem:[#allocation8 + $0x4b8] sm:$0xf]
    %v2934 = vunpack.c.l.b16 %v2870
    %v2935 = vunpack.c.h.b16 %v2870
    %v2936 = vunpack.c.l.b16 %v2871
    %v2937 = vunpack.c.l.b16 %v2872
    %v2938 = vunpack.c.h.b16 %v2872
    %v2939 = vunpack.c.l.b16 %v2873
    %v2940 = vunpack.c.l.b16 %v2874
    %v2941 = vunpack.c.h.b16 %v2874
    %v2942 = vunpack.c.l.b16 %v2875
    %v2943 = vunpack.c.l.b16 %v2876
    %v2944 = vunpack.c.h.b16 %v2876
    %v2945 = vunpack.c.l.b16 %v2877
    %v2946 = vunpack.c.l.b16 %v2878
    %v2947 = vunpack.c.h.b16 %v2878
    %v2948 = vunpack.c.l.b16 %v2879
    %v2949 = vunpack.c.l.b16 %v2880
    %v2950 = vunpack.c.h.b16 %v2880
    %v2951 = vunpack.c.l.b16 %v2881
    %v2952 = vunpack.c.l.b16 %v2882
    %v2953 = vunpack.c.h.b16 %v2882
    %v2954 = vunpack.c.l.b16 %v2883
    %v2955 = vunpack.c.l.b16 %v2884
    %v2956 = vunpack.c.h.b16 %v2884
    %v2957 = vunpack.c.l.b16 %v2885
    %v2958 = vunpack.c.l.b16 %v2886
    %v2959 = vunpack.c.h.b16 %v2886
    %v2960 = vunpack.c.l.b16 %v2887
    %v2961 = vunpack.c.l.b16 %v2888
    %v2962 = vunpack.c.h.b16 %v2888
    %v2963 = vunpack.c.l.b16 %v2889
    %v2964 = vunpack.c.l.b16 %v2890
    %v2965 = vunpack.c.h.b16 %v2890
    %v2966 = vunpack.c.l.b16 %v2891
    %v2967 = vunpack.c.l.b16 %v2892
    %v2968 = vunpack.c.h.b16 %v2892
    %v2969 = vunpack.c.l.b16 %v2893
    %v2970 = vunpack.c.l.b16 %v2894
    %v2971 = vunpack.c.h.b16 %v2894
    %v2972 = vunpack.c.l.b16 %v2895
    %v2973 = vunpack.c.l.b16 %v2896
    %v2974 = vunpack.c.h.b16 %v2896
    %v2975 = vunpack.c.l.b16 %v2897
    %v2976 = vunpack.c.l.b16 %v2898
    %v2977 = vunpack.c.h.b16 %v2898
    %v2978 = vunpack.c.l.b16 %v2899
    %v2979 = vunpack.c.l.b16 %v2900
    %v2980 = vunpack.c.h.b16 %v2900
    %v2981 = vunpack.c.l.b16 %v2901
    %v2982 = vpack.c.b16 %v2937, %v2934
    %v2983 = vpack.c.b16 %v2938, %v2935
    %v2984 = vpack.c.b16 %v2939, %v2936
    %v2985 = vpack.c.b16 %v2943, %v2940
    %v2986 = vpack.c.b16 %v2944, %v2941
    %v2987 = vpack.c.b16 %v2945, %v2942
    %v2988 = vpack.c.b16 %v2949, %v2946
    %v2989 = vpack.c.b16 %v2950, %v2947
    %v2990 = vpack.c.b16 %v2951, %v2948
    %v2991 = vpack.c.b16 %v2955, %v2952
    %v2992 = vpack.c.b16 %v2956, %v2953
    %v2993 = vpack.c.b16 %v2957, %v2954
    %v2994 = vpack.c.b16 %v2961, %v2958
    %v2995 = vpack.c.b16 %v2962, %v2959
    %v2996 = vpack.c.b16 %v2963, %v2960
    %v2997 = vpack.c.b16 %v2967, %v2964
    %v2998 = vpack.c.b16 %v2968, %v2965
    %v2999 = vpack.c.b16 %v2969, %v2966
    %v3000 = vpack.c.b16 %v2973, %v2970
    %v3001 = vpack.c.b16 %v2974, %v2971
    %v3002 = vpack.c.b16 %v2975, %v2972
    %v3003 = vpack.c.b16 %v2979, %v2976
    %v3004 = vpack.c.b16 %v2980, %v2977
    %v3005 = vpack.c.b16 %v2981, %v2978
    %3030 = vmatpush.bf16.msra.mxu0 %v3003
    %3031 = vmatpush.bf16.msra.mxu0 %v3000
    %3032 = vmatpush.bf16.msra.mxu0 %v2997
    %3033 = vmatpush.bf16.msra.mxu0 %v2994
    %3034 = vmatpush.bf16.msra.mxu0 %v2991
    %3035 = vmatpush.bf16.msra.mxu0 %v2988
    %3036 = vmatpush.bf16.msra.mxu0 %v2985
    %3037 = vmatpush.bf16.msra.mxu0 %v2982
    %3038 = vmatmul.bf16.gmra.mxu0 %v1894
    %v3039 = vpop.f32.mrf.mxu0
    %v3040 = vadd.f32 0.0, %v3039
    %v3041 = vpop.f32.mrf.mxu0
    %3042 = vdwg.mxu0
    %3043 = vmatpush.bf16.msra.mxu0 %v3004
    %3044 = vmatpush.bf16.msra.mxu0 %v3001
    %3045 = vmatpush.bf16.msra.mxu0 %v2998
    %3046 = vmatpush.bf16.msra.mxu0 %v2995
    %3047 = vmatpush.bf16.msra.mxu0 %v2992
    %3048 = vmatpush.bf16.msra.mxu0 %v2989
    %3049 = vmatpush.bf16.msra.mxu0 %v2986
    %3050 = vmatpush.bf16.msra.mxu0 %v2983
    %3051 = vmatmul.bf16.gmra.mxu0 %v1894
    %v3052 = vpop.f32.mrf.mxu0
    %v3053 = vadd.f32 0.0, %v3052
    %v3054 = vpop.f32.mrf.mxu0
    %3055 = vdwg.mxu0
    %3056 = vmatpush.bf16.msra.mxu0 %v3005
    %3057 = vmatpush.bf16.msra.mxu0 %v3002
    %3058 = vmatpush.bf16.msra.mxu0 %v2999
    %3059 = vmatpush.bf16.msra.mxu0 %v2996
    %3060 = vmatpush.bf16.msra.mxu0 %v2993
    %3061 = vmatpush.bf16.msra.mxu0 %v2990
    %3062 = vmatpush.bf16.msra.mxu0 %v2987
    %3063 = vmatpush.bf16.msra.mxu0 %v2984
    %3064 = vmatmul.bf16.gmra.mxu0 %v1894
    %v3065 = vpop.f32.mrf.mxu0
    %v3066 = vadd.f32 0.0, %v3065
    %v3067 = vpop.f32.mrf.mxu0
    %3068 = vdwg.mxu0
    %v3069 = vadd.f32 %v2841, %v3040
    %v3070 = vadd.f32 %v2854, %v3053
    %v3071 = vxor.u32 %v3069, 2147483648
    %v3072 = vxor.u32 %v3070, 2147483648
    %v3073 = vmul.f32 %v3071, 1.442695
    %v3074 = vpow.pop %v3073
    %v3075 = vmul.f32 %v3072, 1.442695
    %v3076 = vpow.pop %v3075
    %v3077 = vadd.f32 %v3074, 1.0
    %v3078 = vadd.f32 %v3076, 1.0
    %v3079 = vrcp.pop %v3077
    %v3080 = vmul.f32 %v3077, %v3079
    %v3081 = vsub.f32 1.0, %v3080
    %v3082 = vmul.f32 %v3079, %v3081
    %v3083 = vadd.f32 %v3079, %v3082
    %vm3084 = vweird.f32 %v3077
    %vm3085 = vweird.f32 %v3079
    %vm3086 = vmor %vm3084, %vm3085
    %v3087 = vsel %vm3086, %v3079, %v3083
    %v3088 = vand.u32 2147483647, %v3077
    %vm3089 = vcmp.eq.f32.partialorder %v3088, 8.507059e+37
    %v3090 = vand.u32 %v3077, 2147483648
    %v3091 = vor.u32 1.1754944e-38, %v3090
    %v3092 = vsel %vm3089, %v3091, %v3087
    %v3093 = vmul.f32 1.0, %v3092
    %v3094 = vrcp.pop %v3078
    %v3095 = vmul.f32 %v3078, %v3094
    %v3096 = vsub.f32 1.0, %v3095
    %v3097 = vmul.f32 %v3094, %v3096
    %v3098 = vadd.f32 %v3094, %v3097
    %vm3099 = vweird.f32 %v3078
    %vm3100 = vweird.f32 %v3094
    %vm3101 = vmor %vm3099, %vm3100
    %v3102 = vsel %vm3101, %v3094, %v3098
    %v3103 = vand.u32 2147483647, %v3078
    %vm3104 = vcmp.eq.f32.partialorder %v3103, 8.507059e+37
    %v3105 = vand.u32 %v3078, 2147483648
    %v3106 = vor.u32 1.1754944e-38, %v3105
    %v3107 = vsel %vm3104, %v3106, %v3102
    %v3108 = vmul.f32 1.0, %v3107
    %v3109 = vadd.f32 %v3066, %v106
    %v3110 = vmul.f32 %v3093, %v3109
    %v3111 = vadd.f32 %v2867, %v3110
    %v3112 = vtanh.pop %v3111
    %v3113 = vsub.f32 1.0, %v3108
    %v3114 = vmul.f32 %v3113, %v3112
    %v3115 = vmul.f32 %v3108, %v1877
    %v3116 = vadd.f32 %v3114, %v3115
    %v3117 = vld [vmem:[#allocation8 + $0x48] sm:$0xf]
    %v3118 = vld [vmem:[#allocation8 + $0x94] sm:$0xf]
    %v3119 = vld [vmem:[#allocation8 + $0xe0] sm:$0xf]
    %v3120 = vld [vmem:[#allocation8 + $0x12c] sm:$0xf]
    %v3121 = vld [vmem:[#allocation8 + $0x178] sm:$0xf]
    %v3122 = vld [vmem:[#allocation8 + $0x1c4] sm:$0xf]
    %v3123 = vld [vmem:[#allocation8 + $0x210] sm:$0xf]
    %v3124 = vld [vmem:[#allocation8 + $0x25c] sm:$0xf]
    %v3125 = vld [vmem:[#allocation8 + $0x2a8] sm:$0xf]
    %v3126 = vld [vmem:[#allocation8 + $0x2f4] sm:$0xf]
    %v3127 = vld [vmem:[#allocation8 + $0x340] sm:$0xf]
    %v3128 = vld [vmem:[#allocation8 + $0x38c] sm:$0xf]
    %v3129 = vld [vmem:[#allocation8 + $0x3d8] sm:$0xf]
    %v3130 = vld [vmem:[#allocation8 + $0x424] sm:$0xf]
    %v3131 = vld [vmem:[#allocation8 + $0x470] sm:$0xf]
    %v3132 = vld [vmem:[#allocation8 + $0x4bc] sm:$0xf]
    %v3133 = vpack.c.bf16 %v3116, %v3116
    %v3150 = vunpack.c.l.b16 %v3117
    %v3151 = vunpack.c.l.b16 %v3118
    %v3152 = vunpack.c.l.b16 %v3119
    %v3153 = vunpack.c.l.b16 %v3120
    %v3154 = vunpack.c.l.b16 %v3121
    %v3155 = vunpack.c.l.b16 %v3122
    %v3156 = vunpack.c.l.b16 %v3123
    %v3157 = vunpack.c.l.b16 %v3124
    %v3158 = vunpack.c.l.b16 %v3125
    %v3159 = vunpack.c.l.b16 %v3126
    %v3160 = vunpack.c.l.b16 %v3127
    %v3161 = vunpack.c.l.b16 %v3128
    %v3162 = vunpack.c.l.b16 %v3129
    %v3163 = vunpack.c.l.b16 %v3130
    %v3164 = vunpack.c.l.b16 %v3131
    %v3165 = vunpack.c.l.b16 %v3132
    %v3166 = vpack.c.b16 %v3151, %v3150
    %v3167 = vpack.c.b16 %v3153, %v3152
    %v3168 = vpack.c.b16 %v3155, %v3154
    %v3169 = vpack.c.b16 %v3157, %v3156
    %v3170 = vpack.c.b16 %v3159, %v3158
    %v3171 = vpack.c.b16 %v3161, %v3160
    %v3172 = vpack.c.b16 %v3163, %v3162
    %v3173 = vpack.c.b16 %v3165, %v3164
    %3182 = vmatpush.bf16.msra.mxu0 %v3173
    %3183 = vmatpush.bf16.msra.mxu0 %v3172
    %3184 = vmatpush.bf16.msra.mxu0 %v3171
    %3185 = vmatpush.bf16.msra.mxu0 %v3170
    %3186 = vmatpush.bf16.msra.mxu0 %v3169
    %3187 = vmatpush.bf16.msra.mxu0 %v3168
    %3188 = vmatpush.bf16.msra.mxu0 %v3167
    %3189 = vmatpush.bf16.msra.mxu0 %v3166
    %3190 = vmatmul.bf16.gmra.mxu0 %v3133
    %v3191 = vpop.f32.mrf.mxu0
    %v3192 = vadd.f32 %v126, %v3191
    %v3193 = vpop.f32.mrf.mxu0
    %3194 = vdwg.mxu0
    %v3195 = vxor.u32 %v3192, 2147483648
    %v3196 = vmul.f32 %v3195, 1.442695
    %v3197 = vpow.pop %v3196
    %v3198 = vadd.f32 %v3197, 1.0
    %v3199 = vrcp.pop %v3198
    %v3200 = vmul.f32 %v3198, %v3199
    %v3201 = vsub.f32 1.0, %v3200
    %v3202 = vmul.f32 %v3199, %v3201
    %v3203 = vadd.f32 %v3199, %v3202
    %vm3204 = vweird.f32 %v3198
    %vm3205 = vweird.f32 %v3199
    %vm3206 = vmor %vm3204, %vm3205
    %v3207 = vsel %vm3206, %v3199, %v3203
    %v3208 = vand.u32 2147483647, %v3198
    %vm3209 = vcmp.eq.f32.partialorder %v3208, 8.507059e+37
    %v3210 = vand.u32 %v3198, 2147483648
    %v3211 = vor.u32 1.1754944e-38, %v3210
    %v3212 = vsel %vm3209, %v3211, %v3207
    %v3213 = vmul.f32 1.0, %v3212
    %3214 = vst [vmem:[#allocation11 + $0x8] sm:$0xff] %v3213
    %v3215 = vld [vmem:[#allocation8 + $0xc] sm:$0xff]
    %v3216 = vld [vmem:[#allocation8 + $0x14] sm:$0xf]
    %v3217 = vld [vmem:[#allocation8 + $0x58] sm:$0xff]
    %v3218 = vld [vmem:[#allocation8 + $0x60] sm:$0xf]
    %v3219 = vld [vmem:[#allocation8 + $0xa4] sm:$0xff]
    %v3220 = vld [vmem:[#allocation8 + $0xac] sm:$0xf]
    %v3221 = vld [vmem:[#allocation8 + $0xf0] sm:$0xff]
    %v3222 = vld [vmem:[#allocation8 + $0xf8] sm:$0xf]
    %v3223 = vld [vmem:[#allocation8 + $0x13c] sm:$0xff]
    %v3224 = vld [vmem:[#allocation8 + $0x144] sm:$0xf]
    %v3225 = vld [vmem:[#allocation8 + $0x188] sm:$0xff]
    %v3226 = vld [vmem:[#allocation8 + $0x190] sm:$0xf]
    %v3227 = vld [vmem:[#allocation8 + $0x1d4] sm:$0xff]
    %v3228 = vld [vmem:[#allocation8 + $0x1dc] sm:$0xf]
    %v3229 = vld [vmem:[#allocation8 + $0x220] sm:$0xff]
    %v3230 = vld [vmem:[#allocation8 + $0x228] sm:$0xf]
    %v3231 = vld [vmem:[#allocation8 + $0x26c] sm:$0xff]
    %v3232 = vld [vmem:[#allocation8 + $0x274] sm:$0xf]
    %v3233 = vld [vmem:[#allocation8 + $0x2b8] sm:$0xff]
    %v3234 = vld [vmem:[#allocation8 + $0x2c0] sm:$0xf]
    %v3235 = vld [vmem:[#allocation8 + $0x304] sm:$0xff]
    %v3236 = vld [vmem:[#allocation8 + $0x30c] sm:$0xf]
    %v3237 = vld [vmem:[#allocation8 + $0x350] sm:$0xff]
    %v3238 = vld [vmem:[#allocation8 + $0x358] sm:$0xf]
    %v3239 = vld [vmem:[#allocation8 + $0x39c] sm:$0xff]
    %v3240 = vld [vmem:[#allocation8 + $0x3a4] sm:$0xf]
    %v3241 = vld [vmem:[#allocation8 + $0x3e8] sm:$0xff]
    %v3242 = vld [vmem:[#allocation8 + $0x3f0] sm:$0xf]
    %v3243 = vld [vmem:[#allocation8 + $0x434] sm:$0xff]
    %v3244 = vld [vmem:[#allocation8 + $0x43c] sm:$0xf]
    %v3245 = vld [vmem:[#allocation8 + $0x480] sm:$0xff]
    %v3246 = vld [vmem:[#allocation8 + $0x488] sm:$0xf]
    %v3247 = vpack.c.bf16 %v2223, %v2223
    %v3280 = vunpack.c.l.b16 %v3215
    %v3281 = vunpack.c.h.b16 %v3215
    %v3282 = vunpack.c.l.b16 %v3216
    %v3283 = vunpack.c.l.b16 %v3217
    %v3284 = vunpack.c.h.b16 %v3217
    %v3285 = vunpack.c.l.b16 %v3218
    %v3286 = vunpack.c.l.b16 %v3219
    %v3287 = vunpack.c.h.b16 %v3219
    %v3288 = vunpack.c.l.b16 %v3220
    %v3289 = vunpack.c.l.b16 %v3221
    %v3290 = vunpack.c.h.b16 %v3221
    %v3291 = vunpack.c.l.b16 %v3222
    %v3292 = vunpack.c.l.b16 %v3223
    %v3293 = vunpack.c.h.b16 %v3223
    %v3294 = vunpack.c.l.b16 %v3224
    %v3295 = vunpack.c.l.b16 %v3225
    %v3296 = vunpack.c.h.b16 %v3225
    %v3297 = vunpack.c.l.b16 %v3226
    %v3298 = vunpack.c.l.b16 %v3227
    %v3299 = vunpack.c.h.b16 %v3227
    %v3300 = vunpack.c.l.b16 %v3228
    %v3301 = vunpack.c.l.b16 %v3229
    %v3302 = vunpack.c.h.b16 %v3229
    %v3303 = vunpack.c.l.b16 %v3230
    %v3304 = vunpack.c.l.b16 %v3231
    %v3305 = vunpack.c.h.b16 %v3231
    %v3306 = vunpack.c.l.b16 %v3232
    %v3307 = vunpack.c.l.b16 %v3233
    %v3308 = vunpack.c.h.b16 %v3233
    %v3309 = vunpack.c.l.b16 %v3234
    %v3310 = vunpack.c.l.b16 %v3235
    %v3311 = vunpack.c.h.b16 %v3235
    %v3312 = vunpack.c.l.b16 %v3236
    %v3313 = vunpack.c.l.b16 %v3237
    %v3314 = vunpack.c.h.b16 %v3237
    %v3315 = vunpack.c.l.b16 %v3238
    %v3316 = vunpack.c.l.b16 %v3239
    %v3317 = vunpack.c.h.b16 %v3239
    %v3318 = vunpack.c.l.b16 %v3240
    %v3319 = vunpack.c.l.b16 %v3241
    %v3320 = vunpack.c.h.b16 %v3241
    %v3321 = vunpack.c.l.b16 %v3242
    %v3322 = vunpack.c.l.b16 %v3243
    %v3323 = vunpack.c.h.b16 %v3243
    %v3324 = vunpack.c.l.b16 %v3244
    %v3325 = vunpack.c.l.b16 %v3245
    %v3326 = vunpack.c.h.b16 %v3245
    %v3327 = vunpack.c.l.b16 %v3246
    %v3328 = vpack.c.b16 %v3283, %v3280
    %v3329 = vpack.c.b16 %v3284, %v3281
    %v3330 = vpack.c.b16 %v3285, %v3282
    %v3331 = vpack.c.b16 %v3289, %v3286
    %v3332 = vpack.c.b16 %v3290, %v3287
    %v3333 = vpack.c.b16 %v3291, %v3288
    %v3334 = vpack.c.b16 %v3295, %v3292
    %v3335 = vpack.c.b16 %v3296, %v3293
    %v3336 = vpack.c.b16 %v3297, %v3294
    %v3337 = vpack.c.b16 %v3301, %v3298
    %v3338 = vpack.c.b16 %v3302, %v3299
    %v3339 = vpack.c.b16 %v3303, %v3300
    %v3340 = vpack.c.b16 %v3307, %v3304
    %v3341 = vpack.c.b16 %v3308, %v3305
    %v3342 = vpack.c.b16 %v3309, %v3306
    %v3343 = vpack.c.b16 %v3313, %v3310
    %v3344 = vpack.c.b16 %v3314, %v3311
    %v3345 = vpack.c.b16 %v3315, %v3312
    %v3346 = vpack.c.b16 %v3319, %v3316
    %v3347 = vpack.c.b16 %v3320, %v3317
    %v3348 = vpack.c.b16 %v3321, %v3318
    %v3349 = vpack.c.b16 %v3325, %v3322
    %v3350 = vpack.c.b16 %v3326, %v3323
    %v3351 = vpack.c.b16 %v3327, %v3324
    %3376 = vmatpush.bf16.msra.mxu0 %v3349
    %3377 = vmatpush.bf16.msra.mxu0 %v3346
    %3378 = vmatpush.bf16.msra.mxu0 %v3343
    %3379 = vmatpush.bf16.msra.mxu0 %v3340
    %3380 = vmatpush.bf16.msra.mxu0 %v3337
    %3381 = vmatpush.bf16.msra.mxu0 %v3334
    %3382 = vmatpush.bf16.msra.mxu0 %v3331
    %3383 = vmatpush.bf16.msra.mxu0 %v3328
    %3384 = vmatmul.bf16.gmra.mxu0 %v3247
    %v3385 = vpop.f32.mrf.mxu0
    %v3386 = vadd.f32 0.0, %v3385
    %v3387 = vpop.f32.mrf.mxu0
    %3388 = vdwg.mxu0
    %3389 = vmatpush.bf16.msra.mxu0 %v3350
    %3390 = vmatpush.bf16.msra.mxu0 %v3347
    %3391 = vmatpush.bf16.msra.mxu0 %v3344
    %3392 = vmatpush.bf16.msra.mxu0 %v3341
    %3393 = vmatpush.bf16.msra.mxu0 %v3338
    %3394 = vmatpush.bf16.msra.mxu0 %v3335
    %3395 = vmatpush.bf16.msra.mxu0 %v3332
    %3396 = vmatpush.bf16.msra.mxu0 %v3329
    %3397 = vmatmul.bf16.gmra.mxu0 %v3247
    %v3398 = vpop.f32.mrf.mxu0
    %v3399 = vadd.f32 0.0, %v3398
    %v3400 = vpop.f32.mrf.mxu0
    %3401 = vdwg.mxu0
    %3402 = vmatpush.bf16.msra.mxu0 %v3351
    %3403 = vmatpush.bf16.msra.mxu0 %v3348
    %3404 = vmatpush.bf16.msra.mxu0 %v3345
    %3405 = vmatpush.bf16.msra.mxu0 %v3342
    %3406 = vmatpush.bf16.msra.mxu0 %v3339
    %3407 = vmatpush.bf16.msra.mxu0 %v3336
    %3408 = vmatpush.bf16.msra.mxu0 %v3333
    %3409 = vmatpush.bf16.msra.mxu0 %v3330
    %3410 = vmatmul.bf16.gmra.mxu0 %v3247
    %v3411 = vpop.f32.mrf.mxu0
    %v3412 = vadd.f32 0.0, %v3411
    %v3413 = vpop.f32.mrf.mxu0
    %3414 = vdwg.mxu0
    %v3415 = vadd.f32 %v401, %v3386
    %v3416 = vadd.f32 %v414, %v3399
    %v3417 = vxor.u32 %v3415, 2147483648
    %v3418 = vxor.u32 %v3416, 2147483648
    %v3419 = vmul.f32 %v3417, 1.442695
    %v3420 = vpow.pop %v3419
    %v3421 = vmul.f32 %v3418, 1.442695
    %v3422 = vpow.pop %v3421
    %v3423 = vadd.f32 %v3420, 1.0
    %v3424 = vadd.f32 %v3422, 1.0
    %v3425 = vrcp.pop %v3423
    %v3426 = vmul.f32 %v3423, %v3425
    %v3427 = vsub.f32 1.0, %v3426
    %v3428 = vmul.f32 %v3425, %v3427
    %v3429 = vadd.f32 %v3425, %v3428
    %vm3430 = vweird.f32 %v3423
    %vm3431 = vweird.f32 %v3425
    %vm3432 = vmor %vm3430, %vm3431
    %v3433 = vsel %vm3432, %v3425, %v3429
    %v3434 = vand.u32 2147483647, %v3423
    %vm3435 = vcmp.eq.f32.partialorder %v3434, 8.507059e+37
    %v3436 = vand.u32 %v3423, 2147483648
    %v3437 = vor.u32 1.1754944e-38, %v3436
    %v3438 = vsel %vm3435, %v3437, %v3433
    %v3439 = vmul.f32 1.0, %v3438
    %v3440 = vrcp.pop %v3424
    %v3441 = vmul.f32 %v3424, %v3440
    %v3442 = vsub.f32 1.0, %v3441
    %v3443 = vmul.f32 %v3440, %v3442
    %v3444 = vadd.f32 %v3440, %v3443
    %vm3445 = vweird.f32 %v3424
    %vm3446 = vweird.f32 %v3440
    %vm3447 = vmor %vm3445, %vm3446
    %v3448 = vsel %vm3447, %v3440, %v3444
    %v3449 = vand.u32 2147483647, %v3424
    %vm3450 = vcmp.eq.f32.partialorder %v3449, 8.507059e+37
    %v3451 = vand.u32 %v3424, 2147483648
    %v3452 = vor.u32 1.1754944e-38, %v3451
    %v3453 = vsel %vm3450, %v3452, %v3448
    %v3454 = vmul.f32 1.0, %v3453
    %v3455 = vadd.f32 %v3412, %v98
    %v3456 = vmul.f32 %v3439, %v3455
    %v3457 = vadd.f32 %v427, %v3456
    %v3458 = vtanh.pop %v3457
    %v3459 = vsub.f32 1.0, %v3454
    %v3460 = vmul.f32 %v3459, %v3458
    %v3461 = vmul.f32 %v3454, %v2223
    %v3462 = vadd.f32 %v3460, %v3461
    %v3463 = vld [vmem:[#allocation8 + $0x18] sm:$0xff]
    %v3464 = vld [vmem:[#allocation8 + $0x20] sm:$0xf]
    %v3465 = vld [vmem:[#allocation8 + $0x64] sm:$0xff]
    %v3466 = vld [vmem:[#allocation8 + $0x6c] sm:$0xf]
    %v3467 = vld [vmem:[#allocation8 + $0xb0] sm:$0xff]
    %v3468 = vld [vmem:[#allocation8 + $0xb8] sm:$0xf]
    %v3469 = vld [vmem:[#allocation8 + $0xfc] sm:$0xff]
    %v3470 = vld [vmem:[#allocation8 + $0x104] sm:$0xf]
    %v3471 = vld [vmem:[#allocation8 + $0x148] sm:$0xff]
    %v3472 = vld [vmem:[#allocation8 + $0x150] sm:$0xf]
    %v3473 = vld [vmem:[#allocation8 + $0x194] sm:$0xff]
    %v3474 = vld [vmem:[#allocation8 + $0x19c] sm:$0xf]
    %v3475 = vld [vmem:[#allocation8 + $0x1e0] sm:$0xff]
    %v3476 = vld [vmem:[#allocation8 + $0x1e8] sm:$0xf]
    %v3477 = vld [vmem:[#allocation8 + $0x22c] sm:$0xff]
    %v3478 = vld [vmem:[#allocation8 + $0x234] sm:$0xf]
    %v3479 = vld [vmem:[#allocation8 + $0x278] sm:$0xff]
    %v3480 = vld [vmem:[#allocation8 + $0x280] sm:$0xf]
    %v3481 = vld [vmem:[#allocation8 + $0x2c4] sm:$0xff]
    %v3482 = vld [vmem:[#allocation8 + $0x2cc] sm:$0xf]
    %v3483 = vld [vmem:[#allocation8 + $0x310] sm:$0xff]
    %v3484 = vld [vmem:[#allocation8 + $0x318] sm:$0xf]
    %v3485 = vld [vmem:[#allocation8 + $0x35c] sm:$0xff]
    %v3486 = vld [vmem:[#allocation8 + $0x364] sm:$0xf]
    %v3487 = vld [vmem:[#allocation8 + $0x3a8] sm:$0xff]
    %v3488 = vld [vmem:[#allocation8 + $0x3b0] sm:$0xf]
    %v3489 = vld [vmem:[#allocation8 + $0x3f4] sm:$0xff]
    %v3490 = vld [vmem:[#allocation8 + $0x3fc] sm:$0xf]
    %v3491 = vld [vmem:[#allocation8 + $0x440] sm:$0xff]
    %v3492 = vld [vmem:[#allocation8 + $0x448] sm:$0xf]
    %v3493 = vld [vmem:[#allocation8 + $0x48c] sm:$0xff]
    %v3494 = vld [vmem:[#allocation8 + $0x494] sm:$0xf]
    %v3527 = vunpack.c.l.b16 %v3463
    %v3528 = vunpack.c.h.b16 %v3463
    %v3529 = vunpack.c.l.b16 %v3464
    %v3530 = vunpack.c.l.b16 %v3465
    %v3531 = vunpack.c.h.b16 %v3465
    %v3532 = vunpack.c.l.b16 %v3466
    %v3533 = vunpack.c.l.b16 %v3467
    %v3534 = vunpack.c.h.b16 %v3467
    %v3535 = vunpack.c.l.b16 %v3468
    %v3536 = vunpack.c.l.b16 %v3469
    %v3537 = vunpack.c.h.b16 %v3469
    %v3538 = vunpack.c.l.b16 %v3470
    %v3539 = vunpack.c.l.b16 %v3471
    %v3540 = vunpack.c.h.b16 %v3471
    %v3541 = vunpack.c.l.b16 %v3472
    %v3542 = vunpack.c.l.b16 %v3473
    %v3543 = vunpack.c.h.b16 %v3473
    %v3544 = vunpack.c.l.b16 %v3474
    %v3545 = vunpack.c.l.b16 %v3475
    %v3546 = vunpack.c.h.b16 %v3475
    %v3547 = vunpack.c.l.b16 %v3476
    %v3548 = vunpack.c.l.b16 %v3477
    %v3549 = vunpack.c.h.b16 %v3477
    %v3550 = vunpack.c.l.b16 %v3478
    %v3551 = vunpack.c.l.b16 %v3479
    %v3552 = vunpack.c.h.b16 %v3479
    %v3553 = vunpack.c.l.b16 %v3480
    %v3554 = vunpack.c.l.b16 %v3481
    %v3555 = vunpack.c.h.b16 %v3481
    %v3556 = vunpack.c.l.b16 %v3482
    %v3557 = vunpack.c.l.b16 %v3483
    %v3558 = vunpack.c.h.b16 %v3483
    %v3559 = vunpack.c.l.b16 %v3484
    %v3560 = vunpack.c.l.b16 %v3485
    %v3561 = vunpack.c.h.b16 %v3485
    %v3562 = vunpack.c.l.b16 %v3486
    %v3563 = vunpack.c.l.b16 %v3487
    %v3564 = vunpack.c.h.b16 %v3487
    %v3565 = vunpack.c.l.b16 %v3488
    %v3566 = vunpack.c.l.b16 %v3489
    %v3567 = vunpack.c.h.b16 %v3489
    %v3568 = vunpack.c.l.b16 %v3490
    %v3569 = vunpack.c.l.b16 %v3491
    %v3570 = vunpack.c.h.b16 %v3491
    %v3571 = vunpack.c.l.b16 %v3492
    %v3572 = vunpack.c.l.b16 %v3493
    %v3573 = vunpack.c.h.b16 %v3493
    %v3574 = vunpack.c.l.b16 %v3494
    %v3575 = vpack.c.b16 %v3530, %v3527
    %v3576 = vpack.c.b16 %v3531, %v3528
    %v3577 = vpack.c.b16 %v3532, %v3529
    %v3578 = vpack.c.b16 %v3536, %v3533
    %v3579 = vpack.c.b16 %v3537, %v3534
    %v3580 = vpack.c.b16 %v3538, %v3535
    %v3581 = vpack.c.b16 %v3542, %v3539
    %v3582 = vpack.c.b16 %v3543, %v3540
    %v3583 = vpack.c.b16 %v3544, %v3541
    %v3584 = vpack.c.b16 %v3548, %v3545
    %v3585 = vpack.c.b16 %v3549, %v3546
    %v3586 = vpack.c.b16 %v3550, %v3547
    %v3587 = vpack.c.b16 %v3554, %v3551
    %v3588 = vpack.c.b16 %v3555, %v3552
    %v3589 = vpack.c.b16 %v3556, %v3553
    %v3590 = vpack.c.b16 %v3560, %v3557
    %v3591 = vpack.c.b16 %v3561, %v3558
    %v3592 = vpack.c.b16 %v3562, %v3559
    %v3593 = vpack.c.b16 %v3566, %v3563
    %v3594 = vpack.c.b16 %v3567, %v3564
    %v3595 = vpack.c.b16 %v3568, %v3565
    %v3596 = vpack.c.b16 %v3572, %v3569
    %v3597 = vpack.c.b16 %v3573, %v3570
    %v3598 = vpack.c.b16 %v3574, %v3571
    %3623 = vmatpush.bf16.msra.mxu0 %v3596
    %3624 = vmatpush.bf16.msra.mxu0 %v3593
    %3625 = vmatpush.bf16.msra.mxu0 %v3590
    %3626 = vmatpush.bf16.msra.mxu0 %v3587
    %3627 = vmatpush.bf16.msra.mxu0 %v3584
    %3628 = vmatpush.bf16.msra.mxu0 %v3581
    %3629 = vmatpush.bf16.msra.mxu0 %v3578
    %3630 = vmatpush.bf16.msra.mxu0 %v3575
    %3631 = vmatmul.bf16.gmra.mxu0 %v3247
    %v3632 = vpop.f32.mrf.mxu0
    %v3633 = vadd.f32 %v110, %v3632
    %v3634 = vpop.f32.mrf.mxu0
    %3635 = vdwg.mxu0
    %3636 = vmatpush.bf16.msra.mxu0 %v3597
    %3637 = vmatpush.bf16.msra.mxu0 %v3594
    %3638 = vmatpush.bf16.msra.mxu0 %v3591
    %3639 = vmatpush.bf16.msra.mxu0 %v3588
    %3640 = vmatpush.bf16.msra.mxu0 %v3585
    %3641 = vmatpush.bf16.msra.mxu0 %v3582
    %3642 = vmatpush.bf16.msra.mxu0 %v3579
    %3643 = vmatpush.bf16.msra.mxu0 %v3576
    %3644 = vmatmul.bf16.gmra.mxu0 %v3247
    %v3645 = vpop.f32.mrf.mxu0
    %v3646 = vadd.f32 %v111, %v3645
    %v3647 = vpop.f32.mrf.mxu0
    %3648 = vdwg.mxu0
    %3649 = vmatpush.bf16.msra.mxu0 %v3598
    %3650 = vmatpush.bf16.msra.mxu0 %v3595
    %3651 = vmatpush.bf16.msra.mxu0 %v3592
    %3652 = vmatpush.bf16.msra.mxu0 %v3589
    %3653 = vmatpush.bf16.msra.mxu0 %v3586
    %3654 = vmatpush.bf16.msra.mxu0 %v3583
    %3655 = vmatpush.bf16.msra.mxu0 %v3580
    %3656 = vmatpush.bf16.msra.mxu0 %v3577
    %3657 = vmatmul.bf16.gmra.mxu0 %v3247
    %v3658 = vpop.f32.mrf.mxu0
    %v3659 = vadd.f32 %v112, %v3658
    %v3660 = vpop.f32.mrf.mxu0
    %3661 = vdwg.mxu0
    %v3662 = vld [vmem:[#allocation8 + $0x24] sm:$0xff]
    %v3663 = vld [vmem:[#allocation8 + $0x2c] sm:$0xf]
    %v3664 = vld [vmem:[#allocation8 + $0x70] sm:$0xff]
    %v3665 = vld [vmem:[#allocation8 + $0x78] sm:$0xf]
    %v3666 = vld [vmem:[#allocation8 + $0xbc] sm:$0xff]
    %v3667 = vld [vmem:[#allocation8 + $0xc4] sm:$0xf]
    %v3668 = vld [vmem:[#allocation8 + $0x108] sm:$0xff]
    %v3669 = vld [vmem:[#allocation8 + $0x110] sm:$0xf]
    %v3670 = vld [vmem:[#allocation8 + $0x154] sm:$0xff]
    %v3671 = vld [vmem:[#allocation8 + $0x15c] sm:$0xf]
    %v3672 = vld [vmem:[#allocation8 + $0x1a0] sm:$0xff]
    %v3673 = vld [vmem:[#allocation8 + $0x1a8] sm:$0xf]
    %v3674 = vld [vmem:[#allocation8 + $0x1ec] sm:$0xff]
    %v3675 = vld [vmem:[#allocation8 + $0x1f4] sm:$0xf]
    %v3676 = vld [vmem:[#allocation8 + $0x238] sm:$0xff]
    %v3677 = vld [vmem:[#allocation8 + $0x240] sm:$0xf]
    %v3678 = vld [vmem:[#allocation8 + $0x284] sm:$0xff]
    %v3679 = vld [vmem:[#allocation8 + $0x28c] sm:$0xf]
    %v3680 = vld [vmem:[#allocation8 + $0x2d0] sm:$0xff]
    %v3681 = vld [vmem:[#allocation8 + $0x2d8] sm:$0xf]
    %v3682 = vld [vmem:[#allocation8 + $0x31c] sm:$0xff]
    %v3683 = vld [vmem:[#allocation8 + $0x324] sm:$0xf]
    %v3684 = vld [vmem:[#allocation8 + $0x368] sm:$0xff]
    %v3685 = vld [vmem:[#allocation8 + $0x370] sm:$0xf]
    %v3686 = vld [vmem:[#allocation8 + $0x3b4] sm:$0xff]
    %v3687 = vld [vmem:[#allocation8 + $0x3bc] sm:$0xf]
    %v3688 = vld [vmem:[#allocation8 + $0x400] sm:$0xff]
    %v3689 = vld [vmem:[#allocation8 + $0x408] sm:$0xf]
    %v3690 = vld [vmem:[#allocation8 + $0x44c] sm:$0xff]
    %v3691 = vld [vmem:[#allocation8 + $0x454] sm:$0xf]
    %v3692 = vld [vmem:[#allocation8 + $0x498] sm:$0xff]
    %v3693 = vld [vmem:[#allocation8 + $0x4a0] sm:$0xf]
    %v3694 = vpack.c.bf16 %v2670, %v2670
    %v3727 = vunpack.c.l.b16 %v3662
    %v3728 = vunpack.c.h.b16 %v3662
    %v3729 = vunpack.c.l.b16 %v3663
    %v3730 = vunpack.c.l.b16 %v3664
    %v3731 = vunpack.c.h.b16 %v3664
    %v3732 = vunpack.c.l.b16 %v3665
    %v3733 = vunpack.c.l.b16 %v3666
    %v3734 = vunpack.c.h.b16 %v3666
    %v3735 = vunpack.c.l.b16 %v3667
    %v3736 = vunpack.c.l.b16 %v3668
    %v3737 = vunpack.c.h.b16 %v3668
    %v3738 = vunpack.c.l.b16 %v3669
    %v3739 = vunpack.c.l.b16 %v3670
    %v3740 = vunpack.c.h.b16 %v3670
    %v3741 = vunpack.c.l.b16 %v3671
    %v3742 = vunpack.c.l.b16 %v3672
    %v3743 = vunpack.c.h.b16 %v3672
    %v3744 = vunpack.c.l.b16 %v3673
    %v3745 = vunpack.c.l.b16 %v3674
    %v3746 = vunpack.c.h.b16 %v3674
    %v3747 = vunpack.c.l.b16 %v3675
    %v3748 = vunpack.c.l.b16 %v3676
    %v3749 = vunpack.c.h.b16 %v3676
    %v3750 = vunpack.c.l.b16 %v3677
    %v3751 = vunpack.c.l.b16 %v3678
    %v3752 = vunpack.c.h.b16 %v3678
    %v3753 = vunpack.c.l.b16 %v3679
    %v3754 = vunpack.c.l.b16 %v3680
    %v3755 = vunpack.c.h.b16 %v3680
    %v3756 = vunpack.c.l.b16 %v3681
    %v3757 = vunpack.c.l.b16 %v3682
    %v3758 = vunpack.c.h.b16 %v3682
    %v3759 = vunpack.c.l.b16 %v3683
    %v3760 = vunpack.c.l.b16 %v3684
    %v3761 = vunpack.c.h.b16 %v3684
    %v3762 = vunpack.c.l.b16 %v3685
    %v3763 = vunpack.c.l.b16 %v3686
    %v3764 = vunpack.c.h.b16 %v3686
    %v3765 = vunpack.c.l.b16 %v3687
    %v3766 = vunpack.c.l.b16 %v3688
    %v3767 = vunpack.c.h.b16 %v3688
    %v3768 = vunpack.c.l.b16 %v3689
    %v3769 = vunpack.c.l.b16 %v3690
    %v3770 = vunpack.c.h.b16 %v3690
    %v3771 = vunpack.c.l.b16 %v3691
    %v3772 = vunpack.c.l.b16 %v3692
    %v3773 = vunpack.c.h.b16 %v3692
    %v3774 = vunpack.c.l.b16 %v3693
    %v3775 = vpack.c.b16 %v3730, %v3727
    %v3776 = vpack.c.b16 %v3731, %v3728
    %v3777 = vpack.c.b16 %v3732, %v3729
    %v3778 = vpack.c.b16 %v3736, %v3733
    %v3779 = vpack.c.b16 %v3737, %v3734
    %v3780 = vpack.c.b16 %v3738, %v3735
    %v3781 = vpack.c.b16 %v3742, %v3739
    %v3782 = vpack.c.b16 %v3743, %v3740
    %v3783 = vpack.c.b16 %v3744, %v3741
    %v3784 = vpack.c.b16 %v3748, %v3745
    %v3785 = vpack.c.b16 %v3749, %v3746
    %v3786 = vpack.c.b16 %v3750, %v3747
    %v3787 = vpack.c.b16 %v3754, %v3751
    %v3788 = vpack.c.b16 %v3755, %v3752
    %v3789 = vpack.c.b16 %v3756, %v3753
    %v3790 = vpack.c.b16 %v3760, %v3757
    %v3791 = vpack.c.b16 %v3761, %v3758
    %v3792 = vpack.c.b16 %v3762, %v3759
    %v3793 = vpack.c.b16 %v3766, %v3763
    %v3794 = vpack.c.b16 %v3767, %v3764
    %v3795 = vpack.c.b16 %v3768, %v3765
    %v3796 = vpack.c.b16 %v3772, %v3769
    %v3797 = vpack.c.b16 %v3773, %v3770
    %v3798 = vpack.c.b16 %v3774, %v3771
    %3823 = vmatpush.bf16.msra.mxu0 %v3796
    %3824 = vmatpush.bf16.msra.mxu0 %v3793
    %3825 = vmatpush.bf16.msra.mxu0 %v3790
    %3826 = vmatpush.bf16.msra.mxu0 %v3787
    %3827 = vmatpush.bf16.msra.mxu0 %v3784
    %3828 = vmatpush.bf16.msra.mxu0 %v3781
    %3829 = vmatpush.bf16.msra.mxu0 %v3778
    %3830 = vmatpush.bf16.msra.mxu0 %v3775
    %3831 = vmatmul.bf16.gmra.mxu0 %v3694
    %v3832 = vpop.f32.mrf.mxu0
    %v3833 = vadd.f32 0.0, %v3832
    %v3834 = vpop.f32.mrf.mxu0
    %3835 = vdwg.mxu0
    %3836 = vmatpush.bf16.msra.mxu0 %v3797
    %3837 = vmatpush.bf16.msra.mxu0 %v3794
    %3838 = vmatpush.bf16.msra.mxu0 %v3791
    %3839 = vmatpush.bf16.msra.mxu0 %v3788
    %3840 = vmatpush.bf16.msra.mxu0 %v3785
    %3841 = vmatpush.bf16.msra.mxu0 %v3782
    %3842 = vmatpush.bf16.msra.mxu0 %v3779
    %3843 = vmatpush.bf16.msra.mxu0 %v3776
    %3844 = vmatmul.bf16.gmra.mxu0 %v3694
    %v3845 = vpop.f32.mrf.mxu0
    %v3846 = vadd.f32 0.0, %v3845
    %v3847 = vpop.f32.mrf.mxu0
    %3848 = vdwg.mxu0
    %3849 = vmatpush.bf16.msra.mxu0 %v3798
    %3850 = vmatpush.bf16.msra.mxu0 %v3795
    %3851 = vmatpush.bf16.msra.mxu0 %v3792
    %3852 = vmatpush.bf16.msra.mxu0 %v3789
    %3853 = vmatpush.bf16.msra.mxu0 %v3786
    %3854 = vmatpush.bf16.msra.mxu0 %v3783
    %3855 = vmatpush.bf16.msra.mxu0 %v3780
    %3856 = vmatpush.bf16.msra.mxu0 %v3777
    %3857 = vmatmul.bf16.gmra.mxu0 %v3694
    %v3858 = vpop.f32.mrf.mxu0
    %v3859 = vadd.f32 0.0, %v3858
    %v3860 = vpop.f32.mrf.mxu0
    %3861 = vdwg.mxu0
    %v3862 = vadd.f32 %v3633, %v3833
    %v3863 = vadd.f32 %v3646, %v3846
    %v3864 = vxor.u32 %v3862, 2147483648
    %v3865 = vxor.u32 %v3863, 2147483648
    %v3866 = vmul.f32 %v3864, 1.442695
    %v3867 = vpow.pop %v3866
    %v3868 = vmul.f32 %v3865, 1.442695
    %v3869 = vpow.pop %v3868
    %v3870 = vadd.f32 %v3867, 1.0
    %v3871 = vadd.f32 %v3869, 1.0
    %v3872 = vrcp.pop %v3870
    %v3873 = vmul.f32 %v3870, %v3872
    %v3874 = vsub.f32 1.0, %v3873
    %v3875 = vmul.f32 %v3872, %v3874
    %v3876 = vadd.f32 %v3872, %v3875
    %vm3877 = vweird.f32 %v3870
    %vm3878 = vweird.f32 %v3872
    %vm3879 = vmor %vm3877, %vm3878
    %v3880 = vsel %vm3879, %v3872, %v3876
    %v3881 = vand.u32 2147483647, %v3870
    %vm3882 = vcmp.eq.f32.partialorder %v3881, 8.507059e+37
    %v3883 = vand.u32 %v3870, 2147483648
    %v3884 = vor.u32 1.1754944e-38, %v3883
    %v3885 = vsel %vm3882, %v3884, %v3880
    %v3886 = vmul.f32 1.0, %v3885
    %v3887 = vrcp.pop %v3871
    %v3888 = vmul.f32 %v3871, %v3887
    %v3889 = vsub.f32 1.0, %v3888
    %v3890 = vmul.f32 %v3887, %v3889
    %v3891 = vadd.f32 %v3887, %v3890
    %vm3892 = vweird.f32 %v3871
    %vm3893 = vweird.f32 %v3887
    %vm3894 = vmor %vm3892, %vm3893
    %v3895 = vsel %vm3894, %v3887, %v3891
    %v3896 = vand.u32 2147483647, %v3871
    %vm3897 = vcmp.eq.f32.partialorder %v3896, 8.507059e+37
    %v3898 = vand.u32 %v3871, 2147483648
    %v3899 = vor.u32 1.1754944e-38, %v3898
    %v3900 = vsel %vm3897, %v3899, %v3895
    %v3901 = vmul.f32 1.0, %v3900
    %v3902 = vadd.f32 %v3859, %v102
    %v3903 = vmul.f32 %v3886, %v3902
    %v3904 = vadd.f32 %v3659, %v3903
    %v3905 = vtanh.pop %v3904
    %v3906 = vsub.f32 1.0, %v3901
    %v3907 = vmul.f32 %v3906, %v3905
    %v3908 = vmul.f32 %v3901, %v2670
    %v3909 = vadd.f32 %v3907, %v3908
    %v3910 = vld [vmem:[#allocation8 + $0x30] sm:$0xff]
    %v3911 = vld [vmem:[#allocation8 + $0x38] sm:$0xf]
    %v3912 = vld [vmem:[#allocation8 + $0x7c] sm:$0xff]
    %v3913 = vld [vmem:[#allocation8 + $0x84] sm:$0xf]
    %v3914 = vld [vmem:[#allocation8 + $0xc8] sm:$0xff]
    %v3915 = vld [vmem:[#allocation8 + $0xd0] sm:$0xf]
    %v3916 = vld [vmem:[#allocation8 + $0x114] sm:$0xff]
    %v3917 = vld [vmem:[#allocation8 + $0x11c] sm:$0xf]
    %v3918 = vld [vmem:[#allocation8 + $0x160] sm:$0xff]
    %v3919 = vld [vmem:[#allocation8 + $0x168] sm:$0xf]
    %v3920 = vld [vmem:[#allocation8 + $0x1ac] sm:$0xff]
    %v3921 = vld [vmem:[#allocation8 + $0x1b4] sm:$0xf]
    %v3922 = vld [vmem:[#allocation8 + $0x1f8] sm:$0xff]
    %v3923 = vld [vmem:[#allocation8 + $0x200] sm:$0xf]
    %v3924 = vld [vmem:[#allocation8 + $0x244] sm:$0xff]
    %v3925 = vld [vmem:[#allocation8 + $0x24c] sm:$0xf]
    %v3926 = vld [vmem:[#allocation8 + $0x290] sm:$0xff]
    %v3927 = vld [vmem:[#allocation8 + $0x298] sm:$0xf]
    %v3928 = vld [vmem:[#allocation8 + $0x2dc] sm:$0xff]
    %v3929 = vld [vmem:[#allocation8 + $0x2e4] sm:$0xf]
    %v3930 = vld [vmem:[#allocation8 + $0x328] sm:$0xff]
    %v3931 = vld [vmem:[#allocation8 + $0x330] sm:$0xf]
    %v3932 = vld [vmem:[#allocation8 + $0x374] sm:$0xff]
    %v3933 = vld [vmem:[#allocation8 + $0x37c] sm:$0xf]
    %v3934 = vld [vmem:[#allocation8 + $0x3c0] sm:$0xff]
    %v3935 = vld [vmem:[#allocation8 + $0x3c8] sm:$0xf]
    %v3936 = vld [vmem:[#allocation8 + $0x40c] sm:$0xff]
    %v3937 = vld [vmem:[#allocation8 + $0x414] sm:$0xf]
    %v3938 = vld [vmem:[#allocation8 + $0x458] sm:$0xff]
    %v3939 = vld [vmem:[#allocation8 + $0x460] sm:$0xf]
    %v3940 = vld [vmem:[#allocation8 + $0x4a4] sm:$0xff]
    %v3941 = vld [vmem:[#allocation8 + $0x4ac] sm:$0xf]
    %v3974 = vunpack.c.l.b16 %v3910
    %v3975 = vunpack.c.h.b16 %v3910
    %v3976 = vunpack.c.l.b16 %v3911
    %v3977 = vunpack.c.l.b16 %v3912
    %v3978 = vunpack.c.h.b16 %v3912
    %v3979 = vunpack.c.l.b16 %v3913
    %v3980 = vunpack.c.l.b16 %v3914
    %v3981 = vunpack.c.h.b16 %v3914
    %v3982 = vunpack.c.l.b16 %v3915
    %v3983 = vunpack.c.l.b16 %v3916
    %v3984 = vunpack.c.h.b16 %v3916
    %v3985 = vunpack.c.l.b16 %v3917
    %v3986 = vunpack.c.l.b16 %v3918
    %v3987 = vunpack.c.h.b16 %v3918
    %v3988 = vunpack.c.l.b16 %v3919
    %v3989 = vunpack.c.l.b16 %v3920
    %v3990 = vunpack.c.h.b16 %v3920
    %v3991 = vunpack.c.l.b16 %v3921
    %v3992 = vunpack.c.l.b16 %v3922
    %v3993 = vunpack.c.h.b16 %v3922
    %v3994 = vunpack.c.l.b16 %v3923
    %v3995 = vunpack.c.l.b16 %v3924
    %v3996 = vunpack.c.h.b16 %v3924
    %v3997 = vunpack.c.l.b16 %v3925
    %v3998 = vunpack.c.l.b16 %v3926
    %v3999 = vunpack.c.h.b16 %v3926
    %v4000 = vunpack.c.l.b16 %v3927
    %v4001 = vunpack.c.l.b16 %v3928
    %v4002 = vunpack.c.h.b16 %v3928
    %v4003 = vunpack.c.l.b16 %v3929
    %v4004 = vunpack.c.l.b16 %v3930
    %v4005 = vunpack.c.h.b16 %v3930
    %v4006 = vunpack.c.l.b16 %v3931
    %v4007 = vunpack.c.l.b16 %v3932
    %v4008 = vunpack.c.h.b16 %v3932
    %v4009 = vunpack.c.l.b16 %v3933
    %v4010 = vunpack.c.l.b16 %v3934
    %v4011 = vunpack.c.h.b16 %v3934
    %v4012 = vunpack.c.l.b16 %v3935
    %v4013 = vunpack.c.l.b16 %v3936
    %v4014 = vunpack.c.h.b16 %v3936
    %v4015 = vunpack.c.l.b16 %v3937
    %v4016 = vunpack.c.l.b16 %v3938
    %v4017 = vunpack.c.h.b16 %v3938
    %v4018 = vunpack.c.l.b16 %v3939
    %v4019 = vunpack.c.l.b16 %v3940
    %v4020 = vunpack.c.h.b16 %v3940
    %v4021 = vunpack.c.l.b16 %v3941
    %v4022 = vpack.c.b16 %v3977, %v3974
    %v4023 = vpack.c.b16 %v3978, %v3975
    %v4024 = vpack.c.b16 %v3979, %v3976
    %v4025 = vpack.c.b16 %v3983, %v3980
    %v4026 = vpack.c.b16 %v3984, %v3981
    %v4027 = vpack.c.b16 %v3985, %v3982
    %v4028 = vpack.c.b16 %v3989, %v3986
    %v4029 = vpack.c.b16 %v3990, %v3987
    %v4030 = vpack.c.b16 %v3991, %v3988
    %v4031 = vpack.c.b16 %v3995, %v3992
    %v4032 = vpack.c.b16 %v3996, %v3993
    %v4033 = vpack.c.b16 %v3997, %v3994
    %v4034 = vpack.c.b16 %v4001, %v3998
    %v4035 = vpack.c.b16 %v4002, %v3999
    %v4036 = vpack.c.b16 %v4003, %v4000
    %v4037 = vpack.c.b16 %v4007, %v4004
    %v4038 = vpack.c.b16 %v4008, %v4005
    %v4039 = vpack.c.b16 %v4009, %v4006
    %v4040 = vpack.c.b16 %v4013, %v4010
    %v4041 = vpack.c.b16 %v4014, %v4011
    %v4042 = vpack.c.b16 %v4015, %v4012
    %v4043 = vpack.c.b16 %v4019, %v4016
    %v4044 = vpack.c.b16 %v4020, %v4017
    %v4045 = vpack.c.b16 %v4021, %v4018
    %4070 = vmatpush.bf16.msra.mxu0 %v4043
    %4071 = vmatpush.bf16.msra.mxu0 %v4040
    %4072 = vmatpush.bf16.msra.mxu0 %v4037
    %4073 = vmatpush.bf16.msra.mxu0 %v4034
    %4074 = vmatpush.bf16.msra.mxu0 %v4031
    %4075 = vmatpush.bf16.msra.mxu0 %v4028
    %4076 = vmatpush.bf16.msra.mxu0 %v4025
    %4077 = vmatpush.bf16.msra.mxu0 %v4022
    %4078 = vmatmul.bf16.gmra.mxu0 %v3694
    %v4079 = vpop.f32.mrf.mxu0
    %v4080 = vadd.f32 %v118, %v4079
    %v4081 = vpop.f32.mrf.mxu0
    %4082 = vdwg.mxu0
    %4083 = vmatpush.bf16.msra.mxu0 %v4044
    %4084 = vmatpush.bf16.msra.mxu0 %v4041
    %4085 = vmatpush.bf16.msra.mxu0 %v4038
    %4086 = vmatpush.bf16.msra.mxu0 %v4035
    %4087 = vmatpush.bf16.msra.mxu0 %v4032
    %4088 = vmatpush.bf16.msra.mxu0 %v4029
    %4089 = vmatpush.bf16.msra.mxu0 %v4026
    %4090 = vmatpush.bf16.msra.mxu0 %v4023
    %4091 = vmatmul.bf16.gmra.mxu0 %v3694
    %v4092 = vpop.f32.mrf.mxu0
    %v4093 = vadd.f32 %v119, %v4092
    %v4094 = vpop.f32.mrf.mxu0
    %4095 = vdwg.mxu0
    %4096 = vmatpush.bf16.msra.mxu0 %v4045
    %4097 = vmatpush.bf16.msra.mxu0 %v4042
    %4098 = vmatpush.bf16.msra.mxu0 %v4039
    %4099 = vmatpush.bf16.msra.mxu0 %v4036
    %4100 = vmatpush.bf16.msra.mxu0 %v4033
    %4101 = vmatpush.bf16.msra.mxu0 %v4030
    %4102 = vmatpush.bf16.msra.mxu0 %v4027
    %4103 = vmatpush.bf16.msra.mxu0 %v4024
    %4104 = vmatmul.bf16.gmra.mxu0 %v3694
    %v4105 = vpop.f32.mrf.mxu0
    %v4106 = vadd.f32 %v120, %v4105
    %v4107 = vpop.f32.mrf.mxu0
    %4108 = vdwg.mxu0
    %v4109 = vld [vmem:[#allocation8 + $0x3c] sm:$0xff]
    %v4110 = vld [vmem:[#allocation8 + $0x44] sm:$0xf]
    %v4111 = vld [vmem:[#allocation8 + $0x88] sm:$0xff]
    %v4112 = vld [vmem:[#allocation8 + $0x90] sm:$0xf]
    %v4113 = vld [vmem:[#allocation8 + $0xd4] sm:$0xff]
    %v4114 = vld [vmem:[#allocation8 + $0xdc] sm:$0xf]
    %v4115 = vld [vmem:[#allocation8 + $0x120] sm:$0xff]
    %v4116 = vld [vmem:[#allocation8 + $0x128] sm:$0xf]
    %v4117 = vld [vmem:[#allocation8 + $0x16c] sm:$0xff]
    %v4118 = vld [vmem:[#allocation8 + $0x174] sm:$0xf]
    %v4119 = vld [vmem:[#allocation8 + $0x1b8] sm:$0xff]
    %v4120 = vld [vmem:[#allocation8 + $0x1c0] sm:$0xf]
    %v4121 = vld [vmem:[#allocation8 + $0x204] sm:$0xff]
    %v4122 = vld [vmem:[#allocation8 + $0x20c] sm:$0xf]
    %v4123 = vld [vmem:[#allocation8 + $0x250] sm:$0xff]
    %v4124 = vld [vmem:[#allocation8 + $0x258] sm:$0xf]
    %v4125 = vld [vmem:[#allocation8 + $0x29c] sm:$0xff]
    %v4126 = vld [vmem:[#allocation8 + $0x2a4] sm:$0xf]
    %v4127 = vld [vmem:[#allocation8 + $0x2e8] sm:$0xff]
    %v4128 = vld [vmem:[#allocation8 + $0x2f0] sm:$0xf]
    %v4129 = vld [vmem:[#allocation8 + $0x334] sm:$0xff]
    %v4130 = vld [vmem:[#allocation8 + $0x33c] sm:$0xf]
    %v4131 = vld [vmem:[#allocation8 + $0x380] sm:$0xff]
    %v4132 = vld [vmem:[#allocation8 + $0x388] sm:$0xf]
    %v4133 = vld [vmem:[#allocation8 + $0x3cc] sm:$0xff]
    %v4134 = vld [vmem:[#allocation8 + $0x3d4] sm:$0xf]
    %v4135 = vld [vmem:[#allocation8 + $0x418] sm:$0xff]
    %v4136 = vld [vmem:[#allocation8 + $0x420] sm:$0xf]
    %v4137 = vld [vmem:[#allocation8 + $0x464] sm:$0xff]
    %v4138 = vld [vmem:[#allocation8 + $0x46c] sm:$0xf]
    %v4139 = vld [vmem:[#allocation8 + $0x4b0] sm:$0xff]
    %v4140 = vld [vmem:[#allocation8 + $0x4b8] sm:$0xf]
    %v4173 = vunpack.c.l.b16 %v4109
    %v4174 = vunpack.c.h.b16 %v4109
    %v4175 = vunpack.c.l.b16 %v4110
    %v4176 = vunpack.c.l.b16 %v4111
    %v4177 = vunpack.c.h.b16 %v4111
    %v4178 = vunpack.c.l.b16 %v4112
    %v4179 = vunpack.c.l.b16 %v4113
    %v4180 = vunpack.c.h.b16 %v4113
    %v4181 = vunpack.c.l.b16 %v4114
    %v4182 = vunpack.c.l.b16 %v4115
    %v4183 = vunpack.c.h.b16 %v4115
    %v4184 = vunpack.c.l.b16 %v4116
    %v4185 = vunpack.c.l.b16 %v4117
    %v4186 = vunpack.c.h.b16 %v4117
    %v4187 = vunpack.c.l.b16 %v4118
    %v4188 = vunpack.c.l.b16 %v4119
    %v4189 = vunpack.c.h.b16 %v4119
    %v4190 = vunpack.c.l.b16 %v4120
    %v4191 = vunpack.c.l.b16 %v4121
    %v4192 = vunpack.c.h.b16 %v4121
    %v4193 = vunpack.c.l.b16 %v4122
    %v4194 = vunpack.c.l.b16 %v4123
    %v4195 = vunpack.c.h.b16 %v4123
    %v4196 = vunpack.c.l.b16 %v4124
    %v4197 = vunpack.c.l.b16 %v4125
    %v4198 = vunpack.c.h.b16 %v4125
    %v4199 = vunpack.c.l.b16 %v4126
    %v4200 = vunpack.c.l.b16 %v4127
    %v4201 = vunpack.c.h.b16 %v4127
    %v4202 = vunpack.c.l.b16 %v4128
    %v4203 = vunpack.c.l.b16 %v4129
    %v4204 = vunpack.c.h.b16 %v4129
    %v4205 = vunpack.c.l.b16 %v4130
    %v4206 = vunpack.c.l.b16 %v4131
    %v4207 = vunpack.c.h.b16 %v4131
    %v4208 = vunpack.c.l.b16 %v4132
    %v4209 = vunpack.c.l.b16 %v4133
    %v4210 = vunpack.c.h.b16 %v4133
    %v4211 = vunpack.c.l.b16 %v4134
    %v4212 = vunpack.c.l.b16 %v4135
    %v4213 = vunpack.c.h.b16 %v4135
    %v4214 = vunpack.c.l.b16 %v4136
    %v4215 = vunpack.c.l.b16 %v4137
    %v4216 = vunpack.c.h.b16 %v4137
    %v4217 = vunpack.c.l.b16 %v4138
    %v4218 = vunpack.c.l.b16 %v4139
    %v4219 = vunpack.c.h.b16 %v4139
    %v4220 = vunpack.c.l.b16 %v4140
    %v4221 = vpack.c.b16 %v4176, %v4173
    %v4222 = vpack.c.b16 %v4177, %v4174
    %v4223 = vpack.c.b16 %v4178, %v4175
    %v4224 = vpack.c.b16 %v4182, %v4179
    %v4225 = vpack.c.b16 %v4183, %v4180
    %v4226 = vpack.c.b16 %v4184, %v4181
    %v4227 = vpack.c.b16 %v4188, %v4185
    %v4228 = vpack.c.b16 %v4189, %v4186
    %v4229 = vpack.c.b16 %v4190, %v4187
    %v4230 = vpack.c.b16 %v4194, %v4191
    %v4231 = vpack.c.b16 %v4195, %v4192
    %v4232 = vpack.c.b16 %v4196, %v4193
    %v4233 = vpack.c.b16 %v4200, %v4197
    %v4234 = vpack.c.b16 %v4201, %v4198
    %v4235 = vpack.c.b16 %v4202, %v4199
    %v4236 = vpack.c.b16 %v4206, %v4203
    %v4237 = vpack.c.b16 %v4207, %v4204
    %v4238 = vpack.c.b16 %v4208, %v4205
    %v4239 = vpack.c.b16 %v4212, %v4209
    %v4240 = vpack.c.b16 %v4213, %v4210
    %v4241 = vpack.c.b16 %v4214, %v4211
    %v4242 = vpack.c.b16 %v4218, %v4215
    %v4243 = vpack.c.b16 %v4219, %v4216
    %v4244 = vpack.c.b16 %v4220, %v4217
    %4269 = vmatpush.bf16.msra.mxu0 %v4242
    %4270 = vmatpush.bf16.msra.mxu0 %v4239
    %4271 = vmatpush.bf16.msra.mxu0 %v4236
    %4272 = vmatpush.bf16.msra.mxu0 %v4233
    %4273 = vmatpush.bf16.msra.mxu0 %v4230
    %4274 = vmatpush.bf16.msra.mxu0 %v4227
    %4275 = vmatpush.bf16.msra.mxu0 %v4224
    %4276 = vmatpush.bf16.msra.mxu0 %v4221
    %4277 = vmatmul.bf16.gmra.mxu0 %v3133
    %v4278 = vpop.f32.mrf.mxu0
    %v4279 = vadd.f32 0.0, %v4278
    %v4280 = vpop.f32.mrf.mxu0
    %4281 = vdwg.mxu0
    %4282 = vmatpush.bf16.msra.mxu0 %v4243
    %4283 = vmatpush.bf16.msra.mxu0 %v4240
    %4284 = vmatpush.bf16.msra.mxu0 %v4237
    %4285 = vmatpush.bf16.msra.mxu0 %v4234
    %4286 = vmatpush.bf16.msra.mxu0 %v4231
    %4287 = vmatpush.bf16.msra.mxu0 %v4228
    %4288 = vmatpush.bf16.msra.mxu0 %v4225
    %4289 = vmatpush.bf16.msra.mxu0 %v4222
    %4290 = vmatmul.bf16.gmra.mxu0 %v3133
    %v4291 = vpop.f32.mrf.mxu0
    %v4292 = vadd.f32 0.0, %v4291
    %v4293 = vpop.f32.mrf.mxu0
    %4294 = vdwg.mxu0
    %4295 = vmatpush.bf16.msra.mxu0 %v4244
    %4296 = vmatpush.bf16.msra.mxu0 %v4241
    %4297 = vmatpush.bf16.msra.mxu0 %v4238
    %4298 = vmatpush.bf16.msra.mxu0 %v4235
    %4299 = vmatpush.bf16.msra.mxu0 %v4232
    %4300 = vmatpush.bf16.msra.mxu0 %v4229
    %4301 = vmatpush.bf16.msra.mxu0 %v4226
    %4302 = vmatpush.bf16.msra.mxu0 %v4223
    %4303 = vmatmul.bf16.gmra.mxu0 %v3133
    %v4304 = vpop.f32.mrf.mxu0
    %v4305 = vadd.f32 0.0, %v4304
    %v4306 = vpop.f32.mrf.mxu0
    %4307 = vdwg.mxu0
    %v4308 = vadd.f32 %v4080, %v4279
    %v4309 = vadd.f32 %v4093, %v4292
    %v4310 = vxor.u32 %v4308, 2147483648
    %v4311 = vxor.u32 %v4309, 2147483648
    %v4312 = vmul.f32 %v4310, 1.442695
    %v4313 = vpow.pop %v4312
    %v4314 = vmul.f32 %v4311, 1.442695
    %v4315 = vpow.pop %v4314
    %v4316 = vadd.f32 %v4313, 1.0
    %v4317 = vadd.f32 %v4315, 1.0
    %v4318 = vrcp.pop %v4316
    %v4319 = vmul.f32 %v4316, %v4318
    %v4320 = vsub.f32 1.0, %v4319
    %v4321 = vmul.f32 %v4318, %v4320
    %v4322 = vadd.f32 %v4318, %v4321
    %vm4323 = vweird.f32 %v4316
    %vm4324 = vweird.f32 %v4318
    %vm4325 = vmor %vm4323, %vm4324
    %v4326 = vsel %vm4325, %v4318, %v4322
    %v4327 = vand.u32 2147483647, %v4316
    %vm4328 = vcmp.eq.f32.partialorder %v4327, 8.507059e+37
    %v4329 = vand.u32 %v4316, 2147483648
    %v4330 = vor.u32 1.1754944e-38, %v4329
    %v4331 = vsel %vm4328, %v4330, %v4326
    %v4332 = vmul.f32 1.0, %v4331
    %v4333 = vrcp.pop %v4317
    %v4334 = vmul.f32 %v4317, %v4333
    %v4335 = vsub.f32 1.0, %v4334
    %v4336 = vmul.f32 %v4333, %v4335
    %v4337 = vadd.f32 %v4333, %v4336
    %vm4338 = vweird.f32 %v4317
    %vm4339 = vweird.f32 %v4333
    %vm4340 = vmor %vm4338, %vm4339
    %v4341 = vsel %vm4340, %v4333, %v4337
    %v4342 = vand.u32 2147483647, %v4317
    %vm4343 = vcmp.eq.f32.partialorder %v4342, 8.507059e+37
    %v4344 = vand.u32 %v4317, 2147483648
    %v4345 = vor.u32 1.1754944e-38, %v4344
    %v4346 = vsel %vm4343, %v4345, %v4341
    %v4347 = vmul.f32 1.0, %v4346
    %v4348 = vadd.f32 %v4305, %v106
    %v4349 = vmul.f32 %v4332, %v4348
    %v4350 = vadd.f32 %v4106, %v4349
    %v4351 = vtanh.pop %v4350
    %v4352 = vsub.f32 1.0, %v4347
    %v4353 = vmul.f32 %v4352, %v4351
    %v4354 = vmul.f32 %v4347, %v3116
    %v4355 = vadd.f32 %v4353, %v4354
    %v4356 = vld [vmem:[#allocation8 + $0x48] sm:$0xf]
    %v4357 = vld [vmem:[#allocation8 + $0x94] sm:$0xf]
    %v4358 = vld [vmem:[#allocation8 + $0xe0] sm:$0xf]
    %v4359 = vld [vmem:[#allocation8 + $0x12c] sm:$0xf]
    %v4360 = vld [vmem:[#allocation8 + $0x178] sm:$0xf]
    %v4361 = vld [vmem:[#allocation8 + $0x1c4] sm:$0xf]
    %v4362 = vld [vmem:[#allocation8 + $0x210] sm:$0xf]
    %v4363 = vld [vmem:[#allocation8 + $0x25c] sm:$0xf]
    %v4364 = vld [vmem:[#allocation8 + $0x2a8] sm:$0xf]
    %v4365 = vld [vmem:[#allocation8 + $0x2f4] sm:$0xf]
    %v4366 = vld [vmem:[#allocation8 + $0x340] sm:$0xf]
    %v4367 = vld [vmem:[#allocation8 + $0x38c] sm:$0xf]
    %v4368 = vld [vmem:[#allocation8 + $0x3d8] sm:$0xf]
    %v4369 = vld [vmem:[#allocation8 + $0x424] sm:$0xf]
    %v4370 = vld [vmem:[#allocation8 + $0x470] sm:$0xf]
    %v4371 = vld [vmem:[#allocation8 + $0x4bc] sm:$0xf]
    %v4372 = vpack.c.bf16 %v4355, %v4355
    %v4389 = vunpack.c.l.b16 %v4356
    %v4390 = vunpack.c.l.b16 %v4357
    %v4391 = vunpack.c.l.b16 %v4358
    %v4392 = vunpack.c.l.b16 %v4359
    %v4393 = vunpack.c.l.b16 %v4360
    %v4394 = vunpack.c.l.b16 %v4361
    %v4395 = vunpack.c.l.b16 %v4362
    %v4396 = vunpack.c.l.b16 %v4363
    %v4397 = vunpack.c.l.b16 %v4364
    %v4398 = vunpack.c.l.b16 %v4365
    %v4399 = vunpack.c.l.b16 %v4366
    %v4400 = vunpack.c.l.b16 %v4367
    %v4401 = vunpack.c.l.b16 %v4368
    %v4402 = vunpack.c.l.b16 %v4369
    %v4403 = vunpack.c.l.b16 %v4370
    %v4404 = vunpack.c.l.b16 %v4371
    %v4405 = vpack.c.b16 %v4390, %v4389
    %v4406 = vpack.c.b16 %v4392, %v4391
    %v4407 = vpack.c.b16 %v4394, %v4393
    %v4408 = vpack.c.b16 %v4396, %v4395
    %v4409 = vpack.c.b16 %v4398, %v4397
    %v4410 = vpack.c.b16 %v4400, %v4399
    %v4411 = vpack.c.b16 %v4402, %v4401
    %v4412 = vpack.c.b16 %v4404, %v4403
    %4421 = vmatpush.bf16.msra.mxu0 %v4412
    %4422 = vmatpush.bf16.msra.mxu0 %v4411
    %4423 = vmatpush.bf16.msra.mxu0 %v4410
    %4424 = vmatpush.bf16.msra.mxu0 %v4409
    %4425 = vmatpush.bf16.msra.mxu0 %v4408
    %4426 = vmatpush.bf16.msra.mxu0 %v4407
    %4427 = vmatpush.bf16.msra.mxu0 %v4406
    %4428 = vmatpush.bf16.msra.mxu0 %v4405
    %4429 = vmatmul.bf16.gmra.mxu0 %v4372
    %v4430 = vpop.f32.mrf.mxu0
    %v4431 = vadd.f32 %v126, %v4430
    %v4432 = vpop.f32.mrf.mxu0
    %4433 = vdwg.mxu0
    %v4434 = vxor.u32 %v4431, 2147483648
    %v4435 = vmul.f32 %v4434, 1.442695
    %v4436 = vpow.pop %v4435
    %v4437 = vadd.f32 %v4436, 1.0
    %v4438 = vrcp.pop %v4437
    %v4439 = vmul.f32 %v4437, %v4438
    %v4440 = vsub.f32 1.0, %v4439
    %v4441 = vmul.f32 %v4438, %v4440
    %v4442 = vadd.f32 %v4438, %v4441
    %vm4443 = vweird.f32 %v4437
    %vm4444 = vweird.f32 %v4438
    %vm4445 = vmor %vm4443, %vm4444
    %v4446 = vsel %vm4445, %v4438, %v4442
    %v4447 = vand.u32 2147483647, %v4437
    %vm4448 = vcmp.eq.f32.partialorder %v4447, 8.507059e+37
    %v4449 = vand.u32 %v4437, 2147483648
    %v4450 = vor.u32 1.1754944e-38, %v4449
    %v4451 = vsel %vm4448, %v4450, %v4446
    %v4452 = vmul.f32 1.0, %v4451
    %4453 = vst [vmem:[#allocation11 + $0x10] sm:$0xff] %v4452
    %v4454 = vld [vmem:[#allocation8 + $0xc] sm:$0xff]
    %v4455 = vld [vmem:[#allocation8 + $0x14] sm:$0xf]
    %v4456 = vld [vmem:[#allocation8 + $0x58] sm:$0xff]
    %v4457 = vld [vmem:[#allocation8 + $0x60] sm:$0xf]
    %v4458 = vld [vmem:[#allocation8 + $0xa4] sm:$0xff]
    %v4459 = vld [vmem:[#allocation8 + $0xac] sm:$0xf]
    %v4460 = vld [vmem:[#allocation8 + $0xf0] sm:$0xff]
    %v4461 = vld [vmem:[#allocation8 + $0xf8] sm:$0xf]
    %v4462 = vld [vmem:[#allocation8 + $0x13c] sm:$0xff]
    %v4463 = vld [vmem:[#allocation8 + $0x144] sm:$0xf]
    %v4464 = vld [vmem:[#allocation8 + $0x188] sm:$0xff]
    %v4465 = vld [vmem:[#allocation8 + $0x190] sm:$0xf]
    %v4466 = vld [vmem:[#allocation8 + $0x1d4] sm:$0xff]
    %v4467 = vld [vmem:[#allocation8 + $0x1dc] sm:$0xf]
    %v4468 = vld [vmem:[#allocation8 + $0x220] sm:$0xff]
    %v4469 = vld [vmem:[#allocation8 + $0x228] sm:$0xf]
    %v4470 = vld [vmem:[#allocation8 + $0x26c] sm:$0xff]
    %v4471 = vld [vmem:[#allocation8 + $0x274] sm:$0xf]
    %v4472 = vld [vmem:[#allocation8 + $0x2b8] sm:$0xff]
    %v4473 = vld [vmem:[#allocation8 + $0x2c0] sm:$0xf]
    %v4474 = vld [vmem:[#allocation8 + $0x304] sm:$0xff]
    %v4475 = vld [vmem:[#allocation8 + $0x30c] sm:$0xf]
    %v4476 = vld [vmem:[#allocation8 + $0x350] sm:$0xff]
    %v4477 = vld [vmem:[#allocation8 + $0x358] sm:$0xf]
    %v4478 = vld [vmem:[#allocation8 + $0x39c] sm:$0xff]
    %v4479 = vld [vmem:[#allocation8 + $0x3a4] sm:$0xf]
    %v4480 = vld [vmem:[#allocation8 + $0x3e8] sm:$0xff]
    %v4481 = vld [vmem:[#allocation8 + $0x3f0] sm:$0xf]
    %v4482 = vld [vmem:[#allocation8 + $0x434] sm:$0xff]
    %v4483 = vld [vmem:[#allocation8 + $0x43c] sm:$0xf]
    %v4484 = vld [vmem:[#allocation8 + $0x480] sm:$0xff]
    %v4485 = vld [vmem:[#allocation8 + $0x488] sm:$0xf]
    %v4486 = vpack.c.bf16 %v3462, %v3462
    %v4519 = vunpack.c.l.b16 %v4454
    %v4520 = vunpack.c.h.b16 %v4454
    %v4521 = vunpack.c.l.b16 %v4455
    %v4522 = vunpack.c.l.b16 %v4456
    %v4523 = vunpack.c.h.b16 %v4456
    %v4524 = vunpack.c.l.b16 %v4457
    %v4525 = vunpack.c.l.b16 %v4458
    %v4526 = vunpack.c.h.b16 %v4458
    %v4527 = vunpack.c.l.b16 %v4459
    %v4528 = vunpack.c.l.b16 %v4460
    %v4529 = vunpack.c.h.b16 %v4460
    %v4530 = vunpack.c.l.b16 %v4461
    %v4531 = vunpack.c.l.b16 %v4462
    %v4532 = vunpack.c.h.b16 %v4462
    %v4533 = vunpack.c.l.b16 %v4463
    %v4534 = vunpack.c.l.b16 %v4464
    %v4535 = vunpack.c.h.b16 %v4464
    %v4536 = vunpack.c.l.b16 %v4465
    %v4537 = vunpack.c.l.b16 %v4466
    %v4538 = vunpack.c.h.b16 %v4466
    %v4539 = vunpack.c.l.b16 %v4467
    %v4540 = vunpack.c.l.b16 %v4468
    %v4541 = vunpack.c.h.b16 %v4468
    %v4542 = vunpack.c.l.b16 %v4469
    %v4543 = vunpack.c.l.b16 %v4470
    %v4544 = vunpack.c.h.b16 %v4470
    %v4545 = vunpack.c.l.b16 %v4471
    %v4546 = vunpack.c.l.b16 %v4472
    %v4547 = vunpack.c.h.b16 %v4472
    %v4548 = vunpack.c.l.b16 %v4473
    %v4549 = vunpack.c.l.b16 %v4474
    %v4550 = vunpack.c.h.b16 %v4474
    %v4551 = vunpack.c.l.b16 %v4475
    %v4552 = vunpack.c.l.b16 %v4476
    %v4553 = vunpack.c.h.b16 %v4476
    %v4554 = vunpack.c.l.b16 %v4477
    %v4555 = vunpack.c.l.b16 %v4478
    %v4556 = vunpack.c.h.b16 %v4478
    %v4557 = vunpack.c.l.b16 %v4479
    %v4558 = vunpack.c.l.b16 %v4480
    %v4559 = vunpack.c.h.b16 %v4480
    %v4560 = vunpack.c.l.b16 %v4481
    %v4561 = vunpack.c.l.b16 %v4482
    %v4562 = vunpack.c.h.b16 %v4482
    %v4563 = vunpack.c.l.b16 %v4483
    %v4564 = vunpack.c.l.b16 %v4484
    %v4565 = vunpack.c.h.b16 %v4484
    %v4566 = vunpack.c.l.b16 %v4485
    %v4567 = vpack.c.b16 %v4522, %v4519
    %v4568 = vpack.c.b16 %v4523, %v4520
    %v4569 = vpack.c.b16 %v4524, %v4521
    %v4570 = vpack.c.b16 %v4528, %v4525
    %v4571 = vpack.c.b16 %v4529, %v4526
    %v4572 = vpack.c.b16 %v4530, %v4527
    %v4573 = vpack.c.b16 %v4534, %v4531
    %v4574 = vpack.c.b16 %v4535, %v4532
    %v4575 = vpack.c.b16 %v4536, %v4533
    %v4576 = vpack.c.b16 %v4540, %v4537
    %v4577 = vpack.c.b16 %v4541, %v4538
    %v4578 = vpack.c.b16 %v4542, %v4539
    %v4579 = vpack.c.b16 %v4546, %v4543
    %v4580 = vpack.c.b16 %v4547, %v4544
    %v4581 = vpack.c.b16 %v4548, %v4545
    %v4582 = vpack.c.b16 %v4552, %v4549
    %v4583 = vpack.c.b16 %v4553, %v4550
    %v4584 = vpack.c.b16 %v4554, %v4551
    %v4585 = vpack.c.b16 %v4558, %v4555
    %v4586 = vpack.c.b16 %v4559, %v4556
    %v4587 = vpack.c.b16 %v4560, %v4557
    %v4588 = vpack.c.b16 %v4564, %v4561
    %v4589 = vpack.c.b16 %v4565, %v4562
    %v4590 = vpack.c.b16 %v4566, %v4563
    %4615 = vmatpush.bf16.msra.mxu0 %v4588
    %4616 = vmatpush.bf16.msra.mxu0 %v4585
    %4617 = vmatpush.bf16.msra.mxu0 %v4582
    %4618 = vmatpush.bf16.msra.mxu0 %v4579
    %4619 = vmatpush.bf16.msra.mxu0 %v4576
    %4620 = vmatpush.bf16.msra.mxu0 %v4573
    %4621 = vmatpush.bf16.msra.mxu0 %v4570
    %4622 = vmatpush.bf16.msra.mxu0 %v4567
    %4623 = vmatmul.bf16.gmra.mxu0 %v4486
    %v4624 = vpop.f32.mrf.mxu0
    %v4625 = vadd.f32 0.0, %v4624
    %v4626 = vpop.f32.mrf.mxu0
    %4627 = vdwg.mxu0
    %4628 = vmatpush.bf16.msra.mxu0 %v4589
    %4629 = vmatpush.bf16.msra.mxu0 %v4586
    %4630 = vmatpush.bf16.msra.mxu0 %v4583
    %4631 = vmatpush.bf16.msra.mxu0 %v4580
    %4632 = vmatpush.bf16.msra.mxu0 %v4577
    %4633 = vmatpush.bf16.msra.mxu0 %v4574
    %4634 = vmatpush.bf16.msra.mxu0 %v4571
    %4635 = vmatpush.bf16.msra.mxu0 %v4568
    %4636 = vmatmul.bf16.gmra.mxu0 %v4486
    %v4637 = vpop.f32.mrf.mxu0
    %v4638 = vadd.f32 0.0, %v4637
    %v4639 = vpop.f32.mrf.mxu0
    %4640 = vdwg.mxu0
    %4641 = vmatpush.bf16.msra.mxu0 %v4590
    %4642 = vmatpush.bf16.msra.mxu0 %v4587
    %4643 = vmatpush.bf16.msra.mxu0 %v4584
    %4644 = vmatpush.bf16.msra.mxu0 %v4581
    %4645 = vmatpush.bf16.msra.mxu0 %v4578
    %4646 = vmatpush.bf16.msra.mxu0 %v4575
    %4647 = vmatpush.bf16.msra.mxu0 %v4572
    %4648 = vmatpush.bf16.msra.mxu0 %v4569
    %4649 = vmatmul.bf16.gmra.mxu0 %v4486
    %v4650 = vpop.f32.mrf.mxu0
    %v4651 = vadd.f32 0.0, %v4650
    %v4652 = vpop.f32.mrf.mxu0
    %4653 = vdwg.mxu0
    %v4654 = vadd.f32 %v401, %v4625
    %v4655 = vadd.f32 %v414, %v4638
    %v4656 = vxor.u32 %v4654, 2147483648
    %v4657 = vxor.u32 %v4655, 2147483648
    %v4658 = vmul.f32 %v4656, 1.442695
    %v4659 = vpow.pop %v4658
    %v4660 = vmul.f32 %v4657, 1.442695
    %v4661 = vpow.pop %v4660
    %v4662 = vadd.f32 %v4659, 1.0
    %v4663 = vadd.f32 %v4661, 1.0
    %v4664 = vrcp.pop %v4662
    %v4665 = vmul.f32 %v4662, %v4664
    %v4666 = vsub.f32 1.0, %v4665
    %v4667 = vmul.f32 %v4664, %v4666
    %v4668 = vadd.f32 %v4664, %v4667
    %vm4669 = vweird.f32 %v4662
    %vm4670 = vweird.f32 %v4664
    %vm4671 = vmor %vm4669, %vm4670
    %v4672 = vsel %vm4671, %v4664, %v4668
    %v4673 = vand.u32 2147483647, %v4662
    %vm4674 = vcmp.eq.f32.partialorder %v4673, 8.507059e+37
    %v4675 = vand.u32 %v4662, 2147483648
    %v4676 = vor.u32 1.1754944e-38, %v4675
    %v4677 = vsel %vm4674, %v4676, %v4672
    %v4678 = vmul.f32 1.0, %v4677
    %v4679 = vrcp.pop %v4663
    %v4680 = vmul.f32 %v4663, %v4679
    %v4681 = vsub.f32 1.0, %v4680
    %v4682 = vmul.f32 %v4679, %v4681
    %v4683 = vadd.f32 %v4679, %v4682
    %vm4684 = vweird.f32 %v4663
    %vm4685 = vweird.f32 %v4679
    %vm4686 = vmor %vm4684, %vm4685
    %v4687 = vsel %vm4686, %v4679, %v4683
    %v4688 = vand.u32 2147483647, %v4663
    %vm4689 = vcmp.eq.f32.partialorder %v4688, 8.507059e+37
    %v4690 = vand.u32 %v4663, 2147483648
    %v4691 = vor.u32 1.1754944e-38, %v4690
    %v4692 = vsel %vm4689, %v4691, %v4687
    %v4693 = vmul.f32 1.0, %v4692
    %v4694 = vadd.f32 %v4651, %v98
    %v4695 = vmul.f32 %v4678, %v4694
    %v4696 = vadd.f32 %v427, %v4695
    %v4697 = vtanh.pop %v4696
    %v4698 = vsub.f32 1.0, %v4693
    %v4699 = vmul.f32 %v4698, %v4697
    %v4700 = vmul.f32 %v4693, %v3462
    %v4701 = vadd.f32 %v4699, %v4700
    %v4702 = vld [vmem:[#allocation8 + $0x18] sm:$0xff]
    %v4703 = vld [vmem:[#allocation8 + $0x20] sm:$0xf]
    %v4704 = vld [vmem:[#allocation8 + $0x64] sm:$0xff]
    %v4705 = vld [vmem:[#allocation8 + $0x6c] sm:$0xf]
    %v4706 = vld [vmem:[#allocation8 + $0xb0] sm:$0xff]
    %v4707 = vld [vmem:[#allocation8 + $0xb8] sm:$0xf]
    %v4708 = vld [vmem:[#allocation8 + $0xfc] sm:$0xff]
    %v4709 = vld [vmem:[#allocation8 + $0x104] sm:$0xf]
    %v4710 = vld [vmem:[#allocation8 + $0x148] sm:$0xff]
    %v4711 = vld [vmem:[#allocation8 + $0x150] sm:$0xf]
    %v4712 = vld [vmem:[#allocation8 + $0x194] sm:$0xff]
    %v4713 = vld [vmem:[#allocation8 + $0x19c] sm:$0xf]
    %v4714 = vld [vmem:[#allocation8 + $0x1e0] sm:$0xff]
    %v4715 = vld [vmem:[#allocation8 + $0x1e8] sm:$0xf]
    %v4716 = vld [vmem:[#allocation8 + $0x22c] sm:$0xff]
    %v4717 = vld [vmem:[#allocation8 + $0x234] sm:$0xf]
    %v4718 = vld [vmem:[#allocation8 + $0x278] sm:$0xff]
    %v4719 = vld [vmem:[#allocation8 + $0x280] sm:$0xf]
    %v4720 = vld [vmem:[#allocation8 + $0x2c4] sm:$0xff]
    %v4721 = vld [vmem:[#allocation8 + $0x2cc] sm:$0xf]
    %v4722 = vld [vmem:[#allocation8 + $0x310] sm:$0xff]
    %v4723 = vld [vmem:[#allocation8 + $0x318] sm:$0xf]
    %v4724 = vld [vmem:[#allocation8 + $0x35c] sm:$0xff]
    %v4725 = vld [vmem:[#allocation8 + $0x364] sm:$0xf]
    %v4726 = vld [vmem:[#allocation8 + $0x3a8] sm:$0xff]
    %v4727 = vld [vmem:[#allocation8 + $0x3b0] sm:$0xf]
    %v4728 = vld [vmem:[#allocation8 + $0x3f4] sm:$0xff]
    %v4729 = vld [vmem:[#allocation8 + $0x3fc] sm:$0xf]
    %v4730 = vld [vmem:[#allocation8 + $0x440] sm:$0xff]
    %v4731 = vld [vmem:[#allocation8 + $0x448] sm:$0xf]
    %v4732 = vld [vmem:[#allocation8 + $0x48c] sm:$0xff]
    %v4733 = vld [vmem:[#allocation8 + $0x494] sm:$0xf]
    %v4766 = vunpack.c.l.b16 %v4702
    %v4767 = vunpack.c.h.b16 %v4702
    %v4768 = vunpack.c.l.b16 %v4703
    %v4769 = vunpack.c.l.b16 %v4704
    %v4770 = vunpack.c.h.b16 %v4704
    %v4771 = vunpack.c.l.b16 %v4705
    %v4772 = vunpack.c.l.b16 %v4706
    %v4773 = vunpack.c.h.b16 %v4706
    %v4774 = vunpack.c.l.b16 %v4707
    %v4775 = vunpack.c.l.b16 %v4708
    %v4776 = vunpack.c.h.b16 %v4708
    %v4777 = vunpack.c.l.b16 %v4709
    %v4778 = vunpack.c.l.b16 %v4710
    %v4779 = vunpack.c.h.b16 %v4710
    %v4780 = vunpack.c.l.b16 %v4711
    %v4781 = vunpack.c.l.b16 %v4712
    %v4782 = vunpack.c.h.b16 %v4712
    %v4783 = vunpack.c.l.b16 %v4713
    %v4784 = vunpack.c.l.b16 %v4714
    %v4785 = vunpack.c.h.b16 %v4714
    %v4786 = vunpack.c.l.b16 %v4715
    %v4787 = vunpack.c.l.b16 %v4716
    %v4788 = vunpack.c.h.b16 %v4716
    %v4789 = vunpack.c.l.b16 %v4717
    %v4790 = vunpack.c.l.b16 %v4718
    %v4791 = vunpack.c.h.b16 %v4718
    %v4792 = vunpack.c.l.b16 %v4719
    %v4793 = vunpack.c.l.b16 %v4720
    %v4794 = vunpack.c.h.b16 %v4720
    %v4795 = vunpack.c.l.b16 %v4721
    %v4796 = vunpack.c.l.b16 %v4722
    %v4797 = vunpack.c.h.b16 %v4722
    %v4798 = vunpack.c.l.b16 %v4723
    %v4799 = vunpack.c.l.b16 %v4724
    %v4800 = vunpack.c.h.b16 %v4724
    %v4801 = vunpack.c.l.b16 %v4725
    %v4802 = vunpack.c.l.b16 %v4726
    %v4803 = vunpack.c.h.b16 %v4726
    %v4804 = vunpack.c.l.b16 %v4727
    %v4805 = vunpack.c.l.b16 %v4728
    %v4806 = vunpack.c.h.b16 %v4728
    %v4807 = vunpack.c.l.b16 %v4729
    %v4808 = vunpack.c.l.b16 %v4730
    %v4809 = vunpack.c.h.b16 %v4730
    %v4810 = vunpack.c.l.b16 %v4731
    %v4811 = vunpack.c.l.b16 %v4732
    %v4812 = vunpack.c.h.b16 %v4732
    %v4813 = vunpack.c.l.b16 %v4733
    %v4814 = vpack.c.b16 %v4769, %v4766
    %v4815 = vpack.c.b16 %v4770, %v4767
    %v4816 = vpack.c.b16 %v4771, %v4768
    %v4817 = vpack.c.b16 %v4775, %v4772
    %v4818 = vpack.c.b16 %v4776, %v4773
    %v4819 = vpack.c.b16 %v4777, %v4774
    %v4820 = vpack.c.b16 %v4781, %v4778
    %v4821 = vpack.c.b16 %v4782, %v4779
    %v4822 = vpack.c.b16 %v4783, %v4780
    %v4823 = vpack.c.b16 %v4787, %v4784
    %v4824 = vpack.c.b16 %v4788, %v4785
    %v4825 = vpack.c.b16 %v4789, %v4786
    %v4826 = vpack.c.b16 %v4793, %v4790
    %v4827 = vpack.c.b16 %v4794, %v4791
    %v4828 = vpack.c.b16 %v4795, %v4792
    %v4829 = vpack.c.b16 %v4799, %v4796
    %v4830 = vpack.c.b16 %v4800, %v4797
    %v4831 = vpack.c.b16 %v4801, %v4798
    %v4832 = vpack.c.b16 %v4805, %v4802
    %v4833 = vpack.c.b16 %v4806, %v4803
    %v4834 = vpack.c.b16 %v4807, %v4804
    %v4835 = vpack.c.b16 %v4811, %v4808
    %v4836 = vpack.c.b16 %v4812, %v4809
    %v4837 = vpack.c.b16 %v4813, %v4810
    %4862 = vmatpush.bf16.msra.mxu0 %v4835
    %4863 = vmatpush.bf16.msra.mxu0 %v4832
    %4864 = vmatpush.bf16.msra.mxu0 %v4829
    %4865 = vmatpush.bf16.msra.mxu0 %v4826
    %4866 = vmatpush.bf16.msra.mxu0 %v4823
    %4867 = vmatpush.bf16.msra.mxu0 %v4820
    %4868 = vmatpush.bf16.msra.mxu0 %v4817
    %4869 = vmatpush.bf16.msra.mxu0 %v4814
    %4870 = vmatmul.bf16.gmra.mxu0 %v4486
    %v4871 = vpop.f32.mrf.mxu0
    %v4872 = vadd.f32 %v110, %v4871
    %v4873 = vpop.f32.mrf.mxu0
    %4874 = vdwg.mxu0
    %4875 = vmatpush.bf16.msra.mxu0 %v4836
    %4876 = vmatpush.bf16.msra.mxu0 %v4833
    %4877 = vmatpush.bf16.msra.mxu0 %v4830
    %4878 = vmatpush.bf16.msra.mxu0 %v4827
    %4879 = vmatpush.bf16.msra.mxu0 %v4824
    %4880 = vmatpush.bf16.msra.mxu0 %v4821
    %4881 = vmatpush.bf16.msra.mxu0 %v4818
    %4882 = vmatpush.bf16.msra.mxu0 %v4815
    %4883 = vmatmul.bf16.gmra.mxu0 %v4486
    %v4884 = vpop.f32.mrf.mxu0
    %v4885 = vadd.f32 %v111, %v4884
    %v4886 = vpop.f32.mrf.mxu0
    %4887 = vdwg.mxu0
    %4888 = vmatpush.bf16.msra.mxu0 %v4837
    %4889 = vmatpush.bf16.msra.mxu0 %v4834
    %4890 = vmatpush.bf16.msra.mxu0 %v4831
    %4891 = vmatpush.bf16.msra.mxu0 %v4828
    %4892 = vmatpush.bf16.msra.mxu0 %v4825
    %4893 = vmatpush.bf16.msra.mxu0 %v4822
    %4894 = vmatpush.bf16.msra.mxu0 %v4819
    %4895 = vmatpush.bf16.msra.mxu0 %v4816
    %4896 = vmatmul.bf16.gmra.mxu0 %v4486
    %v4897 = vpop.f32.mrf.mxu0
    %v4898 = vadd.f32 %v112, %v4897
    %v4899 = vpop.f32.mrf.mxu0
    %4900 = vdwg.mxu0
    %v4901 = vld [vmem:[#allocation8 + $0x24] sm:$0xff]
    %v4902 = vld [vmem:[#allocation8 + $0x2c] sm:$0xf]
    %v4903 = vld [vmem:[#allocation8 + $0x70] sm:$0xff]
    %v4904 = vld [vmem:[#allocation8 + $0x78] sm:$0xf]
    %v4905 = vld [vmem:[#allocation8 + $0xbc] sm:$0xff]
    %v4906 = vld [vmem:[#allocation8 + $0xc4] sm:$0xf]
    %v4907 = vld [vmem:[#allocation8 + $0x108] sm:$0xff]
    %v4908 = vld [vmem:[#allocation8 + $0x110] sm:$0xf]
    %v4909 = vld [vmem:[#allocation8 + $0x154] sm:$0xff]
    %v4910 = vld [vmem:[#allocation8 + $0x15c] sm:$0xf]
    %v4911 = vld [vmem:[#allocation8 + $0x1a0] sm:$0xff]
    %v4912 = vld [vmem:[#allocation8 + $0x1a8] sm:$0xf]
    %v4913 = vld [vmem:[#allocation8 + $0x1ec] sm:$0xff]
    %v4914 = vld [vmem:[#allocation8 + $0x1f4] sm:$0xf]
    %v4915 = vld [vmem:[#allocation8 + $0x238] sm:$0xff]
    %v4916 = vld [vmem:[#allocation8 + $0x240] sm:$0xf]
    %v4917 = vld [vmem:[#allocation8 + $0x284] sm:$0xff]
    %v4918 = vld [vmem:[#allocation8 + $0x28c] sm:$0xf]
    %v4919 = vld [vmem:[#allocation8 + $0x2d0] sm:$0xff]
    %v4920 = vld [vmem:[#allocation8 + $0x2d8] sm:$0xf]
    %v4921 = vld [vmem:[#allocation8 + $0x31c] sm:$0xff]
    %v4922 = vld [vmem:[#allocation8 + $0x324] sm:$0xf]
    %v4923 = vld [vmem:[#allocation8 + $0x368] sm:$0xff]
    %v4924 = vld [vmem:[#allocation8 + $0x370] sm:$0xf]
    %v4925 = vld [vmem:[#allocation8 + $0x3b4] sm:$0xff]
    %v4926 = vld [vmem:[#allocation8 + $0x3bc] sm:$0xf]
    %v4927 = vld [vmem:[#allocation8 + $0x400] sm:$0xff]
    %v4928 = vld [vmem:[#allocation8 + $0x408] sm:$0xf]
    %v4929 = vld [vmem:[#allocation8 + $0x44c] sm:$0xff]
    %v4930 = vld [vmem:[#allocation8 + $0x454] sm:$0xf]
    %v4931 = vld [vmem:[#allocation8 + $0x498] sm:$0xff]
    %v4932 = vld [vmem:[#allocation8 + $0x4a0] sm:$0xf]
    %v4933 = vpack.c.bf16 %v3909, %v3909
    %v4966 = vunpack.c.l.b16 %v4901
    %v4967 = vunpack.c.h.b16 %v4901
    %v4968 = vunpack.c.l.b16 %v4902
    %v4969 = vunpack.c.l.b16 %v4903
    %v4970 = vunpack.c.h.b16 %v4903
    %v4971 = vunpack.c.l.b16 %v4904
    %v4972 = vunpack.c.l.b16 %v4905
    %v4973 = vunpack.c.h.b16 %v4905
    %v4974 = vunpack.c.l.b16 %v4906
    %v4975 = vunpack.c.l.b16 %v4907
    %v4976 = vunpack.c.h.b16 %v4907
    %v4977 = vunpack.c.l.b16 %v4908
    %v4978 = vunpack.c.l.b16 %v4909
    %v4979 = vunpack.c.h.b16 %v4909
    %v4980 = vunpack.c.l.b16 %v4910
    %v4981 = vunpack.c.l.b16 %v4911
    %v4982 = vunpack.c.h.b16 %v4911
    %v4983 = vunpack.c.l.b16 %v4912
    %v4984 = vunpack.c.l.b16 %v4913
    %v4985 = vunpack.c.h.b16 %v4913
    %v4986 = vunpack.c.l.b16 %v4914
    %v4987 = vunpack.c.l.b16 %v4915
    %v4988 = vunpack.c.h.b16 %v4915
    %v4989 = vunpack.c.l.b16 %v4916
    %v4990 = vunpack.c.l.b16 %v4917
    %v4991 = vunpack.c.h.b16 %v4917
    %v4992 = vunpack.c.l.b16 %v4918
    %v4993 = vunpack.c.l.b16 %v4919
    %v4994 = vunpack.c.h.b16 %v4919
    %v4995 = vunpack.c.l.b16 %v4920
    %v4996 = vunpack.c.l.b16 %v4921
    %v4997 = vunpack.c.h.b16 %v4921
    %v4998 = vunpack.c.l.b16 %v4922
    %v4999 = vunpack.c.l.b16 %v4923
    %v5000 = vunpack.c.h.b16 %v4923
    %v5001 = vunpack.c.l.b16 %v4924
    %v5002 = vunpack.c.l.b16 %v4925
    %v5003 = vunpack.c.h.b16 %v4925
    %v5004 = vunpack.c.l.b16 %v4926
    %v5005 = vunpack.c.l.b16 %v4927
    %v5006 = vunpack.c.h.b16 %v4927
    %v5007 = vunpack.c.l.b16 %v4928
    %v5008 = vunpack.c.l.b16 %v4929
    %v5009 = vunpack.c.h.b16 %v4929
    %v5010 = vunpack.c.l.b16 %v4930
    %v5011 = vunpack.c.l.b16 %v4931
    %v5012 = vunpack.c.h.b16 %v4931
    %v5013 = vunpack.c.l.b16 %v4932
    %v5014 = vpack.c.b16 %v4969, %v4966
    %v5015 = vpack.c.b16 %v4970, %v4967
    %v5016 = vpack.c.b16 %v4971, %v4968
    %v5017 = vpack.c.b16 %v4975, %v4972
    %v5018 = vpack.c.b16 %v4976, %v4973
    %v5019 = vpack.c.b16 %v4977, %v4974
    %v5020 = vpack.c.b16 %v4981, %v4978
    %v5021 = vpack.c.b16 %v4982, %v4979
    %v5022 = vpack.c.b16 %v4983, %v4980
    %v5023 = vpack.c.b16 %v4987, %v4984
    %v5024 = vpack.c.b16 %v4988, %v4985
    %v5025 = vpack.c.b16 %v4989, %v4986
    %v5026 = vpack.c.b16 %v4993, %v4990
    %v5027 = vpack.c.b16 %v4994, %v4991
    %v5028 = vpack.c.b16 %v4995, %v4992
    %v5029 = vpack.c.b16 %v4999, %v4996
    %v5030 = vpack.c.b16 %v5000, %v4997
    %v5031 = vpack.c.b16 %v5001, %v4998
    %v5032 = vpack.c.b16 %v5005, %v5002
    %v5033 = vpack.c.b16 %v5006, %v5003
    %v5034 = vpack.c.b16 %v5007, %v5004
    %v5035 = vpack.c.b16 %v5011, %v5008
    %v5036 = vpack.c.b16 %v5012, %v5009
    %v5037 = vpack.c.b16 %v5013, %v5010
    %5062 = vmatpush.bf16.msra.mxu0 %v5035
    %5063 = vmatpush.bf16.msra.mxu0 %v5032
    %5064 = vmatpush.bf16.msra.mxu0 %v5029
    %5065 = vmatpush.bf16.msra.mxu0 %v5026
    %5066 = vmatpush.bf16.msra.mxu0 %v5023
    %5067 = vmatpush.bf16.msra.mxu0 %v5020
    %5068 = vmatpush.bf16.msra.mxu0 %v5017
    %5069 = vmatpush.bf16.msra.mxu0 %v5014
    %5070 = vmatmul.bf16.gmra.mxu0 %v4933
    %v5071 = vpop.f32.mrf.mxu0
    %v5072 = vadd.f32 0.0, %v5071
    %v5073 = vpop.f32.mrf.mxu0
    %5074 = vdwg.mxu0
    %5075 = vmatpush.bf16.msra.mxu0 %v5036
    %5076 = vmatpush.bf16.msra.mxu0 %v5033
    %5077 = vmatpush.bf16.msra.mxu0 %v5030
    %5078 = vmatpush.bf16.msra.mxu0 %v5027
    %5079 = vmatpush.bf16.msra.mxu0 %v5024
    %5080 = vmatpush.bf16.msra.mxu0 %v5021
    %5081 = vmatpush.bf16.msra.mxu0 %v5018
    %5082 = vmatpush.bf16.msra.mxu0 %v5015
    %5083 = vmatmul.bf16.gmra.mxu0 %v4933
    %v5084 = vpop.f32.mrf.mxu0
    %v5085 = vadd.f32 0.0, %v5084
    %v5086 = vpop.f32.mrf.mxu0
    %5087 = vdwg.mxu0
    %5088 = vmatpush.bf16.msra.mxu0 %v5037
    %5089 = vmatpush.bf16.msra.mxu0 %v5034
    %5090 = vmatpush.bf16.msra.mxu0 %v5031
    %5091 = vmatpush.bf16.msra.mxu0 %v5028
    %5092 = vmatpush.bf16.msra.mxu0 %v5025
    %5093 = vmatpush.bf16.msra.mxu0 %v5022
    %5094 = vmatpush.bf16.msra.mxu0 %v5019
    %5095 = vmatpush.bf16.msra.mxu0 %v5016
    %5096 = vmatmul.bf16.gmra.mxu0 %v4933
    %v5097 = vpop.f32.mrf.mxu0
    %v5098 = vadd.f32 0.0, %v5097
    %v5099 = vpop.f32.mrf.mxu0
    %5100 = vdwg.mxu0
    %v5101 = vadd.f32 %v4872, %v5072
    %v5102 = vadd.f32 %v4885, %v5085
    %v5103 = vxor.u32 %v5101, 2147483648
    %v5104 = vxor.u32 %v5102, 2147483648
    %v5105 = vmul.f32 %v5103, 1.442695
    %v5106 = vpow.pop %v5105
    %v5107 = vmul.f32 %v5104, 1.442695
    %v5108 = vpow.pop %v5107
    %v5109 = vadd.f32 %v5106, 1.0
    %v5110 = vadd.f32 %v5108, 1.0
    %v5111 = vrcp.pop %v5109
    %v5112 = vmul.f32 %v5109, %v5111
    %v5113 = vsub.f32 1.0, %v5112
    %v5114 = vmul.f32 %v5111, %v5113
    %v5115 = vadd.f32 %v5111, %v5114
    %vm5116 = vweird.f32 %v5109
    %vm5117 = vweird.f32 %v5111
    %vm5118 = vmor %vm5116, %vm5117
    %v5119 = vsel %vm5118, %v5111, %v5115
    %v5120 = vand.u32 2147483647, %v5109
    %vm5121 = vcmp.eq.f32.partialorder %v5120, 8.507059e+37
    %v5122 = vand.u32 %v5109, 2147483648
    %v5123 = vor.u32 1.1754944e-38, %v5122
    %v5124 = vsel %vm5121, %v5123, %v5119
    %v5125 = vmul.f32 1.0, %v5124
    %v5126 = vrcp.pop %v5110
    %v5127 = vmul.f32 %v5110, %v5126
    %v5128 = vsub.f32 1.0, %v5127
    %v5129 = vmul.f32 %v5126, %v5128
    %v5130 = vadd.f32 %v5126, %v5129
    %vm5131 = vweird.f32 %v5110
    %vm5132 = vweird.f32 %v5126
    %vm5133 = vmor %vm5131, %vm5132
    %v5134 = vsel %vm5133, %v5126, %v5130
    %v5135 = vand.u32 2147483647, %v5110
    %vm5136 = vcmp.eq.f32.partialorder %v5135, 8.507059e+37
    %v5137 = vand.u32 %v5110, 2147483648
    %v5138 = vor.u32 1.1754944e-38, %v5137
    %v5139 = vsel %vm5136, %v5138, %v5134
    %v5140 = vmul.f32 1.0, %v5139
    %v5141 = vadd.f32 %v5098, %v102
    %v5142 = vmul.f32 %v5125, %v5141
    %v5143 = vadd.f32 %v4898, %v5142
    %v5144 = vtanh.pop %v5143
    %v5145 = vsub.f32 1.0, %v5140
    %v5146 = vmul.f32 %v5145, %v5144
    %v5147 = vmul.f32 %v5140, %v3909
    %v5148 = vadd.f32 %v5146, %v5147
    %v5149 = vld [vmem:[#allocation8 + $0x30] sm:$0xff]
    %v5150 = vld [vmem:[#allocation8 + $0x38] sm:$0xf]
    %v5151 = vld [vmem:[#allocation8 + $0x7c] sm:$0xff]
    %v5152 = vld [vmem:[#allocation8 + $0x84] sm:$0xf]
    %v5153 = vld [vmem:[#allocation8 + $0xc8] sm:$0xff]
    %v5154 = vld [vmem:[#allocation8 + $0xd0] sm:$0xf]
    %v5155 = vld [vmem:[#allocation8 + $0x114] sm:$0xff]
    %v5156 = vld [vmem:[#allocation8 + $0x11c] sm:$0xf]
    %v5157 = vld [vmem:[#allocation8 + $0x160] sm:$0xff]
    %v5158 = vld [vmem:[#allocation8 + $0x168] sm:$0xf]
    %v5159 = vld [vmem:[#allocation8 + $0x1ac] sm:$0xff]
    %v5160 = vld [vmem:[#allocation8 + $0x1b4] sm:$0xf]
    %v5161 = vld [vmem:[#allocation8 + $0x1f8] sm:$0xff]
    %v5162 = vld [vmem:[#allocation8 + $0x200] sm:$0xf]
    %v5163 = vld [vmem:[#allocation8 + $0x244] sm:$0xff]
    %v5164 = vld [vmem:[#allocation8 + $0x24c] sm:$0xf]
    %v5165 = vld [vmem:[#allocation8 + $0x290] sm:$0xff]
    %v5166 = vld [vmem:[#allocation8 + $0x298] sm:$0xf]
    %v5167 = vld [vmem:[#allocation8 + $0x2dc] sm:$0xff]
    %v5168 = vld [vmem:[#allocation8 + $0x2e4] sm:$0xf]
    %v5169 = vld [vmem:[#allocation8 + $0x328] sm:$0xff]
    %v5170 = vld [vmem:[#allocation8 + $0x330] sm:$0xf]
    %v5171 = vld [vmem:[#allocation8 + $0x374] sm:$0xff]
    %v5172 = vld [vmem:[#allocation8 + $0x37c] sm:$0xf]
    %v5173 = vld [vmem:[#allocation8 + $0x3c0] sm:$0xff]
    %v5174 = vld [vmem:[#allocation8 + $0x3c8] sm:$0xf]
    %v5175 = vld [vmem:[#allocation8 + $0x40c] sm:$0xff]
    %v5176 = vld [vmem:[#allocation8 + $0x414] sm:$0xf]
    %v5177 = vld [vmem:[#allocation8 + $0x458] sm:$0xff]
    %v5178 = vld [vmem:[#allocation8 + $0x460] sm:$0xf]
    %v5179 = vld [vmem:[#allocation8 + $0x4a4] sm:$0xff]
    %v5180 = vld [vmem:[#allocation8 + $0x4ac] sm:$0xf]
    %v5213 = vunpack.c.l.b16 %v5149
    %v5214 = vunpack.c.h.b16 %v5149
    %v5215 = vunpack.c.l.b16 %v5150
    %v5216 = vunpack.c.l.b16 %v5151
    %v5217 = vunpack.c.h.b16 %v5151
    %v5218 = vunpack.c.l.b16 %v5152
    %v5219 = vunpack.c.l.b16 %v5153
    %v5220 = vunpack.c.h.b16 %v5153
    %v5221 = vunpack.c.l.b16 %v5154
    %v5222 = vunpack.c.l.b16 %v5155
    %v5223 = vunpack.c.h.b16 %v5155
    %v5224 = vunpack.c.l.b16 %v5156
    %v5225 = vunpack.c.l.b16 %v5157
    %v5226 = vunpack.c.h.b16 %v5157
    %v5227 = vunpack.c.l.b16 %v5158
    %v5228 = vunpack.c.l.b16 %v5159
    %v5229 = vunpack.c.h.b16 %v5159
    %v5230 = vunpack.c.l.b16 %v5160
    %v5231 = vunpack.c.l.b16 %v5161
    %v5232 = vunpack.c.h.b16 %v5161
    %v5233 = vunpack.c.l.b16 %v5162
    %v5234 = vunpack.c.l.b16 %v5163
    %v5235 = vunpack.c.h.b16 %v5163
    %v5236 = vunpack.c.l.b16 %v5164
    %v5237 = vunpack.c.l.b16 %v5165
    %v5238 = vunpack.c.h.b16 %v5165
    %v5239 = vunpack.c.l.b16 %v5166
    %v5240 = vunpack.c.l.b16 %v5167
    %v5241 = vunpack.c.h.b16 %v5167
    %v5242 = vunpack.c.l.b16 %v5168
    %v5243 = vunpack.c.l.b16 %v5169
    %v5244 = vunpack.c.h.b16 %v5169
    %v5245 = vunpack.c.l.b16 %v5170
    %v5246 = vunpack.c.l.b16 %v5171
    %v5247 = vunpack.c.h.b16 %v5171
    %v5248 = vunpack.c.l.b16 %v5172
    %v5249 = vunpack.c.l.b16 %v5173
    %v5250 = vunpack.c.h.b16 %v5173
    %v5251 = vunpack.c.l.b16 %v5174
    %v5252 = vunpack.c.l.b16 %v5175
    %v5253 = vunpack.c.h.b16 %v5175
    %v5254 = vunpack.c.l.b16 %v5176
    %v5255 = vunpack.c.l.b16 %v5177
    %v5256 = vunpack.c.h.b16 %v5177
    %v5257 = vunpack.c.l.b16 %v5178
    %v5258 = vunpack.c.l.b16 %v5179
    %v5259 = vunpack.c.h.b16 %v5179
    %v5260 = vunpack.c.l.b16 %v5180
    %v5261 = vpack.c.b16 %v5216, %v5213
    %v5262 = vpack.c.b16 %v5217, %v5214
    %v5263 = vpack.c.b16 %v5218, %v5215
    %v5264 = vpack.c.b16 %v5222, %v5219
    %v5265 = vpack.c.b16 %v5223, %v5220
    %v5266 = vpack.c.b16 %v5224, %v5221
    %v5267 = vpack.c.b16 %v5228, %v5225
    %v5268 = vpack.c.b16 %v5229, %v5226
    %v5269 = vpack.c.b16 %v5230, %v5227
    %v5270 = vpack.c.b16 %v5234, %v5231
    %v5271 = vpack.c.b16 %v5235, %v5232
    %v5272 = vpack.c.b16 %v5236, %v5233
    %v5273 = vpack.c.b16 %v5240, %v5237
    %v5274 = vpack.c.b16 %v5241, %v5238
    %v5275 = vpack.c.b16 %v5242, %v5239
    %v5276 = vpack.c.b16 %v5246, %v5243
    %v5277 = vpack.c.b16 %v5247, %v5244
    %v5278 = vpack.c.b16 %v5248, %v5245
    %v5279 = vpack.c.b16 %v5252, %v5249
    %v5280 = vpack.c.b16 %v5253, %v5250
    %v5281 = vpack.c.b16 %v5254, %v5251
    %v5282 = vpack.c.b16 %v5258, %v5255
    %v5283 = vpack.c.b16 %v5259, %v5256
    %v5284 = vpack.c.b16 %v5260, %v5257
    %5309 = vmatpush.bf16.msra.mxu0 %v5282
    %5310 = vmatpush.bf16.msra.mxu0 %v5279
    %5311 = vmatpush.bf16.msra.mxu0 %v5276
    %5312 = vmatpush.bf16.msra.mxu0 %v5273
    %5313 = vmatpush.bf16.msra.mxu0 %v5270
    %5314 = vmatpush.bf16.msra.mxu0 %v5267
    %5315 = vmatpush.bf16.msra.mxu0 %v5264
    %5316 = vmatpush.bf16.msra.mxu0 %v5261
    %5317 = vmatmul.bf16.gmra.mxu0 %v4933
    %v5318 = vpop.f32.mrf.mxu0
    %v5319 = vadd.f32 %v118, %v5318
    %v5320 = vpop.f32.mrf.mxu0
    %5321 = vdwg.mxu0
    %5322 = vmatpush.bf16.msra.mxu0 %v5283
    %5323 = vmatpush.bf16.msra.mxu0 %v5280
    %5324 = vmatpush.bf16.msra.mxu0 %v5277
    %5325 = vmatpush.bf16.msra.mxu0 %v5274
    %5326 = vmatpush.bf16.msra.mxu0 %v5271
    %5327 = vmatpush.bf16.msra.mxu0 %v5268
    %5328 = vmatpush.bf16.msra.mxu0 %v5265
    %5329 = vmatpush.bf16.msra.mxu0 %v5262
    %5330 = vmatmul.bf16.gmra.mxu0 %v4933
    %v5331 = vpop.f32.mrf.mxu0
    %v5332 = vadd.f32 %v119, %v5331
    %v5333 = vpop.f32.mrf.mxu0
    %5334 = vdwg.mxu0
    %5335 = vmatpush.bf16.msra.mxu0 %v5284
    %5336 = vmatpush.bf16.msra.mxu0 %v5281
    %5337 = vmatpush.bf16.msra.mxu0 %v5278
    %5338 = vmatpush.bf16.msra.mxu0 %v5275
    %5339 = vmatpush.bf16.msra.mxu0 %v5272
    %5340 = vmatpush.bf16.msra.mxu0 %v5269
    %5341 = vmatpush.bf16.msra.mxu0 %v5266
    %5342 = vmatpush.bf16.msra.mxu0 %v5263
    %5343 = vmatmul.bf16.gmra.mxu0 %v4933
    %v5344 = vpop.f32.mrf.mxu0
    %v5345 = vadd.f32 %v120, %v5344
    %v5346 = vpop.f32.mrf.mxu0
    %5347 = vdwg.mxu0
    %v5348 = vld [vmem:[#allocation8 + $0x3c] sm:$0xff]
    %v5349 = vld [vmem:[#allocation8 + $0x44] sm:$0xf]
    %v5350 = vld [vmem:[#allocation8 + $0x88] sm:$0xff]
    %v5351 = vld [vmem:[#allocation8 + $0x90] sm:$0xf]
    %v5352 = vld [vmem:[#allocation8 + $0xd4] sm:$0xff]
    %v5353 = vld [vmem:[#allocation8 + $0xdc] sm:$0xf]
    %v5354 = vld [vmem:[#allocation8 + $0x120] sm:$0xff]
    %v5355 = vld [vmem:[#allocation8 + $0x128] sm:$0xf]
    %v5356 = vld [vmem:[#allocation8 + $0x16c] sm:$0xff]
    %v5357 = vld [vmem:[#allocation8 + $0x174] sm:$0xf]
    %v5358 = vld [vmem:[#allocation8 + $0x1b8] sm:$0xff]
    %v5359 = vld [vmem:[#allocation8 + $0x1c0] sm:$0xf]
    %v5360 = vld [vmem:[#allocation8 + $0x204] sm:$0xff]
    %v5361 = vld [vmem:[#allocation8 + $0x20c] sm:$0xf]
    %v5362 = vld [vmem:[#allocation8 + $0x250] sm:$0xff]
    %v5363 = vld [vmem:[#allocation8 + $0x258] sm:$0xf]
    %v5364 = vld [vmem:[#allocation8 + $0x29c] sm:$0xff]
    %v5365 = vld [vmem:[#allocation8 + $0x2a4] sm:$0xf]
    %v5366 = vld [vmem:[#allocation8 + $0x2e8] sm:$0xff]
    %v5367 = vld [vmem:[#allocation8 + $0x2f0] sm:$0xf]
    %v5368 = vld [vmem:[#allocation8 + $0x334] sm:$0xff]
    %v5369 = vld [vmem:[#allocation8 + $0x33c] sm:$0xf]
    %v5370 = vld [vmem:[#allocation8 + $0x380] sm:$0xff]
    %v5371 = vld [vmem:[#allocation8 + $0x388] sm:$0xf]
    %v5372 = vld [vmem:[#allocation8 + $0x3cc] sm:$0xff]
    %v5373 = vld [vmem:[#allocation8 + $0x3d4] sm:$0xf]
    %v5374 = vld [vmem:[#allocation8 + $0x418] sm:$0xff]
    %v5375 = vld [vmem:[#allocation8 + $0x420] sm:$0xf]
    %v5376 = vld [vmem:[#allocation8 + $0x464] sm:$0xff]
    %v5377 = vld [vmem:[#allocation8 + $0x46c] sm:$0xf]
    %v5378 = vld [vmem:[#allocation8 + $0x4b0] sm:$0xff]
    %v5379 = vld [vmem:[#allocation8 + $0x4b8] sm:$0xf]
    %v5412 = vunpack.c.l.b16 %v5348
    %v5413 = vunpack.c.h.b16 %v5348
    %v5414 = vunpack.c.l.b16 %v5349
    %v5415 = vunpack.c.l.b16 %v5350
    %v5416 = vunpack.c.h.b16 %v5350
    %v5417 = vunpack.c.l.b16 %v5351
    %v5418 = vunpack.c.l.b16 %v5352
    %v5419 = vunpack.c.h.b16 %v5352
    %v5420 = vunpack.c.l.b16 %v5353
    %v5421 = vunpack.c.l.b16 %v5354
    %v5422 = vunpack.c.h.b16 %v5354
    %v5423 = vunpack.c.l.b16 %v5355
    %v5424 = vunpack.c.l.b16 %v5356
    %v5425 = vunpack.c.h.b16 %v5356
    %v5426 = vunpack.c.l.b16 %v5357
    %v5427 = vunpack.c.l.b16 %v5358
    %v5428 = vunpack.c.h.b16 %v5358
    %v5429 = vunpack.c.l.b16 %v5359
    %v5430 = vunpack.c.l.b16 %v5360
    %v5431 = vunpack.c.h.b16 %v5360
    %v5432 = vunpack.c.l.b16 %v5361
    %v5433 = vunpack.c.l.b16 %v5362
    %v5434 = vunpack.c.h.b16 %v5362
    %v5435 = vunpack.c.l.b16 %v5363
    %v5436 = vunpack.c.l.b16 %v5364
    %v5437 = vunpack.c.h.b16 %v5364
    %v5438 = vunpack.c.l.b16 %v5365
    %v5439 = vunpack.c.l.b16 %v5366
    %v5440 = vunpack.c.h.b16 %v5366
    %v5441 = vunpack.c.l.b16 %v5367
    %v5442 = vunpack.c.l.b16 %v5368
    %v5443 = vunpack.c.h.b16 %v5368
    %v5444 = vunpack.c.l.b16 %v5369
    %v5445 = vunpack.c.l.b16 %v5370
    %v5446 = vunpack.c.h.b16 %v5370
    %v5447 = vunpack.c.l.b16 %v5371
    %v5448 = vunpack.c.l.b16 %v5372
    %v5449 = vunpack.c.h.b16 %v5372
    %v5450 = vunpack.c.l.b16 %v5373
    %v5451 = vunpack.c.l.b16 %v5374
    %v5452 = vunpack.c.h.b16 %v5374
    %v5453 = vunpack.c.l.b16 %v5375
    %v5454 = vunpack.c.l.b16 %v5376
    %v5455 = vunpack.c.h.b16 %v5376
    %v5456 = vunpack.c.l.b16 %v5377
    %v5457 = vunpack.c.l.b16 %v5378
    %v5458 = vunpack.c.h.b16 %v5378
    %v5459 = vunpack.c.l.b16 %v5379
    %v5460 = vpack.c.b16 %v5415, %v5412
    %v5461 = vpack.c.b16 %v5416, %v5413
    %v5462 = vpack.c.b16 %v5417, %v5414
    %v5463 = vpack.c.b16 %v5421, %v5418
    %v5464 = vpack.c.b16 %v5422, %v5419
    %v5465 = vpack.c.b16 %v5423, %v5420
    %v5466 = vpack.c.b16 %v5427, %v5424
    %v5467 = vpack.c.b16 %v5428, %v5425
    %v5468 = vpack.c.b16 %v5429, %v5426
    %v5469 = vpack.c.b16 %v5433, %v5430
    %v5470 = vpack.c.b16 %v5434, %v5431
    %v5471 = vpack.c.b16 %v5435, %v5432
    %v5472 = vpack.c.b16 %v5439, %v5436
    %v5473 = vpack.c.b16 %v5440, %v5437
    %v5474 = vpack.c.b16 %v5441, %v5438
    %v5475 = vpack.c.b16 %v5445, %v5442
    %v5476 = vpack.c.b16 %v5446, %v5443
    %v5477 = vpack.c.b16 %v5447, %v5444
    %v5478 = vpack.c.b16 %v5451, %v5448
    %v5479 = vpack.c.b16 %v5452, %v5449
    %v5480 = vpack.c.b16 %v5453, %v5450
    %v5481 = vpack.c.b16 %v5457, %v5454
    %v5482 = vpack.c.b16 %v5458, %v5455
    %v5483 = vpack.c.b16 %v5459, %v5456
    %5508 = vmatpush.bf16.msra.mxu0 %v5481
    %5509 = vmatpush.bf16.msra.mxu0 %v5478
    %5510 = vmatpush.bf16.msra.mxu0 %v5475
    %5511 = vmatpush.bf16.msra.mxu0 %v5472
    %5512 = vmatpush.bf16.msra.mxu0 %v5469
    %5513 = vmatpush.bf16.msra.mxu0 %v5466
    %5514 = vmatpush.bf16.msra.mxu0 %v5463
    %5515 = vmatpush.bf16.msra.mxu0 %v5460
    %5516 = vmatmul.bf16.gmra.mxu0 %v4372
    %v5517 = vpop.f32.mrf.mxu0
    %v5518 = vadd.f32 0.0, %v5517
    %v5519 = vpop.f32.mrf.mxu0
    %5520 = vdwg.mxu0
    %5521 = vmatpush.bf16.msra.mxu0 %v5482
    %5522 = vmatpush.bf16.msra.mxu0 %v5479
    %5523 = vmatpush.bf16.msra.mxu0 %v5476
    %5524 = vmatpush.bf16.msra.mxu0 %v5473
    %5525 = vmatpush.bf16.msra.mxu0 %v5470
    %5526 = vmatpush.bf16.msra.mxu0 %v5467
    %5527 = vmatpush.bf16.msra.mxu0 %v5464
    %5528 = vmatpush.bf16.msra.mxu0 %v5461
    %5529 = vmatmul.bf16.gmra.mxu0 %v4372
    %v5530 = vpop.f32.mrf.mxu0
    %v5531 = vadd.f32 0.0, %v5530
    %v5532 = vpop.f32.mrf.mxu0
    %5533 = vdwg.mxu0
    %5534 = vmatpush.bf16.msra.mxu0 %v5483
    %5535 = vmatpush.bf16.msra.mxu0 %v5480
    %5536 = vmatpush.bf16.msra.mxu0 %v5477
    %5537 = vmatpush.bf16.msra.mxu0 %v5474
    %5538 = vmatpush.bf16.msra.mxu0 %v5471
    %5539 = vmatpush.bf16.msra.mxu0 %v5468
    %5540 = vmatpush.bf16.msra.mxu0 %v5465
    %5541 = vmatpush.bf16.msra.mxu0 %v5462
    %5542 = vmatmul.bf16.gmra.mxu0 %v4372
    %v5543 = vpop.f32.mrf.mxu0
    %v5544 = vadd.f32 0.0, %v5543
    %v5545 = vpop.f32.mrf.mxu0
    %5546 = vdwg.mxu0
    %v5547 = vadd.f32 %v5319, %v5518
    %v5548 = vadd.f32 %v5332, %v5531
    %v5549 = vxor.u32 %v5547, 2147483648
    %v5550 = vxor.u32 %v5548, 2147483648
    %v5551 = vmul.f32 %v5549, 1.442695
    %v5552 = vpow.pop %v5551
    %v5553 = vmul.f32 %v5550, 1.442695
    %v5554 = vpow.pop %v5553
    %v5555 = vadd.f32 %v5552, 1.0
    %v5556 = vadd.f32 %v5554, 1.0
    %v5557 = vrcp.pop %v5555
    %v5558 = vmul.f32 %v5555, %v5557
    %v5559 = vsub.f32 1.0, %v5558
    %v5560 = vmul.f32 %v5557, %v5559
    %v5561 = vadd.f32 %v5557, %v5560
    %vm5562 = vweird.f32 %v5555
    %vm5563 = vweird.f32 %v5557
    %vm5564 = vmor %vm5562, %vm5563
    %v5565 = vsel %vm5564, %v5557, %v5561
    %v5566 = vand.u32 2147483647, %v5555
    %vm5567 = vcmp.eq.f32.partialorder %v5566, 8.507059e+37
    %v5568 = vand.u32 %v5555, 2147483648
    %v5569 = vor.u32 1.1754944e-38, %v5568
    %v5570 = vsel %vm5567, %v5569, %v5565
    %v5571 = vmul.f32 1.0, %v5570
    %v5572 = vrcp.pop %v5556
    %v5573 = vmul.f32 %v5556, %v5572
    %v5574 = vsub.f32 1.0, %v5573
    %v5575 = vmul.f32 %v5572, %v5574
    %v5576 = vadd.f32 %v5572, %v5575
    %vm5577 = vweird.f32 %v5556
    %vm5578 = vweird.f32 %v5572
    %vm5579 = vmor %vm5577, %vm5578
    %v5580 = vsel %vm5579, %v5572, %v5576
    %v5581 = vand.u32 2147483647, %v5556
    %vm5582 = vcmp.eq.f32.partialorder %v5581, 8.507059e+37
    %v5583 = vand.u32 %v5556, 2147483648
    %v5584 = vor.u32 1.1754944e-38, %v5583
    %v5585 = vsel %vm5582, %v5584, %v5580
    %v5586 = vmul.f32 1.0, %v5585
    %v5587 = vadd.f32 %v5544, %v106
    %v5588 = vmul.f32 %v5571, %v5587
    %v5589 = vadd.f32 %v5345, %v5588
    %v5590 = vtanh.pop %v5589
    %v5591 = vsub.f32 1.0, %v5586
    %v5592 = vmul.f32 %v5591, %v5590
    %v5593 = vmul.f32 %v5586, %v4355
    %v5594 = vadd.f32 %v5592, %v5593
    %v5595 = vld [vmem:[#allocation8 + $0x48] sm:$0xf]
    %v5596 = vld [vmem:[#allocation8 + $0x94] sm:$0xf]
    %v5597 = vld [vmem:[#allocation8 + $0xe0] sm:$0xf]
    %v5598 = vld [vmem:[#allocation8 + $0x12c] sm:$0xf]
    %v5599 = vld [vmem:[#allocation8 + $0x178] sm:$0xf]
    %v5600 = vld [vmem:[#allocation8 + $0x1c4] sm:$0xf]
    %v5601 = vld [vmem:[#allocation8 + $0x210] sm:$0xf]
    %v5602 = vld [vmem:[#allocation8 + $0x25c] sm:$0xf]
    %v5603 = vld [vmem:[#allocation8 + $0x2a8] sm:$0xf]
    %v5604 = vld [vmem:[#allocation8 + $0x2f4] sm:$0xf]
    %v5605 = vld [vmem:[#allocation8 + $0x340] sm:$0xf]
    %v5606 = vld [vmem:[#allocation8 + $0x38c] sm:$0xf]
    %v5607 = vld [vmem:[#allocation8 + $0x3d8] sm:$0xf]
    %v5608 = vld [vmem:[#allocation8 + $0x424] sm:$0xf]
    %v5609 = vld [vmem:[#allocation8 + $0x470] sm:$0xf]
    %v5610 = vld [vmem:[#allocation8 + $0x4bc] sm:$0xf]
    %v5611 = vpack.c.bf16 %v5594, %v5594
    %v5628 = vunpack.c.l.b16 %v5595
    %v5629 = vunpack.c.l.b16 %v5596
    %v5630 = vunpack.c.l.b16 %v5597
    %v5631 = vunpack.c.l.b16 %v5598
    %v5632 = vunpack.c.l.b16 %v5599
    %v5633 = vunpack.c.l.b16 %v5600
    %v5634 = vunpack.c.l.b16 %v5601
    %v5635 = vunpack.c.l.b16 %v5602
    %v5636 = vunpack.c.l.b16 %v5603
    %v5637 = vunpack.c.l.b16 %v5604
    %v5638 = vunpack.c.l.b16 %v5605
    %v5639 = vunpack.c.l.b16 %v5606
    %v5640 = vunpack.c.l.b16 %v5607
    %v5641 = vunpack.c.l.b16 %v5608
    %v5642 = vunpack.c.l.b16 %v5609
    %v5643 = vunpack.c.l.b16 %v5610
    %v5644 = vpack.c.b16 %v5629, %v5628
    %v5645 = vpack.c.b16 %v5631, %v5630
    %v5646 = vpack.c.b16 %v5633, %v5632
    %v5647 = vpack.c.b16 %v5635, %v5634
    %v5648 = vpack.c.b16 %v5637, %v5636
    %v5649 = vpack.c.b16 %v5639, %v5638
    %v5650 = vpack.c.b16 %v5641, %v5640
    %v5651 = vpack.c.b16 %v5643, %v5642
    %5660 = vmatpush.bf16.msra.mxu0 %v5651
    %5661 = vmatpush.bf16.msra.mxu0 %v5650
    %5662 = vmatpush.bf16.msra.mxu0 %v5649
    %5663 = vmatpush.bf16.msra.mxu0 %v5648
    %5664 = vmatpush.bf16.msra.mxu0 %v5647
    %5665 = vmatpush.bf16.msra.mxu0 %v5646
    %5666 = vmatpush.bf16.msra.mxu0 %v5645
    %5667 = vmatpush.bf16.msra.mxu0 %v5644
    %5668 = vmatmul.bf16.gmra.mxu0 %v5611
    %v5669 = vpop.f32.mrf.mxu0
    %v5670 = vadd.f32 %v126, %v5669
    %v5671 = vpop.f32.mrf.mxu0
    %5672 = vdwg.mxu0
    %v5673 = vxor.u32 %v5670, 2147483648
    %v5674 = vmul.f32 %v5673, 1.442695
    %v5675 = vpow.pop %v5674
    %v5676 = vadd.f32 %v5675, 1.0
    %v5677 = vrcp.pop %v5676
    %v5678 = vmul.f32 %v5676, %v5677
    %v5679 = vsub.f32 1.0, %v5678
    %v5680 = vmul.f32 %v5677, %v5679
    %v5681 = vadd.f32 %v5677, %v5680
    %vm5682 = vweird.f32 %v5676
    %vm5683 = vweird.f32 %v5677
    %vm5684 = vmor %vm5682, %vm5683
    %v5685 = vsel %vm5684, %v5677, %v5681
    %v5686 = vand.u32 2147483647, %v5676
    %vm5687 = vcmp.eq.f32.partialorder %v5686, 8.507059e+37
    %v5688 = vand.u32 %v5676, 2147483648
    %v5689 = vor.u32 1.1754944e-38, %v5688
    %v5690 = vsel %vm5687, %v5689, %v5685
    %v5691 = vmul.f32 1.0, %v5690
    %5692 = vst [vmem:[#allocation11 + $0x18] sm:$0xff] %v5691
    %v5693 = vld [vmem:[#allocation8 + $0xc] sm:$0xff]
    %v5694 = vld [vmem:[#allocation8 + $0x14] sm:$0xf]
    %v5695 = vld [vmem:[#allocation8 + $0x58] sm:$0xff]
    %v5696 = vld [vmem:[#allocation8 + $0x60] sm:$0xf]
    %v5697 = vld [vmem:[#allocation8 + $0xa4] sm:$0xff]
    %v5698 = vld [vmem:[#allocation8 + $0xac] sm:$0xf]
    %v5699 = vld [vmem:[#allocation8 + $0xf0] sm:$0xff]
    %v5700 = vld [vmem:[#allocation8 + $0xf8] sm:$0xf]
    %v5701 = vld [vmem:[#allocation8 + $0x13c] sm:$0xff]
    %v5702 = vld [vmem:[#allocation8 + $0x144] sm:$0xf]
    %v5703 = vld [vmem:[#allocation8 + $0x188] sm:$0xff]
    %v5704 = vld [vmem:[#allocation8 + $0x190] sm:$0xf]
    %v5705 = vld [vmem:[#allocation8 + $0x1d4] sm:$0xff]
    %v5706 = vld [vmem:[#allocation8 + $0x1dc] sm:$0xf]
    %v5707 = vld [vmem:[#allocation8 + $0x220] sm:$0xff]
    %v5708 = vld [vmem:[#allocation8 + $0x228] sm:$0xf]
    %v5709 = vld [vmem:[#allocation8 + $0x26c] sm:$0xff]
    %v5710 = vld [vmem:[#allocation8 + $0x274] sm:$0xf]
    %v5711 = vld [vmem:[#allocation8 + $0x2b8] sm:$0xff]
    %v5712 = vld [vmem:[#allocation8 + $0x2c0] sm:$0xf]
    %v5713 = vld [vmem:[#allocation8 + $0x304] sm:$0xff]
    %v5714 = vld [vmem:[#allocation8 + $0x30c] sm:$0xf]
    %v5715 = vld [vmem:[#allocation8 + $0x350] sm:$0xff]
    %v5716 = vld [vmem:[#allocation8 + $0x358] sm:$0xf]
    %v5717 = vld [vmem:[#allocation8 + $0x39c] sm:$0xff]
    %v5718 = vld [vmem:[#allocation8 + $0x3a4] sm:$0xf]
    %v5719 = vld [vmem:[#allocation8 + $0x3e8] sm:$0xff]
    %v5720 = vld [vmem:[#allocation8 + $0x3f0] sm:$0xf]
    %v5721 = vld [vmem:[#allocation8 + $0x434] sm:$0xff]
    %v5722 = vld [vmem:[#allocation8 + $0x43c] sm:$0xf]
    %v5723 = vld [vmem:[#allocation8 + $0x480] sm:$0xff]
    %v5724 = vld [vmem:[#allocation8 + $0x488] sm:$0xf]
    %v5725 = vpack.c.bf16 %v4701, %v4701
    %v5758 = vunpack.c.l.b16 %v5693
    %v5759 = vunpack.c.h.b16 %v5693
    %v5760 = vunpack.c.l.b16 %v5694
    %v5761 = vunpack.c.l.b16 %v5695
    %v5762 = vunpack.c.h.b16 %v5695
    %v5763 = vunpack.c.l.b16 %v5696
    %v5764 = vunpack.c.l.b16 %v5697
    %v5765 = vunpack.c.h.b16 %v5697
    %v5766 = vunpack.c.l.b16 %v5698
    %v5767 = vunpack.c.l.b16 %v5699
    %v5768 = vunpack.c.h.b16 %v5699
    %v5769 = vunpack.c.l.b16 %v5700
    %v5770 = vunpack.c.l.b16 %v5701
    %v5771 = vunpack.c.h.b16 %v5701
    %v5772 = vunpack.c.l.b16 %v5702
    %v5773 = vunpack.c.l.b16 %v5703
    %v5774 = vunpack.c.h.b16 %v5703
    %v5775 = vunpack.c.l.b16 %v5704
    %v5776 = vunpack.c.l.b16 %v5705
    %v5777 = vunpack.c.h.b16 %v5705
    %v5778 = vunpack.c.l.b16 %v5706
    %v5779 = vunpack.c.l.b16 %v5707
    %v5780 = vunpack.c.h.b16 %v5707
    %v5781 = vunpack.c.l.b16 %v5708
    %v5782 = vunpack.c.l.b16 %v5709
    %v5783 = vunpack.c.h.b16 %v5709
    %v5784 = vunpack.c.l.b16 %v5710
    %v5785 = vunpack.c.l.b16 %v5711
    %v5786 = vunpack.c.h.b16 %v5711
    %v5787 = vunpack.c.l.b16 %v5712
    %v5788 = vunpack.c.l.b16 %v5713
    %v5789 = vunpack.c.h.b16 %v5713
    %v5790 = vunpack.c.l.b16 %v5714
    %v5791 = vunpack.c.l.b16 %v5715
    %v5792 = vunpack.c.h.b16 %v5715
    %v5793 = vunpack.c.l.b16 %v5716
    %v5794 = vunpack.c.l.b16 %v5717
    %v5795 = vunpack.c.h.b16 %v5717
    %v5796 = vunpack.c.l.b16 %v5718
    %v5797 = vunpack.c.l.b16 %v5719
    %v5798 = vunpack.c.h.b16 %v5719
    %v5799 = vunpack.c.l.b16 %v5720
    %v5800 = vunpack.c.l.b16 %v5721
    %v5801 = vunpack.c.h.b16 %v5721
    %v5802 = vunpack.c.l.b16 %v5722
    %v5803 = vunpack.c.l.b16 %v5723
    %v5804 = vunpack.c.h.b16 %v5723
    %v5805 = vunpack.c.l.b16 %v5724
    %v5806 = vpack.c.b16 %v5761, %v5758
    %v5807 = vpack.c.b16 %v5762, %v5759
    %v5808 = vpack.c.b16 %v5763, %v5760
    %v5809 = vpack.c.b16 %v5767, %v5764
    %v5810 = vpack.c.b16 %v5768, %v5765
    %v5811 = vpack.c.b16 %v5769, %v5766
    %v5812 = vpack.c.b16 %v5773, %v5770
    %v5813 = vpack.c.b16 %v5774, %v5771
    %v5814 = vpack.c.b16 %v5775, %v5772
    %v5815 = vpack.c.b16 %v5779, %v5776
    %v5816 = vpack.c.b16 %v5780, %v5777
    %v5817 = vpack.c.b16 %v5781, %v5778
    %v5818 = vpack.c.b16 %v5785, %v5782
    %v5819 = vpack.c.b16 %v5786, %v5783
    %v5820 = vpack.c.b16 %v5787, %v5784
    %v5821 = vpack.c.b16 %v5791, %v5788
    %v5822 = vpack.c.b16 %v5792, %v5789
    %v5823 = vpack.c.b16 %v5793, %v5790
    %v5824 = vpack.c.b16 %v5797, %v5794
    %v5825 = vpack.c.b16 %v5798, %v5795
    %v5826 = vpack.c.b16 %v5799, %v5796
    %v5827 = vpack.c.b16 %v5803, %v5800
    %v5828 = vpack.c.b16 %v5804, %v5801
    %v5829 = vpack.c.b16 %v5805, %v5802
    %5854 = vmatpush.bf16.msra.mxu0 %v5827
    %5855 = vmatpush.bf16.msra.mxu0 %v5824
    %5856 = vmatpush.bf16.msra.mxu0 %v5821
    %5857 = vmatpush.bf16.msra.mxu0 %v5818
    %5858 = vmatpush.bf16.msra.mxu0 %v5815
    %5859 = vmatpush.bf16.msra.mxu0 %v5812
    %5860 = vmatpush.bf16.msra.mxu0 %v5809
    %5861 = vmatpush.bf16.msra.mxu0 %v5806
    %5862 = vmatmul.bf16.gmra.mxu0 %v5725
    %v5863 = vpop.f32.mrf.mxu0
    %v5864 = vadd.f32 0.0, %v5863
    %v5865 = vpop.f32.mrf.mxu0
    %5866 = vdwg.mxu0
    %5867 = vmatpush.bf16.msra.mxu0 %v5828
    %5868 = vmatpush.bf16.msra.mxu0 %v5825
    %5869 = vmatpush.bf16.msra.mxu0 %v5822
    %5870 = vmatpush.bf16.msra.mxu0 %v5819
    %5871 = vmatpush.bf16.msra.mxu0 %v5816
    %5872 = vmatpush.bf16.msra.mxu0 %v5813
    %5873 = vmatpush.bf16.msra.mxu0 %v5810
    %5874 = vmatpush.bf16.msra.mxu0 %v5807
    %5875 = vmatmul.bf16.gmra.mxu0 %v5725
    %v5876 = vpop.f32.mrf.mxu0
    %v5877 = vadd.f32 0.0, %v5876
    %v5878 = vpop.f32.mrf.mxu0
    %5879 = vdwg.mxu0
    %5880 = vmatpush.bf16.msra.mxu0 %v5829
    %5881 = vmatpush.bf16.msra.mxu0 %v5826
    %5882 = vmatpush.bf16.msra.mxu0 %v5823
    %5883 = vmatpush.bf16.msra.mxu0 %v5820
    %5884 = vmatpush.bf16.msra.mxu0 %v5817
    %5885 = vmatpush.bf16.msra.mxu0 %v5814
    %5886 = vmatpush.bf16.msra.mxu0 %v5811
    %5887 = vmatpush.bf16.msra.mxu0 %v5808
    %5888 = vmatmul.bf16.gmra.mxu0 %v5725
    %v5889 = vpop.f32.mrf.mxu0
    %v5890 = vadd.f32 0.0, %v5889
    %v5891 = vpop.f32.mrf.mxu0
    %5892 = vdwg.mxu0
    %v5893 = vadd.f32 %v401, %v5864
    %v5894 = vadd.f32 %v414, %v5877
    %v5895 = vxor.u32 %v5893, 2147483648
    %v5896 = vxor.u32 %v5894, 2147483648
    %v5897 = vmul.f32 %v5895, 1.442695
    %v5898 = vpow.pop %v5897
    %v5899 = vmul.f32 %v5896, 1.442695
    %v5900 = vpow.pop %v5899
    %v5901 = vadd.f32 %v5898, 1.0
    %v5902 = vadd.f32 %v5900, 1.0
    %v5903 = vrcp.pop %v5901
    %v5904 = vmul.f32 %v5901, %v5903
    %v5905 = vsub.f32 1.0, %v5904
    %v5906 = vmul.f32 %v5903, %v5905
    %v5907 = vadd.f32 %v5903, %v5906
    %vm5908 = vweird.f32 %v5901
    %vm5909 = vweird.f32 %v5903
    %vm5910 = vmor %vm5908, %vm5909
    %v5911 = vsel %vm5910, %v5903, %v5907
    %v5912 = vand.u32 2147483647, %v5901
    %vm5913 = vcmp.eq.f32.partialorder %v5912, 8.507059e+37
    %v5914 = vand.u32 %v5901, 2147483648
    %v5915 = vor.u32 1.1754944e-38, %v5914
    %v5916 = vsel %vm5913, %v5915, %v5911
    %v5917 = vmul.f32 1.0, %v5916
    %v5918 = vrcp.pop %v5902
    %v5919 = vmul.f32 %v5902, %v5918
    %v5920 = vsub.f32 1.0, %v5919
    %v5921 = vmul.f32 %v5918, %v5920
    %v5922 = vadd.f32 %v5918, %v5921
    %vm5923 = vweird.f32 %v5902
    %vm5924 = vweird.f32 %v5918
    %vm5925 = vmor %vm5923, %vm5924
    %v5926 = vsel %vm5925, %v5918, %v5922
    %v5927 = vand.u32 2147483647, %v5902
    %vm5928 = vcmp.eq.f32.partialorder %v5927, 8.507059e+37
    %v5929 = vand.u32 %v5902, 2147483648
    %v5930 = vor.u32 1.1754944e-38, %v5929
    %v5931 = vsel %vm5928, %v5930, %v5926
    %v5932 = vmul.f32 1.0, %v5931
    %v5933 = vadd.f32 %v5890, %v98
    %v5934 = vmul.f32 %v5917, %v5933
    %v5935 = vadd.f32 %v427, %v5934
    %v5936 = vtanh.pop %v5935
    %v5937 = vsub.f32 1.0, %v5932
    %v5938 = vmul.f32 %v5937, %v5936
    %v5939 = vmul.f32 %v5932, %v4701
    %v5940 = vadd.f32 %v5938, %v5939
    %v5941 = vld [vmem:[#allocation8 + $0x18] sm:$0xff]
    %v5942 = vld [vmem:[#allocation8 + $0x20] sm:$0xf]
    %v5943 = vld [vmem:[#allocation8 + $0x64] sm:$0xff]
    %v5944 = vld [vmem:[#allocation8 + $0x6c] sm:$0xf]
    %v5945 = vld [vmem:[#allocation8 + $0xb0] sm:$0xff]
    %v5946 = vld [vmem:[#allocation8 + $0xb8] sm:$0xf]
    %v5947 = vld [vmem:[#allocation8 + $0xfc] sm:$0xff]
    %v5948 = vld [vmem:[#allocation8 + $0x104] sm:$0xf]
    %v5949 = vld [vmem:[#allocation8 + $0x148] sm:$0xff]
    %v5950 = vld [vmem:[#allocation8 + $0x150] sm:$0xf]
    %v5951 = vld [vmem:[#allocation8 + $0x194] sm:$0xff]
    %v5952 = vld [vmem:[#allocation8 + $0x19c] sm:$0xf]
    %v5953 = vld [vmem:[#allocation8 + $0x1e0] sm:$0xff]
    %v5954 = vld [vmem:[#allocation8 + $0x1e8] sm:$0xf]
    %v5955 = vld [vmem:[#allocation8 + $0x22c] sm:$0xff]
    %v5956 = vld [vmem:[#allocation8 + $0x234] sm:$0xf]
    %v5957 = vld [vmem:[#allocation8 + $0x278] sm:$0xff]
    %v5958 = vld [vmem:[#allocation8 + $0x280] sm:$0xf]
    %v5959 = vld [vmem:[#allocation8 + $0x2c4] sm:$0xff]
    %v5960 = vld [vmem:[#allocation8 + $0x2cc] sm:$0xf]
    %v5961 = vld [vmem:[#allocation8 + $0x310] sm:$0xff]
    %v5962 = vld [vmem:[#allocation8 + $0x318] sm:$0xf]
    %v5963 = vld [vmem:[#allocation8 + $0x35c] sm:$0xff]
    %v5964 = vld [vmem:[#allocation8 + $0x364] sm:$0xf]
    %v5965 = vld [vmem:[#allocation8 + $0x3a8] sm:$0xff]
    %v5966 = vld [vmem:[#allocation8 + $0x3b0] sm:$0xf]
    %v5967 = vld [vmem:[#allocation8 + $0x3f4] sm:$0xff]
    %v5968 = vld [vmem:[#allocation8 + $0x3fc] sm:$0xf]
    %v5969 = vld [vmem:[#allocation8 + $0x440] sm:$0xff]
    %v5970 = vld [vmem:[#allocation8 + $0x448] sm:$0xf]
    %v5971 = vld [vmem:[#allocation8 + $0x48c] sm:$0xff]
    %v5972 = vld [vmem:[#allocation8 + $0x494] sm:$0xf]
    %v6005 = vunpack.c.l.b16 %v5941
    %v6006 = vunpack.c.h.b16 %v5941
    %v6007 = vunpack.c.l.b16 %v5942
    %v6008 = vunpack.c.l.b16 %v5943
    %v6009 = vunpack.c.h.b16 %v5943
    %v6010 = vunpack.c.l.b16 %v5944
    %v6011 = vunpack.c.l.b16 %v5945
    %v6012 = vunpack.c.h.b16 %v5945
    %v6013 = vunpack.c.l.b16 %v5946
    %v6014 = vunpack.c.l.b16 %v5947
    %v6015 = vunpack.c.h.b16 %v5947
    %v6016 = vunpack.c.l.b16 %v5948
    %v6017 = vunpack.c.l.b16 %v5949
    %v6018 = vunpack.c.h.b16 %v5949
    %v6019 = vunpack.c.l.b16 %v5950
    %v6020 = vunpack.c.l.b16 %v5951
    %v6021 = vunpack.c.h.b16 %v5951
    %v6022 = vunpack.c.l.b16 %v5952
    %v6023 = vunpack.c.l.b16 %v5953
    %v6024 = vunpack.c.h.b16 %v5953
    %v6025 = vunpack.c.l.b16 %v5954
    %v6026 = vunpack.c.l.b16 %v5955
    %v6027 = vunpack.c.h.b16 %v5955
    %v6028 = vunpack.c.l.b16 %v5956
    %v6029 = vunpack.c.l.b16 %v5957
    %v6030 = vunpack.c.h.b16 %v5957
    %v6031 = vunpack.c.l.b16 %v5958
    %v6032 = vunpack.c.l.b16 %v5959
    %v6033 = vunpack.c.h.b16 %v5959
    %v6034 = vunpack.c.l.b16 %v5960
    %v6035 = vunpack.c.l.b16 %v5961
    %v6036 = vunpack.c.h.b16 %v5961
    %v6037 = vunpack.c.l.b16 %v5962
    %v6038 = vunpack.c.l.b16 %v5963
    %v6039 = vunpack.c.h.b16 %v5963
    %v6040 = vunpack.c.l.b16 %v5964
    %v6041 = vunpack.c.l.b16 %v5965
    %v6042 = vunpack.c.h.b16 %v5965
    %v6043 = vunpack.c.l.b16 %v5966
    %v6044 = vunpack.c.l.b16 %v5967
    %v6045 = vunpack.c.h.b16 %v5967
    %v6046 = vunpack.c.l.b16 %v5968
    %v6047 = vunpack.c.l.b16 %v5969
    %v6048 = vunpack.c.h.b16 %v5969
    %v6049 = vunpack.c.l.b16 %v5970
    %v6050 = vunpack.c.l.b16 %v5971
    %v6051 = vunpack.c.h.b16 %v5971
    %v6052 = vunpack.c.l.b16 %v5972
    %v6053 = vpack.c.b16 %v6008, %v6005
    %v6054 = vpack.c.b16 %v6009, %v6006
    %v6055 = vpack.c.b16 %v6010, %v6007
    %v6056 = vpack.c.b16 %v6014, %v6011
    %v6057 = vpack.c.b16 %v6015, %v6012
    %v6058 = vpack.c.b16 %v6016, %v6013
    %v6059 = vpack.c.b16 %v6020, %v6017
    %v6060 = vpack.c.b16 %v6021, %v6018
    %v6061 = vpack.c.b16 %v6022, %v6019
    %v6062 = vpack.c.b16 %v6026, %v6023
    %v6063 = vpack.c.b16 %v6027, %v6024
    %v6064 = vpack.c.b16 %v6028, %v6025
    %v6065 = vpack.c.b16 %v6032, %v6029
    %v6066 = vpack.c.b16 %v6033, %v6030
    %v6067 = vpack.c.b16 %v6034, %v6031
    %v6068 = vpack.c.b16 %v6038, %v6035
    %v6069 = vpack.c.b16 %v6039, %v6036
    %v6070 = vpack.c.b16 %v6040, %v6037
    %v6071 = vpack.c.b16 %v6044, %v6041
    %v6072 = vpack.c.b16 %v6045, %v6042
    %v6073 = vpack.c.b16 %v6046, %v6043
    %v6074 = vpack.c.b16 %v6050, %v6047
    %v6075 = vpack.c.b16 %v6051, %v6048
    %v6076 = vpack.c.b16 %v6052, %v6049
    %6101 = vmatpush.bf16.msra.mxu0 %v6074
    %6102 = vmatpush.bf16.msra.mxu0 %v6071
    %6103 = vmatpush.bf16.msra.mxu0 %v6068
    %6104 = vmatpush.bf16.msra.mxu0 %v6065
    %6105 = vmatpush.bf16.msra.mxu0 %v6062
    %6106 = vmatpush.bf16.msra.mxu0 %v6059
    %6107 = vmatpush.bf16.msra.mxu0 %v6056
    %6108 = vmatpush.bf16.msra.mxu0 %v6053
    %6109 = vmatmul.bf16.gmra.mxu0 %v5725
    %v6110 = vpop.f32.mrf.mxu0
    %v6111 = vadd.f32 %v110, %v6110
    %v6112 = vpop.f32.mrf.mxu0
    %6113 = vdwg.mxu0
    %6114 = vmatpush.bf16.msra.mxu0 %v6075
    %6115 = vmatpush.bf16.msra.mxu0 %v6072
    %6116 = vmatpush.bf16.msra.mxu0 %v6069
    %6117 = vmatpush.bf16.msra.mxu0 %v6066
    %6118 = vmatpush.bf16.msra.mxu0 %v6063
    %6119 = vmatpush.bf16.msra.mxu0 %v6060
    %6120 = vmatpush.bf16.msra.mxu0 %v6057
    %6121 = vmatpush.bf16.msra.mxu0 %v6054
    %6122 = vmatmul.bf16.gmra.mxu0 %v5725
    %v6123 = vpop.f32.mrf.mxu0
    %v6124 = vadd.f32 %v111, %v6123
    %v6125 = vpop.f32.mrf.mxu0
    %6126 = vdwg.mxu0
    %6127 = vmatpush.bf16.msra.mxu0 %v6076
    %6128 = vmatpush.bf16.msra.mxu0 %v6073
    %6129 = vmatpush.bf16.msra.mxu0 %v6070
    %6130 = vmatpush.bf16.msra.mxu0 %v6067
    %6131 = vmatpush.bf16.msra.mxu0 %v6064
    %6132 = vmatpush.bf16.msra.mxu0 %v6061
    %6133 = vmatpush.bf16.msra.mxu0 %v6058
    %6134 = vmatpush.bf16.msra.mxu0 %v6055
    %6135 = vmatmul.bf16.gmra.mxu0 %v5725
    %v6136 = vpop.f32.mrf.mxu0
    %v6137 = vadd.f32 %v112, %v6136
    %v6138 = vpop.f32.mrf.mxu0
    %6139 = vdwg.mxu0
    %v6140 = vld [vmem:[#allocation8 + $0x24] sm:$0xff]
    %v6141 = vld [vmem:[#allocation8 + $0x2c] sm:$0xf]
    %v6142 = vld [vmem:[#allocation8 + $0x70] sm:$0xff]
    %v6143 = vld [vmem:[#allocation8 + $0x78] sm:$0xf]
    %v6144 = vld [vmem:[#allocation8 + $0xbc] sm:$0xff]
    %v6145 = vld [vmem:[#allocation8 + $0xc4] sm:$0xf]
    %v6146 = vld [vmem:[#allocation8 + $0x108] sm:$0xff]
    %v6147 = vld [vmem:[#allocation8 + $0x110] sm:$0xf]
    %v6148 = vld [vmem:[#allocation8 + $0x154] sm:$0xff]
    %v6149 = vld [vmem:[#allocation8 + $0x15c] sm:$0xf]
    %v6150 = vld [vmem:[#allocation8 + $0x1a0] sm:$0xff]
    %v6151 = vld [vmem:[#allocation8 + $0x1a8] sm:$0xf]
    %v6152 = vld [vmem:[#allocation8 + $0x1ec] sm:$0xff]
    %v6153 = vld [vmem:[#allocation8 + $0x1f4] sm:$0xf]
    %v6154 = vld [vmem:[#allocation8 + $0x238] sm:$0xff]
    %v6155 = vld [vmem:[#allocation8 + $0x240] sm:$0xf]
    %v6156 = vld [vmem:[#allocation8 + $0x284] sm:$0xff]
    %v6157 = vld [vmem:[#allocation8 + $0x28c] sm:$0xf]
    %v6158 = vld [vmem:[#allocation8 + $0x2d0] sm:$0xff]
    %v6159 = vld [vmem:[#allocation8 + $0x2d8] sm:$0xf]
    %v6160 = vld [vmem:[#allocation8 + $0x31c] sm:$0xff]
    %v6161 = vld [vmem:[#allocation8 + $0x324] sm:$0xf]
    %v6162 = vld [vmem:[#allocation8 + $0x368] sm:$0xff]
    %v6163 = vld [vmem:[#allocation8 + $0x370] sm:$0xf]
    %v6164 = vld [vmem:[#allocation8 + $0x3b4] sm:$0xff]
    %v6165 = vld [vmem:[#allocation8 + $0x3bc] sm:$0xf]
    %v6166 = vld [vmem:[#allocation8 + $0x400] sm:$0xff]
    %v6167 = vld [vmem:[#allocation8 + $0x408] sm:$0xf]
    %v6168 = vld [vmem:[#allocation8 + $0x44c] sm:$0xff]
    %v6169 = vld [vmem:[#allocation8 + $0x454] sm:$0xf]
    %v6170 = vld [vmem:[#allocation8 + $0x498] sm:$0xff]
    %v6171 = vld [vmem:[#allocation8 + $0x4a0] sm:$0xf]
    %v6172 = vpack.c.bf16 %v5148, %v5148
    %v6205 = vunpack.c.l.b16 %v6140
    %v6206 = vunpack.c.h.b16 %v6140
    %v6207 = vunpack.c.l.b16 %v6141
    %v6208 = vunpack.c.l.b16 %v6142
    %v6209 = vunpack.c.h.b16 %v6142
    %v6210 = vunpack.c.l.b16 %v6143
    %v6211 = vunpack.c.l.b16 %v6144
    %v6212 = vunpack.c.h.b16 %v6144
    %v6213 = vunpack.c.l.b16 %v6145
    %v6214 = vunpack.c.l.b16 %v6146
    %v6215 = vunpack.c.h.b16 %v6146
    %v6216 = vunpack.c.l.b16 %v6147
    %v6217 = vunpack.c.l.b16 %v6148
    %v6218 = vunpack.c.h.b16 %v6148
    %v6219 = vunpack.c.l.b16 %v6149
    %v6220 = vunpack.c.l.b16 %v6150
    %v6221 = vunpack.c.h.b16 %v6150
    %v6222 = vunpack.c.l.b16 %v6151
    %v6223 = vunpack.c.l.b16 %v6152
    %v6224 = vunpack.c.h.b16 %v6152
    %v6225 = vunpack.c.l.b16 %v6153
    %v6226 = vunpack.c.l.b16 %v6154
    %v6227 = vunpack.c.h.b16 %v6154
    %v6228 = vunpack.c.l.b16 %v6155
    %v6229 = vunpack.c.l.b16 %v6156
    %v6230 = vunpack.c.h.b16 %v6156
    %v6231 = vunpack.c.l.b16 %v6157
    %v6232 = vunpack.c.l.b16 %v6158
    %v6233 = vunpack.c.h.b16 %v6158
    %v6234 = vunpack.c.l.b16 %v6159
    %v6235 = vunpack.c.l.b16 %v6160
    %v6236 = vunpack.c.h.b16 %v6160
    %v6237 = vunpack.c.l.b16 %v6161
    %v6238 = vunpack.c.l.b16 %v6162
    %v6239 = vunpack.c.h.b16 %v6162
    %v6240 = vunpack.c.l.b16 %v6163
    %v6241 = vunpack.c.l.b16 %v6164
    %v6242 = vunpack.c.h.b16 %v6164
    %v6243 = vunpack.c.l.b16 %v6165
    %v6244 = vunpack.c.l.b16 %v6166
    %v6245 = vunpack.c.h.b16 %v6166
    %v6246 = vunpack.c.l.b16 %v6167
    %v6247 = vunpack.c.l.b16 %v6168
    %v6248 = vunpack.c.h.b16 %v6168
    %v6249 = vunpack.c.l.b16 %v6169
    %v6250 = vunpack.c.l.b16 %v6170
    %v6251 = vunpack.c.h.b16 %v6170
    %v6252 = vunpack.c.l.b16 %v6171
    %v6253 = vpack.c.b16 %v6208, %v6205
    %v6254 = vpack.c.b16 %v6209, %v6206
    %v6255 = vpack.c.b16 %v6210, %v6207
    %v6256 = vpack.c.b16 %v6214, %v6211
    %v6257 = vpack.c.b16 %v6215, %v6212
    %v6258 = vpack.c.b16 %v6216, %v6213
    %v6259 = vpack.c.b16 %v6220, %v6217
    %v6260 = vpack.c.b16 %v6221, %v6218
    %v6261 = vpack.c.b16 %v6222, %v6219
    %v6262 = vpack.c.b16 %v6226, %v6223
    %v6263 = vpack.c.b16 %v6227, %v6224
    %v6264 = vpack.c.b16 %v6228, %v6225
    %v6265 = vpack.c.b16 %v6232, %v6229
    %v6266 = vpack.c.b16 %v6233, %v6230
    %v6267 = vpack.c.b16 %v6234, %v6231
    %v6268 = vpack.c.b16 %v6238, %v6235
    %v6269 = vpack.c.b16 %v6239, %v6236
    %v6270 = vpack.c.b16 %v6240, %v6237
    %v6271 = vpack.c.b16 %v6244, %v6241
    %v6272 = vpack.c.b16 %v6245, %v6242
    %v6273 = vpack.c.b16 %v6246, %v6243
    %v6274 = vpack.c.b16 %v6250, %v6247
    %v6275 = vpack.c.b16 %v6251, %v6248
    %v6276 = vpack.c.b16 %v6252, %v6249
    %6301 = vmatpush.bf16.msra.mxu0 %v6274
    %6302 = vmatpush.bf16.msra.mxu0 %v6271
    %6303 = vmatpush.bf16.msra.mxu0 %v6268
    %6304 = vmatpush.bf16.msra.mxu0 %v6265
    %6305 = vmatpush.bf16.msra.mxu0 %v6262
    %6306 = vmatpush.bf16.msra.mxu0 %v6259
    %6307 = vmatpush.bf16.msra.mxu0 %v6256
    %6308 = vmatpush.bf16.msra.mxu0 %v6253
    %6309 = vmatmul.bf16.gmra.mxu0 %v6172
    %v6310 = vpop.f32.mrf.mxu0
    %v6311 = vadd.f32 0.0, %v6310
    %v6312 = vpop.f32.mrf.mxu0
    %6313 = vdwg.mxu0
    %6314 = vmatpush.bf16.msra.mxu0 %v6275
    %6315 = vmatpush.bf16.msra.mxu0 %v6272
    %6316 = vmatpush.bf16.msra.mxu0 %v6269
    %6317 = vmatpush.bf16.msra.mxu0 %v6266
    %6318 = vmatpush.bf16.msra.mxu0 %v6263
    %6319 = vmatpush.bf16.msra.mxu0 %v6260
    %6320 = vmatpush.bf16.msra.mxu0 %v6257
    %6321 = vmatpush.bf16.msra.mxu0 %v6254
    %6322 = vmatmul.bf16.gmra.mxu0 %v6172
    %v6323 = vpop.f32.mrf.mxu0
    %v6324 = vadd.f32 0.0, %v6323
    %v6325 = vpop.f32.mrf.mxu0
    %6326 = vdwg.mxu0
    %6327 = vmatpush.bf16.msra.mxu0 %v6276
    %6328 = vmatpush.bf16.msra.mxu0 %v6273
    %6329 = vmatpush.bf16.msra.mxu0 %v6270
    %6330 = vmatpush.bf16.msra.mxu0 %v6267
    %6331 = vmatpush.bf16.msra.mxu0 %v6264
    %6332 = vmatpush.bf16.msra.mxu0 %v6261
    %6333 = vmatpush.bf16.msra.mxu0 %v6258
    %6334 = vmatpush.bf16.msra.mxu0 %v6255
    %6335 = vmatmul.bf16.gmra.mxu0 %v6172
    %v6336 = vpop.f32.mrf.mxu0
    %v6337 = vadd.f32 0.0, %v6336
    %v6338 = vpop.f32.mrf.mxu0
    %6339 = vdwg.mxu0
    %v6340 = vadd.f32 %v6111, %v6311
    %v6341 = vadd.f32 %v6124, %v6324
    %v6342 = vxor.u32 %v6340, 2147483648
    %v6343 = vxor.u32 %v6341, 2147483648
    %v6344 = vmul.f32 %v6342, 1.442695
    %v6345 = vpow.pop %v6344
    %v6346 = vmul.f32 %v6343, 1.442695
    %v6347 = vpow.pop %v6346
    %v6348 = vadd.f32 %v6345, 1.0
    %v6349 = vadd.f32 %v6347, 1.0
    %v6350 = vrcp.pop %v6348
    %v6351 = vmul.f32 %v6348, %v6350
    %v6352 = vsub.f32 1.0, %v6351
    %v6353 = vmul.f32 %v6350, %v6352
    %v6354 = vadd.f32 %v6350, %v6353
    %vm6355 = vweird.f32 %v6348
    %vm6356 = vweird.f32 %v6350
    %vm6357 = vmor %vm6355, %vm6356
    %v6358 = vsel %vm6357, %v6350, %v6354
    %v6359 = vand.u32 2147483647, %v6348
    %vm6360 = vcmp.eq.f32.partialorder %v6359, 8.507059e+37
    %v6361 = vand.u32 %v6348, 2147483648
    %v6362 = vor.u32 1.1754944e-38, %v6361
    %v6363 = vsel %vm6360, %v6362, %v6358
    %v6364 = vmul.f32 1.0, %v6363
    %v6365 = vrcp.pop %v6349
    %v6366 = vmul.f32 %v6349, %v6365
    %v6367 = vsub.f32 1.0, %v6366
    %v6368 = vmul.f32 %v6365, %v6367
    %v6369 = vadd.f32 %v6365, %v6368
    %vm6370 = vweird.f32 %v6349
    %vm6371 = vweird.f32 %v6365
    %vm6372 = vmor %vm6370, %vm6371
    %v6373 = vsel %vm6372, %v6365, %v6369
    %v6374 = vand.u32 2147483647, %v6349
    %vm6375 = vcmp.eq.f32.partialorder %v6374, 8.507059e+37
    %v6376 = vand.u32 %v6349, 2147483648
    %v6377 = vor.u32 1.1754944e-38, %v6376
    %v6378 = vsel %vm6375, %v6377, %v6373
    %v6379 = vmul.f32 1.0, %v6378
    %v6380 = vadd.f32 %v6337, %v102
    %v6381 = vmul.f32 %v6364, %v6380
    %v6382 = vadd.f32 %v6137, %v6381
    %v6383 = vtanh.pop %v6382
    %v6384 = vsub.f32 1.0, %v6379
    %v6385 = vmul.f32 %v6384, %v6383
    %v6386 = vmul.f32 %v6379, %v5148
    %v6387 = vadd.f32 %v6385, %v6386
    %v6388 = vld [vmem:[#allocation8 + $0x30] sm:$0xff]
    %v6389 = vld [vmem:[#allocation8 + $0x38] sm:$0xf]
    %v6390 = vld [vmem:[#allocation8 + $0x7c] sm:$0xff]
    %v6391 = vld [vmem:[#allocation8 + $0x84] sm:$0xf]
    %v6392 = vld [vmem:[#allocation8 + $0xc8] sm:$0xff]
    %v6393 = vld [vmem:[#allocation8 + $0xd0] sm:$0xf]
    %v6394 = vld [vmem:[#allocation8 + $0x114] sm:$0xff]
    %v6395 = vld [vmem:[#allocation8 + $0x11c] sm:$0xf]
    %v6396 = vld [vmem:[#allocation8 + $0x160] sm:$0xff]
    %v6397 = vld [vmem:[#allocation8 + $0x168] sm:$0xf]
    %v6398 = vld [vmem:[#allocation8 + $0x1ac] sm:$0xff]
    %v6399 = vld [vmem:[#allocation8 + $0x1b4] sm:$0xf]
    %v6400 = vld [vmem:[#allocation8 + $0x1f8] sm:$0xff]
    %v6401 = vld [vmem:[#allocation8 + $0x200] sm:$0xf]
    %v6402 = vld [vmem:[#allocation8 + $0x244] sm:$0xff]
    %v6403 = vld [vmem:[#allocation8 + $0x24c] sm:$0xf]
    %v6404 = vld [vmem:[#allocation8 + $0x290] sm:$0xff]
    %v6405 = vld [vmem:[#allocation8 + $0x298] sm:$0xf]
    %v6406 = vld [vmem:[#allocation8 + $0x2dc] sm:$0xff]
    %v6407 = vld [vmem:[#allocation8 + $0x2e4] sm:$0xf]
    %v6408 = vld [vmem:[#allocation8 + $0x328] sm:$0xff]
    %v6409 = vld [vmem:[#allocation8 + $0x330] sm:$0xf]
    %v6410 = vld [vmem:[#allocation8 + $0x374] sm:$0xff]
    %v6411 = vld [vmem:[#allocation8 + $0x37c] sm:$0xf]
    %v6412 = vld [vmem:[#allocation8 + $0x3c0] sm:$0xff]
    %v6413 = vld [vmem:[#allocation8 + $0x3c8] sm:$0xf]
    %v6414 = vld [vmem:[#allocation8 + $0x40c] sm:$0xff]
    %v6415 = vld [vmem:[#allocation8 + $0x414] sm:$0xf]
    %v6416 = vld [vmem:[#allocation8 + $0x458] sm:$0xff]
    %v6417 = vld [vmem:[#allocation8 + $0x460] sm:$0xf]
    %v6418 = vld [vmem:[#allocation8 + $0x4a4] sm:$0xff]
    %v6419 = vld [vmem:[#allocation8 + $0x4ac] sm:$0xf]
    %v6452 = vunpack.c.l.b16 %v6388
    %v6453 = vunpack.c.h.b16 %v6388
    %v6454 = vunpack.c.l.b16 %v6389
    %v6455 = vunpack.c.l.b16 %v6390
    %v6456 = vunpack.c.h.b16 %v6390
    %v6457 = vunpack.c.l.b16 %v6391
    %v6458 = vunpack.c.l.b16 %v6392
    %v6459 = vunpack.c.h.b16 %v6392
    %v6460 = vunpack.c.l.b16 %v6393
    %v6461 = vunpack.c.l.b16 %v6394
    %v6462 = vunpack.c.h.b16 %v6394
    %v6463 = vunpack.c.l.b16 %v6395
    %v6464 = vunpack.c.l.b16 %v6396
    %v6465 = vunpack.c.h.b16 %v6396
    %v6466 = vunpack.c.l.b16 %v6397
    %v6467 = vunpack.c.l.b16 %v6398
    %v6468 = vunpack.c.h.b16 %v6398
    %v6469 = vunpack.c.l.b16 %v6399
    %v6470 = vunpack.c.l.b16 %v6400
    %v6471 = vunpack.c.h.b16 %v6400
    %v6472 = vunpack.c.l.b16 %v6401
    %v6473 = vunpack.c.l.b16 %v6402
    %v6474 = vunpack.c.h.b16 %v6402
    %v6475 = vunpack.c.l.b16 %v6403
    %v6476 = vunpack.c.l.b16 %v6404
    %v6477 = vunpack.c.h.b16 %v6404
    %v6478 = vunpack.c.l.b16 %v6405
    %v6479 = vunpack.c.l.b16 %v6406
    %v6480 = vunpack.c.h.b16 %v6406
    %v6481 = vunpack.c.l.b16 %v6407
    %v6482 = vunpack.c.l.b16 %v6408
    %v6483 = vunpack.c.h.b16 %v6408
    %v6484 = vunpack.c.l.b16 %v6409
    %v6485 = vunpack.c.l.b16 %v6410
    %v6486 = vunpack.c.h.b16 %v6410
    %v6487 = vunpack.c.l.b16 %v6411
    %v6488 = vunpack.c.l.b16 %v6412
    %v6489 = vunpack.c.h.b16 %v6412
    %v6490 = vunpack.c.l.b16 %v6413
    %v6491 = vunpack.c.l.b16 %v6414
    %v6492 = vunpack.c.h.b16 %v6414
    %v6493 = vunpack.c.l.b16 %v6415
    %v6494 = vunpack.c.l.b16 %v6416
    %v6495 = vunpack.c.h.b16 %v6416
    %v6496 = vunpack.c.l.b16 %v6417
    %v6497 = vunpack.c.l.b16 %v6418
    %v6498 = vunpack.c.h.b16 %v6418
    %v6499 = vunpack.c.l.b16 %v6419
    %v6500 = vpack.c.b16 %v6455, %v6452
    %v6501 = vpack.c.b16 %v6456, %v6453
    %v6502 = vpack.c.b16 %v6457, %v6454
    %v6503 = vpack.c.b16 %v6461, %v6458
    %v6504 = vpack.c.b16 %v6462, %v6459
    %v6505 = vpack.c.b16 %v6463, %v6460
    %v6506 = vpack.c.b16 %v6467, %v6464
    %v6507 = vpack.c.b16 %v6468, %v6465
    %v6508 = vpack.c.b16 %v6469, %v6466
    %v6509 = vpack.c.b16 %v6473, %v6470
    %v6510 = vpack.c.b16 %v6474, %v6471
    %v6511 = vpack.c.b16 %v6475, %v6472
    %v6512 = vpack.c.b16 %v6479, %v6476
    %v6513 = vpack.c.b16 %v6480, %v6477
    %v6514 = vpack.c.b16 %v6481, %v6478
    %v6515 = vpack.c.b16 %v6485, %v6482
    %v6516 = vpack.c.b16 %v6486, %v6483
    %v6517 = vpack.c.b16 %v6487, %v6484
    %v6518 = vpack.c.b16 %v6491, %v6488
    %v6519 = vpack.c.b16 %v6492, %v6489
    %v6520 = vpack.c.b16 %v6493, %v6490
    %v6521 = vpack.c.b16 %v6497, %v6494
    %v6522 = vpack.c.b16 %v6498, %v6495
    %v6523 = vpack.c.b16 %v6499, %v6496
    %6548 = vmatpush.bf16.msra.mxu0 %v6521
    %6549 = vmatpush.bf16.msra.mxu0 %v6518
    %6550 = vmatpush.bf16.msra.mxu0 %v6515
    %6551 = vmatpush.bf16.msra.mxu0 %v6512
    %6552 = vmatpush.bf16.msra.mxu0 %v6509
    %6553 = vmatpush.bf16.msra.mxu0 %v6506
    %6554 = vmatpush.bf16.msra.mxu0 %v6503
    %6555 = vmatpush.bf16.msra.mxu0 %v6500
    %6556 = vmatmul.bf16.gmra.mxu0 %v6172
    %v6557 = vpop.f32.mrf.mxu0
    %v6558 = vadd.f32 %v118, %v6557
    %v6559 = vpop.f32.mrf.mxu0
    %6560 = vdwg.mxu0
    %6561 = vmatpush.bf16.msra.mxu0 %v6522
    %6562 = vmatpush.bf16.msra.mxu0 %v6519
    %6563 = vmatpush.bf16.msra.mxu0 %v6516
    %6564 = vmatpush.bf16.msra.mxu0 %v6513
    %6565 = vmatpush.bf16.msra.mxu0 %v6510
    %6566 = vmatpush.bf16.msra.mxu0 %v6507
    %6567 = vmatpush.bf16.msra.mxu0 %v6504
    %6568 = vmatpush.bf16.msra.mxu0 %v6501
    %6569 = vmatmul.bf16.gmra.mxu0 %v6172
    %v6570 = vpop.f32.mrf.mxu0
    %v6571 = vadd.f32 %v119, %v6570
    %v6572 = vpop.f32.mrf.mxu0
    %6573 = vdwg.mxu0
    %6574 = vmatpush.bf16.msra.mxu0 %v6523
    %6575 = vmatpush.bf16.msra.mxu0 %v6520
    %6576 = vmatpush.bf16.msra.mxu0 %v6517
    %6577 = vmatpush.bf16.msra.mxu0 %v6514
    %6578 = vmatpush.bf16.msra.mxu0 %v6511
    %6579 = vmatpush.bf16.msra.mxu0 %v6508
    %6580 = vmatpush.bf16.msra.mxu0 %v6505
    %6581 = vmatpush.bf16.msra.mxu0 %v6502
    %6582 = vmatmul.bf16.gmra.mxu0 %v6172
    %v6583 = vpop.f32.mrf.mxu0
    %v6584 = vadd.f32 %v120, %v6583
    %v6585 = vpop.f32.mrf.mxu0
    %6586 = vdwg.mxu0
    %v6587 = vld [vmem:[#allocation8 + $0x3c] sm:$0xff]
    %v6588 = vld [vmem:[#allocation8 + $0x44] sm:$0xf]
    %v6589 = vld [vmem:[#allocation8 + $0x88] sm:$0xff]
    %v6590 = vld [vmem:[#allocation8 + $0x90] sm:$0xf]
    %v6591 = vld [vmem:[#allocation8 + $0xd4] sm:$0xff]
    %v6592 = vld [vmem:[#allocation8 + $0xdc] sm:$0xf]
    %v6593 = vld [vmem:[#allocation8 + $0x120] sm:$0xff]
    %v6594 = vld [vmem:[#allocation8 + $0x128] sm:$0xf]
    %v6595 = vld [vmem:[#allocation8 + $0x16c] sm:$0xff]
    %v6596 = vld [vmem:[#allocation8 + $0x174] sm:$0xf]
    %v6597 = vld [vmem:[#allocation8 + $0x1b8] sm:$0xff]
    %v6598 = vld [vmem:[#allocation8 + $0x1c0] sm:$0xf]
    %v6599 = vld [vmem:[#allocation8 + $0x204] sm:$0xff]
    %v6600 = vld [vmem:[#allocation8 + $0x20c] sm:$0xf]
    %v6601 = vld [vmem:[#allocation8 + $0x250] sm:$0xff]
    %v6602 = vld [vmem:[#allocation8 + $0x258] sm:$0xf]
    %v6603 = vld [vmem:[#allocation8 + $0x29c] sm:$0xff]
    %v6604 = vld [vmem:[#allocation8 + $0x2a4] sm:$0xf]
    %v6605 = vld [vmem:[#allocation8 + $0x2e8] sm:$0xff]
    %v6606 = vld [vmem:[#allocation8 + $0x2f0] sm:$0xf]
    %v6607 = vld [vmem:[#allocation8 + $0x334] sm:$0xff]
    %v6608 = vld [vmem:[#allocation8 + $0x33c] sm:$0xf]
    %v6609 = vld [vmem:[#allocation8 + $0x380] sm:$0xff]
    %v6610 = vld [vmem:[#allocation8 + $0x388] sm:$0xf]
    %v6611 = vld [vmem:[#allocation8 + $0x3cc] sm:$0xff]
    %v6612 = vld [vmem:[#allocation8 + $0x3d4] sm:$0xf]
    %v6613 = vld [vmem:[#allocation8 + $0x418] sm:$0xff]
    %v6614 = vld [vmem:[#allocation8 + $0x420] sm:$0xf]
    %v6615 = vld [vmem:[#allocation8 + $0x464] sm:$0xff]
    %v6616 = vld [vmem:[#allocation8 + $0x46c] sm:$0xf]
    %v6617 = vld [vmem:[#allocation8 + $0x4b0] sm:$0xff]
    %v6618 = vld [vmem:[#allocation8 + $0x4b8] sm:$0xf]
    %v6651 = vunpack.c.l.b16 %v6587
    %v6652 = vunpack.c.h.b16 %v6587
    %v6653 = vunpack.c.l.b16 %v6588
    %v6654 = vunpack.c.l.b16 %v6589
    %v6655 = vunpack.c.h.b16 %v6589
    %v6656 = vunpack.c.l.b16 %v6590
    %v6657 = vunpack.c.l.b16 %v6591
    %v6658 = vunpack.c.h.b16 %v6591
    %v6659 = vunpack.c.l.b16 %v6592
    %v6660 = vunpack.c.l.b16 %v6593
    %v6661 = vunpack.c.h.b16 %v6593
    %v6662 = vunpack.c.l.b16 %v6594
    %v6663 = vunpack.c.l.b16 %v6595
    %v6664 = vunpack.c.h.b16 %v6595
    %v6665 = vunpack.c.l.b16 %v6596
    %v6666 = vunpack.c.l.b16 %v6597
    %v6667 = vunpack.c.h.b16 %v6597
    %v6668 = vunpack.c.l.b16 %v6598
    %v6669 = vunpack.c.l.b16 %v6599
    %v6670 = vunpack.c.h.b16 %v6599
    %v6671 = vunpack.c.l.b16 %v6600
    %v6672 = vunpack.c.l.b16 %v6601
    %v6673 = vunpack.c.h.b16 %v6601
    %v6674 = vunpack.c.l.b16 %v6602
    %v6675 = vunpack.c.l.b16 %v6603
    %v6676 = vunpack.c.h.b16 %v6603
    %v6677 = vunpack.c.l.b16 %v6604
    %v6678 = vunpack.c.l.b16 %v6605
    %v6679 = vunpack.c.h.b16 %v6605
    %v6680 = vunpack.c.l.b16 %v6606
    %v6681 = vunpack.c.l.b16 %v6607
    %v6682 = vunpack.c.h.b16 %v6607
    %v6683 = vunpack.c.l.b16 %v6608
    %v6684 = vunpack.c.l.b16 %v6609
    %v6685 = vunpack.c.h.b16 %v6609
    %v6686 = vunpack.c.l.b16 %v6610
    %v6687 = vunpack.c.l.b16 %v6611
    %v6688 = vunpack.c.h.b16 %v6611
    %v6689 = vunpack.c.l.b16 %v6612
    %v6690 = vunpack.c.l.b16 %v6613
    %v6691 = vunpack.c.h.b16 %v6613
    %v6692 = vunpack.c.l.b16 %v6614
    %v6693 = vunpack.c.l.b16 %v6615
    %v6694 = vunpack.c.h.b16 %v6615
    %v6695 = vunpack.c.l.b16 %v6616
    %v6696 = vunpack.c.l.b16 %v6617
    %v6697 = vunpack.c.h.b16 %v6617
    %v6698 = vunpack.c.l.b16 %v6618
    %v6699 = vpack.c.b16 %v6654, %v6651
    %v6700 = vpack.c.b16 %v6655, %v6652
    %v6701 = vpack.c.b16 %v6656, %v6653
    %v6702 = vpack.c.b16 %v6660, %v6657
    %v6703 = vpack.c.b16 %v6661, %v6658
    %v6704 = vpack.c.b16 %v6662, %v6659
    %v6705 = vpack.c.b16 %v6666, %v6663
    %v6706 = vpack.c.b16 %v6667, %v6664
    %v6707 = vpack.c.b16 %v6668, %v6665
    %v6708 = vpack.c.b16 %v6672, %v6669
    %v6709 = vpack.c.b16 %v6673, %v6670
    %v6710 = vpack.c.b16 %v6674, %v6671
    %v6711 = vpack.c.b16 %v6678, %v6675
    %v6712 = vpack.c.b16 %v6679, %v6676
    %v6713 = vpack.c.b16 %v6680, %v6677
    %v6714 = vpack.c.b16 %v6684, %v6681
    %v6715 = vpack.c.b16 %v6685, %v6682
    %v6716 = vpack.c.b16 %v6686, %v6683
    %v6717 = vpack.c.b16 %v6690, %v6687
    %v6718 = vpack.c.b16 %v6691, %v6688
    %v6719 = vpack.c.b16 %v6692, %v6689
    %v6720 = vpack.c.b16 %v6696, %v6693
    %v6721 = vpack.c.b16 %v6697, %v6694
    %v6722 = vpack.c.b16 %v6698, %v6695
    %6747 = vmatpush.bf16.msra.mxu0 %v6720
    %6748 = vmatpush.bf16.msra.mxu0 %v6717
    %6749 = vmatpush.bf16.msra.mxu0 %v6714
    %6750 = vmatpush.bf16.msra.mxu0 %v6711
    %6751 = vmatpush.bf16.msra.mxu0 %v6708
    %6752 = vmatpush.bf16.msra.mxu0 %v6705
    %6753 = vmatpush.bf16.msra.mxu0 %v6702
    %6754 = vmatpush.bf16.msra.mxu0 %v6699
    %6755 = vmatmul.bf16.gmra.mxu0 %v5611
    %v6756 = vpop.f32.mrf.mxu0
    %v6757 = vadd.f32 0.0, %v6756
    %v6758 = vpop.f32.mrf.mxu0
    %6759 = vdwg.mxu0
    %6760 = vmatpush.bf16.msra.mxu0 %v6721
    %6761 = vmatpush.bf16.msra.mxu0 %v6718
    %6762 = vmatpush.bf16.msra.mxu0 %v6715
    %6763 = vmatpush.bf16.msra.mxu0 %v6712
    %6764 = vmatpush.bf16.msra.mxu0 %v6709
    %6765 = vmatpush.bf16.msra.mxu0 %v6706
    %6766 = vmatpush.bf16.msra.mxu0 %v6703
    %6767 = vmatpush.bf16.msra.mxu0 %v6700
    %6768 = vmatmul.bf16.gmra.mxu0 %v5611
    %v6769 = vpop.f32.mrf.mxu0
    %v6770 = vadd.f32 0.0, %v6769
    %v6771 = vpop.f32.mrf.mxu0
    %6772 = vdwg.mxu0
    %6773 = vmatpush.bf16.msra.mxu0 %v6722
    %6774 = vmatpush.bf16.msra.mxu0 %v6719
    %6775 = vmatpush.bf16.msra.mxu0 %v6716
    %6776 = vmatpush.bf16.msra.mxu0 %v6713
    %6777 = vmatpush.bf16.msra.mxu0 %v6710
    %6778 = vmatpush.bf16.msra.mxu0 %v6707
    %6779 = vmatpush.bf16.msra.mxu0 %v6704
    %6780 = vmatpush.bf16.msra.mxu0 %v6701
    %6781 = vmatmul.bf16.gmra.mxu0 %v5611
    %v6782 = vpop.f32.mrf.mxu0
    %v6783 = vadd.f32 0.0, %v6782
    %v6784 = vpop.f32.mrf.mxu0
    %6785 = vdwg.mxu0
    %v6786 = vadd.f32 %v6558, %v6757
    %v6787 = vadd.f32 %v6571, %v6770
    %v6788 = vxor.u32 %v6786, 2147483648
    %v6789 = vxor.u32 %v6787, 2147483648
    %v6790 = vmul.f32 %v6788, 1.442695
    %v6791 = vpow.pop %v6790
    %v6792 = vmul.f32 %v6789, 1.442695
    %v6793 = vpow.pop %v6792
    %v6794 = vadd.f32 %v6791, 1.0
    %v6795 = vadd.f32 %v6793, 1.0
    %v6796 = vrcp.pop %v6794
    %v6797 = vmul.f32 %v6794, %v6796
    %v6798 = vsub.f32 1.0, %v6797
    %v6799 = vmul.f32 %v6796, %v6798
    %v6800 = vadd.f32 %v6796, %v6799
    %vm6801 = vweird.f32 %v6794
    %vm6802 = vweird.f32 %v6796
    %vm6803 = vmor %vm6801, %vm6802
    %v6804 = vsel %vm6803, %v6796, %v6800
    %v6805 = vand.u32 2147483647, %v6794
    %vm6806 = vcmp.eq.f32.partialorder %v6805, 8.507059e+37
    %v6807 = vand.u32 %v6794, 2147483648
    %v6808 = vor.u32 1.1754944e-38, %v6807
    %v6809 = vsel %vm6806, %v6808, %v6804
    %v6810 = vmul.f32 1.0, %v6809
    %v6811 = vrcp.pop %v6795
    %v6812 = vmul.f32 %v6795, %v6811
    %v6813 = vsub.f32 1.0, %v6812
    %v6814 = vmul.f32 %v6811, %v6813
    %v6815 = vadd.f32 %v6811, %v6814
    %vm6816 = vweird.f32 %v6795
    %vm6817 = vweird.f32 %v6811
    %vm6818 = vmor %vm6816, %vm6817
    %v6819 = vsel %vm6818, %v6811, %v6815
    %v6820 = vand.u32 2147483647, %v6795
    %vm6821 = vcmp.eq.f32.partialorder %v6820, 8.507059e+37
    %v6822 = vand.u32 %v6795, 2147483648
    %v6823 = vor.u32 1.1754944e-38, %v6822
    %v6824 = vsel %vm6821, %v6823, %v6819
    %v6825 = vmul.f32 1.0, %v6824
    %v6826 = vadd.f32 %v6783, %v106
    %v6827 = vmul.f32 %v6810, %v6826
    %v6828 = vadd.f32 %v6584, %v6827
    %v6829 = vtanh.pop %v6828
    %v6830 = vsub.f32 1.0, %v6825
    %v6831 = vmul.f32 %v6830, %v6829
    %v6832 = vmul.f32 %v6825, %v5594
    %v6833 = vadd.f32 %v6831, %v6832
    %v6834 = vld [vmem:[#allocation8 + $0x48] sm:$0xf]
    %v6835 = vld [vmem:[#allocation8 + $0x94] sm:$0xf]
    %v6836 = vld [vmem:[#allocation8 + $0xe0] sm:$0xf]
    %v6837 = vld [vmem:[#allocation8 + $0x12c] sm:$0xf]
    %v6838 = vld [vmem:[#allocation8 + $0x178] sm:$0xf]
    %v6839 = vld [vmem:[#allocation8 + $0x1c4] sm:$0xf]
    %v6840 = vld [vmem:[#allocation8 + $0x210] sm:$0xf]
    %v6841 = vld [vmem:[#allocation8 + $0x25c] sm:$0xf]
    %v6842 = vld [vmem:[#allocation8 + $0x2a8] sm:$0xf]
    %v6843 = vld [vmem:[#allocation8 + $0x2f4] sm:$0xf]
    %v6844 = vld [vmem:[#allocation8 + $0x340] sm:$0xf]
    %v6845 = vld [vmem:[#allocation8 + $0x38c] sm:$0xf]
    %v6846 = vld [vmem:[#allocation8 + $0x3d8] sm:$0xf]
    %v6847 = vld [vmem:[#allocation8 + $0x424] sm:$0xf]
    %v6848 = vld [vmem:[#allocation8 + $0x470] sm:$0xf]
    %v6849 = vld [vmem:[#allocation8 + $0x4bc] sm:$0xf]
    %v6850 = vpack.c.bf16 %v6833, %v6833
    %v6867 = vunpack.c.l.b16 %v6834
    %v6868 = vunpack.c.l.b16 %v6835
    %v6869 = vunpack.c.l.b16 %v6836
    %v6870 = vunpack.c.l.b16 %v6837
    %v6871 = vunpack.c.l.b16 %v6838
    %v6872 = vunpack.c.l.b16 %v6839
    %v6873 = vunpack.c.l.b16 %v6840
    %v6874 = vunpack.c.l.b16 %v6841
    %v6875 = vunpack.c.l.b16 %v6842
    %v6876 = vunpack.c.l.b16 %v6843
    %v6877 = vunpack.c.l.b16 %v6844
    %v6878 = vunpack.c.l.b16 %v6845
    %v6879 = vunpack.c.l.b16 %v6846
    %v6880 = vunpack.c.l.b16 %v6847
    %v6881 = vunpack.c.l.b16 %v6848
    %v6882 = vunpack.c.l.b16 %v6849
    %v6883 = vpack.c.b16 %v6868, %v6867
    %v6884 = vpack.c.b16 %v6870, %v6869
    %v6885 = vpack.c.b16 %v6872, %v6871
    %v6886 = vpack.c.b16 %v6874, %v6873
    %v6887 = vpack.c.b16 %v6876, %v6875
    %v6888 = vpack.c.b16 %v6878, %v6877
    %v6889 = vpack.c.b16 %v6880, %v6879
    %v6890 = vpack.c.b16 %v6882, %v6881
    %6899 = vmatpush.bf16.msra.mxu0 %v6890
    %6900 = vmatpush.bf16.msra.mxu0 %v6889
    %6901 = vmatpush.bf16.msra.mxu0 %v6888
    %6902 = vmatpush.bf16.msra.mxu0 %v6887
    %6903 = vmatpush.bf16.msra.mxu0 %v6886
    %6904 = vmatpush.bf16.msra.mxu0 %v6885
    %6905 = vmatpush.bf16.msra.mxu0 %v6884
    %6906 = vmatpush.bf16.msra.mxu0 %v6883
    %6907 = vmatmul.bf16.gmra.mxu0 %v6850
    %v6908 = vpop.f32.mrf.mxu0
    %v6909 = vadd.f32 %v126, %v6908
    %v6910 = vpop.f32.mrf.mxu0
    %6911 = vdwg.mxu0
    %v6912 = vxor.u32 %v6909, 2147483648
    %v6913 = vmul.f32 %v6912, 1.442695
    %v6914 = vpow.pop %v6913
    %v6915 = vadd.f32 %v6914, 1.0
    %v6916 = vrcp.pop %v6915
    %v6917 = vmul.f32 %v6915, %v6916
    %v6918 = vsub.f32 1.0, %v6917
    %v6919 = vmul.f32 %v6916, %v6918
    %v6920 = vadd.f32 %v6916, %v6919
    %vm6921 = vweird.f32 %v6915
    %vm6922 = vweird.f32 %v6916
    %vm6923 = vmor %vm6921, %vm6922
    %v6924 = vsel %vm6923, %v6916, %v6920
    %v6925 = vand.u32 2147483647, %v6915
    %vm6926 = vcmp.eq.f32.partialorder %v6925, 8.507059e+37
    %v6927 = vand.u32 %v6915, 2147483648
    %v6928 = vor.u32 1.1754944e-38, %v6927
    %v6929 = vsel %vm6926, %v6928, %v6924
    %v6930 = vmul.f32 1.0, %v6929
    %6931 = vst [vmem:[#allocation11 + $0x20] sm:$0xff] %v6930
    %v6932 = vld [vmem:[#allocation8 + $0xc] sm:$0xff]
    %v6933 = vld [vmem:[#allocation8 + $0x14] sm:$0xf]
    %v6934 = vld [vmem:[#allocation8 + $0x58] sm:$0xff]
    %v6935 = vld [vmem:[#allocation8 + $0x60] sm:$0xf]
    %v6936 = vld [vmem:[#allocation8 + $0xa4] sm:$0xff]
    %v6937 = vld [vmem:[#allocation8 + $0xac] sm:$0xf]
    %v6938 = vld [vmem:[#allocation8 + $0xf0] sm:$0xff]
    %v6939 = vld [vmem:[#allocation8 + $0xf8] sm:$0xf]
    %v6940 = vld [vmem:[#allocation8 + $0x13c] sm:$0xff]
    %v6941 = vld [vmem:[#allocation8 + $0x144] sm:$0xf]
    %v6942 = vld [vmem:[#allocation8 + $0x188] sm:$0xff]
    %v6943 = vld [vmem:[#allocation8 + $0x190] sm:$0xf]
    %v6944 = vld [vmem:[#allocation8 + $0x1d4] sm:$0xff]
    %v6945 = vld [vmem:[#allocation8 + $0x1dc] sm:$0xf]
    %v6946 = vld [vmem:[#allocation8 + $0x220] sm:$0xff]
    %v6947 = vld [vmem:[#allocation8 + $0x228] sm:$0xf]
    %v6948 = vld [vmem:[#allocation8 + $0x26c] sm:$0xff]
    %v6949 = vld [vmem:[#allocation8 + $0x274] sm:$0xf]
    %v6950 = vld [vmem:[#allocation8 + $0x2b8] sm:$0xff]
    %v6951 = vld [vmem:[#allocation8 + $0x2c0] sm:$0xf]
    %v6952 = vld [vmem:[#allocation8 + $0x304] sm:$0xff]
    %v6953 = vld [vmem:[#allocation8 + $0x30c] sm:$0xf]
    %v6954 = vld [vmem:[#allocation8 + $0x350] sm:$0xff]
    %v6955 = vld [vmem:[#allocation8 + $0x358] sm:$0xf]
    %v6956 = vld [vmem:[#allocation8 + $0x39c] sm:$0xff]
    %v6957 = vld [vmem:[#allocation8 + $0x3a4] sm:$0xf]
    %v6958 = vld [vmem:[#allocation8 + $0x3e8] sm:$0xff]
    %v6959 = vld [vmem:[#allocation8 + $0x3f0] sm:$0xf]
    %v6960 = vld [vmem:[#allocation8 + $0x434] sm:$0xff]
    %v6961 = vld [vmem:[#allocation8 + $0x43c] sm:$0xf]
    %v6962 = vld [vmem:[#allocation8 + $0x480] sm:$0xff]
    %v6963 = vld [vmem:[#allocation8 + $0x488] sm:$0xf]
    %v6964 = vpack.c.bf16 %v5940, %v5940
    %v6997 = vunpack.c.l.b16 %v6932
    %v6998 = vunpack.c.h.b16 %v6932
    %v6999 = vunpack.c.l.b16 %v6933
    %v7000 = vunpack.c.l.b16 %v6934
    %v7001 = vunpack.c.h.b16 %v6934
    %v7002 = vunpack.c.l.b16 %v6935
    %v7003 = vunpack.c.l.b16 %v6936
    %v7004 = vunpack.c.h.b16 %v6936
    %v7005 = vunpack.c.l.b16 %v6937
    %v7006 = vunpack.c.l.b16 %v6938
    %v7007 = vunpack.c.h.b16 %v6938
    %v7008 = vunpack.c.l.b16 %v6939
    %v7009 = vunpack.c.l.b16 %v6940
    %v7010 = vunpack.c.h.b16 %v6940
    %v7011 = vunpack.c.l.b16 %v6941
    %v7012 = vunpack.c.l.b16 %v6942
    %v7013 = vunpack.c.h.b16 %v6942
    %v7014 = vunpack.c.l.b16 %v6943
    %v7015 = vunpack.c.l.b16 %v6944
    %v7016 = vunpack.c.h.b16 %v6944
    %v7017 = vunpack.c.l.b16 %v6945
    %v7018 = vunpack.c.l.b16 %v6946
    %v7019 = vunpack.c.h.b16 %v6946
    %v7020 = vunpack.c.l.b16 %v6947
    %v7021 = vunpack.c.l.b16 %v6948
    %v7022 = vunpack.c.h.b16 %v6948
    %v7023 = vunpack.c.l.b16 %v6949
    %v7024 = vunpack.c.l.b16 %v6950
    %v7025 = vunpack.c.h.b16 %v6950
    %v7026 = vunpack.c.l.b16 %v6951
    %v7027 = vunpack.c.l.b16 %v6952
    %v7028 = vunpack.c.h.b16 %v6952
    %v7029 = vunpack.c.l.b16 %v6953
    %v7030 = vunpack.c.l.b16 %v6954
    %v7031 = vunpack.c.h.b16 %v6954
    %v7032 = vunpack.c.l.b16 %v6955
    %v7033 = vunpack.c.l.b16 %v6956
    %v7034 = vunpack.c.h.b16 %v6956
    %v7035 = vunpack.c.l.b16 %v6957
    %v7036 = vunpack.c.l.b16 %v6958
    %v7037 = vunpack.c.h.b16 %v6958
    %v7038 = vunpack.c.l.b16 %v6959
    %v7039 = vunpack.c.l.b16 %v6960
    %v7040 = vunpack.c.h.b16 %v6960
    %v7041 = vunpack.c.l.b16 %v6961
    %v7042 = vunpack.c.l.b16 %v6962
    %v7043 = vunpack.c.h.b16 %v6962
    %v7044 = vunpack.c.l.b16 %v6963
    %v7045 = vpack.c.b16 %v7000, %v6997
    %v7046 = vpack.c.b16 %v7001, %v6998
    %v7047 = vpack.c.b16 %v7002, %v6999
    %v7048 = vpack.c.b16 %v7006, %v7003
    %v7049 = vpack.c.b16 %v7007, %v7004
    %v7050 = vpack.c.b16 %v7008, %v7005
    %v7051 = vpack.c.b16 %v7012, %v7009
    %v7052 = vpack.c.b16 %v7013, %v7010
    %v7053 = vpack.c.b16 %v7014, %v7011
    %v7054 = vpack.c.b16 %v7018, %v7015
    %v7055 = vpack.c.b16 %v7019, %v7016
    %v7056 = vpack.c.b16 %v7020, %v7017
    %v7057 = vpack.c.b16 %v7024, %v7021
    %v7058 = vpack.c.b16 %v7025, %v7022
    %v7059 = vpack.c.b16 %v7026, %v7023
    %v7060 = vpack.c.b16 %v7030, %v7027
    %v7061 = vpack.c.b16 %v7031, %v7028
    %v7062 = vpack.c.b16 %v7032, %v7029
    %v7063 = vpack.c.b16 %v7036, %v7033
    %v7064 = vpack.c.b16 %v7037, %v7034
    %v7065 = vpack.c.b16 %v7038, %v7035
    %v7066 = vpack.c.b16 %v7042, %v7039
    %v7067 = vpack.c.b16 %v7043, %v7040
    %v7068 = vpack.c.b16 %v7044, %v7041
    %7093 = vmatpush.bf16.msra.mxu0 %v7066
    %7094 = vmatpush.bf16.msra.mxu0 %v7063
    %7095 = vmatpush.bf16.msra.mxu0 %v7060
    %7096 = vmatpush.bf16.msra.mxu0 %v7057
    %7097 = vmatpush.bf16.msra.mxu0 %v7054
    %7098 = vmatpush.bf16.msra.mxu0 %v7051
    %7099 = vmatpush.bf16.msra.mxu0 %v7048
    %7100 = vmatpush.bf16.msra.mxu0 %v7045
    %7101 = vmatmul.bf16.gmra.mxu0 %v6964
    %v7102 = vpop.f32.mrf.mxu0
    %v7103 = vadd.f32 0.0, %v7102
    %v7104 = vpop.f32.mrf.mxu0
    %7105 = vdwg.mxu0
    %7106 = vmatpush.bf16.msra.mxu0 %v7067
    %7107 = vmatpush.bf16.msra.mxu0 %v7064
    %7108 = vmatpush.bf16.msra.mxu0 %v7061
    %7109 = vmatpush.bf16.msra.mxu0 %v7058
    %7110 = vmatpush.bf16.msra.mxu0 %v7055
    %7111 = vmatpush.bf16.msra.mxu0 %v7052
    %7112 = vmatpush.bf16.msra.mxu0 %v7049
    %7113 = vmatpush.bf16.msra.mxu0 %v7046
    %7114 = vmatmul.bf16.gmra.mxu0 %v6964
    %v7115 = vpop.f32.mrf.mxu0
    %v7116 = vadd.f32 0.0, %v7115
    %v7117 = vpop.f32.mrf.mxu0
    %7118 = vdwg.mxu0
    %7119 = vmatpush.bf16.msra.mxu0 %v7068
    %7120 = vmatpush.bf16.msra.mxu0 %v7065
    %7121 = vmatpush.bf16.msra.mxu0 %v7062
    %7122 = vmatpush.bf16.msra.mxu0 %v7059
    %7123 = vmatpush.bf16.msra.mxu0 %v7056
    %7124 = vmatpush.bf16.msra.mxu0 %v7053
    %7125 = vmatpush.bf16.msra.mxu0 %v7050
    %7126 = vmatpush.bf16.msra.mxu0 %v7047
    %7127 = vmatmul.bf16.gmra.mxu0 %v6964
    %v7128 = vpop.f32.mrf.mxu0
    %v7129 = vadd.f32 0.0, %v7128
    %v7130 = vpop.f32.mrf.mxu0
    %7131 = vdwg.mxu0
    %v7132 = vadd.f32 %v401, %v7103
    %v7133 = vadd.f32 %v414, %v7116
    %v7134 = vxor.u32 %v7132, 2147483648
    %v7135 = vxor.u32 %v7133, 2147483648
    %v7136 = vmul.f32 %v7134, 1.442695
    %v7137 = vpow.pop %v7136
    %v7138 = vmul.f32 %v7135, 1.442695
    %v7139 = vpow.pop %v7138
    %v7140 = vadd.f32 %v7137, 1.0
    %v7141 = vadd.f32 %v7139, 1.0
    %v7142 = vrcp.pop %v7140
    %v7143 = vmul.f32 %v7140, %v7142
    %v7144 = vsub.f32 1.0, %v7143
    %v7145 = vmul.f32 %v7142, %v7144
    %v7146 = vadd.f32 %v7142, %v7145
    %vm7147 = vweird.f32 %v7140
    %vm7148 = vweird.f32 %v7142
    %vm7149 = vmor %vm7147, %vm7148
    %v7150 = vsel %vm7149, %v7142, %v7146
    %v7151 = vand.u32 2147483647, %v7140
    %vm7152 = vcmp.eq.f32.partialorder %v7151, 8.507059e+37
    %v7153 = vand.u32 %v7140, 2147483648
    %v7154 = vor.u32 1.1754944e-38, %v7153
    %v7155 = vsel %vm7152, %v7154, %v7150
    %v7156 = vmul.f32 1.0, %v7155
    %v7157 = vrcp.pop %v7141
    %v7158 = vmul.f32 %v7141, %v7157
    %v7159 = vsub.f32 1.0, %v7158
    %v7160 = vmul.f32 %v7157, %v7159
    %v7161 = vadd.f32 %v7157, %v7160
    %vm7162 = vweird.f32 %v7141
    %vm7163 = vweird.f32 %v7157
    %vm7164 = vmor %vm7162, %vm7163
    %v7165 = vsel %vm7164, %v7157, %v7161
    %v7166 = vand.u32 2147483647, %v7141
    %vm7167 = vcmp.eq.f32.partialorder %v7166, 8.507059e+37
    %v7168 = vand.u32 %v7141, 2147483648
    %v7169 = vor.u32 1.1754944e-38, %v7168
    %v7170 = vsel %vm7167, %v7169, %v7165
    %v7171 = vmul.f32 1.0, %v7170
    %v7172 = vadd.f32 %v7129, %v98
    %v7173 = vmul.f32 %v7156, %v7172
    %v7174 = vadd.f32 %v427, %v7173
    %v7175 = vtanh.pop %v7174
    %v7176 = vsub.f32 1.0, %v7171
    %v7177 = vmul.f32 %v7176, %v7175
    %v7178 = vmul.f32 %v7171, %v5940
    %v7179 = vadd.f32 %v7177, %v7178
    %v7180 = vld [vmem:[#allocation8 + $0x18] sm:$0xff]
    %v7181 = vld [vmem:[#allocation8 + $0x20] sm:$0xf]
    %v7182 = vld [vmem:[#allocation8 + $0x64] sm:$0xff]
    %v7183 = vld [vmem:[#allocation8 + $0x6c] sm:$0xf]
    %v7184 = vld [vmem:[#allocation8 + $0xb0] sm:$0xff]
    %v7185 = vld [vmem:[#allocation8 + $0xb8] sm:$0xf]
    %v7186 = vld [vmem:[#allocation8 + $0xfc] sm:$0xff]
    %v7187 = vld [vmem:[#allocation8 + $0x104] sm:$0xf]
    %v7188 = vld [vmem:[#allocation8 + $0x148] sm:$0xff]
    %v7189 = vld [vmem:[#allocation8 + $0x150] sm:$0xf]
    %v7190 = vld [vmem:[#allocation8 + $0x194] sm:$0xff]
    %v7191 = vld [vmem:[#allocation8 + $0x19c] sm:$0xf]
    %v7192 = vld [vmem:[#allocation8 + $0x1e0] sm:$0xff]
    %v7193 = vld [vmem:[#allocation8 + $0x1e8] sm:$0xf]
    %v7194 = vld [vmem:[#allocation8 + $0x22c] sm:$0xff]
    %v7195 = vld [vmem:[#allocation8 + $0x234] sm:$0xf]
    %v7196 = vld [vmem:[#allocation8 + $0x278] sm:$0xff]
    %v7197 = vld [vmem:[#allocation8 + $0x280] sm:$0xf]
    %v7198 = vld [vmem:[#allocation8 + $0x2c4] sm:$0xff]
    %v7199 = vld [vmem:[#allocation8 + $0x2cc] sm:$0xf]
    %v7200 = vld [vmem:[#allocation8 + $0x310] sm:$0xff]
    %v7201 = vld [vmem:[#allocation8 + $0x318] sm:$0xf]
    %v7202 = vld [vmem:[#allocation8 + $0x35c] sm:$0xff]
    %v7203 = vld [vmem:[#allocation8 + $0x364] sm:$0xf]
    %v7204 = vld [vmem:[#allocation8 + $0x3a8] sm:$0xff]
    %v7205 = vld [vmem:[#allocation8 + $0x3b0] sm:$0xf]
    %v7206 = vld [vmem:[#allocation8 + $0x3f4] sm:$0xff]
    %v7207 = vld [vmem:[#allocation8 + $0x3fc] sm:$0xf]
    %v7208 = vld [vmem:[#allocation8 + $0x440] sm:$0xff]
    %v7209 = vld [vmem:[#allocation8 + $0x448] sm:$0xf]
    %v7210 = vld [vmem:[#allocation8 + $0x48c] sm:$0xff]
    %v7211 = vld [vmem:[#allocation8 + $0x494] sm:$0xf]
    %v7244 = vunpack.c.l.b16 %v7180
    %v7245 = vunpack.c.h.b16 %v7180
    %v7246 = vunpack.c.l.b16 %v7181
    %v7247 = vunpack.c.l.b16 %v7182
    %v7248 = vunpack.c.h.b16 %v7182
    %v7249 = vunpack.c.l.b16 %v7183
    %v7250 = vunpack.c.l.b16 %v7184
    %v7251 = vunpack.c.h.b16 %v7184
    %v7252 = vunpack.c.l.b16 %v7185
    %v7253 = vunpack.c.l.b16 %v7186
    %v7254 = vunpack.c.h.b16 %v7186
    %v7255 = vunpack.c.l.b16 %v7187
    %v7256 = vunpack.c.l.b16 %v7188
    %v7257 = vunpack.c.h.b16 %v7188
    %v7258 = vunpack.c.l.b16 %v7189
    %v7259 = vunpack.c.l.b16 %v7190
    %v7260 = vunpack.c.h.b16 %v7190
    %v7261 = vunpack.c.l.b16 %v7191
    %v7262 = vunpack.c.l.b16 %v7192
    %v7263 = vunpack.c.h.b16 %v7192
    %v7264 = vunpack.c.l.b16 %v7193
    %v7265 = vunpack.c.l.b16 %v7194
    %v7266 = vunpack.c.h.b16 %v7194
    %v7267 = vunpack.c.l.b16 %v7195
    %v7268 = vunpack.c.l.b16 %v7196
    %v7269 = vunpack.c.h.b16 %v7196
    %v7270 = vunpack.c.l.b16 %v7197
    %v7271 = vunpack.c.l.b16 %v7198
    %v7272 = vunpack.c.h.b16 %v7198
    %v7273 = vunpack.c.l.b16 %v7199
    %v7274 = vunpack.c.l.b16 %v7200
    %v7275 = vunpack.c.h.b16 %v7200
    %v7276 = vunpack.c.l.b16 %v7201
    %v7277 = vunpack.c.l.b16 %v7202
    %v7278 = vunpack.c.h.b16 %v7202
    %v7279 = vunpack.c.l.b16 %v7203
    %v7280 = vunpack.c.l.b16 %v7204
    %v7281 = vunpack.c.h.b16 %v7204
    %v7282 = vunpack.c.l.b16 %v7205
    %v7283 = vunpack.c.l.b16 %v7206
    %v7284 = vunpack.c.h.b16 %v7206
    %v7285 = vunpack.c.l.b16 %v7207
    %v7286 = vunpack.c.l.b16 %v7208
    %v7287 = vunpack.c.h.b16 %v7208
    %v7288 = vunpack.c.l.b16 %v7209
    %v7289 = vunpack.c.l.b16 %v7210
    %v7290 = vunpack.c.h.b16 %v7210
    %v7291 = vunpack.c.l.b16 %v7211
    %v7292 = vpack.c.b16 %v7247, %v7244
    %v7293 = vpack.c.b16 %v7248, %v7245
    %v7294 = vpack.c.b16 %v7249, %v7246
    %v7295 = vpack.c.b16 %v7253, %v7250
    %v7296 = vpack.c.b16 %v7254, %v7251
    %v7297 = vpack.c.b16 %v7255, %v7252
    %v7298 = vpack.c.b16 %v7259, %v7256
    %v7299 = vpack.c.b16 %v7260, %v7257
    %v7300 = vpack.c.b16 %v7261, %v7258
    %v7301 = vpack.c.b16 %v7265, %v7262
    %v7302 = vpack.c.b16 %v7266, %v7263
    %v7303 = vpack.c.b16 %v7267, %v7264
    %v7304 = vpack.c.b16 %v7271, %v7268
    %v7305 = vpack.c.b16 %v7272, %v7269
    %v7306 = vpack.c.b16 %v7273, %v7270
    %v7307 = vpack.c.b16 %v7277, %v7274
    %v7308 = vpack.c.b16 %v7278, %v7275
    %v7309 = vpack.c.b16 %v7279, %v7276
    %v7310 = vpack.c.b16 %v7283, %v7280
    %v7311 = vpack.c.b16 %v7284, %v7281
    %v7312 = vpack.c.b16 %v7285, %v7282
    %v7313 = vpack.c.b16 %v7289, %v7286
    %v7314 = vpack.c.b16 %v7290, %v7287
    %v7315 = vpack.c.b16 %v7291, %v7288
    %7340 = vmatpush.bf16.msra.mxu0 %v7313
    %7341 = vmatpush.bf16.msra.mxu0 %v7310
    %7342 = vmatpush.bf16.msra.mxu0 %v7307
    %7343 = vmatpush.bf16.msra.mxu0 %v7304
    %7344 = vmatpush.bf16.msra.mxu0 %v7301
    %7345 = vmatpush.bf16.msra.mxu0 %v7298
    %7346 = vmatpush.bf16.msra.mxu0 %v7295
    %7347 = vmatpush.bf16.msra.mxu0 %v7292
    %7348 = vmatmul.bf16.gmra.mxu0 %v6964
    %v7349 = vpop.f32.mrf.mxu0
    %v7350 = vadd.f32 %v110, %v7349
    %v7351 = vpop.f32.mrf.mxu0
    %7352 = vdwg.mxu0
    %7353 = vmatpush.bf16.msra.mxu0 %v7314
    %7354 = vmatpush.bf16.msra.mxu0 %v7311
    %7355 = vmatpush.bf16.msra.mxu0 %v7308
    %7356 = vmatpush.bf16.msra.mxu0 %v7305
    %7357 = vmatpush.bf16.msra.mxu0 %v7302
    %7358 = vmatpush.bf16.msra.mxu0 %v7299
    %7359 = vmatpush.bf16.msra.mxu0 %v7296
    %7360 = vmatpush.bf16.msra.mxu0 %v7293
    %7361 = vmatmul.bf16.gmra.mxu0 %v6964
    %v7362 = vpop.f32.mrf.mxu0
    %v7363 = vadd.f32 %v111, %v7362
    %v7364 = vpop.f32.mrf.mxu0
    %7365 = vdwg.mxu0
    %7366 = vmatpush.bf16.msra.mxu0 %v7315
    %7367 = vmatpush.bf16.msra.mxu0 %v7312
    %7368 = vmatpush.bf16.msra.mxu0 %v7309
    %7369 = vmatpush.bf16.msra.mxu0 %v7306
    %7370 = vmatpush.bf16.msra.mxu0 %v7303
    %7371 = vmatpush.bf16.msra.mxu0 %v7300
    %7372 = vmatpush.bf16.msra.mxu0 %v7297
    %7373 = vmatpush.bf16.msra.mxu0 %v7294
    %7374 = vmatmul.bf16.gmra.mxu0 %v6964
    %v7375 = vpop.f32.mrf.mxu0
    %v7376 = vadd.f32 %v112, %v7375
    %v7377 = vpop.f32.mrf.mxu0
    %7378 = vdwg.mxu0
    %v7379 = vld [vmem:[#allocation8 + $0x24] sm:$0xff]
    %v7380 = vld [vmem:[#allocation8 + $0x2c] sm:$0xf]
    %v7381 = vld [vmem:[#allocation8 + $0x70] sm:$0xff]
    %v7382 = vld [vmem:[#allocation8 + $0x78] sm:$0xf]
    %v7383 = vld [vmem:[#allocation8 + $0xbc] sm:$0xff]
    %v7384 = vld [vmem:[#allocation8 + $0xc4] sm:$0xf]
    %v7385 = vld [vmem:[#allocation8 + $0x108] sm:$0xff]
    %v7386 = vld [vmem:[#allocation8 + $0x110] sm:$0xf]
    %v7387 = vld [vmem:[#allocation8 + $0x154] sm:$0xff]
    %v7388 = vld [vmem:[#allocation8 + $0x15c] sm:$0xf]
    %v7389 = vld [vmem:[#allocation8 + $0x1a0] sm:$0xff]
    %v7390 = vld [vmem:[#allocation8 + $0x1a8] sm:$0xf]
    %v7391 = vld [vmem:[#allocation8 + $0x1ec] sm:$0xff]
    %v7392 = vld [vmem:[#allocation8 + $0x1f4] sm:$0xf]
    %v7393 = vld [vmem:[#allocation8 + $0x238] sm:$0xff]
    %v7394 = vld [vmem:[#allocation8 + $0x240] sm:$0xf]
    %v7395 = vld [vmem:[#allocation8 + $0x284] sm:$0xff]
    %v7396 = vld [vmem:[#allocation8 + $0x28c] sm:$0xf]
    %v7397 = vld [vmem:[#allocation8 + $0x2d0] sm:$0xff]
    %v7398 = vld [vmem:[#allocation8 + $0x2d8] sm:$0xf]
    %v7399 = vld [vmem:[#allocation8 + $0x31c] sm:$0xff]
    %v7400 = vld [vmem:[#allocation8 + $0x324] sm:$0xf]
    %v7401 = vld [vmem:[#allocation8 + $0x368] sm:$0xff]
    %v7402 = vld [vmem:[#allocation8 + $0x370] sm:$0xf]
    %v7403 = vld [vmem:[#allocation8 + $0x3b4] sm:$0xff]
    %v7404 = vld [vmem:[#allocation8 + $0x3bc] sm:$0xf]
    %v7405 = vld [vmem:[#allocation8 + $0x400] sm:$0xff]
    %v7406 = vld [vmem:[#allocation8 + $0x408] sm:$0xf]
    %v7407 = vld [vmem:[#allocation8 + $0x44c] sm:$0xff]
    %v7408 = vld [vmem:[#allocation8 + $0x454] sm:$0xf]
    %v7409 = vld [vmem:[#allocation8 + $0x498] sm:$0xff]
    %v7410 = vld [vmem:[#allocation8 + $0x4a0] sm:$0xf]
    %v7411 = vpack.c.bf16 %v6387, %v6387
    %v7444 = vunpack.c.l.b16 %v7379
    %v7445 = vunpack.c.h.b16 %v7379
    %v7446 = vunpack.c.l.b16 %v7380
    %v7447 = vunpack.c.l.b16 %v7381
    %v7448 = vunpack.c.h.b16 %v7381
    %v7449 = vunpack.c.l.b16 %v7382
    %v7450 = vunpack.c.l.b16 %v7383
    %v7451 = vunpack.c.h.b16 %v7383
    %v7452 = vunpack.c.l.b16 %v7384
    %v7453 = vunpack.c.l.b16 %v7385
    %v7454 = vunpack.c.h.b16 %v7385
    %v7455 = vunpack.c.l.b16 %v7386
    %v7456 = vunpack.c.l.b16 %v7387
    %v7457 = vunpack.c.h.b16 %v7387
    %v7458 = vunpack.c.l.b16 %v7388
    %v7459 = vunpack.c.l.b16 %v7389
    %v7460 = vunpack.c.h.b16 %v7389
    %v7461 = vunpack.c.l.b16 %v7390
    %v7462 = vunpack.c.l.b16 %v7391
    %v7463 = vunpack.c.h.b16 %v7391
    %v7464 = vunpack.c.l.b16 %v7392
    %v7465 = vunpack.c.l.b16 %v7393
    %v7466 = vunpack.c.h.b16 %v7393
    %v7467 = vunpack.c.l.b16 %v7394
    %v7468 = vunpack.c.l.b16 %v7395
    %v7469 = vunpack.c.h.b16 %v7395
    %v7470 = vunpack.c.l.b16 %v7396
    %v7471 = vunpack.c.l.b16 %v7397
    %v7472 = vunpack.c.h.b16 %v7397
    %v7473 = vunpack.c.l.b16 %v7398
    %v7474 = vunpack.c.l.b16 %v7399
    %v7475 = vunpack.c.h.b16 %v7399
    %v7476 = vunpack.c.l.b16 %v7400
    %v7477 = vunpack.c.l.b16 %v7401
    %v7478 = vunpack.c.h.b16 %v7401
    %v7479 = vunpack.c.l.b16 %v7402
    %v7480 = vunpack.c.l.b16 %v7403
    %v7481 = vunpack.c.h.b16 %v7403
    %v7482 = vunpack.c.l.b16 %v7404
    %v7483 = vunpack.c.l.b16 %v7405
    %v7484 = vunpack.c.h.b16 %v7405
    %v7485 = vunpack.c.l.b16 %v7406
    %v7486 = vunpack.c.l.b16 %v7407
    %v7487 = vunpack.c.h.b16 %v7407
    %v7488 = vunpack.c.l.b16 %v7408
    %v7489 = vunpack.c.l.b16 %v7409
    %v7490 = vunpack.c.h.b16 %v7409
    %v7491 = vunpack.c.l.b16 %v7410
    %v7492 = vpack.c.b16 %v7447, %v7444
    %v7493 = vpack.c.b16 %v7448, %v7445
    %v7494 = vpack.c.b16 %v7449, %v7446
    %v7495 = vpack.c.b16 %v7453, %v7450
    %v7496 = vpack.c.b16 %v7454, %v7451
    %v7497 = vpack.c.b16 %v7455, %v7452
    %v7498 = vpack.c.b16 %v7459, %v7456
    %v7499 = vpack.c.b16 %v7460, %v7457
    %v7500 = vpack.c.b16 %v7461, %v7458
    %v7501 = vpack.c.b16 %v7465, %v7462
    %v7502 = vpack.c.b16 %v7466, %v7463
    %v7503 = vpack.c.b16 %v7467, %v7464
    %v7504 = vpack.c.b16 %v7471, %v7468
    %v7505 = vpack.c.b16 %v7472, %v7469
    %v7506 = vpack.c.b16 %v7473, %v7470
    %v7507 = vpack.c.b16 %v7477, %v7474
    %v7508 = vpack.c.b16 %v7478, %v7475
    %v7509 = vpack.c.b16 %v7479, %v7476
    %v7510 = vpack.c.b16 %v7483, %v7480
    %v7511 = vpack.c.b16 %v7484, %v7481
    %v7512 = vpack.c.b16 %v7485, %v7482
    %v7513 = vpack.c.b16 %v7489, %v7486
    %v7514 = vpack.c.b16 %v7490, %v7487
    %v7515 = vpack.c.b16 %v7491, %v7488
    %7540 = vmatpush.bf16.msra.mxu0 %v7513
    %7541 = vmatpush.bf16.msra.mxu0 %v7510
    %7542 = vmatpush.bf16.msra.mxu0 %v7507
    %7543 = vmatpush.bf16.msra.mxu0 %v7504
    %7544 = vmatpush.bf16.msra.mxu0 %v7501
    %7545 = vmatpush.bf16.msra.mxu0 %v7498
    %7546 = vmatpush.bf16.msra.mxu0 %v7495
    %7547 = vmatpush.bf16.msra.mxu0 %v7492
    %7548 = vmatmul.bf16.gmra.mxu0 %v7411
    %v7549 = vpop.f32.mrf.mxu0
    %v7550 = vadd.f32 0.0, %v7549
    %v7551 = vpop.f32.mrf.mxu0
    %7552 = vdwg.mxu0
    %7553 = vmatpush.bf16.msra.mxu0 %v7514
    %7554 = vmatpush.bf16.msra.mxu0 %v7511
    %7555 = vmatpush.bf16.msra.mxu0 %v7508
    %7556 = vmatpush.bf16.msra.mxu0 %v7505
    %7557 = vmatpush.bf16.msra.mxu0 %v7502
    %7558 = vmatpush.bf16.msra.mxu0 %v7499
    %7559 = vmatpush.bf16.msra.mxu0 %v7496
    %7560 = vmatpush.bf16.msra.mxu0 %v7493
    %7561 = vmatmul.bf16.gmra.mxu0 %v7411
    %v7562 = vpop.f32.mrf.mxu0
    %v7563 = vadd.f32 0.0, %v7562
    %v7564 = vpop.f32.mrf.mxu0
    %7565 = vdwg.mxu0
    %7566 = vmatpush.bf16.msra.mxu0 %v7515
    %7567 = vmatpush.bf16.msra.mxu0 %v7512
    %7568 = vmatpush.bf16.msra.mxu0 %v7509
    %7569 = vmatpush.bf16.msra.mxu0 %v7506
    %7570 = vmatpush.bf16.msra.mxu0 %v7503
    %7571 = vmatpush.bf16.msra.mxu0 %v7500
    %7572 = vmatpush.bf16.msra.mxu0 %v7497
    %7573 = vmatpush.bf16.msra.mxu0 %v7494
    %7574 = vmatmul.bf16.gmra.mxu0 %v7411
    %v7575 = vpop.f32.mrf.mxu0
    %v7576 = vadd.f32 0.0, %v7575
    %v7577 = vpop.f32.mrf.mxu0
    %7578 = vdwg.mxu0
    %v7579 = vadd.f32 %v7350, %v7550
    %v7580 = vadd.f32 %v7363, %v7563
    %v7581 = vxor.u32 %v7579, 2147483648
    %v7582 = vxor.u32 %v7580, 2147483648
    %v7583 = vmul.f32 %v7581, 1.442695
    %v7584 = vpow.pop %v7583
    %v7585 = vmul.f32 %v7582, 1.442695
    %v7586 = vpow.pop %v7585
    %v7587 = vadd.f32 %v7584, 1.0
    %v7588 = vadd.f32 %v7586, 1.0
    %v7589 = vrcp.pop %v7587
    %v7590 = vmul.f32 %v7587, %v7589
    %v7591 = vsub.f32 1.0, %v7590
    %v7592 = vmul.f32 %v7589, %v7591
    %v7593 = vadd.f32 %v7589, %v7592
    %vm7594 = vweird.f32 %v7587
    %vm7595 = vweird.f32 %v7589
    %vm7596 = vmor %vm7594, %vm7595
    %v7597 = vsel %vm7596, %v7589, %v7593
    %v7598 = vand.u32 2147483647, %v7587
    %vm7599 = vcmp.eq.f32.partialorder %v7598, 8.507059e+37
    %v7600 = vand.u32 %v7587, 2147483648
    %v7601 = vor.u32 1.1754944e-38, %v7600
    %v7602 = vsel %vm7599, %v7601, %v7597
    %v7603 = vmul.f32 1.0, %v7602
    %v7604 = vrcp.pop %v7588
    %v7605 = vmul.f32 %v7588, %v7604
    %v7606 = vsub.f32 1.0, %v7605
    %v7607 = vmul.f32 %v7604, %v7606
    %v7608 = vadd.f32 %v7604, %v7607
    %vm7609 = vweird.f32 %v7588
    %vm7610 = vweird.f32 %v7604
    %vm7611 = vmor %vm7609, %vm7610
    %v7612 = vsel %vm7611, %v7604, %v7608
    %v7613 = vand.u32 2147483647, %v7588
    %vm7614 = vcmp.eq.f32.partialorder %v7613, 8.507059e+37
    %v7615 = vand.u32 %v7588, 2147483648
    %v7616 = vor.u32 1.1754944e-38, %v7615
    %v7617 = vsel %vm7614, %v7616, %v7612
    %v7618 = vmul.f32 1.0, %v7617
    %v7619 = vadd.f32 %v7576, %v102
    %v7620 = vmul.f32 %v7603, %v7619
    %v7621 = vadd.f32 %v7376, %v7620
    %v7622 = vtanh.pop %v7621
    %v7623 = vsub.f32 1.0, %v7618
    %v7624 = vmul.f32 %v7623, %v7622
    %v7625 = vmul.f32 %v7618, %v6387
    %v7626 = vadd.f32 %v7624, %v7625
    %v7627 = vld [vmem:[#allocation8 + $0x30] sm:$0xff]
    %v7628 = vld [vmem:[#allocation8 + $0x38] sm:$0xf]
    %v7629 = vld [vmem:[#allocation8 + $0x7c] sm:$0xff]
    %v7630 = vld [vmem:[#allocation8 + $0x84] sm:$0xf]
    %v7631 = vld [vmem:[#allocation8 + $0xc8] sm:$0xff]
    %v7632 = vld [vmem:[#allocation8 + $0xd0] sm:$0xf]
    %v7633 = vld [vmem:[#allocation8 + $0x114] sm:$0xff]
    %v7634 = vld [vmem:[#allocation8 + $0x11c] sm:$0xf]
    %v7635 = vld [vmem:[#allocation8 + $0x160] sm:$0xff]
    %v7636 = vld [vmem:[#allocation8 + $0x168] sm:$0xf]
    %v7637 = vld [vmem:[#allocation8 + $0x1ac] sm:$0xff]
    %v7638 = vld [vmem:[#allocation8 + $0x1b4] sm:$0xf]
    %v7639 = vld [vmem:[#allocation8 + $0x1f8] sm:$0xff]
    %v7640 = vld [vmem:[#allocation8 + $0x200] sm:$0xf]
    %v7641 = vld [vmem:[#allocation8 + $0x244] sm:$0xff]
    %v7642 = vld [vmem:[#allocation8 + $0x24c] sm:$0xf]
    %v7643 = vld [vmem:[#allocation8 + $0x290] sm:$0xff]
    %v7644 = vld [vmem:[#allocation8 + $0x298] sm:$0xf]
    %v7645 = vld [vmem:[#allocation8 + $0x2dc] sm:$0xff]
    %v7646 = vld [vmem:[#allocation8 + $0x2e4] sm:$0xf]
    %v7647 = vld [vmem:[#allocation8 + $0x328] sm:$0xff]
    %v7648 = vld [vmem:[#allocation8 + $0x330] sm:$0xf]
    %v7649 = vld [vmem:[#allocation8 + $0x374] sm:$0xff]
    %v7650 = vld [vmem:[#allocation8 + $0x37c] sm:$0xf]
    %v7651 = vld [vmem:[#allocation8 + $0x3c0] sm:$0xff]
    %v7652 = vld [vmem:[#allocation8 + $0x3c8] sm:$0xf]
    %v7653 = vld [vmem:[#allocation8 + $0x40c] sm:$0xff]
    %v7654 = vld [vmem:[#allocation8 + $0x414] sm:$0xf]
    %v7655 = vld [vmem:[#allocation8 + $0x458] sm:$0xff]
    %v7656 = vld [vmem:[#allocation8 + $0x460] sm:$0xf]
    %v7657 = vld [vmem:[#allocation8 + $0x4a4] sm:$0xff]
    %v7658 = vld [vmem:[#allocation8 + $0x4ac] sm:$0xf]
    %v7691 = vunpack.c.l.b16 %v7627
    %v7692 = vunpack.c.h.b16 %v7627
    %v7693 = vunpack.c.l.b16 %v7628
    %v7694 = vunpack.c.l.b16 %v7629
    %v7695 = vunpack.c.h.b16 %v7629
    %v7696 = vunpack.c.l.b16 %v7630
    %v7697 = vunpack.c.l.b16 %v7631
    %v7698 = vunpack.c.h.b16 %v7631
    %v7699 = vunpack.c.l.b16 %v7632
    %v7700 = vunpack.c.l.b16 %v7633
    %v7701 = vunpack.c.h.b16 %v7633
    %v7702 = vunpack.c.l.b16 %v7634
    %v7703 = vunpack.c.l.b16 %v7635
    %v7704 = vunpack.c.h.b16 %v7635
    %v7705 = vunpack.c.l.b16 %v7636
    %v7706 = vunpack.c.l.b16 %v7637
    %v7707 = vunpack.c.h.b16 %v7637
    %v7708 = vunpack.c.l.b16 %v7638
    %v7709 = vunpack.c.l.b16 %v7639
    %v7710 = vunpack.c.h.b16 %v7639
    %v7711 = vunpack.c.l.b16 %v7640
    %v7712 = vunpack.c.l.b16 %v7641
    %v7713 = vunpack.c.h.b16 %v7641
    %v7714 = vunpack.c.l.b16 %v7642
    %v7715 = vunpack.c.l.b16 %v7643
    %v7716 = vunpack.c.h.b16 %v7643
    %v7717 = vunpack.c.l.b16 %v7644
    %v7718 = vunpack.c.l.b16 %v7645
    %v7719 = vunpack.c.h.b16 %v7645
    %v7720 = vunpack.c.l.b16 %v7646
    %v7721 = vunpack.c.l.b16 %v7647
    %v7722 = vunpack.c.h.b16 %v7647
    %v7723 = vunpack.c.l.b16 %v7648
    %v7724 = vunpack.c.l.b16 %v7649
    %v7725 = vunpack.c.h.b16 %v7649
    %v7726 = vunpack.c.l.b16 %v7650
    %v7727 = vunpack.c.l.b16 %v7651
    %v7728 = vunpack.c.h.b16 %v7651
    %v7729 = vunpack.c.l.b16 %v7652
    %v7730 = vunpack.c.l.b16 %v7653
    %v7731 = vunpack.c.h.b16 %v7653
    %v7732 = vunpack.c.l.b16 %v7654
    %v7733 = vunpack.c.l.b16 %v7655
    %v7734 = vunpack.c.h.b16 %v7655
    %v7735 = vunpack.c.l.b16 %v7656
    %v7736 = vunpack.c.l.b16 %v7657
    %v7737 = vunpack.c.h.b16 %v7657
    %v7738 = vunpack.c.l.b16 %v7658
    %v7739 = vpack.c.b16 %v7694, %v7691
    %v7740 = vpack.c.b16 %v7695, %v7692
    %v7741 = vpack.c.b16 %v7696, %v7693
    %v7742 = vpack.c.b16 %v7700, %v7697
    %v7743 = vpack.c.b16 %v7701, %v7698
    %v7744 = vpack.c.b16 %v7702, %v7699
    %v7745 = vpack.c.b16 %v7706, %v7703
    %v7746 = vpack.c.b16 %v7707, %v7704
    %v7747 = vpack.c.b16 %v7708, %v7705
    %v7748 = vpack.c.b16 %v7712, %v7709
    %v7749 = vpack.c.b16 %v7713, %v7710
    %v7750 = vpack.c.b16 %v7714, %v7711
    %v7751 = vpack.c.b16 %v7718, %v7715
    %v7752 = vpack.c.b16 %v7719, %v7716
    %v7753 = vpack.c.b16 %v7720, %v7717
    %v7754 = vpack.c.b16 %v7724, %v7721
    %v7755 = vpack.c.b16 %v7725, %v7722
    %v7756 = vpack.c.b16 %v7726, %v7723
    %v7757 = vpack.c.b16 %v7730, %v7727
    %v7758 = vpack.c.b16 %v7731, %v7728
    %v7759 = vpack.c.b16 %v7732, %v7729
    %v7760 = vpack.c.b16 %v7736, %v7733
    %v7761 = vpack.c.b16 %v7737, %v7734
    %v7762 = vpack.c.b16 %v7738, %v7735
    %7787 = vmatpush.bf16.msra.mxu0 %v7760
    %7788 = vmatpush.bf16.msra.mxu0 %v7757
    %7789 = vmatpush.bf16.msra.mxu0 %v7754
    %7790 = vmatpush.bf16.msra.mxu0 %v7751
    %7791 = vmatpush.bf16.msra.mxu0 %v7748
    %7792 = vmatpush.bf16.msra.mxu0 %v7745
    %7793 = vmatpush.bf16.msra.mxu0 %v7742
    %7794 = vmatpush.bf16.msra.mxu0 %v7739
    %7795 = vmatmul.bf16.gmra.mxu0 %v7411
    %v7796 = vpop.f32.mrf.mxu0
    %v7797 = vadd.f32 %v118, %v7796
    %v7798 = vpop.f32.mrf.mxu0
    %7799 = vdwg.mxu0
    %7800 = vmatpush.bf16.msra.mxu0 %v7761
    %7801 = vmatpush.bf16.msra.mxu0 %v7758
    %7802 = vmatpush.bf16.msra.mxu0 %v7755
    %7803 = vmatpush.bf16.msra.mxu0 %v7752
    %7804 = vmatpush.bf16.msra.mxu0 %v7749
    %7805 = vmatpush.bf16.msra.mxu0 %v7746
    %7806 = vmatpush.bf16.msra.mxu0 %v7743
    %7807 = vmatpush.bf16.msra.mxu0 %v7740
    %7808 = vmatmul.bf16.gmra.mxu0 %v7411
    %v7809 = vpop.f32.mrf.mxu0
    %v7810 = vadd.f32 %v119, %v7809
    %v7811 = vpop.f32.mrf.mxu0
    %7812 = vdwg.mxu0
    %7813 = vmatpush.bf16.msra.mxu0 %v7762
    %7814 = vmatpush.bf16.msra.mxu0 %v7759
    %7815 = vmatpush.bf16.msra.mxu0 %v7756
    %7816 = vmatpush.bf16.msra.mxu0 %v7753
    %7817 = vmatpush.bf16.msra.mxu0 %v7750
    %7818 = vmatpush.bf16.msra.mxu0 %v7747
    %7819 = vmatpush.bf16.msra.mxu0 %v7744
    %7820 = vmatpush.bf16.msra.mxu0 %v7741
    %7821 = vmatmul.bf16.gmra.mxu0 %v7411
    %v7822 = vpop.f32.mrf.mxu0
    %v7823 = vadd.f32 %v120, %v7822
    %v7824 = vpop.f32.mrf.mxu0
    %7825 = vdwg.mxu0
    %v7826 = vld [vmem:[#allocation8 + $0x3c] sm:$0xff]
    %v7827 = vld [vmem:[#allocation8 + $0x44] sm:$0xf]
    %v7828 = vld [vmem:[#allocation8 + $0x88] sm:$0xff]
    %v7829 = vld [vmem:[#allocation8 + $0x90] sm:$0xf]
    %v7830 = vld [vmem:[#allocation8 + $0xd4] sm:$0xff]
    %v7831 = vld [vmem:[#allocation8 + $0xdc] sm:$0xf]
    %v7832 = vld [vmem:[#allocation8 + $0x120] sm:$0xff]
    %v7833 = vld [vmem:[#allocation8 + $0x128] sm:$0xf]
    %v7834 = vld [vmem:[#allocation8 + $0x16c] sm:$0xff]
    %v7835 = vld [vmem:[#allocation8 + $0x174] sm:$0xf]
    %v7836 = vld [vmem:[#allocation8 + $0x1b8] sm:$0xff]
    %v7837 = vld [vmem:[#allocation8 + $0x1c0] sm:$0xf]
    %v7838 = vld [vmem:[#allocation8 + $0x204] sm:$0xff]
    %v7839 = vld [vmem:[#allocation8 + $0x20c] sm:$0xf]
    %v7840 = vld [vmem:[#allocation8 + $0x250] sm:$0xff]
    %v7841 = vld [vmem:[#allocation8 + $0x258] sm:$0xf]
    %v7842 = vld [vmem:[#allocation8 + $0x29c] sm:$0xff]
    %v7843 = vld [vmem:[#allocation8 + $0x2a4] sm:$0xf]
    %v7844 = vld [vmem:[#allocation8 + $0x2e8] sm:$0xff]
    %v7845 = vld [vmem:[#allocation8 + $0x2f0] sm:$0xf]
    %v7846 = vld [vmem:[#allocation8 + $0x334] sm:$0xff]
    %v7847 = vld [vmem:[#allocation8 + $0x33c] sm:$0xf]
    %v7848 = vld [vmem:[#allocation8 + $0x380] sm:$0xff]
    %v7849 = vld [vmem:[#allocation8 + $0x388] sm:$0xf]
    %v7850 = vld [vmem:[#allocation8 + $0x3cc] sm:$0xff]
    %v7851 = vld [vmem:[#allocation8 + $0x3d4] sm:$0xf]
    %v7852 = vld [vmem:[#allocation8 + $0x418] sm:$0xff]
    %v7853 = vld [vmem:[#allocation8 + $0x420] sm:$0xf]
    %v7854 = vld [vmem:[#allocation8 + $0x464] sm:$0xff]
    %v7855 = vld [vmem:[#allocation8 + $0x46c] sm:$0xf]
    %v7856 = vld [vmem:[#allocation8 + $0x4b0] sm:$0xff]
    %v7857 = vld [vmem:[#allocation8 + $0x4b8] sm:$0xf]
    %v7890 = vunpack.c.l.b16 %v7826
    %v7891 = vunpack.c.h.b16 %v7826
    %v7892 = vunpack.c.l.b16 %v7827
    %v7893 = vunpack.c.l.b16 %v7828
    %v7894 = vunpack.c.h.b16 %v7828
    %v7895 = vunpack.c.l.b16 %v7829
    %v7896 = vunpack.c.l.b16 %v7830
    %v7897 = vunpack.c.h.b16 %v7830
    %v7898 = vunpack.c.l.b16 %v7831
    %v7899 = vunpack.c.l.b16 %v7832
    %v7900 = vunpack.c.h.b16 %v7832
    %v7901 = vunpack.c.l.b16 %v7833
    %v7902 = vunpack.c.l.b16 %v7834
    %v7903 = vunpack.c.h.b16 %v7834
    %v7904 = vunpack.c.l.b16 %v7835
    %v7905 = vunpack.c.l.b16 %v7836
    %v7906 = vunpack.c.h.b16 %v7836
    %v7907 = vunpack.c.l.b16 %v7837
    %v7908 = vunpack.c.l.b16 %v7838
    %v7909 = vunpack.c.h.b16 %v7838
    %v7910 = vunpack.c.l.b16 %v7839
    %v7911 = vunpack.c.l.b16 %v7840
    %v7912 = vunpack.c.h.b16 %v7840
    %v7913 = vunpack.c.l.b16 %v7841
    %v7914 = vunpack.c.l.b16 %v7842
    %v7915 = vunpack.c.h.b16 %v7842
    %v7916 = vunpack.c.l.b16 %v7843
    %v7917 = vunpack.c.l.b16 %v7844
    %v7918 = vunpack.c.h.b16 %v7844
    %v7919 = vunpack.c.l.b16 %v7845
    %v7920 = vunpack.c.l.b16 %v7846
    %v7921 = vunpack.c.h.b16 %v7846
    %v7922 = vunpack.c.l.b16 %v7847
    %v7923 = vunpack.c.l.b16 %v7848
    %v7924 = vunpack.c.h.b16 %v7848
    %v7925 = vunpack.c.l.b16 %v7849
    %v7926 = vunpack.c.l.b16 %v7850
    %v7927 = vunpack.c.h.b16 %v7850
    %v7928 = vunpack.c.l.b16 %v7851
    %v7929 = vunpack.c.l.b16 %v7852
    %v7930 = vunpack.c.h.b16 %v7852
    %v7931 = vunpack.c.l.b16 %v7853
    %v7932 = vunpack.c.l.b16 %v7854
    %v7933 = vunpack.c.h.b16 %v7854
    %v7934 = vunpack.c.l.b16 %v7855
    %v7935 = vunpack.c.l.b16 %v7856
    %v7936 = vunpack.c.h.b16 %v7856
    %v7937 = vunpack.c.l.b16 %v7857
    %v7938 = vpack.c.b16 %v7893, %v7890
    %v7939 = vpack.c.b16 %v7894, %v7891
    %v7940 = vpack.c.b16 %v7895, %v7892
    %v7941 = vpack.c.b16 %v7899, %v7896
    %v7942 = vpack.c.b16 %v7900, %v7897
    %v7943 = vpack.c.b16 %v7901, %v7898
    %v7944 = vpack.c.b16 %v7905, %v7902
    %v7945 = vpack.c.b16 %v7906, %v7903
    %v7946 = vpack.c.b16 %v7907, %v7904
    %v7947 = vpack.c.b16 %v7911, %v7908
    %v7948 = vpack.c.b16 %v7912, %v7909
    %v7949 = vpack.c.b16 %v7913, %v7910
    %v7950 = vpack.c.b16 %v7917, %v7914
    %v7951 = vpack.c.b16 %v7918, %v7915
    %v7952 = vpack.c.b16 %v7919, %v7916
    %v7953 = vpack.c.b16 %v7923, %v7920
    %v7954 = vpack.c.b16 %v7924, %v7921
    %v7955 = vpack.c.b16 %v7925, %v7922
    %v7956 = vpack.c.b16 %v7929, %v7926
    %v7957 = vpack.c.b16 %v7930, %v7927
    %v7958 = vpack.c.b16 %v7931, %v7928
    %v7959 = vpack.c.b16 %v7935, %v7932
    %v7960 = vpack.c.b16 %v7936, %v7933
    %v7961 = vpack.c.b16 %v7937, %v7934
    %7986 = vmatpush.bf16.msra.mxu0 %v7959
    %7987 = vmatpush.bf16.msra.mxu0 %v7956
    %7988 = vmatpush.bf16.msra.mxu0 %v7953
    %7989 = vmatpush.bf16.msra.mxu0 %v7950
    %7990 = vmatpush.bf16.msra.mxu0 %v7947
    %7991 = vmatpush.bf16.msra.mxu0 %v7944
    %7992 = vmatpush.bf16.msra.mxu0 %v7941
    %7993 = vmatpush.bf16.msra.mxu0 %v7938
    %7994 = vmatmul.bf16.gmra.mxu0 %v6850
    %v7995 = vpop.f32.mrf.mxu0
    %v7996 = vadd.f32 0.0, %v7995
    %v7997 = vpop.f32.mrf.mxu0
    %7998 = vdwg.mxu0
    %7999 = vmatpush.bf16.msra.mxu0 %v7960
    %8000 = vmatpush.bf16.msra.mxu0 %v7957
    %8001 = vmatpush.bf16.msra.mxu0 %v7954
    %8002 = vmatpush.bf16.msra.mxu0 %v7951
    %8003 = vmatpush.bf16.msra.mxu0 %v7948
    %8004 = vmatpush.bf16.msra.mxu0 %v7945
    %8005 = vmatpush.bf16.msra.mxu0 %v7942
    %8006 = vmatpush.bf16.msra.mxu0 %v7939
    %8007 = vmatmul.bf16.gmra.mxu0 %v6850
    %v8008 = vpop.f32.mrf.mxu0
    %v8009 = vadd.f32 0.0, %v8008
    %v8010 = vpop.f32.mrf.mxu0
    %8011 = vdwg.mxu0
    %8012 = vmatpush.bf16.msra.mxu0 %v7961
    %8013 = vmatpush.bf16.msra.mxu0 %v7958
    %8014 = vmatpush.bf16.msra.mxu0 %v7955
    %8015 = vmatpush.bf16.msra.mxu0 %v7952
    %8016 = vmatpush.bf16.msra.mxu0 %v7949
    %8017 = vmatpush.bf16.msra.mxu0 %v7946
    %8018 = vmatpush.bf16.msra.mxu0 %v7943
    %8019 = vmatpush.bf16.msra.mxu0 %v7940
    %8020 = vmatmul.bf16.gmra.mxu0 %v6850
    %v8021 = vpop.f32.mrf.mxu0
    %v8022 = vadd.f32 0.0, %v8021
    %v8023 = vpop.f32.mrf.mxu0
    %8024 = vdwg.mxu0
    %v8025 = vadd.f32 %v7797, %v7996
    %v8026 = vadd.f32 %v7810, %v8009
    %v8027 = vxor.u32 %v8025, 2147483648
    %v8028 = vxor.u32 %v8026, 2147483648
    %v8029 = vmul.f32 %v8027, 1.442695
    %v8030 = vpow.pop %v8029
    %v8031 = vmul.f32 %v8028, 1.442695
    %v8032 = vpow.pop %v8031
    %v8033 = vadd.f32 %v8030, 1.0
    %v8034 = vadd.f32 %v8032, 1.0
    %v8035 = vrcp.pop %v8033
    %v8036 = vmul.f32 %v8033, %v8035
    %v8037 = vsub.f32 1.0, %v8036
    %v8038 = vmul.f32 %v8035, %v8037
    %v8039 = vadd.f32 %v8035, %v8038
    %vm8040 = vweird.f32 %v8033
    %vm8041 = vweird.f32 %v8035
    %vm8042 = vmor %vm8040, %vm8041
    %v8043 = vsel %vm8042, %v8035, %v8039
    %v8044 = vand.u32 2147483647, %v8033
    %vm8045 = vcmp.eq.f32.partialorder %v8044, 8.507059e+37
    %v8046 = vand.u32 %v8033, 2147483648
    %v8047 = vor.u32 1.1754944e-38, %v8046
    %v8048 = vsel %vm8045, %v8047, %v8043
    %v8049 = vmul.f32 1.0, %v8048
    %v8050 = vrcp.pop %v8034
    %v8051 = vmul.f32 %v8034, %v8050
    %v8052 = vsub.f32 1.0, %v8051
    %v8053 = vmul.f32 %v8050, %v8052
    %v8054 = vadd.f32 %v8050, %v8053
    %vm8055 = vweird.f32 %v8034
    %vm8056 = vweird.f32 %v8050
    %vm8057 = vmor %vm8055, %vm8056
    %v8058 = vsel %vm8057, %v8050, %v8054
    %v8059 = vand.u32 2147483647, %v8034
    %vm8060 = vcmp.eq.f32.partialorder %v8059, 8.507059e+37
    %v8061 = vand.u32 %v8034, 2147483648
    %v8062 = vor.u32 1.1754944e-38, %v8061
    %v8063 = vsel %vm8060, %v8062, %v8058
    %v8064 = vmul.f32 1.0, %v8063
    %v8065 = vadd.f32 %v8022, %v106
    %v8066 = vmul.f32 %v8049, %v8065
    %v8067 = vadd.f32 %v7823, %v8066
    %v8068 = vtanh.pop %v8067
    %v8069 = vsub.f32 1.0, %v8064
    %v8070 = vmul.f32 %v8069, %v8068
    %v8071 = vmul.f32 %v8064, %v6833
    %v8072 = vadd.f32 %v8070, %v8071
    %v8073 = vld [vmem:[#allocation8 + $0x48] sm:$0xf]
    %v8074 = vld [vmem:[#allocation8 + $0x94] sm:$0xf]
    %v8075 = vld [vmem:[#allocation8 + $0xe0] sm:$0xf]
    %v8076 = vld [vmem:[#allocation8 + $0x12c] sm:$0xf]
    %v8077 = vld [vmem:[#allocation8 + $0x178] sm:$0xf]
    %v8078 = vld [vmem:[#allocation8 + $0x1c4] sm:$0xf]
    %v8079 = vld [vmem:[#allocation8 + $0x210] sm:$0xf]
    %v8080 = vld [vmem:[#allocation8 + $0x25c] sm:$0xf]
    %v8081 = vld [vmem:[#allocation8 + $0x2a8] sm:$0xf]
    %v8082 = vld [vmem:[#allocation8 + $0x2f4] sm:$0xf]
    %v8083 = vld [vmem:[#allocation8 + $0x340] sm:$0xf]
    %v8084 = vld [vmem:[#allocation8 + $0x38c] sm:$0xf]
    %v8085 = vld [vmem:[#allocation8 + $0x3d8] sm:$0xf]
    %v8086 = vld [vmem:[#allocation8 + $0x424] sm:$0xf]
    %v8087 = vld [vmem:[#allocation8 + $0x470] sm:$0xf]
    %v8088 = vld [vmem:[#allocation8 + $0x4bc] sm:$0xf]
    %v8089 = vpack.c.bf16 %v8072, %v8072
    %v8106 = vunpack.c.l.b16 %v8073
    %v8107 = vunpack.c.l.b16 %v8074
    %v8108 = vunpack.c.l.b16 %v8075
    %v8109 = vunpack.c.l.b16 %v8076
    %v8110 = vunpack.c.l.b16 %v8077
    %v8111 = vunpack.c.l.b16 %v8078
    %v8112 = vunpack.c.l.b16 %v8079
    %v8113 = vunpack.c.l.b16 %v8080
    %v8114 = vunpack.c.l.b16 %v8081
    %v8115 = vunpack.c.l.b16 %v8082
    %v8116 = vunpack.c.l.b16 %v8083
    %v8117 = vunpack.c.l.b16 %v8084
    %v8118 = vunpack.c.l.b16 %v8085
    %v8119 = vunpack.c.l.b16 %v8086
    %v8120 = vunpack.c.l.b16 %v8087
    %v8121 = vunpack.c.l.b16 %v8088
    %v8122 = vpack.c.b16 %v8107, %v8106
    %v8123 = vpack.c.b16 %v8109, %v8108
    %v8124 = vpack.c.b16 %v8111, %v8110
    %v8125 = vpack.c.b16 %v8113, %v8112
    %v8126 = vpack.c.b16 %v8115, %v8114
    %v8127 = vpack.c.b16 %v8117, %v8116
    %v8128 = vpack.c.b16 %v8119, %v8118
    %v8129 = vpack.c.b16 %v8121, %v8120
    %8138 = vmatpush.bf16.msra.mxu0 %v8129
    %8139 = vmatpush.bf16.msra.mxu0 %v8128
    %8140 = vmatpush.bf16.msra.mxu0 %v8127
    %8141 = vmatpush.bf16.msra.mxu0 %v8126
    %8142 = vmatpush.bf16.msra.mxu0 %v8125
    %8143 = vmatpush.bf16.msra.mxu0 %v8124
    %8144 = vmatpush.bf16.msra.mxu0 %v8123
    %8145 = vmatpush.bf16.msra.mxu0 %v8122
    %8146 = vmatmul.bf16.gmra.mxu0 %v8089
    %v8147 = vpop.f32.mrf.mxu0
    %v8148 = vadd.f32 %v126, %v8147
    %v8149 = vpop.f32.mrf.mxu0
    %8150 = vdwg.mxu0
    %v8151 = vxor.u32 %v8148, 2147483648
    %v8152 = vmul.f32 %v8151, 1.442695
    %v8153 = vpow.pop %v8152
    %v8154 = vadd.f32 %v8153, 1.0
    %v8155 = vrcp.pop %v8154
    %v8156 = vmul.f32 %v8154, %v8155
    %v8157 = vsub.f32 1.0, %v8156
    %v8158 = vmul.f32 %v8155, %v8157
    %v8159 = vadd.f32 %v8155, %v8158
    %vm8160 = vweird.f32 %v8154
    %vm8161 = vweird.f32 %v8155
    %vm8162 = vmor %vm8160, %vm8161
    %v8163 = vsel %vm8162, %v8155, %v8159
    %v8164 = vand.u32 2147483647, %v8154
    %vm8165 = vcmp.eq.f32.partialorder %v8164, 8.507059e+37
    %v8166 = vand.u32 %v8154, 2147483648
    %v8167 = vor.u32 1.1754944e-38, %v8166
    %v8168 = vsel %vm8165, %v8167, %v8163
    %v8169 = vmul.f32 1.0, %v8168
    %8170 = vst [vmem:[#allocation11 + $0x28] sm:$0xff] %v8169
    %v8171 = vld [vmem:[#allocation8 + $0x18] sm:$0xff]
    %v8172 = vld [vmem:[#allocation8 + $0x20] sm:$0xf]
    %v8173 = vld [vmem:[#allocation8 + $0x64] sm:$0xff]
    %v8174 = vld [vmem:[#allocation8 + $0x6c] sm:$0xf]
    %v8175 = vld [vmem:[#allocation8 + $0xb0] sm:$0xff]
    %v8176 = vld [vmem:[#allocation8 + $0xb8] sm:$0xf]
    %v8177 = vld [vmem:[#allocation8 + $0xfc] sm:$0xff]
    %v8178 = vld [vmem:[#allocation8 + $0x104] sm:$0xf]
    %v8179 = vld [vmem:[#allocation8 + $0x148] sm:$0xff]
    %v8180 = vld [vmem:[#allocation8 + $0x150] sm:$0xf]
    %v8181 = vld [vmem:[#allocation8 + $0x194] sm:$0xff]
    %v8182 = vld [vmem:[#allocation8 + $0x19c] sm:$0xf]
    %v8183 = vld [vmem:[#allocation8 + $0x1e0] sm:$0xff]
    %v8184 = vld [vmem:[#allocation8 + $0x1e8] sm:$0xf]
    %v8185 = vld [vmem:[#allocation8 + $0x22c] sm:$0xff]
    %v8186 = vld [vmem:[#allocation8 + $0x234] sm:$0xf]
    %v8187 = vld [vmem:[#allocation8 + $0x278] sm:$0xff]
    %v8188 = vld [vmem:[#allocation8 + $0x280] sm:$0xf]
    %v8189 = vld [vmem:[#allocation8 + $0x2c4] sm:$0xff]
    %v8190 = vld [vmem:[#allocation8 + $0x2cc] sm:$0xf]
    %v8191 = vld [vmem:[#allocation8 + $0x310] sm:$0xff]
    %v8192 = vld [vmem:[#allocation8 + $0x318] sm:$0xf]
    %v8193 = vld [vmem:[#allocation8 + $0x35c] sm:$0xff]
    %v8194 = vld [vmem:[#allocation8 + $0x364] sm:$0xf]
    %v8195 = vld [vmem:[#allocation8 + $0x3a8] sm:$0xff]
    %v8196 = vld [vmem:[#allocation8 + $0x3b0] sm:$0xf]
    %v8197 = vld [vmem:[#allocation8 + $0x3f4] sm:$0xff]
    %v8198 = vld [vmem:[#allocation8 + $0x3fc] sm:$0xf]
    %v8199 = vld [vmem:[#allocation8 + $0x440] sm:$0xff]
    %v8200 = vld [vmem:[#allocation8 + $0x448] sm:$0xf]
    %v8201 = vld [vmem:[#allocation8 + $0x48c] sm:$0xff]
    %v8202 = vld [vmem:[#allocation8 + $0x494] sm:$0xf]
    %v8203 = vpack.c.bf16 %v7179, %v7179
    %v8236 = vunpack.c.l.b16 %v8171
    %v8237 = vunpack.c.h.b16 %v8171
    %v8238 = vunpack.c.l.b16 %v8172
    %v8239 = vunpack.c.l.b16 %v8173
    %v8240 = vunpack.c.h.b16 %v8173
    %v8241 = vunpack.c.l.b16 %v8174
    %v8242 = vunpack.c.l.b16 %v8175
    %v8243 = vunpack.c.h.b16 %v8175
    %v8244 = vunpack.c.l.b16 %v8176
    %v8245 = vunpack.c.l.b16 %v8177
    %v8246 = vunpack.c.h.b16 %v8177
    %v8247 = vunpack.c.l.b16 %v8178
    %v8248 = vunpack.c.l.b16 %v8179
    %v8249 = vunpack.c.h.b16 %v8179
    %v8250 = vunpack.c.l.b16 %v8180
    %v8251 = vunpack.c.l.b16 %v8181
    %v8252 = vunpack.c.h.b16 %v8181
    %v8253 = vunpack.c.l.b16 %v8182
    %v8254 = vunpack.c.l.b16 %v8183
    %v8255 = vunpack.c.h.b16 %v8183
    %v8256 = vunpack.c.l.b16 %v8184
    %v8257 = vunpack.c.l.b16 %v8185
    %v8258 = vunpack.c.h.b16 %v8185
    %v8259 = vunpack.c.l.b16 %v8186
    %v8260 = vunpack.c.l.b16 %v8187
    %v8261 = vunpack.c.h.b16 %v8187
    %v8262 = vunpack.c.l.b16 %v8188
    %v8263 = vunpack.c.l.b16 %v8189
    %v8264 = vunpack.c.h.b16 %v8189
    %v8265 = vunpack.c.l.b16 %v8190
    %v8266 = vunpack.c.l.b16 %v8191
    %v8267 = vunpack.c.h.b16 %v8191
    %v8268 = vunpack.c.l.b16 %v8192
    %v8269 = vunpack.c.l.b16 %v8193
    %v8270 = vunpack.c.h.b16 %v8193
    %v8271 = vunpack.c.l.b16 %v8194
    %v8272 = vunpack.c.l.b16 %v8195
    %v8273 = vunpack.c.h.b16 %v8195
    %v8274 = vunpack.c.l.b16 %v8196
    %v8275 = vunpack.c.l.b16 %v8197
    %v8276 = vunpack.c.h.b16 %v8197
    %v8277 = vunpack.c.l.b16 %v8198
    %v8278 = vunpack.c.l.b16 %v8199
    %v8279 = vunpack.c.h.b16 %v8199
    %v8280 = vunpack.c.l.b16 %v8200
    %v8281 = vunpack.c.l.b16 %v8201
    %v8282 = vunpack.c.h.b16 %v8201
    %v8283 = vunpack.c.l.b16 %v8202
    %v8284 = vpack.c.b16 %v8239, %v8236
    %v8285 = vpack.c.b16 %v8240, %v8237
    %v8286 = vpack.c.b16 %v8241, %v8238
    %v8287 = vpack.c.b16 %v8245, %v8242
    %v8288 = vpack.c.b16 %v8246, %v8243
    %v8289 = vpack.c.b16 %v8247, %v8244
    %v8290 = vpack.c.b16 %v8251, %v8248
    %v8291 = vpack.c.b16 %v8252, %v8249
    %v8292 = vpack.c.b16 %v8253, %v8250
    %v8293 = vpack.c.b16 %v8257, %v8254
    %v8294 = vpack.c.b16 %v8258, %v8255
    %v8295 = vpack.c.b16 %v8259, %v8256
    %v8296 = vpack.c.b16 %v8263, %v8260
    %v8297 = vpack.c.b16 %v8264, %v8261
    %v8298 = vpack.c.b16 %v8265, %v8262
    %v8299 = vpack.c.b16 %v8269, %v8266
    %v8300 = vpack.c.b16 %v8270, %v8267
    %v8301 = vpack.c.b16 %v8271, %v8268
    %v8302 = vpack.c.b16 %v8275, %v8272
    %v8303 = vpack.c.b16 %v8276, %v8273
    %v8304 = vpack.c.b16 %v8277, %v8274
    %v8305 = vpack.c.b16 %v8281, %v8278
    %v8306 = vpack.c.b16 %v8282, %v8279
    %v8307 = vpack.c.b16 %v8283, %v8280
    %8332 = vmatpush.bf16.msra.mxu0 %v8305
    %8333 = vmatpush.bf16.msra.mxu0 %v8302
    %8334 = vmatpush.bf16.msra.mxu0 %v8299
    %8335 = vmatpush.bf16.msra.mxu0 %v8296
    %8336 = vmatpush.bf16.msra.mxu0 %v8293
    %8337 = vmatpush.bf16.msra.mxu0 %v8290
    %8338 = vmatpush.bf16.msra.mxu0 %v8287
    %8339 = vmatpush.bf16.msra.mxu0 %v8284
    %8340 = vmatmul.bf16.gmra.mxu0 %v8203
    %v8341 = vpop.f32.mrf.mxu0
    %v8342 = vadd.f32 %v110, %v8341
    %v8343 = vpop.f32.mrf.mxu0
    %8344 = vdwg.mxu0
    %8345 = vmatpush.bf16.msra.mxu0 %v8306
    %8346 = vmatpush.bf16.msra.mxu0 %v8303
    %8347 = vmatpush.bf16.msra.mxu0 %v8300
    %8348 = vmatpush.bf16.msra.mxu0 %v8297
    %8349 = vmatpush.bf16.msra.mxu0 %v8294
    %8350 = vmatpush.bf16.msra.mxu0 %v8291
    %8351 = vmatpush.bf16.msra.mxu0 %v8288
    %8352 = vmatpush.bf16.msra.mxu0 %v8285
    %8353 = vmatmul.bf16.gmra.mxu0 %v8203
    %v8354 = vpop.f32.mrf.mxu0
    %v8355 = vadd.f32 %v111, %v8354
    %v8356 = vpop.f32.mrf.mxu0
    %8357 = vdwg.mxu0
    %8358 = vmatpush.bf16.msra.mxu0 %v8307
    %8359 = vmatpush.bf16.msra.mxu0 %v8304
    %8360 = vmatpush.bf16.msra.mxu0 %v8301
    %8361 = vmatpush.bf16.msra.mxu0 %v8298
    %8362 = vmatpush.bf16.msra.mxu0 %v8295
    %8363 = vmatpush.bf16.msra.mxu0 %v8292
    %8364 = vmatpush.bf16.msra.mxu0 %v8289
    %8365 = vmatpush.bf16.msra.mxu0 %v8286
    %8366 = vmatmul.bf16.gmra.mxu0 %v8203
    %v8367 = vpop.f32.mrf.mxu0
    %v8368 = vadd.f32 %v112, %v8367
    %v8369 = vpop.f32.mrf.mxu0
    %8370 = vdwg.mxu0
    %v8371 = vld [vmem:[#allocation8 + $0x24] sm:$0xff]
    %v8372 = vld [vmem:[#allocation8 + $0x2c] sm:$0xf]
    %v8373 = vld [vmem:[#allocation8 + $0x70] sm:$0xff]
    %v8374 = vld [vmem:[#allocation8 + $0x78] sm:$0xf]
    %v8375 = vld [vmem:[#allocation8 + $0xbc] sm:$0xff]
    %v8376 = vld [vmem:[#allocation8 + $0xc4] sm:$0xf]
    %v8377 = vld [vmem:[#allocation8 + $0x108] sm:$0xff]
    %v8378 = vld [vmem:[#allocation8 + $0x110] sm:$0xf]
    %v8379 = vld [vmem:[#allocation8 + $0x154] sm:$0xff]
    %v8380 = vld [vmem:[#allocation8 + $0x15c] sm:$0xf]
    %v8381 = vld [vmem:[#allocation8 + $0x1a0] sm:$0xff]
    %v8382 = vld [vmem:[#allocation8 + $0x1a8] sm:$0xf]
    %v8383 = vld [vmem:[#allocation8 + $0x1ec] sm:$0xff]
    %v8384 = vld [vmem:[#allocation8 + $0x1f4] sm:$0xf]
    %v8385 = vld [vmem:[#allocation8 + $0x238] sm:$0xff]
    %v8386 = vld [vmem:[#allocation8 + $0x240] sm:$0xf]
    %v8387 = vld [vmem:[#allocation8 + $0x284] sm:$0xff]
    %v8388 = vld [vmem:[#allocation8 + $0x28c] sm:$0xf]
    %v8389 = vld [vmem:[#allocation8 + $0x2d0] sm:$0xff]
    %v8390 = vld [vmem:[#allocation8 + $0x2d8] sm:$0xf]
    %v8391 = vld [vmem:[#allocation8 + $0x31c] sm:$0xff]
    %v8392 = vld [vmem:[#allocation8 + $0x324] sm:$0xf]
    %v8393 = vld [vmem:[#allocation8 + $0x368] sm:$0xff]
    %v8394 = vld [vmem:[#allocation8 + $0x370] sm:$0xf]
    %v8395 = vld [vmem:[#allocation8 + $0x3b4] sm:$0xff]
    %v8396 = vld [vmem:[#allocation8 + $0x3bc] sm:$0xf]
    %v8397 = vld [vmem:[#allocation8 + $0x400] sm:$0xff]
    %v8398 = vld [vmem:[#allocation8 + $0x408] sm:$0xf]
    %v8399 = vld [vmem:[#allocation8 + $0x44c] sm:$0xff]
    %v8400 = vld [vmem:[#allocation8 + $0x454] sm:$0xf]
    %v8401 = vld [vmem:[#allocation8 + $0x498] sm:$0xff]
    %v8402 = vld [vmem:[#allocation8 + $0x4a0] sm:$0xf]
    %v8403 = vpack.c.bf16 %v7626, %v7626
    %v8436 = vunpack.c.l.b16 %v8371
    %v8437 = vunpack.c.h.b16 %v8371
    %v8438 = vunpack.c.l.b16 %v8372
    %v8439 = vunpack.c.l.b16 %v8373
    %v8440 = vunpack.c.h.b16 %v8373
    %v8441 = vunpack.c.l.b16 %v8374
    %v8442 = vunpack.c.l.b16 %v8375
    %v8443 = vunpack.c.h.b16 %v8375
    %v8444 = vunpack.c.l.b16 %v8376
    %v8445 = vunpack.c.l.b16 %v8377
    %v8446 = vunpack.c.h.b16 %v8377
    %v8447 = vunpack.c.l.b16 %v8378
    %v8448 = vunpack.c.l.b16 %v8379
    %v8449 = vunpack.c.h.b16 %v8379
    %v8450 = vunpack.c.l.b16 %v8380
    %v8451 = vunpack.c.l.b16 %v8381
    %v8452 = vunpack.c.h.b16 %v8381
    %v8453 = vunpack.c.l.b16 %v8382
    %v8454 = vunpack.c.l.b16 %v8383
    %v8455 = vunpack.c.h.b16 %v8383
    %v8456 = vunpack.c.l.b16 %v8384
    %v8457 = vunpack.c.l.b16 %v8385
    %v8458 = vunpack.c.h.b16 %v8385
    %v8459 = vunpack.c.l.b16 %v8386
    %v8460 = vunpack.c.l.b16 %v8387
    %v8461 = vunpack.c.h.b16 %v8387
    %v8462 = vunpack.c.l.b16 %v8388
    %v8463 = vunpack.c.l.b16 %v8389
    %v8464 = vunpack.c.h.b16 %v8389
    %v8465 = vunpack.c.l.b16 %v8390
    %v8466 = vunpack.c.l.b16 %v8391
    %v8467 = vunpack.c.h.b16 %v8391
    %v8468 = vunpack.c.l.b16 %v8392
    %v8469 = vunpack.c.l.b16 %v8393
    %v8470 = vunpack.c.h.b16 %v8393
    %v8471 = vunpack.c.l.b16 %v8394
    %v8472 = vunpack.c.l.b16 %v8395
    %v8473 = vunpack.c.h.b16 %v8395
    %v8474 = vunpack.c.l.b16 %v8396
    %v8475 = vunpack.c.l.b16 %v8397
    %v8476 = vunpack.c.h.b16 %v8397
    %v8477 = vunpack.c.l.b16 %v8398
    %v8478 = vunpack.c.l.b16 %v8399
    %v8479 = vunpack.c.h.b16 %v8399
    %v8480 = vunpack.c.l.b16 %v8400
    %v8481 = vunpack.c.l.b16 %v8401
    %v8482 = vunpack.c.h.b16 %v8401
    %v8483 = vunpack.c.l.b16 %v8402
    %v8484 = vpack.c.b16 %v8439, %v8436
    %v8485 = vpack.c.b16 %v8440, %v8437
    %v8486 = vpack.c.b16 %v8441, %v8438
    %v8487 = vpack.c.b16 %v8445, %v8442
    %v8488 = vpack.c.b16 %v8446, %v8443
    %v8489 = vpack.c.b16 %v8447, %v8444
    %v8490 = vpack.c.b16 %v8451, %v8448
    %v8491 = vpack.c.b16 %v8452, %v8449
    %v8492 = vpack.c.b16 %v8453, %v8450
    %v8493 = vpack.c.b16 %v8457, %v8454
    %v8494 = vpack.c.b16 %v8458, %v8455
    %v8495 = vpack.c.b16 %v8459, %v8456
    %v8496 = vpack.c.b16 %v8463, %v8460
    %v8497 = vpack.c.b16 %v8464, %v8461
    %v8498 = vpack.c.b16 %v8465, %v8462
    %v8499 = vpack.c.b16 %v8469, %v8466
    %v8500 = vpack.c.b16 %v8470, %v8467
    %v8501 = vpack.c.b16 %v8471, %v8468
    %v8502 = vpack.c.b16 %v8475, %v8472
    %v8503 = vpack.c.b16 %v8476, %v8473
    %v8504 = vpack.c.b16 %v8477, %v8474
    %v8505 = vpack.c.b16 %v8481, %v8478
    %v8506 = vpack.c.b16 %v8482, %v8479
    %v8507 = vpack.c.b16 %v8483, %v8480
    %8532 = vmatpush.bf16.msra.mxu0 %v8505
    %8533 = vmatpush.bf16.msra.mxu0 %v8502
    %8534 = vmatpush.bf16.msra.mxu0 %v8499
    %8535 = vmatpush.bf16.msra.mxu0 %v8496
    %8536 = vmatpush.bf16.msra.mxu0 %v8493
    %8537 = vmatpush.bf16.msra.mxu0 %v8490
    %8538 = vmatpush.bf16.msra.mxu0 %v8487
    %8539 = vmatpush.bf16.msra.mxu0 %v8484
    %8540 = vmatmul.bf16.gmra.mxu0 %v8403
    %v8541 = vpop.f32.mrf.mxu0
    %v8542 = vadd.f32 0.0, %v8541
    %v8543 = vpop.f32.mrf.mxu0
    %8544 = vdwg.mxu0
    %8545 = vmatpush.bf16.msra.mxu0 %v8506
    %8546 = vmatpush.bf16.msra.mxu0 %v8503
    %8547 = vmatpush.bf16.msra.mxu0 %v8500
    %8548 = vmatpush.bf16.msra.mxu0 %v8497
    %8549 = vmatpush.bf16.msra.mxu0 %v8494
    %8550 = vmatpush.bf16.msra.mxu0 %v8491
    %8551 = vmatpush.bf16.msra.mxu0 %v8488
    %8552 = vmatpush.bf16.msra.mxu0 %v8485
    %8553 = vmatmul.bf16.gmra.mxu0 %v8403
    %v8554 = vpop.f32.mrf.mxu0
    %v8555 = vadd.f32 0.0, %v8554
    %v8556 = vpop.f32.mrf.mxu0
    %8557 = vdwg.mxu0
    %8558 = vmatpush.bf16.msra.mxu0 %v8507
    %8559 = vmatpush.bf16.msra.mxu0 %v8504
    %8560 = vmatpush.bf16.msra.mxu0 %v8501
    %8561 = vmatpush.bf16.msra.mxu0 %v8498
    %8562 = vmatpush.bf16.msra.mxu0 %v8495
    %8563 = vmatpush.bf16.msra.mxu0 %v8492
    %8564 = vmatpush.bf16.msra.mxu0 %v8489
    %8565 = vmatpush.bf16.msra.mxu0 %v8486
    %8566 = vmatmul.bf16.gmra.mxu0 %v8403
    %v8567 = vpop.f32.mrf.mxu0
    %v8568 = vadd.f32 0.0, %v8567
    %v8569 = vpop.f32.mrf.mxu0
    %8570 = vdwg.mxu0
    %v8571 = vadd.f32 %v8342, %v8542
    %v8572 = vadd.f32 %v8355, %v8555
    %v8573 = vxor.u32 %v8571, 2147483648
    %v8574 = vxor.u32 %v8572, 2147483648
    %v8575 = vmul.f32 %v8573, 1.442695
    %v8576 = vpow.pop %v8575
    %v8577 = vmul.f32 %v8574, 1.442695
    %v8578 = vpow.pop %v8577
    %v8579 = vadd.f32 %v8576, 1.0
    %v8580 = vadd.f32 %v8578, 1.0
    %v8581 = vrcp.pop %v8579
    %v8582 = vmul.f32 %v8579, %v8581
    %v8583 = vsub.f32 1.0, %v8582
    %v8584 = vmul.f32 %v8581, %v8583
    %v8585 = vadd.f32 %v8581, %v8584
    %vm8586 = vweird.f32 %v8579
    %vm8587 = vweird.f32 %v8581
    %vm8588 = vmor %vm8586, %vm8587
    %v8589 = vsel %vm8588, %v8581, %v8585
    %v8590 = vand.u32 2147483647, %v8579
    %vm8591 = vcmp.eq.f32.partialorder %v8590, 8.507059e+37
    %v8592 = vand.u32 %v8579, 2147483648
    %v8593 = vor.u32 1.1754944e-38, %v8592
    %v8594 = vsel %vm8591, %v8593, %v8589
    %v8595 = vmul.f32 1.0, %v8594
    %v8596 = vrcp.pop %v8580
    %v8597 = vmul.f32 %v8580, %v8596
    %v8598 = vsub.f32 1.0, %v8597
    %v8599 = vmul.f32 %v8596, %v8598
    %v8600 = vadd.f32 %v8596, %v8599
    %vm8601 = vweird.f32 %v8580
    %vm8602 = vweird.f32 %v8596
    %vm8603 = vmor %vm8601, %vm8602
    %v8604 = vsel %vm8603, %v8596, %v8600
    %v8605 = vand.u32 2147483647, %v8580
    %vm8606 = vcmp.eq.f32.partialorder %v8605, 8.507059e+37
    %v8607 = vand.u32 %v8580, 2147483648
    %v8608 = vor.u32 1.1754944e-38, %v8607
    %v8609 = vsel %vm8606, %v8608, %v8604
    %v8610 = vmul.f32 1.0, %v8609
    %v8611 = vadd.f32 %v8568, %v102
    %v8612 = vmul.f32 %v8595, %v8611
    %v8613 = vadd.f32 %v8368, %v8612
    %v8614 = vtanh.pop %v8613
    %v8615 = vsub.f32 1.0, %v8610
    %v8616 = vmul.f32 %v8615, %v8614
    %v8617 = vmul.f32 %v8610, %v7626
    %v8618 = vadd.f32 %v8616, %v8617
    %v8619 = vld [vmem:[#allocation8 + $0x30] sm:$0xff]
    %v8620 = vld [vmem:[#allocation8 + $0x38] sm:$0xf]
    %v8621 = vld [vmem:[#allocation8 + $0x7c] sm:$0xff]
    %v8622 = vld [vmem:[#allocation8 + $0x84] sm:$0xf]
    %v8623 = vld [vmem:[#allocation8 + $0xc8] sm:$0xff]
    %v8624 = vld [vmem:[#allocation8 + $0xd0] sm:$0xf]
    %v8625 = vld [vmem:[#allocation8 + $0x114] sm:$0xff]
    %v8626 = vld [vmem:[#allocation8 + $0x11c] sm:$0xf]
    %v8627 = vld [vmem:[#allocation8 + $0x160] sm:$0xff]
    %v8628 = vld [vmem:[#allocation8 + $0x168] sm:$0xf]
    %v8629 = vld [vmem:[#allocation8 + $0x1ac] sm:$0xff]
    %v8630 = vld [vmem:[#allocation8 + $0x1b4] sm:$0xf]
    %v8631 = vld [vmem:[#allocation8 + $0x1f8] sm:$0xff]
    %v8632 = vld [vmem:[#allocation8 + $0x200] sm:$0xf]
    %v8633 = vld [vmem:[#allocation8 + $0x244] sm:$0xff]
    %v8634 = vld [vmem:[#allocation8 + $0x24c] sm:$0xf]
    %v8635 = vld [vmem:[#allocation8 + $0x290] sm:$0xff]
    %v8636 = vld [vmem:[#allocation8 + $0x298] sm:$0xf]
    %v8637 = vld [vmem:[#allocation8 + $0x2dc] sm:$0xff]
    %v8638 = vld [vmem:[#allocation8 + $0x2e4] sm:$0xf]
    %v8639 = vld [vmem:[#allocation8 + $0x328] sm:$0xff]
    %v8640 = vld [vmem:[#allocation8 + $0x330] sm:$0xf]
    %v8641 = vld [vmem:[#allocation8 + $0x374] sm:$0xff]
    %v8642 = vld [vmem:[#allocation8 + $0x37c] sm:$0xf]
    %v8643 = vld [vmem:[#allocation8 + $0x3c0] sm:$0xff]
    %v8644 = vld [vmem:[#allocation8 + $0x3c8] sm:$0xf]
    %v8645 = vld [vmem:[#allocation8 + $0x40c] sm:$0xff]
    %v8646 = vld [vmem:[#allocation8 + $0x414] sm:$0xf]
    %v8647 = vld [vmem:[#allocation8 + $0x458] sm:$0xff]
    %v8648 = vld [vmem:[#allocation8 + $0x460] sm:$0xf]
    %v8649 = vld [vmem:[#allocation8 + $0x4a4] sm:$0xff]
    %v8650 = vld [vmem:[#allocation8 + $0x4ac] sm:$0xf]
    %v8683 = vunpack.c.l.b16 %v8619
    %v8684 = vunpack.c.h.b16 %v8619
    %v8685 = vunpack.c.l.b16 %v8620
    %v8686 = vunpack.c.l.b16 %v8621
    %v8687 = vunpack.c.h.b16 %v8621
    %v8688 = vunpack.c.l.b16 %v8622
    %v8689 = vunpack.c.l.b16 %v8623
    %v8690 = vunpack.c.h.b16 %v8623
    %v8691 = vunpack.c.l.b16 %v8624
    %v8692 = vunpack.c.l.b16 %v8625
    %v8693 = vunpack.c.h.b16 %v8625
    %v8694 = vunpack.c.l.b16 %v8626
    %v8695 = vunpack.c.l.b16 %v8627
    %v8696 = vunpack.c.h.b16 %v8627
    %v8697 = vunpack.c.l.b16 %v8628
    %v8698 = vunpack.c.l.b16 %v8629
    %v8699 = vunpack.c.h.b16 %v8629
    %v8700 = vunpack.c.l.b16 %v8630
    %v8701 = vunpack.c.l.b16 %v8631
    %v8702 = vunpack.c.h.b16 %v8631
    %v8703 = vunpack.c.l.b16 %v8632
    %v8704 = vunpack.c.l.b16 %v8633
    %v8705 = vunpack.c.h.b16 %v8633
    %v8706 = vunpack.c.l.b16 %v8634
    %v8707 = vunpack.c.l.b16 %v8635
    %v8708 = vunpack.c.h.b16 %v8635
    %v8709 = vunpack.c.l.b16 %v8636
    %v8710 = vunpack.c.l.b16 %v8637
    %v8711 = vunpack.c.h.b16 %v8637
    %v8712 = vunpack.c.l.b16 %v8638
    %v8713 = vunpack.c.l.b16 %v8639
    %v8714 = vunpack.c.h.b16 %v8639
    %v8715 = vunpack.c.l.b16 %v8640
    %v8716 = vunpack.c.l.b16 %v8641
    %v8717 = vunpack.c.h.b16 %v8641
    %v8718 = vunpack.c.l.b16 %v8642
    %v8719 = vunpack.c.l.b16 %v8643
    %v8720 = vunpack.c.h.b16 %v8643
    %v8721 = vunpack.c.l.b16 %v8644
    %v8722 = vunpack.c.l.b16 %v8645
    %v8723 = vunpack.c.h.b16 %v8645
    %v8724 = vunpack.c.l.b16 %v8646
    %v8725 = vunpack.c.l.b16 %v8647
    %v8726 = vunpack.c.h.b16 %v8647
    %v8727 = vunpack.c.l.b16 %v8648
    %v8728 = vunpack.c.l.b16 %v8649
    %v8729 = vunpack.c.h.b16 %v8649
    %v8730 = vunpack.c.l.b16 %v8650
    %v8731 = vpack.c.b16 %v8686, %v8683
    %v8732 = vpack.c.b16 %v8687, %v8684
    %v8733 = vpack.c.b16 %v8688, %v8685
    %v8734 = vpack.c.b16 %v8692, %v8689
    %v8735 = vpack.c.b16 %v8693, %v8690
    %v8736 = vpack.c.b16 %v8694, %v8691
    %v8737 = vpack.c.b16 %v8698, %v8695
    %v8738 = vpack.c.b16 %v8699, %v8696
    %v8739 = vpack.c.b16 %v8700, %v8697
    %v8740 = vpack.c.b16 %v8704, %v8701
    %v8741 = vpack.c.b16 %v8705, %v8702
    %v8742 = vpack.c.b16 %v8706, %v8703
    %v8743 = vpack.c.b16 %v8710, %v8707
    %v8744 = vpack.c.b16 %v8711, %v8708
    %v8745 = vpack.c.b16 %v8712, %v8709
    %v8746 = vpack.c.b16 %v8716, %v8713
    %v8747 = vpack.c.b16 %v8717, %v8714
    %v8748 = vpack.c.b16 %v8718, %v8715
    %v8749 = vpack.c.b16 %v8722, %v8719
    %v8750 = vpack.c.b16 %v8723, %v8720
    %v8751 = vpack.c.b16 %v8724, %v8721
    %v8752 = vpack.c.b16 %v8728, %v8725
    %v8753 = vpack.c.b16 %v8729, %v8726
    %v8754 = vpack.c.b16 %v8730, %v8727
    %8779 = vmatpush.bf16.msra.mxu0 %v8752
    %8780 = vmatpush.bf16.msra.mxu0 %v8749
    %8781 = vmatpush.bf16.msra.mxu0 %v8746
    %8782 = vmatpush.bf16.msra.mxu0 %v8743
    %8783 = vmatpush.bf16.msra.mxu0 %v8740
    %8784 = vmatpush.bf16.msra.mxu0 %v8737
    %8785 = vmatpush.bf16.msra.mxu0 %v8734
    %8786 = vmatpush.bf16.msra.mxu0 %v8731
    %8787 = vmatmul.bf16.gmra.mxu0 %v8403
    %v8788 = vpop.f32.mrf.mxu0
    %v8789 = vadd.f32 %v118, %v8788
    %v8790 = vpop.f32.mrf.mxu0
    %8791 = vdwg.mxu0
    %8792 = vmatpush.bf16.msra.mxu0 %v8753
    %8793 = vmatpush.bf16.msra.mxu0 %v8750
    %8794 = vmatpush.bf16.msra.mxu0 %v8747
    %8795 = vmatpush.bf16.msra.mxu0 %v8744
    %8796 = vmatpush.bf16.msra.mxu0 %v8741
    %8797 = vmatpush.bf16.msra.mxu0 %v8738
    %8798 = vmatpush.bf16.msra.mxu0 %v8735
    %8799 = vmatpush.bf16.msra.mxu0 %v8732
    %8800 = vmatmul.bf16.gmra.mxu0 %v8403
    %v8801 = vpop.f32.mrf.mxu0
    %v8802 = vadd.f32 %v119, %v8801
    %v8803 = vpop.f32.mrf.mxu0
    %8804 = vdwg.mxu0
    %8805 = vmatpush.bf16.msra.mxu0 %v8754
    %8806 = vmatpush.bf16.msra.mxu0 %v8751
    %8807 = vmatpush.bf16.msra.mxu0 %v8748
    %8808 = vmatpush.bf16.msra.mxu0 %v8745
    %8809 = vmatpush.bf16.msra.mxu0 %v8742
    %8810 = vmatpush.bf16.msra.mxu0 %v8739
    %8811 = vmatpush.bf16.msra.mxu0 %v8736
    %8812 = vmatpush.bf16.msra.mxu0 %v8733
    %8813 = vmatmul.bf16.gmra.mxu0 %v8403
    %v8814 = vpop.f32.mrf.mxu0
    %v8815 = vadd.f32 %v120, %v8814
    %v8816 = vpop.f32.mrf.mxu0
    %8817 = vdwg.mxu0
    %v8818 = vld [vmem:[#allocation8 + $0x3c] sm:$0xff]
    %v8819 = vld [vmem:[#allocation8 + $0x44] sm:$0xf]
    %v8820 = vld [vmem:[#allocation8 + $0x88] sm:$0xff]
    %v8821 = vld [vmem:[#allocation8 + $0x90] sm:$0xf]
    %v8822 = vld [vmem:[#allocation8 + $0xd4] sm:$0xff]
    %v8823 = vld [vmem:[#allocation8 + $0xdc] sm:$0xf]
    %v8824 = vld [vmem:[#allocation8 + $0x120] sm:$0xff]
    %v8825 = vld [vmem:[#allocation8 + $0x128] sm:$0xf]
    %v8826 = vld [vmem:[#allocation8 + $0x16c] sm:$0xff]
    %v8827 = vld [vmem:[#allocation8 + $0x174] sm:$0xf]
    %v8828 = vld [vmem:[#allocation8 + $0x1b8] sm:$0xff]
    %v8829 = vld [vmem:[#allocation8 + $0x1c0] sm:$0xf]
    %v8830 = vld [vmem:[#allocation8 + $0x204] sm:$0xff]
    %v8831 = vld [vmem:[#allocation8 + $0x20c] sm:$0xf]
    %v8832 = vld [vmem:[#allocation8 + $0x250] sm:$0xff]
    %v8833 = vld [vmem:[#allocation8 + $0x258] sm:$0xf]
    %v8834 = vld [vmem:[#allocation8 + $0x29c] sm:$0xff]
    %v8835 = vld [vmem:[#allocation8 + $0x2a4] sm:$0xf]
    %v8836 = vld [vmem:[#allocation8 + $0x2e8] sm:$0xff]
    %v8837 = vld [vmem:[#allocation8 + $0x2f0] sm:$0xf]
    %v8838 = vld [vmem:[#allocation8 + $0x334] sm:$0xff]
    %v8839 = vld [vmem:[#allocation8 + $0x33c] sm:$0xf]
    %v8840 = vld [vmem:[#allocation8 + $0x380] sm:$0xff]
    %v8841 = vld [vmem:[#allocation8 + $0x388] sm:$0xf]
    %v8842 = vld [vmem:[#allocation8 + $0x3cc] sm:$0xff]
    %v8843 = vld [vmem:[#allocation8 + $0x3d4] sm:$0xf]
    %v8844 = vld [vmem:[#allocation8 + $0x418] sm:$0xff]
    %v8845 = vld [vmem:[#allocation8 + $0x420] sm:$0xf]
    %v8846 = vld [vmem:[#allocation8 + $0x464] sm:$0xff]
    %v8847 = vld [vmem:[#allocation8 + $0x46c] sm:$0xf]
    %v8848 = vld [vmem:[#allocation8 + $0x4b0] sm:$0xff]
    %v8849 = vld [vmem:[#allocation8 + $0x4b8] sm:$0xf]
    %v8882 = vunpack.c.l.b16 %v8818
    %v8883 = vunpack.c.h.b16 %v8818
    %v8884 = vunpack.c.l.b16 %v8819
    %v8885 = vunpack.c.l.b16 %v8820
    %v8886 = vunpack.c.h.b16 %v8820
    %v8887 = vunpack.c.l.b16 %v8821
    %v8888 = vunpack.c.l.b16 %v8822
    %v8889 = vunpack.c.h.b16 %v8822
    %v8890 = vunpack.c.l.b16 %v8823
    %v8891 = vunpack.c.l.b16 %v8824
    %v8892 = vunpack.c.h.b16 %v8824
    %v8893 = vunpack.c.l.b16 %v8825
    %v8894 = vunpack.c.l.b16 %v8826
    %v8895 = vunpack.c.h.b16 %v8826
    %v8896 = vunpack.c.l.b16 %v8827
    %v8897 = vunpack.c.l.b16 %v8828
    %v8898 = vunpack.c.h.b16 %v8828
    %v8899 = vunpack.c.l.b16 %v8829
    %v8900 = vunpack.c.l.b16 %v8830
    %v8901 = vunpack.c.h.b16 %v8830
    %v8902 = vunpack.c.l.b16 %v8831
    %v8903 = vunpack.c.l.b16 %v8832
    %v8904 = vunpack.c.h.b16 %v8832
    %v8905 = vunpack.c.l.b16 %v8833
    %v8906 = vunpack.c.l.b16 %v8834
    %v8907 = vunpack.c.h.b16 %v8834
    %v8908 = vunpack.c.l.b16 %v8835
    %v8909 = vunpack.c.l.b16 %v8836
    %v8910 = vunpack.c.h.b16 %v8836
    %v8911 = vunpack.c.l.b16 %v8837
    %v8912 = vunpack.c.l.b16 %v8838
    %v8913 = vunpack.c.h.b16 %v8838
    %v8914 = vunpack.c.l.b16 %v8839
    %v8915 = vunpack.c.l.b16 %v8840
    %v8916 = vunpack.c.h.b16 %v8840
    %v8917 = vunpack.c.l.b16 %v8841
    %v8918 = vunpack.c.l.b16 %v8842
    %v8919 = vunpack.c.h.b16 %v8842
    %v8920 = vunpack.c.l.b16 %v8843
    %v8921 = vunpack.c.l.b16 %v8844
    %v8922 = vunpack.c.h.b16 %v8844
    %v8923 = vunpack.c.l.b16 %v8845
    %v8924 = vunpack.c.l.b16 %v8846
    %v8925 = vunpack.c.h.b16 %v8846
    %v8926 = vunpack.c.l.b16 %v8847
    %v8927 = vunpack.c.l.b16 %v8848
    %v8928 = vunpack.c.h.b16 %v8848
    %v8929 = vunpack.c.l.b16 %v8849
    %v8930 = vpack.c.b16 %v8885, %v8882
    %v8931 = vpack.c.b16 %v8886, %v8883
    %v8932 = vpack.c.b16 %v8887, %v8884
    %v8933 = vpack.c.b16 %v8891, %v8888
    %v8934 = vpack.c.b16 %v8892, %v8889
    %v8935 = vpack.c.b16 %v8893, %v8890
    %v8936 = vpack.c.b16 %v8897, %v8894
    %v8937 = vpack.c.b16 %v8898, %v8895
    %v8938 = vpack.c.b16 %v8899, %v8896
    %v8939 = vpack.c.b16 %v8903, %v8900
    %v8940 = vpack.c.b16 %v8904, %v8901
    %v8941 = vpack.c.b16 %v8905, %v8902
    %v8942 = vpack.c.b16 %v8909, %v8906
    %v8943 = vpack.c.b16 %v8910, %v8907
    %v8944 = vpack.c.b16 %v8911, %v8908
    %v8945 = vpack.c.b16 %v8915, %v8912
    %v8946 = vpack.c.b16 %v8916, %v8913
    %v8947 = vpack.c.b16 %v8917, %v8914
    %v8948 = vpack.c.b16 %v8921, %v8918
    %v8949 = vpack.c.b16 %v8922, %v8919
    %v8950 = vpack.c.b16 %v8923, %v8920
    %v8951 = vpack.c.b16 %v8927, %v8924
    %v8952 = vpack.c.b16 %v8928, %v8925
    %v8953 = vpack.c.b16 %v8929, %v8926
    %8978 = vmatpush.bf16.msra.mxu0 %v8951
    %8979 = vmatpush.bf16.msra.mxu0 %v8948
    %8980 = vmatpush.bf16.msra.mxu0 %v8945
    %8981 = vmatpush.bf16.msra.mxu0 %v8942
    %8982 = vmatpush.bf16.msra.mxu0 %v8939
    %8983 = vmatpush.bf16.msra.mxu0 %v8936
    %8984 = vmatpush.bf16.msra.mxu0 %v8933
    %8985 = vmatpush.bf16.msra.mxu0 %v8930
    %8986 = vmatmul.bf16.gmra.mxu0 %v8089
    %v8987 = vpop.f32.mrf.mxu0
    %v8988 = vadd.f32 0.0, %v8987
    %v8989 = vpop.f32.mrf.mxu0
    %8990 = vdwg.mxu0
    %8991 = vmatpush.bf16.msra.mxu0 %v8952
    %8992 = vmatpush.bf16.msra.mxu0 %v8949
    %8993 = vmatpush.bf16.msra.mxu0 %v8946
    %8994 = vmatpush.bf16.msra.mxu0 %v8943
    %8995 = vmatpush.bf16.msra.mxu0 %v8940
    %8996 = vmatpush.bf16.msra.mxu0 %v8937
    %8997 = vmatpush.bf16.msra.mxu0 %v8934
    %8998 = vmatpush.bf16.msra.mxu0 %v8931
    %8999 = vmatmul.bf16.gmra.mxu0 %v8089
    %v9000 = vpop.f32.mrf.mxu0
    %v9001 = vadd.f32 0.0, %v9000
    %v9002 = vpop.f32.mrf.mxu0
    %9003 = vdwg.mxu0
    %9004 = vmatpush.bf16.msra.mxu0 %v8953
    %9005 = vmatpush.bf16.msra.mxu0 %v8950
    %9006 = vmatpush.bf16.msra.mxu0 %v8947
    %9007 = vmatpush.bf16.msra.mxu0 %v8944
    %9008 = vmatpush.bf16.msra.mxu0 %v8941
    %9009 = vmatpush.bf16.msra.mxu0 %v8938
    %9010 = vmatpush.bf16.msra.mxu0 %v8935
    %9011 = vmatpush.bf16.msra.mxu0 %v8932
    %9012 = vmatmul.bf16.gmra.mxu0 %v8089
    %v9013 = vpop.f32.mrf.mxu0
    %v9014 = vadd.f32 0.0, %v9013
    %v9015 = vpop.f32.mrf.mxu0
    %9016 = vdwg.mxu0
    %v9017 = vadd.f32 %v8789, %v8988
    %v9018 = vadd.f32 %v8802, %v9001
    %v9019 = vxor.u32 %v9017, 2147483648
    %v9020 = vxor.u32 %v9018, 2147483648
    %v9021 = vmul.f32 %v9019, 1.442695
    %v9022 = vpow.pop %v9021
    %v9023 = vmul.f32 %v9020, 1.442695
    %v9024 = vpow.pop %v9023
    %v9025 = vadd.f32 %v9022, 1.0
    %v9026 = vadd.f32 %v9024, 1.0
    %v9027 = vrcp.pop %v9025
    %v9028 = vmul.f32 %v9025, %v9027
    %v9029 = vsub.f32 1.0, %v9028
    %v9030 = vmul.f32 %v9027, %v9029
    %v9031 = vadd.f32 %v9027, %v9030
    %vm9032 = vweird.f32 %v9025
    %vm9033 = vweird.f32 %v9027
    %vm9034 = vmor %vm9032, %vm9033
    %v9035 = vsel %vm9034, %v9027, %v9031
    %v9036 = vand.u32 2147483647, %v9025
    %vm9037 = vcmp.eq.f32.partialorder %v9036, 8.507059e+37
    %v9038 = vand.u32 %v9025, 2147483648
    %v9039 = vor.u32 1.1754944e-38, %v9038
    %v9040 = vsel %vm9037, %v9039, %v9035
    %v9041 = vmul.f32 1.0, %v9040
    %v9042 = vrcp.pop %v9026
    %v9043 = vmul.f32 %v9026, %v9042
    %v9044 = vsub.f32 1.0, %v9043
    %v9045 = vmul.f32 %v9042, %v9044
    %v9046 = vadd.f32 %v9042, %v9045
    %vm9047 = vweird.f32 %v9026
    %vm9048 = vweird.f32 %v9042
    %vm9049 = vmor %vm9047, %vm9048
    %v9050 = vsel %vm9049, %v9042, %v9046
    %v9051 = vand.u32 2147483647, %v9026
    %vm9052 = vcmp.eq.f32.partialorder %v9051, 8.507059e+37
    %v9053 = vand.u32 %v9026, 2147483648
    %v9054 = vor.u32 1.1754944e-38, %v9053
    %v9055 = vsel %vm9052, %v9054, %v9050
    %v9056 = vmul.f32 1.0, %v9055
    %v9057 = vadd.f32 %v9014, %v106
    %v9058 = vmul.f32 %v9041, %v9057
    %v9059 = vadd.f32 %v8815, %v9058
    %v9060 = vtanh.pop %v9059
    %v9061 = vsub.f32 1.0, %v9056
    %v9062 = vmul.f32 %v9061, %v9060
    %v9063 = vmul.f32 %v9056, %v8072
    %v9064 = vadd.f32 %v9062, %v9063
    %v9065 = vld [vmem:[#allocation8 + $0x48] sm:$0xf]
    %v9066 = vld [vmem:[#allocation8 + $0x94] sm:$0xf]
    %v9067 = vld [vmem:[#allocation8 + $0xe0] sm:$0xf]
    %v9068 = vld [vmem:[#allocation8 + $0x12c] sm:$0xf]
    %v9069 = vld [vmem:[#allocation8 + $0x178] sm:$0xf]
    %v9070 = vld [vmem:[#allocation8 + $0x1c4] sm:$0xf]
    %v9071 = vld [vmem:[#allocation8 + $0x210] sm:$0xf]
    %v9072 = vld [vmem:[#allocation8 + $0x25c] sm:$0xf]
    %v9073 = vld [vmem:[#allocation8 + $0x2a8] sm:$0xf]
    %v9074 = vld [vmem:[#allocation8 + $0x2f4] sm:$0xf]
    %v9075 = vld [vmem:[#allocation8 + $0x340] sm:$0xf]
    %v9076 = vld [vmem:[#allocation8 + $0x38c] sm:$0xf]
    %v9077 = vld [vmem:[#allocation8 + $0x3d8] sm:$0xf]
    %v9078 = vld [vmem:[#allocation8 + $0x424] sm:$0xf]
    %v9079 = vld [vmem:[#allocation8 + $0x470] sm:$0xf]
    %v9080 = vld [vmem:[#allocation8 + $0x4bc] sm:$0xf]
    %v9081 = vpack.c.bf16 %v9064, %v9064
    %v9098 = vunpack.c.l.b16 %v9065
    %v9099 = vunpack.c.l.b16 %v9066
    %v9100 = vunpack.c.l.b16 %v9067
    %v9101 = vunpack.c.l.b16 %v9068
    %v9102 = vunpack.c.l.b16 %v9069
    %v9103 = vunpack.c.l.b16 %v9070
    %v9104 = vunpack.c.l.b16 %v9071
    %v9105 = vunpack.c.l.b16 %v9072
    %v9106 = vunpack.c.l.b16 %v9073
    %v9107 = vunpack.c.l.b16 %v9074
    %v9108 = vunpack.c.l.b16 %v9075
    %v9109 = vunpack.c.l.b16 %v9076
    %v9110 = vunpack.c.l.b16 %v9077
    %v9111 = vunpack.c.l.b16 %v9078
    %v9112 = vunpack.c.l.b16 %v9079
    %v9113 = vunpack.c.l.b16 %v9080
    %v9114 = vpack.c.b16 %v9099, %v9098
    %v9115 = vpack.c.b16 %v9101, %v9100
    %v9116 = vpack.c.b16 %v9103, %v9102
    %v9117 = vpack.c.b16 %v9105, %v9104
    %v9118 = vpack.c.b16 %v9107, %v9106
    %v9119 = vpack.c.b16 %v9109, %v9108
    %v9120 = vpack.c.b16 %v9111, %v9110
    %v9121 = vpack.c.b16 %v9113, %v9112
    %9130 = vmatpush.bf16.msra.mxu0 %v9121
    %9131 = vmatpush.bf16.msra.mxu0 %v9120
    %9132 = vmatpush.bf16.msra.mxu0 %v9119
    %9133 = vmatpush.bf16.msra.mxu0 %v9118
    %9134 = vmatpush.bf16.msra.mxu0 %v9117
    %9135 = vmatpush.bf16.msra.mxu0 %v9116
    %9136 = vmatpush.bf16.msra.mxu0 %v9115
    %9137 = vmatpush.bf16.msra.mxu0 %v9114
    %9138 = vmatmul.bf16.gmra.mxu0 %v9081
    %v9139 = vpop.f32.mrf.mxu0
    %v9140 = vadd.f32 %v126, %v9139
    %v9141 = vpop.f32.mrf.mxu0
    %9142 = vdwg.mxu0
    %v9143 = vxor.u32 %v9140, 2147483648
    %v9144 = vmul.f32 %v9143, 1.442695
    %v9145 = vpow.pop %v9144
    %v9146 = vadd.f32 %v9145, 1.0
    %v9147 = vrcp.pop %v9146
    %v9148 = vmul.f32 %v9146, %v9147
    %v9149 = vsub.f32 1.0, %v9148
    %v9150 = vmul.f32 %v9147, %v9149
    %v9151 = vadd.f32 %v9147, %v9150
    %vm9152 = vweird.f32 %v9146
    %vm9153 = vweird.f32 %v9147
    %vm9154 = vmor %vm9152, %vm9153
    %v9155 = vsel %vm9154, %v9147, %v9151
    %v9156 = vand.u32 2147483647, %v9146
    %vm9157 = vcmp.eq.f32.partialorder %v9156, 8.507059e+37
    %v9158 = vand.u32 %v9146, 2147483648
    %v9159 = vor.u32 1.1754944e-38, %v9158
    %v9160 = vsel %vm9157, %v9159, %v9155
    %v9161 = vmul.f32 1.0, %v9160
    %9162 = vst [vmem:[#allocation11 + $0x30] sm:$0xff] %v9161
    %v9163 = vld [vmem:[#allocation8 + $0x30] sm:$0xff]
    %v9164 = vld [vmem:[#allocation8 + $0x38] sm:$0xf]
    %v9165 = vld [vmem:[#allocation8 + $0x7c] sm:$0xff]
    %v9166 = vld [vmem:[#allocation8 + $0x84] sm:$0xf]
    %v9167 = vld [vmem:[#allocation8 + $0xc8] sm:$0xff]
    %v9168 = vld [vmem:[#allocation8 + $0xd0] sm:$0xf]
    %v9169 = vld [vmem:[#allocation8 + $0x114] sm:$0xff]
    %v9170 = vld [vmem:[#allocation8 + $0x11c] sm:$0xf]
    %v9171 = vld [vmem:[#allocation8 + $0x160] sm:$0xff]
    %v9172 = vld [vmem:[#allocation8 + $0x168] sm:$0xf]
    %v9173 = vld [vmem:[#allocation8 + $0x1ac] sm:$0xff]
    %v9174 = vld [vmem:[#allocation8 + $0x1b4] sm:$0xf]
    %v9175 = vld [vmem:[#allocation8 + $0x1f8] sm:$0xff]
    %v9176 = vld [vmem:[#allocation8 + $0x200] sm:$0xf]
    %v9177 = vld [vmem:[#allocation8 + $0x244] sm:$0xff]
    %v9178 = vld [vmem:[#allocation8 + $0x24c] sm:$0xf]
    %v9179 = vld [vmem:[#allocation8 + $0x290] sm:$0xff]
    %v9180 = vld [vmem:[#allocation8 + $0x298] sm:$0xf]
    %v9181 = vld [vmem:[#allocation8 + $0x2dc] sm:$0xff]
    %v9182 = vld [vmem:[#allocation8 + $0x2e4] sm:$0xf]
    %v9183 = vld [vmem:[#allocation8 + $0x328] sm:$0xff]
    %v9184 = vld [vmem:[#allocation8 + $0x330] sm:$0xf]
    %v9185 = vld [vmem:[#allocation8 + $0x374] sm:$0xff]
    %v9186 = vld [vmem:[#allocation8 + $0x37c] sm:$0xf]
    %v9187 = vld [vmem:[#allocation8 + $0x3c0] sm:$0xff]
    %v9188 = vld [vmem:[#allocation8 + $0x3c8] sm:$0xf]
    %v9189 = vld [vmem:[#allocation8 + $0x40c] sm:$0xff]
    %v9190 = vld [vmem:[#allocation8 + $0x414] sm:$0xf]
    %v9191 = vld [vmem:[#allocation8 + $0x458] sm:$0xff]
    %v9192 = vld [vmem:[#allocation8 + $0x460] sm:$0xf]
    %v9193 = vld [vmem:[#allocation8 + $0x4a4] sm:$0xff]
    %v9194 = vld [vmem:[#allocation8 + $0x4ac] sm:$0xf]
    %v9195 = vpack.c.bf16 %v8618, %v8618
    %v9228 = vunpack.c.l.b16 %v9163
    %v9229 = vunpack.c.h.b16 %v9163
    %v9230 = vunpack.c.l.b16 %v9164
    %v9231 = vunpack.c.l.b16 %v9165
    %v9232 = vunpack.c.h.b16 %v9165
    %v9233 = vunpack.c.l.b16 %v9166
    %v9234 = vunpack.c.l.b16 %v9167
    %v9235 = vunpack.c.h.b16 %v9167
    %v9236 = vunpack.c.l.b16 %v9168
    %v9237 = vunpack.c.l.b16 %v9169
    %v9238 = vunpack.c.h.b16 %v9169
    %v9239 = vunpack.c.l.b16 %v9170
    %v9240 = vunpack.c.l.b16 %v9171
    %v9241 = vunpack.c.h.b16 %v9171
    %v9242 = vunpack.c.l.b16 %v9172
    %v9243 = vunpack.c.l.b16 %v9173
    %v9244 = vunpack.c.h.b16 %v9173
    %v9245 = vunpack.c.l.b16 %v9174
    %v9246 = vunpack.c.l.b16 %v9175
    %v9247 = vunpack.c.h.b16 %v9175
    %v9248 = vunpack.c.l.b16 %v9176
    %v9249 = vunpack.c.l.b16 %v9177
    %v9250 = vunpack.c.h.b16 %v9177
    %v9251 = vunpack.c.l.b16 %v9178
    %v9252 = vunpack.c.l.b16 %v9179
    %v9253 = vunpack.c.h.b16 %v9179
    %v9254 = vunpack.c.l.b16 %v9180
    %v9255 = vunpack.c.l.b16 %v9181
    %v9256 = vunpack.c.h.b16 %v9181
    %v9257 = vunpack.c.l.b16 %v9182
    %v9258 = vunpack.c.l.b16 %v9183
    %v9259 = vunpack.c.h.b16 %v9183
    %v9260 = vunpack.c.l.b16 %v9184
    %v9261 = vunpack.c.l.b16 %v9185
    %v9262 = vunpack.c.h.b16 %v9185
    %v9263 = vunpack.c.l.b16 %v9186
    %v9264 = vunpack.c.l.b16 %v9187
    %v9265 = vunpack.c.h.b16 %v9187
    %v9266 = vunpack.c.l.b16 %v9188
    %v9267 = vunpack.c.l.b16 %v9189
    %v9268 = vunpack.c.h.b16 %v9189
    %v9269 = vunpack.c.l.b16 %v9190
    %v9270 = vunpack.c.l.b16 %v9191
    %v9271 = vunpack.c.h.b16 %v9191
    %v9272 = vunpack.c.l.b16 %v9192
    %v9273 = vunpack.c.l.b16 %v9193
    %v9274 = vunpack.c.h.b16 %v9193
    %v9275 = vunpack.c.l.b16 %v9194
    %v9276 = vpack.c.b16 %v9231, %v9228
    %v9277 = vpack.c.b16 %v9232, %v9229
    %v9278 = vpack.c.b16 %v9233, %v9230
    %v9279 = vpack.c.b16 %v9237, %v9234
    %v9280 = vpack.c.b16 %v9238, %v9235
    %v9281 = vpack.c.b16 %v9239, %v9236
    %v9282 = vpack.c.b16 %v9243, %v9240
    %v9283 = vpack.c.b16 %v9244, %v9241
    %v9284 = vpack.c.b16 %v9245, %v9242
    %v9285 = vpack.c.b16 %v9249, %v9246
    %v9286 = vpack.c.b16 %v9250, %v9247
    %v9287 = vpack.c.b16 %v9251, %v9248
    %v9288 = vpack.c.b16 %v9255, %v9252
    %v9289 = vpack.c.b16 %v9256, %v9253
    %v9290 = vpack.c.b16 %v9257, %v9254
    %v9291 = vpack.c.b16 %v9261, %v9258
    %v9292 = vpack.c.b16 %v9262, %v9259
    %v9293 = vpack.c.b16 %v9263, %v9260
    %v9294 = vpack.c.b16 %v9267, %v9264
    %v9295 = vpack.c.b16 %v9268, %v9265
    %v9296 = vpack.c.b16 %v9269, %v9266
    %v9297 = vpack.c.b16 %v9273, %v9270
    %v9298 = vpack.c.b16 %v9274, %v9271
    %v9299 = vpack.c.b16 %v9275, %v9272
    %9324 = vmatpush.bf16.msra.mxu0 %v9297
    %9325 = vmatpush.bf16.msra.mxu0 %v9294
    %9326 = vmatpush.bf16.msra.mxu0 %v9291
    %9327 = vmatpush.bf16.msra.mxu0 %v9288
    %9328 = vmatpush.bf16.msra.mxu0 %v9285
    %9329 = vmatpush.bf16.msra.mxu0 %v9282
    %9330 = vmatpush.bf16.msra.mxu0 %v9279
    %9331 = vmatpush.bf16.msra.mxu0 %v9276
    %9332 = vmatmul.bf16.gmra.mxu0 %v9195
    %v9333 = vpop.f32.mrf.mxu0
    %v9334 = vadd.f32 %v118, %v9333
    %v9335 = vpop.f32.mrf.mxu0
    %9336 = vdwg.mxu0
    %9337 = vmatpush.bf16.msra.mxu0 %v9298
    %9338 = vmatpush.bf16.msra.mxu0 %v9295
    %9339 = vmatpush.bf16.msra.mxu0 %v9292
    %9340 = vmatpush.bf16.msra.mxu0 %v9289
    %9341 = vmatpush.bf16.msra.mxu0 %v9286
    %9342 = vmatpush.bf16.msra.mxu0 %v9283
    %9343 = vmatpush.bf16.msra.mxu0 %v9280
    %9344 = vmatpush.bf16.msra.mxu0 %v9277
    %9345 = vmatmul.bf16.gmra.mxu0 %v9195
    %v9346 = vpop.f32.mrf.mxu0
    %v9347 = vadd.f32 %v119, %v9346
    %v9348 = vpop.f32.mrf.mxu0
    %9349 = vdwg.mxu0
    %9350 = vmatpush.bf16.msra.mxu0 %v9299
    %9351 = vmatpush.bf16.msra.mxu0 %v9296
    %9352 = vmatpush.bf16.msra.mxu0 %v9293
    %9353 = vmatpush.bf16.msra.mxu0 %v9290
    %9354 = vmatpush.bf16.msra.mxu0 %v9287
    %9355 = vmatpush.bf16.msra.mxu0 %v9284
    %9356 = vmatpush.bf16.msra.mxu0 %v9281
    %9357 = vmatpush.bf16.msra.mxu0 %v9278
    %9358 = vmatmul.bf16.gmra.mxu0 %v9195
    %v9359 = vpop.f32.mrf.mxu0
    %v9360 = vadd.f32 %v120, %v9359
    %v9361 = vpop.f32.mrf.mxu0
    %9362 = vdwg.mxu0
    %v9363 = vld [vmem:[#allocation8 + $0x3c] sm:$0xff]
    %v9364 = vld [vmem:[#allocation8 + $0x44] sm:$0xf]
    %v9365 = vld [vmem:[#allocation8 + $0x88] sm:$0xff]
    %v9366 = vld [vmem:[#allocation8 + $0x90] sm:$0xf]
    %v9367 = vld [vmem:[#allocation8 + $0xd4] sm:$0xff]
    %v9368 = vld [vmem:[#allocation8 + $0xdc] sm:$0xf]
    %v9369 = vld [vmem:[#allocation8 + $0x120] sm:$0xff]
    %v9370 = vld [vmem:[#allocation8 + $0x128] sm:$0xf]
    %v9371 = vld [vmem:[#allocation8 + $0x16c] sm:$0xff]
    %v9372 = vld [vmem:[#allocation8 + $0x174] sm:$0xf]
    %v9373 = vld [vmem:[#allocation8 + $0x1b8] sm:$0xff]
    %v9374 = vld [vmem:[#allocation8 + $0x1c0] sm:$0xf]
    %v9375 = vld [vmem:[#allocation8 + $0x204] sm:$0xff]
    %v9376 = vld [vmem:[#allocation8 + $0x20c] sm:$0xf]
    %v9377 = vld [vmem:[#allocation8 + $0x250] sm:$0xff]
    %v9378 = vld [vmem:[#allocation8 + $0x258] sm:$0xf]
    %v9379 = vld [vmem:[#allocation8 + $0x29c] sm:$0xff]
    %v9380 = vld [vmem:[#allocation8 + $0x2a4] sm:$0xf]
    %v9381 = vld [vmem:[#allocation8 + $0x2e8] sm:$0xff]
    %v9382 = vld [vmem:[#allocation8 + $0x2f0] sm:$0xf]
    %v9383 = vld [vmem:[#allocation8 + $0x334] sm:$0xff]
    %v9384 = vld [vmem:[#allocation8 + $0x33c] sm:$0xf]
    %v9385 = vld [vmem:[#allocation8 + $0x380] sm:$0xff]
    %v9386 = vld [vmem:[#allocation8 + $0x388] sm:$0xf]
    %v9387 = vld [vmem:[#allocation8 + $0x3cc] sm:$0xff]
    %v9388 = vld [vmem:[#allocation8 + $0x3d4] sm:$0xf]
    %v9389 = vld [vmem:[#allocation8 + $0x418] sm:$0xff]
    %v9390 = vld [vmem:[#allocation8 + $0x420] sm:$0xf]
    %v9391 = vld [vmem:[#allocation8 + $0x464] sm:$0xff]
    %v9392 = vld [vmem:[#allocation8 + $0x46c] sm:$0xf]
    %v9393 = vld [vmem:[#allocation8 + $0x4b0] sm:$0xff]
    %v9394 = vld [vmem:[#allocation8 + $0x4b8] sm:$0xf]
    %v9427 = vunpack.c.l.b16 %v9363
    %v9428 = vunpack.c.h.b16 %v9363
    %v9429 = vunpack.c.l.b16 %v9364
    %v9430 = vunpack.c.l.b16 %v9365
    %v9431 = vunpack.c.h.b16 %v9365
    %v9432 = vunpack.c.l.b16 %v9366
    %v9433 = vunpack.c.l.b16 %v9367
    %v9434 = vunpack.c.h.b16 %v9367
    %v9435 = vunpack.c.l.b16 %v9368
    %v9436 = vunpack.c.l.b16 %v9369
    %v9437 = vunpack.c.h.b16 %v9369
    %v9438 = vunpack.c.l.b16 %v9370
    %v9439 = vunpack.c.l.b16 %v9371
    %v9440 = vunpack.c.h.b16 %v9371
    %v9441 = vunpack.c.l.b16 %v9372
    %v9442 = vunpack.c.l.b16 %v9373
    %v9443 = vunpack.c.h.b16 %v9373
    %v9444 = vunpack.c.l.b16 %v9374
    %v9445 = vunpack.c.l.b16 %v9375
    %v9446 = vunpack.c.h.b16 %v9375
    %v9447 = vunpack.c.l.b16 %v9376
    %v9448 = vunpack.c.l.b16 %v9377
    %v9449 = vunpack.c.h.b16 %v9377
    %v9450 = vunpack.c.l.b16 %v9378
    %v9451 = vunpack.c.l.b16 %v9379
    %v9452 = vunpack.c.h.b16 %v9379
    %v9453 = vunpack.c.l.b16 %v9380
    %v9454 = vunpack.c.l.b16 %v9381
    %v9455 = vunpack.c.h.b16 %v9381
    %v9456 = vunpack.c.l.b16 %v9382
    %v9457 = vunpack.c.l.b16 %v9383
    %v9458 = vunpack.c.h.b16 %v9383
    %v9459 = vunpack.c.l.b16 %v9384
    %v9460 = vunpack.c.l.b16 %v9385
    %v9461 = vunpack.c.h.b16 %v9385
    %v9462 = vunpack.c.l.b16 %v9386
    %v9463 = vunpack.c.l.b16 %v9387
    %v9464 = vunpack.c.h.b16 %v9387
    %v9465 = vunpack.c.l.b16 %v9388
    %v9466 = vunpack.c.l.b16 %v9389
    %v9467 = vunpack.c.h.b16 %v9389
    %v9468 = vunpack.c.l.b16 %v9390
    %v9469 = vunpack.c.l.b16 %v9391
    %v9470 = vunpack.c.h.b16 %v9391
    %v9471 = vunpack.c.l.b16 %v9392
    %v9472 = vunpack.c.l.b16 %v9393
    %v9473 = vunpack.c.h.b16 %v9393
    %v9474 = vunpack.c.l.b16 %v9394
    %v9475 = vpack.c.b16 %v9430, %v9427
    %v9476 = vpack.c.b16 %v9431, %v9428
    %v9477 = vpack.c.b16 %v9432, %v9429
    %v9478 = vpack.c.b16 %v9436, %v9433
    %v9479 = vpack.c.b16 %v9437, %v9434
    %v9480 = vpack.c.b16 %v9438, %v9435
    %v9481 = vpack.c.b16 %v9442, %v9439
    %v9482 = vpack.c.b16 %v9443, %v9440
    %v9483 = vpack.c.b16 %v9444, %v9441
    %v9484 = vpack.c.b16 %v9448, %v9445
    %v9485 = vpack.c.b16 %v9449, %v9446
    %v9486 = vpack.c.b16 %v9450, %v9447
    %v9487 = vpack.c.b16 %v9454, %v9451
    %v9488 = vpack.c.b16 %v9455, %v9452
    %v9489 = vpack.c.b16 %v9456, %v9453
    %v9490 = vpack.c.b16 %v9460, %v9457
    %v9491 = vpack.c.b16 %v9461, %v9458
    %v9492 = vpack.c.b16 %v9462, %v9459
    %v9493 = vpack.c.b16 %v9466, %v9463
    %v9494 = vpack.c.b16 %v9467, %v9464
    %v9495 = vpack.c.b16 %v9468, %v9465
    %v9496 = vpack.c.b16 %v9472, %v9469
    %v9497 = vpack.c.b16 %v9473, %v9470
    %v9498 = vpack.c.b16 %v9474, %v9471
    %9523 = vmatpush.bf16.msra.mxu0 %v9496
    %9524 = vmatpush.bf16.msra.mxu0 %v9493
    %9525 = vmatpush.bf16.msra.mxu0 %v9490
    %9526 = vmatpush.bf16.msra.mxu0 %v9487
    %9527 = vmatpush.bf16.msra.mxu0 %v9484
    %9528 = vmatpush.bf16.msra.mxu0 %v9481
    %9529 = vmatpush.bf16.msra.mxu0 %v9478
    %9530 = vmatpush.bf16.msra.mxu0 %v9475
    %9531 = vmatmul.bf16.gmra.mxu0 %v9081
    %v9532 = vpop.f32.mrf.mxu0
    %v9533 = vadd.f32 0.0, %v9532
    %v9534 = vpop.f32.mrf.mxu0
    %9535 = vdwg.mxu0
    %9536 = vmatpush.bf16.msra.mxu0 %v9497
    %9537 = vmatpush.bf16.msra.mxu0 %v9494
    %9538 = vmatpush.bf16.msra.mxu0 %v9491
    %9539 = vmatpush.bf16.msra.mxu0 %v9488
    %9540 = vmatpush.bf16.msra.mxu0 %v9485
    %9541 = vmatpush.bf16.msra.mxu0 %v9482
    %9542 = vmatpush.bf16.msra.mxu0 %v9479
    %9543 = vmatpush.bf16.msra.mxu0 %v9476
    %9544 = vmatmul.bf16.gmra.mxu0 %v9081
    %v9545 = vpop.f32.mrf.mxu0
    %v9546 = vadd.f32 0.0, %v9545
    %v9547 = vpop.f32.mrf.mxu0
    %9548 = vdwg.mxu0
    %9549 = vmatpush.bf16.msra.mxu0 %v9498
    %9550 = vmatpush.bf16.msra.mxu0 %v9495
    %9551 = vmatpush.bf16.msra.mxu0 %v9492
    %9552 = vmatpush.bf16.msra.mxu0 %v9489
    %9553 = vmatpush.bf16.msra.mxu0 %v9486
    %9554 = vmatpush.bf16.msra.mxu0 %v9483
    %9555 = vmatpush.bf16.msra.mxu0 %v9480
    %9556 = vmatpush.bf16.msra.mxu0 %v9477
    %9557 = vmatmul.bf16.gmra.mxu0 %v9081
    %v9558 = vpop.f32.mrf.mxu0
    %v9559 = vadd.f32 0.0, %v9558
    %v9560 = vpop.f32.mrf.mxu0
    %9561 = vdwg.mxu0
    %v9562 = vadd.f32 %v9334, %v9533
    %v9563 = vadd.f32 %v9347, %v9546
    %v9564 = vxor.u32 %v9562, 2147483648
    %v9565 = vxor.u32 %v9563, 2147483648
    %v9566 = vmul.f32 %v9564, 1.442695
    %v9567 = vpow.pop %v9566
    %v9568 = vmul.f32 %v9565, 1.442695
    %v9569 = vpow.pop %v9568
    %v9570 = vadd.f32 %v9567, 1.0
    %v9571 = vadd.f32 %v9569, 1.0
    %v9572 = vrcp.pop %v9570
    %v9573 = vmul.f32 %v9570, %v9572
    %v9574 = vsub.f32 1.0, %v9573
    %v9575 = vmul.f32 %v9572, %v9574
    %v9576 = vadd.f32 %v9572, %v9575
    %vm9577 = vweird.f32 %v9570
    %vm9578 = vweird.f32 %v9572
    %vm9579 = vmor %vm9577, %vm9578
    %v9580 = vsel %vm9579, %v9572, %v9576
    %v9581 = vand.u32 2147483647, %v9570
    %vm9582 = vcmp.eq.f32.partialorder %v9581, 8.507059e+37
    %v9583 = vand.u32 %v9570, 2147483648
    %v9584 = vor.u32 1.1754944e-38, %v9583
    %v9585 = vsel %vm9582, %v9584, %v9580
    %v9586 = vmul.f32 1.0, %v9585
    %v9587 = vrcp.pop %v9571
    %v9588 = vmul.f32 %v9571, %v9587
    %v9589 = vsub.f32 1.0, %v9588
    %v9590 = vmul.f32 %v9587, %v9589
    %v9591 = vadd.f32 %v9587, %v9590
    %vm9592 = vweird.f32 %v9571
    %vm9593 = vweird.f32 %v9587
    %vm9594 = vmor %vm9592, %vm9593
    %v9595 = vsel %vm9594, %v9587, %v9591
    %v9596 = vand.u32 2147483647, %v9571
    %vm9597 = vcmp.eq.f32.partialorder %v9596, 8.507059e+37
    %v9598 = vand.u32 %v9571, 2147483648
    %v9599 = vor.u32 1.1754944e-38, %v9598
    %v9600 = vsel %vm9597, %v9599, %v9595
    %v9601 = vmul.f32 1.0, %v9600
    %v9602 = vadd.f32 %v9559, %v106
    %v9603 = vmul.f32 %v9586, %v9602
    %v9604 = vadd.f32 %v9360, %v9603
    %v9605 = vtanh.pop %v9604
    %v9606 = vsub.f32 1.0, %v9601
    %v9607 = vmul.f32 %v9606, %v9605
    %v9608 = vmul.f32 %v9601, %v9064
    %v9609 = vadd.f32 %v9607, %v9608
    %v9610 = vld [vmem:[#allocation8 + $0x48] sm:$0xf]
    %v9611 = vld [vmem:[#allocation8 + $0x94] sm:$0xf]
    %v9612 = vld [vmem:[#allocation8 + $0xe0] sm:$0xf]
    %v9613 = vld [vmem:[#allocation8 + $0x12c] sm:$0xf]
    %v9614 = vld [vmem:[#allocation8 + $0x178] sm:$0xf]
    %v9615 = vld [vmem:[#allocation8 + $0x1c4] sm:$0xf]
    %v9616 = vld [vmem:[#allocation8 + $0x210] sm:$0xf]
    %v9617 = vld [vmem:[#allocation8 + $0x25c] sm:$0xf]
    %v9618 = vld [vmem:[#allocation8 + $0x2a8] sm:$0xf]
    %v9619 = vld [vmem:[#allocation8 + $0x2f4] sm:$0xf]
    %v9620 = vld [vmem:[#allocation8 + $0x340] sm:$0xf]
    %v9621 = vld [vmem:[#allocation8 + $0x38c] sm:$0xf]
    %v9622 = vld [vmem:[#allocation8 + $0x3d8] sm:$0xf]
    %v9623 = vld [vmem:[#allocation8 + $0x424] sm:$0xf]
    %v9624 = vld [vmem:[#allocation8 + $0x470] sm:$0xf]
    %v9625 = vld [vmem:[#allocation8 + $0x4bc] sm:$0xf]
    %v9626 = vpack.c.bf16 %v9609, %v9609
    %v9643 = vunpack.c.l.b16 %v9610
    %v9644 = vunpack.c.l.b16 %v9611
    %v9645 = vunpack.c.l.b16 %v9612
    %v9646 = vunpack.c.l.b16 %v9613
    %v9647 = vunpack.c.l.b16 %v9614
    %v9648 = vunpack.c.l.b16 %v9615
    %v9649 = vunpack.c.l.b16 %v9616
    %v9650 = vunpack.c.l.b16 %v9617
    %v9651 = vunpack.c.l.b16 %v9618
    %v9652 = vunpack.c.l.b16 %v9619
    %v9653 = vunpack.c.l.b16 %v9620
    %v9654 = vunpack.c.l.b16 %v9621
    %v9655 = vunpack.c.l.b16 %v9622
    %v9656 = vunpack.c.l.b16 %v9623
    %v9657 = vunpack.c.l.b16 %v9624
    %v9658 = vunpack.c.l.b16 %v9625
    %v9659 = vpack.c.b16 %v9644, %v9643
    %v9660 = vpack.c.b16 %v9646, %v9645
    %v9661 = vpack.c.b16 %v9648, %v9647
    %v9662 = vpack.c.b16 %v9650, %v9649
    %v9663 = vpack.c.b16 %v9652, %v9651
    %v9664 = vpack.c.b16 %v9654, %v9653
    %v9665 = vpack.c.b16 %v9656, %v9655
    %v9666 = vpack.c.b16 %v9658, %v9657
    %9675 = vmatpush.bf16.msra.mxu0 %v9666
    %9676 = vmatpush.bf16.msra.mxu0 %v9665
    %9677 = vmatpush.bf16.msra.mxu0 %v9664
    %9678 = vmatpush.bf16.msra.mxu0 %v9663
    %9679 = vmatpush.bf16.msra.mxu0 %v9662
    %9680 = vmatpush.bf16.msra.mxu0 %v9661
    %9681 = vmatpush.bf16.msra.mxu0 %v9660
    %9682 = vmatpush.bf16.msra.mxu0 %v9659
    %9683 = vmatmul.bf16.gmra.mxu0 %v9626
    %v9684 = vpop.f32.mrf.mxu0
    %v9685 = vadd.f32 %v126, %v9684
    %v9686 = vpop.f32.mrf.mxu0
    %9687 = vdwg.mxu0
    %v9688 = vxor.u32 %v9685, 2147483648
    %v9689 = vmul.f32 %v9688, 1.442695
    %v9690 = vpow.pop %v9689
    %v9691 = vadd.f32 %v9690, 1.0
    %v9692 = vrcp.pop %v9691
    %v9693 = vmul.f32 %v9691, %v9692
    %v9694 = vsub.f32 1.0, %v9693
    %v9695 = vmul.f32 %v9692, %v9694
    %v9696 = vadd.f32 %v9692, %v9695
    %vm9697 = vweird.f32 %v9691
    %vm9698 = vweird.f32 %v9692
    %vm9699 = vmor %vm9697, %vm9698
    %v9700 = vsel %vm9699, %v9692, %v9696
    %v9701 = vand.u32 2147483647, %v9691
    %vm9702 = vcmp.eq.f32.partialorder %v9701, 8.507059e+37
    %v9703 = vand.u32 %v9691, 2147483648
    %v9704 = vor.u32 1.1754944e-38, %v9703
    %v9705 = vsel %vm9702, %v9704, %v9700
    %v9706 = vmul.f32 1.0, %v9705
    %9707 = vst [vmem:[#allocation11 + $0x38] sm:$0xff] %v9706
    %9708 = vst [vmem:[#allocation12] sm:$0xff] %v7179
    %9709 = vst [vmem:[#allocation12 + $0x8] sm:$0xff] %v8618
    %9710 = vst [vmem:[#allocation12 + $0x10] sm:$0xff] %v9609
    // Predicated region
    $region42: #{tpu_custom_call.1} parent=1 // pred_check
      _
    $region43: #{tpu_custom_call.1} parent=1 // pred_check_branch
      %9712 = sbr.rel (0) target = $region45
    $region44: #{tpu_custom_call.1} parent=1 // pred_region
      %9714 = vsyncadd [#allocation4], 0
      %s9716 = sshll.u32 [#allocation11], 4
      %s9717 = int_to_ptr.vmem [resolvable:$true] %s9716
      %s9718 = sshll.u32 %s5, 4
      %s9719 = int_to_ptr.hbm [resolvable:$true] %s9718
      %9721 = dma.vmem_to_hbm [thread:$0]  %s9717, 1024, %s9719, [#allocation4]
    $region45: #{tpu_custom_call.1} parent=1 // pred_fallthru
      _
    // Predicated region
    $region46: #{tpu_custom_call.1} parent=1 // pred_check
      _
    $region47: #{tpu_custom_call.1} parent=1 // pred_check_branch
      %9723 = sbr.rel (0) target = $region49
    $region48: #{tpu_custom_call.1} parent=1 // pred_region
      %9725 = vsyncadd [#allocation13], 0
      %s9727 = sshll.u32 [#allocation12], 4
      %s9728 = int_to_ptr.vmem [resolvable:$true] %s9727
      %s9729 = sshll.u32 %s6, 4
      %s9730 = int_to_ptr.hbm [resolvable:$true] %s9729
      %9732 = dma.vmem_to_hbm [thread:$0]  %s9728, 384, %s9730, [#allocation13]
    $region49: #{tpu_custom_call.1} parent=1 // pred_fallthru
      _
    // Predicated region
    $region50: #{tpu_custom_call.1} parent=1 // pred_check
      _
    $region51: #{tpu_custom_call.1} parent=1 // pred_check_branch
      %9734 = sbr.rel (0) target = $region53
    $region52: #{tpu_custom_call.1} parent=1 // pred_region
      %9736 = dma.done [#allocation4], 1024
    $region53: #{tpu_custom_call.1} parent=1 // pred_fallthru
      _
    // Predicated region
    $region54: #{tpu_custom_call.1} parent=1 // pred_check
      _
    $region55: #{tpu_custom_call.1} parent=1 // pred_check_branch
      %9738 = sbr.rel (0) target = $region57
    $region56: #{tpu_custom_call.1} parent=1 // pred_region
      %9740 = dma.done [#allocation13], 384
    $region57: #{tpu_custom_call.1} parent=1 // pred_fallthru
      _
    %9741 = vsyncpa [#allocation3], 1
    %9742 = vsyncpa [#allocation6], 1
    %9743 = vsyncpa [#allocation9], 1
    %9744 = vsyncpa [#allocation4], 1
    %9745 = vsyncpa [#allocation13], 1

</llo_original>
